<compile_context>
chip_gen: v6e
topology: v6e:2x2x1
jax: 0.10.0
libtpu: 0.0.40
codegen_flags: <defaults>
</compile_context>

<pallas_src>
import functools

import numpy as np
import jax
import jax.numpy as jnp
from jax.experimental import pallas as pl
from jax.experimental.pallas import tpu as pltpu


IN_CHANNELS = 3
ENC_CHANNELS = (16, 32, 32)   # synthetic encoder stages (each + 2x2 avg-pool -> stride 8)
PSP_BINS = (1, 2, 3, 6)       # PSP pyramid pooling bins (as in smp PSPNet)
BOTTLENECK_DIM = 16           # decoder.conv[0].out_channels (synthetic, small)
NUM_CLASSES = 5               # args.num_classes_tr


# --------------------- host-side interpolation matrices ---------------------

def adaptive_avg_pool_matrix(size_in, size_out):
    """PyTorch adaptive_avg_pool (general, non-divisible) as a 1-D linear map."""
    m = np.zeros((size_out, size_in), np.float32)
    for o in range(size_out):
        s = (o * size_in) // size_out
        e = ((o + 1) * size_in + size_out - 1) // size_out
        m[o, s:e] = 1.0 / (e - s)
    return m


def bilinear_matrix(size_in, size_out):
    """F.interpolate(mode='bilinear', align_corners=True) as a 1-D linear map."""
    m = np.zeros((size_out, size_in), np.float32)
    if size_in == 1:
        m[:, 0] = 1.0
        return m
    if size_out == 1:
        m[0, 0] = 1.0
        return m
    scale = (size_in - 1) / (size_out - 1)
    for o in range(size_out):
        src = o * scale
        i0 = min(int(np.floor(src)), size_in - 1)
        i1 = min(i0 + 1, size_in - 1)
        w1 = src - i0
        m[o, i0] += 1.0 - w1
        m[o, i1] += w1
    return m


def _kron_resample(ah, aw):
    """K such that y = x @ K resamples (H,W) planes flattened as h*W + w."""
    return jnp.asarray(np.kron(ah.T, aw.T), dtype=jnp.bfloat16)


@functools.lru_cache(maxsize=None)
def _resample_constants(H, W):
    """Hoisted, cached interpolation matrices for a given input resolution."""
    hf, wf = H // 8, W // 8
    c = {}
    h, w = H, W
    for i in range(len(ENC_CHANNELS)):
        c[f'down{i}'] = _kron_resample(adaptive_avg_pool_matrix(h, h // 2),
                                       adaptive_avg_pool_matrix(w, w // 2))
        h, w = h // 2, w // 2
    for b in PSP_BINS[1:]:
        c[f'pool{b}'] = _kron_resample(adaptive_avg_pool_matrix(hf, b),
                                       adaptive_avg_pool_matrix(wf, b))
        c[f'up{b}'] = _kron_resample(bilinear_matrix(b, hf),
                                     bilinear_matrix(b, wf))
    c['up_final'] = _kron_resample(bilinear_matrix(hf, H),
                                   bilinear_matrix(wf, W))
    return c


# ------------------------------ fused kernel --------------------------------

def _pspnet_kernel(x_ref,
                   we1_ref, be1_ref, kd0_ref,
                   we2_ref, be2_ref, kd1_ref,
                   we3_ref, be3_ref, kd2_ref,
                   wp1_ref, bp1_ref,
                   wp2_ref, bp2_ref, kp2_ref, ku2_ref,
                   wp3_ref, bp3_ref, kp3_ref, ku3_ref,
                   wp6_ref, bp6_ref, kp6_ref, ku6_ref,
                   wdf_ref, wd1_ref, wd2_ref, wd3_ref, wd6_ref, bd_ref,
                   wc_ref, bc_ref, kfin_ref,
                   o_ref):
    """One batch element per grid step; everything stays in VMEM."""
    f32, bf16 = jnp.float32, jnp.bfloat16

    def mm(a, b):
        # bf16 operands on the MXU, f32 accumulation.
        return jnp.dot(a.astype(bf16), b.astype(bf16), preferred_element_type=f32)

    # ---- encoder (synthetic): 1x1 conv + ReLU + 2x2 avg-pool, three stages ----
    # TODO(synk): the pretrained smp ResNet encoder (7x7/3x3 convs, BatchNorm,
    # residuals) is replaced by synthetic 1x1-conv + 2x2 avg-pool stages; the
    # output stride (8) and the rest of the PSPNet forward are preserved.
    x = x_ref[...]                                     # (Cin, H*W) f32
    w1 = we1_ref[...]                                  # (C1, Cin)  f32
    # Cin=3 is too small for the MXU -> VPU weighted sum of channel planes.
    acc = w1[:, 0:1] * x[0:1, :]
    for ci in range(1, x.shape[0]):
        acc = acc + w1[:, ci:ci + 1] * x[ci:ci + 1, :]
    a = jnp.maximum(acc + be1_ref[...], 0.0)
    a = mm(a, kd0_ref[...])                            # 2x2 avg-pool

    a = jnp.maximum(mm(we2_ref[...], a) + be2_ref[...], 0.0)
    a = mm(a, kd1_ref[...])

    a = jnp.maximum(mm(we3_ref[...], a) + be3_ref[...], 0.0)
    feat = mm(a, kd2_ref[...])                         # (C_enc, S3) stride-8 features

    # ---- PSP branches; channel concat folded into the decoder conv as a sum
    #      of per-branch partial matmuls (mathematically identical).
    # bin 1: global average pool = XLU lane reduction; bilinear upsample of a
    # 1x1 map is a broadcast, and 1x1 conv / ReLU commute with it.
    p1 = jnp.broadcast_to(jnp.mean(feat, axis=1, keepdims=True), feat.shape)
    p1 = jnp.maximum(mm(wp1_ref[...], p1) + bp1_ref[...], 0.0)

    d = mm(wdf_ref[...], feat) + mm(wd1_ref[...], p1)
    for wp, bp, kp, ku, wdb in (
            (wp2_ref, bp2_ref, kp2_ref, ku2_ref, wd2_ref),
            (wp3_ref, bp3_ref, kp3_ref, ku3_ref, wd3_ref),
            (wp6_ref, bp6_ref, kp6_ref, ku6_ref, wd6_ref)):
        p = mm(feat, kp[...])                          # adaptive pool -> bin x bin
        p = jnp.maximum(mm(wp[...], p) + bp[...], 0.0) # 1x1 conv + ReLU
        p = mm(p, ku[...])                             # bilinear up -> hf x wf
        d = d + mm(wdb[...], p)
    d = jnp.maximum(d + bd_ref[...], 0.0)              # bottleneck (seg head = Identity)

    # ---- classifier 1x1 conv + bilinear upsample (align_corners=True) ----
    logits = mm(wc_ref[...], d) + bc_ref[...]          # (num_classes, S3)
    o_ref[...] = mm(logits, kfin_ref[...])             # (num_classes, H*W), lane-dense


# ------------------------------ model wrapper --------------------------------

def init_params(key):
    def conv_p(k, cin, cout):
        k1, k2 = jax.random.split(k)
        w = jax.random.normal(k1, (cout, cin), jnp.float32) / np.sqrt(cin)
        b = 0.01 * jax.random.normal(k2, (cout, 1), jnp.float32)
        return w, b

    keys = jax.random.split(key, len(ENC_CHANNELS) + len(PSP_BINS) + 2)
    params = {}
    enc, cin = [], IN_CHANNELS
    for i, cout in enumerate(ENC_CHANNELS):
        enc.append(conv_p(keys[i], cin, cout))
        cin = cout
    params['encoder'] = enc
    c_enc = ENC_CHANNELS[-1]
    c_branch = c_enc // len(PSP_BINS)
    params['psp'] = [conv_p(keys[len(ENC_CHANNELS) + i], c_enc, c_branch)
                     for i in range(len(PSP_BINS))]
    params['decoder'] = conv_p(keys[-2], c_enc + len(PSP_BINS) * c_branch,
                               BOTTLENECK_DIM)
    params['classifier'] = conv_p(keys[-1], BOTTLENECK_DIM, NUM_CLASSES)
    return params


def pspnet_forward(x_nchw, params):
    N, C, H, W = x_nchw.shape
    assert C == IN_CHANNELS
    assert H % 8 == 0 and W % 8 == 0
    S0 = H * W
    cst = _resample_constants(H, W)

    def bf(a):
        return a.astype(jnp.bfloat16)

    (we1, be1), (we2, be2), (we3, be3) = params['encoder']
    wd, bd = params['decoder']
    wc, bc = params['classifier']
    c_enc = ENC_CHANNELS[-1]
    cb = c_enc // len(PSP_BINS)
    # Fold the channel concat into the decoder conv: split its weight per branch.
    wdf = wd[:, :c_enc]
    wdb = [wd[:, c_enc + i * cb: c_enc + (i + 1) * cb]
           for i in range(len(PSP_BINS))]
    (wp1, bp1), (wp2, bp2), (wp3, bp3), (wp6, bp6) = params['psp']

    x3 = x_nchw.reshape(N, C, S0)                      # NCHW -> (N, C, H*W), no transpose
    inputs = [
        x3,
        we1, be1, cst['down0'],
        bf(we2), be2, cst['down1'],
        bf(we3), be3, cst['down2'],
        bf(wp1), bp1,
        bf(wp2), bp2, cst['pool2'], cst['up2'],
        bf(wp3), bp3, cst['pool3'], cst['up3'],
        bf(wp6), bp6, cst['pool6'], cst['up6'],
        bf(wdf), bf(wdb[0]), bf(wdb[1]), bf(wdb[2]), bf(wdb[3]), bd,
        bf(wc), bc, cst['up_final'],
    ]

    def replicated(arr):
        blk = (0,) * arr.ndim
        return pl.BlockSpec(arr.shape, lambda n: blk)  # same block every step -> stays resident

    in_specs = [pl.BlockSpec((None, C, S0), lambda n: (n, 0, 0))]
    in_specs += [replicated(a) for a in inputs[1:]]

    out = pl.pallas_call(
        _pspnet_kernel,
        out_shape=jax.ShapeDtypeStruct((N, NUM_CLASSES, S0), jnp.float32),
        grid=(N,),
        in_specs=in_specs,
        out_specs=pl.BlockSpec((None, NUM_CLASSES, S0), lambda n: (n, 0, 0)),
        compiler_params=pltpu.CompilerParams(
            dimension_semantics=("parallel",),          # v7x: shard batch over both TCs
            vmem_limit_bytes=32 * 1024 * 1024),
    )(*inputs)
    return out.reshape(N, NUM_CLASSES, H, W)            # (N, classes, H, W) NCHW


# ----------------------------------- main ------------------------------------

if __name__ == "__main__":
    key = jax.random.PRNGKey(0)
    kx, kp = jax.random.split(key)
    x = jax.random.normal(kx, (2, IN_CHANNELS, 48, 48), jnp.float32)
    params = init_params(kp)

    fwd = jax.jit(pspnet_forward)
    out = jax.block_until_ready(fwd(x, params))
    assert out.shape == (2, NUM_CLASSES, 48, 48), out.shape
    assert bool(jnp.all(jnp.isfinite(out)))
    print("KERNEL_OK")
</pallas_src>

<mosaic_0001>
module attributes {stable_mosaic.version = 11 : i64} {
  func.func @_pspnet_kernel(%arg0: i32, %arg1: memref<1x3x2304xf32, #tpu.memory_space<vmem>>, %arg2: memref<16x3xf32, #tpu.memory_space<vmem>>, %arg3: memref<16x1xf32, #tpu.memory_space<vmem>>, %arg4: memref<2304x576xbf16, #tpu.memory_space<vmem>>, %arg5: memref<32x16xbf16, #tpu.memory_space<vmem>>, %arg6: memref<32x1xf32, #tpu.memory_space<vmem>>, %arg7: memref<576x144xbf16, #tpu.memory_space<vmem>>, %arg8: memref<32x32xbf16, #tpu.memory_space<vmem>>, %arg9: memref<32x1xf32, #tpu.memory_space<vmem>>, %arg10: memref<144x36xbf16, #tpu.memory_space<vmem>>, %arg11: memref<8x32xbf16, #tpu.memory_space<vmem>>, %arg12: memref<8x1xf32, #tpu.memory_space<vmem>>, %arg13: memref<8x32xbf16, #tpu.memory_space<vmem>>, %arg14: memref<8x1xf32, #tpu.memory_space<vmem>>, %arg15: memref<36x4xbf16, #tpu.memory_space<vmem>>, %arg16: memref<4x36xbf16, #tpu.memory_space<vmem>>, %arg17: memref<8x32xbf16, #tpu.memory_space<vmem>>, %arg18: memref<8x1xf32, #tpu.memory_space<vmem>>, %arg19: memref<36x9xbf16, #tpu.memory_space<vmem>>, %arg20: memref<9x36xbf16, #tpu.memory_space<vmem>>, %arg21: memref<8x32xbf16, #tpu.memory_space<vmem>>, %arg22: memref<8x1xf32, #tpu.memory_space<vmem>>, %arg23: memref<36x36xbf16, #tpu.memory_space<vmem>>, %arg24: memref<36x36xbf16, #tpu.memory_space<vmem>>, %arg25: memref<16x32xbf16, #tpu.memory_space<vmem>>, %arg26: memref<16x8xbf16, #tpu.memory_space<vmem>>, %arg27: memref<16x8xbf16, #tpu.memory_space<vmem>>, %arg28: memref<16x8xbf16, #tpu.memory_space<vmem>>, %arg29: memref<16x8xbf16, #tpu.memory_space<vmem>>, %arg30: memref<16x1xf32, #tpu.memory_space<vmem>>, %arg31: memref<5x16xbf16, #tpu.memory_space<vmem>>, %arg32: memref<5x1xf32, #tpu.memory_space<vmem>>, %arg33: memref<36x2304xbf16, #tpu.memory_space<vmem>>, %arg34: memref<1x5x2304xf32, #tpu.memory_space<vmem>>) attributes {dimension_semantics = [#tpu.dimension_semantics<parallel>], iteration_bounds = array<i64: 2>, scalar_prefetch = 0 : i64, scratch_operands = 0 : i64, tpu.core_type = #tpu.core_type<tc>, window_params = [{transform_indices = @transform_0, window_bounds = array<i64: 1, 3, 2304>}, {pipeline_mode = #tpu.pipeline_mode<synchronous>, transform_indices = @transform_1, window_bounds = array<i64: 16, 3>}, {pipeline_mode = #tpu.pipeline_mode<synchronous>, transform_indices = @transform_2, window_bounds = array<i64: 16, 1>}, {pipeline_mode = #tpu.pipeline_mode<synchronous>, transform_indices = @transform_3, window_bounds = array<i64: 2304, 576>}, {pipeline_mode = #tpu.pipeline_mode<synchronous>, transform_indices = @transform_4, window_bounds = array<i64: 32, 16>}, {pipeline_mode = #tpu.pipeline_mode<synchronous>, transform_indices = @transform_5, window_bounds = array<i64: 32, 1>}, {pipeline_mode = #tpu.pipeline_mode<synchronous>, transform_indices = @transform_6, window_bounds = array<i64: 576, 144>}, {pipeline_mode = #tpu.pipeline_mode<synchronous>, transform_indices = @transform_7, window_bounds = array<i64: 32, 32>}, {pipeline_mode = #tpu.pipeline_mode<synchronous>, transform_indices = @transform_8, window_bounds = array<i64: 32, 1>}, {pipeline_mode = #tpu.pipeline_mode<synchronous>, transform_indices = @transform_9, window_bounds = array<i64: 144, 36>}, {pipeline_mode = #tpu.pipeline_mode<synchronous>, transform_indices = @transform_10, window_bounds = array<i64: 8, 32>}, {pipeline_mode = #tpu.pipeline_mode<synchronous>, transform_indices = @transform_11, window_bounds = array<i64: 8, 1>}, {pipeline_mode = #tpu.pipeline_mode<synchronous>, transform_indices = @transform_12, window_bounds = array<i64: 8, 32>}, {pipeline_mode = #tpu.pipeline_mode<synchronous>, transform_indices = @transform_13, window_bounds = array<i64: 8, 1>}, {pipeline_mode = #tpu.pipeline_mode<synchronous>, transform_indices = @transform_14, window_bounds = array<i64: 36, 4>}, {pipeline_mode = #tpu.pipeline_mode<synchronous>, transform_indices = @transform_15, window_bounds = array<i64: 4, 36>}, {pipeline_mode = #tpu.pipeline_mode<synchronous>, transform_indices = @transform_16, window_bounds = array<i64: 8, 32>}, {pipeline_mode = #tpu.pipeline_mode<synchronous>, transform_indices = @transform_17, window_bounds = array<i64: 8, 1>}, {pipeline_mode = #tpu.pipeline_mode<synchronous>, transform_indices = @transform_18, window_bounds = array<i64: 36, 9>}, {pipeline_mode = #tpu.pipeline_mode<synchronous>, transform_indices = @transform_19, window_bounds = array<i64: 9, 36>}, {pipeline_mode = #tpu.pipeline_mode<synchronous>, transform_indices = @transform_20, window_bounds = array<i64: 8, 32>}, {pipeline_mode = #tpu.pipeline_mode<synchronous>, transform_indices = @transform_21, window_bounds = array<i64: 8, 1>}, {pipeline_mode = #tpu.pipeline_mode<synchronous>, transform_indices = @transform_22, window_bounds = array<i64: 36, 36>}, {pipeline_mode = #tpu.pipeline_mode<synchronous>, transform_indices = @transform_23, window_bounds = array<i64: 36, 36>}, {pipeline_mode = #tpu.pipeline_mode<synchronous>, transform_indices = @transform_24, window_bounds = array<i64: 16, 32>}, {pipeline_mode = #tpu.pipeline_mode<synchronous>, transform_indices = @transform_25, window_bounds = array<i64: 16, 8>}, {pipeline_mode = #tpu.pipeline_mode<synchronous>, transform_indices = @transform_26, window_bounds = array<i64: 16, 8>}, {pipeline_mode = #tpu.pipeline_mode<synchronous>, transform_indices = @transform_27, window_bounds = array<i64: 16, 8>}, {pipeline_mode = #tpu.pipeline_mode<synchronous>, transform_indices = @transform_28, window_bounds = array<i64: 16, 8>}, {pipeline_mode = #tpu.pipeline_mode<synchronous>, transform_indices = @transform_29, window_bounds = array<i64: 16, 1>}, {pipeline_mode = #tpu.pipeline_mode<synchronous>, transform_indices = @transform_30, window_bounds = array<i64: 5, 16>}, {pipeline_mode = #tpu.pipeline_mode<synchronous>, transform_indices = @transform_31, window_bounds = array<i64: 5, 1>}, {pipeline_mode = #tpu.pipeline_mode<synchronous>, transform_indices = @transform_32, window_bounds = array<i64: 36, 2304>}, {transform_indices = @transform_33, window_bounds = array<i64: 1, 5, 2304>}]} {
    %c0 = arith.constant 0 : index
    %c0_0 = arith.constant 0 : index
    %c0_1 = arith.constant 0 : index
    %0 = vector.load %arg1[%c0, %c0_0, %c0_1] : memref<1x3x2304xf32, #tpu.memory_space<vmem>>, vector<1x3x2304xf32>
    %1 = vector.shape_cast %0 : vector<1x3x2304xf32> to vector<3x2304xf32>
    %c0_2 = arith.constant 0 : index
    %c0_3 = arith.constant 0 : index
    %2 = vector.load %arg2[%c0_2, %c0_3] : memref<16x3xf32, #tpu.memory_space<vmem>>, vector<16x3xf32>
    %3 = vector.extract_strided_slice %2 {offsets = [0, 0], sizes = [16, 1], strides = [1, 1]} : vector<16x3xf32> to vector<16x1xf32>
    %4 = vector.extract_strided_slice %1 {offsets = [0, 0], sizes = [1, 2304], strides = [1, 1]} : vector<3x2304xf32> to vector<1x2304xf32>
    %5 = vector.broadcast %3 : vector<16x1xf32> to vector<16x2304xf32>
    %6 = vector.broadcast %4 : vector<1x2304xf32> to vector<16x2304xf32>
    %7 = arith.mulf %5, %6 : vector<16x2304xf32>
    %8 = vector.extract_strided_slice %2 {offsets = [0, 1], sizes = [16, 1], strides = [1, 1]} : vector<16x3xf32> to vector<16x1xf32>
    %9 = vector.extract_strided_slice %1 {offsets = [1, 0], sizes = [1, 2304], strides = [1, 1]} : vector<3x2304xf32> to vector<1x2304xf32>
    %10 = vector.broadcast %8 : vector<16x1xf32> to vector<16x2304xf32>
    %11 = vector.broadcast %9 : vector<1x2304xf32> to vector<16x2304xf32>
    %12 = arith.mulf %10, %11 : vector<16x2304xf32>
    %13 = arith.addf %7, %12 : vector<16x2304xf32>
    %14 = vector.extract_strided_slice %2 {offsets = [0, 2], sizes = [16, 1], strides = [1, 1]} : vector<16x3xf32> to vector<16x1xf32>
    %15 = vector.extract_strided_slice %1 {offsets = [2, 0], sizes = [1, 2304], strides = [1, 1]} : vector<3x2304xf32> to vector<1x2304xf32>
    %16 = vector.broadcast %14 : vector<16x1xf32> to vector<16x2304xf32>
    %17 = vector.broadcast %15 : vector<1x2304xf32> to vector<16x2304xf32>
    %18 = arith.mulf %16, %17 : vector<16x2304xf32>
    %19 = arith.addf %13, %18 : vector<16x2304xf32>
    %c0_4 = arith.constant 0 : index
    %c0_5 = arith.constant 0 : index
    %20 = vector.load %arg3[%c0_4, %c0_5] : memref<16x1xf32, #tpu.memory_space<vmem>>, vector<16x1xf32>
    %21 = vector.broadcast %20 : vector<16x1xf32> to vector<16x2304xf32>
    %22 = arith.addf %19, %21 : vector<16x2304xf32>
    %cst = arith.constant 0.000000e+00 : f32
    %23 = vector.broadcast %cst : f32 to vector<16x2304xf32>
    %24 = arith.maximumf %22, %23 : vector<16x2304xf32>
    %c0_6 = arith.constant 0 : index
    %c0_7 = arith.constant 0 : index
    %25 = vector.load %arg4[%c0_6, %c0_7] : memref<2304x576xbf16, #tpu.memory_space<vmem>>, vector<2304x576xbf16>
    %26 = arith.truncf %24 : vector<16x2304xf32> to vector<16x2304xbf16>
    %cst_8 = arith.constant dense<0.000000e+00> : vector<16x576xf32>
    %27 = tpu.matmul %26, %25, %cst_8 {dimension_numbers = #tpu.dot_dimension_numbers<[1], [0], [0], [1], [0, 0, 1, 1], [], []>} : vector<16x2304xbf16>, vector<2304x576xbf16>, vector<16x576xf32> -> vector<16x576xf32>
    %c0_9 = arith.constant 0 : index
    %c0_10 = arith.constant 0 : index
    %28 = vector.load %arg5[%c0_9, %c0_10] : memref<32x16xbf16, #tpu.memory_space<vmem>>, vector<32x16xbf16>
    %29 = arith.truncf %27 : vector<16x576xf32> to vector<16x576xbf16>
    %cst_11 = arith.constant dense<0.000000e+00> : vector<32x576xf32>
    %30 = tpu.matmul %28, %29, %cst_11 {dimension_numbers = #tpu.dot_dimension_numbers<[1], [0], [0], [1], [0, 0, 1, 1], [], []>} : vector<32x16xbf16>, vector<16x576xbf16>, vector<32x576xf32> -> vector<32x576xf32>
    %c0_12 = arith.constant 0 : index
    %c0_13 = arith.constant 0 : index
    %31 = vector.load %arg6[%c0_12, %c0_13] : memref<32x1xf32, #tpu.memory_space<vmem>>, vector<32x1xf32>
    %32 = vector.broadcast %31 : vector<32x1xf32> to vector<32x576xf32>
    %33 = arith.addf %30, %32 : vector<32x576xf32>
    %cst_14 = arith.constant 0.000000e+00 : f32
    %34 = vector.broadcast %cst_14 : f32 to vector<32x576xf32>
    %35 = arith.maximumf %33, %34 : vector<32x576xf32>
    %c0_15 = arith.constant 0 : index
    %c0_16 = arith.constant 0 : index
    %36 = vector.load %arg7[%c0_15, %c0_16] : memref<576x144xbf16, #tpu.memory_space<vmem>>, vector<576x144xbf16>
    %37 = arith.truncf %35 : vector<32x576xf32> to vector<32x576xbf16>
    %cst_17 = arith.constant dense<0.000000e+00> : vector<32x144xf32>
    %38 = tpu.matmul %37, %36, %cst_17 {dimension_numbers = #tpu.dot_dimension_numbers<[1], [0], [0], [1], [0, 0, 1, 1], [], []>} : vector<32x576xbf16>, vector<576x144xbf16>, vector<32x144xf32> -> vector<32x144xf32>
    %c0_18 = arith.constant 0 : index
    %c0_19 = arith.constant 0 : index
    %39 = vector.load %arg8[%c0_18, %c0_19] : memref<32x32xbf16, #tpu.memory_space<vmem>>, vector<32x32xbf16>
    %40 = arith.truncf %38 : vector<32x144xf32> to vector<32x144xbf16>
    %cst_20 = arith.constant dense<0.000000e+00> : vector<32x144xf32>
    %41 = tpu.matmul %39, %40, %cst_20 {dimension_numbers = #tpu.dot_dimension_numbers<[1], [0], [0], [1], [0, 0, 1, 1], [], []>} : vector<32x32xbf16>, vector<32x144xbf16>, vector<32x144xf32> -> vector<32x144xf32>
    %c0_21 = arith.constant 0 : index
    %c0_22 = arith.constant 0 : index
    %42 = vector.load %arg9[%c0_21, %c0_22] : memref<32x1xf32, #tpu.memory_space<vmem>>, vector<32x1xf32>
    %43 = vector.broadcast %42 : vector<32x1xf32> to vector<32x144xf32>
    %44 = arith.addf %41, %43 : vector<32x144xf32>
    %cst_23 = arith.constant 0.000000e+00 : f32
    %45 = vector.broadcast %cst_23 : f32 to vector<32x144xf32>
    %46 = arith.maximumf %44, %45 : vector<32x144xf32>
    %c0_24 = arith.constant 0 : index
    %c0_25 = arith.constant 0 : index
    %47 = vector.load %arg10[%c0_24, %c0_25] : memref<144x36xbf16, #tpu.memory_space<vmem>>, vector<144x36xbf16>
    %48 = arith.truncf %46 : vector<32x144xf32> to vector<32x144xbf16>
    %cst_26 = arith.constant dense<0.000000e+00> : vector<32x36xf32>
    %49 = tpu.matmul %48, %47, %cst_26 {dimension_numbers = #tpu.dot_dimension_numbers<[1], [0], [0], [1], [0, 0, 1, 1], [], []>} : vector<32x144xbf16>, vector<144x36xbf16>, vector<32x36xf32> -> vector<32x36xf32>
    %cst_27 = arith.constant dense<0.000000e+00> : vector<32xf32>
    %50 = vector.multi_reduction <add>, %49, %cst_27 [1] : vector<32x36xf32> to vector<32xf32>
    %51 = vector.shape_cast %50 : vector<32xf32> to vector<32x1xf32>
    %cst_28 = arith.constant 3.600000e+01 : f32
    %52 = vector.broadcast %cst_28 : f32 to vector<32x1xf32>
    %53 = arith.divf %51, %52 : vector<32x1xf32>
    %54 = vector.shape_cast %53 : vector<32x1xf32> to vector<32x1xf32>
    %55 = vector.broadcast %54 : vector<32x1xf32> to vector<32x36xf32>
    %c0_29 = arith.constant 0 : index
    %c0_30 = arith.constant 0 : index
    %56 = vector.load %arg11[%c0_29, %c0_30] : memref<8x32xbf16, #tpu.memory_space<vmem>>, vector<8x32xbf16>
    %57 = arith.truncf %55 : vector<32x36xf32> to vector<32x36xbf16>
    %cst_31 = arith.constant dense<0.000000e+00> : vector<8x36xf32>
    %58 = tpu.matmul %56, %57, %cst_31 {dimension_numbers = #tpu.dot_dimension_numbers<[1], [0], [0], [1], [0, 0, 1, 1], [], []>} : vector<8x32xbf16>, vector<32x36xbf16>, vector<8x36xf32> -> vector<8x36xf32>
    %c0_32 = arith.constant 0 : index
    %c0_33 = arith.constant 0 : index
    %59 = vector.load %arg12[%c0_32, %c0_33] : memref<8x1xf32, #tpu.memory_space<vmem>>, vector<8x1xf32>
    %60 = vector.broadcast %59 : vector<8x1xf32> to vector<8x36xf32>
    %61 = arith.addf %58, %60 : vector<8x36xf32>
    %cst_34 = arith.constant 0.000000e+00 : f32
    %62 = vector.broadcast %cst_34 : f32 to vector<8x36xf32>
    %63 = arith.maximumf %61, %62 : vector<8x36xf32>
    %c0_35 = arith.constant 0 : index
    %c0_36 = arith.constant 0 : index
    %64 = vector.load %arg25[%c0_35, %c0_36] : memref<16x32xbf16, #tpu.memory_space<vmem>>, vector<16x32xbf16>
    %65 = arith.truncf %49 : vector<32x36xf32> to vector<32x36xbf16>
    %cst_37 = arith.constant dense<0.000000e+00> : vector<16x36xf32>
    %66 = tpu.matmul %64, %65, %cst_37 {dimension_numbers = #tpu.dot_dimension_numbers<[1], [0], [0], [1], [0, 0, 1, 1], [], []>} : vector<16x32xbf16>, vector<32x36xbf16>, vector<16x36xf32> -> vector<16x36xf32>
    %c0_38 = arith.constant 0 : index
    %c0_39 = arith.constant 0 : index
    %67 = vector.load %arg26[%c0_38, %c0_39] : memref<16x8xbf16, #tpu.memory_space<vmem>>, vector<16x8xbf16>
    %68 = arith.truncf %63 : vector<8x36xf32> to vector<8x36xbf16>
    %cst_40 = arith.constant dense<0.000000e+00> : vector<16x36xf32>
    %69 = tpu.matmul %67, %68, %cst_40 {dimension_numbers = #tpu.dot_dimension_numbers<[1], [0], [0], [1], [0, 0, 1, 1], [], []>} : vector<16x8xbf16>, vector<8x36xbf16>, vector<16x36xf32> -> vector<16x36xf32>
    %70 = arith.addf %66, %69 : vector<16x36xf32>
    %c0_41 = arith.constant 0 : index
    %c0_42 = arith.constant 0 : index
    %71 = vector.load %arg15[%c0_41, %c0_42] : memref<36x4xbf16, #tpu.memory_space<vmem>>, vector<36x4xbf16>
    %72 = arith.truncf %49 : vector<32x36xf32> to vector<32x36xbf16>
    %cst_43 = arith.constant dense<0.000000e+00> : vector<32x4xf32>
    %73 = tpu.matmul %72, %71, %cst_43 {dimension_numbers = #tpu.dot_dimension_numbers<[1], [0], [0], [1], [0, 0, 1, 1], [], []>} : vector<32x36xbf16>, vector<36x4xbf16>, vector<32x4xf32> -> vector<32x4xf32>
    %c0_44 = arith.constant 0 : index
    %c0_45 = arith.constant 0 : index
    %74 = vector.load %arg13[%c0_44, %c0_45] : memref<8x32xbf16, #tpu.memory_space<vmem>>, vector<8x32xbf16>
    %75 = arith.truncf %73 : vector<32x4xf32> to vector<32x4xbf16>
    %cst_46 = arith.constant dense<0.000000e+00> : vector<8x4xf32>
    %76 = tpu.matmul %74, %75, %cst_46 {dimension_numbers = #tpu.dot_dimension_numbers<[1], [0], [0], [1], [0, 0, 1, 1], [], []>} : vector<8x32xbf16>, vector<32x4xbf16>, vector<8x4xf32> -> vector<8x4xf32>
    %c0_47 = arith.constant 0 : index
    %c0_48 = arith.constant 0 : index
    %77 = vector.load %arg14[%c0_47, %c0_48] : memref<8x1xf32, #tpu.memory_space<vmem>>, vector<8x1xf32>
    %78 = vector.broadcast %77 : vector<8x1xf32> to vector<8x4xf32>
    %79 = arith.addf %76, %78 : vector<8x4xf32>
    %cst_49 = arith.constant 0.000000e+00 : f32
    %80 = vector.broadcast %cst_49 : f32 to vector<8x4xf32>
    %81 = arith.maximumf %79, %80 : vector<8x4xf32>
    %c0_50 = arith.constant 0 : index
    %c0_51 = arith.constant 0 : index
    %82 = vector.load %arg16[%c0_50, %c0_51] : memref<4x36xbf16, #tpu.memory_space<vmem>>, vector<4x36xbf16>
    %83 = arith.truncf %81 : vector<8x4xf32> to vector<8x4xbf16>
    %cst_52 = arith.constant dense<0.000000e+00> : vector<8x36xf32>
    %84 = tpu.matmul %83, %82, %cst_52 {dimension_numbers = #tpu.dot_dimension_numbers<[1], [0], [0], [1], [0, 0, 1, 1], [], []>} : vector<8x4xbf16>, vector<4x36xbf16>, vector<8x36xf32> -> vector<8x36xf32>
    %c0_53 = arith.constant 0 : index
    %c0_54 = arith.constant 0 : index
    %85 = vector.load %arg27[%c0_53, %c0_54] : memref<16x8xbf16, #tpu.memory_space<vmem>>, vector<16x8xbf16>
    %86 = arith.truncf %84 : vector<8x36xf32> to vector<8x36xbf16>
    %cst_55 = arith.constant dense<0.000000e+00> : vector<16x36xf32>
    %87 = tpu.matmul %85, %86, %cst_55 {dimension_numbers = #tpu.dot_dimension_numbers<[1], [0], [0], [1], [0, 0, 1, 1], [], []>} : vector<16x8xbf16>, vector<8x36xbf16>, vector<16x36xf32> -> vector<16x36xf32>
    %88 = arith.addf %70, %87 : vector<16x36xf32>
    %c0_56 = arith.constant 0 : index
    %c0_57 = arith.constant 0 : index
    %89 = vector.load %arg19[%c0_56, %c0_57] : memref<36x9xbf16, #tpu.memory_space<vmem>>, vector<36x9xbf16>
    %90 = arith.truncf %49 : vector<32x36xf32> to vector<32x36xbf16>
    %cst_58 = arith.constant dense<0.000000e+00> : vector<32x9xf32>
    %91 = tpu.matmul %90, %89, %cst_58 {dimension_numbers = #tpu.dot_dimension_numbers<[1], [0], [0], [1], [0, 0, 1, 1], [], []>} : vector<32x36xbf16>, vector<36x9xbf16>, vector<32x9xf32> -> vector<32x9xf32>
    %c0_59 = arith.constant 0 : index
    %c0_60 = arith.constant 0 : index
    %92 = vector.load %arg17[%c0_59, %c0_60] : memref<8x32xbf16, #tpu.memory_space<vmem>>, vector<8x32xbf16>
    %93 = arith.truncf %91 : vector<32x9xf32> to vector<32x9xbf16>
    %cst_61 = arith.constant dense<0.000000e+00> : vector<8x9xf32>
    %94 = tpu.matmul %92, %93, %cst_61 {dimension_numbers = #tpu.dot_dimension_numbers<[1], [0], [0], [1], [0, 0, 1, 1], [], []>} : vector<8x32xbf16>, vector<32x9xbf16>, vector<8x9xf32> -> vector<8x9xf32>
    %c0_62 = arith.constant 0 : index
    %c0_63 = arith.constant 0 : index
    %95 = vector.load %arg18[%c0_62, %c0_63] : memref<8x1xf32, #tpu.memory_space<vmem>>, vector<8x1xf32>
    %96 = vector.broadcast %95 : vector<8x1xf32> to vector<8x9xf32>
    %97 = arith.addf %94, %96 : vector<8x9xf32>
    %cst_64 = arith.constant 0.000000e+00 : f32
    %98 = vector.broadcast %cst_64 : f32 to vector<8x9xf32>
    %99 = arith.maximumf %97, %98 : vector<8x9xf32>
    %c0_65 = arith.constant 0 : index
    %c0_66 = arith.constant 0 : index
    %100 = vector.load %arg20[%c0_65, %c0_66] : memref<9x36xbf16, #tpu.memory_space<vmem>>, vector<9x36xbf16>
    %101 = arith.truncf %99 : vector<8x9xf32> to vector<8x9xbf16>
    %cst_67 = arith.constant dense<0.000000e+00> : vector<8x36xf32>
    %102 = tpu.matmul %101, %100, %cst_67 {dimension_numbers = #tpu.dot_dimension_numbers<[1], [0], [0], [1], [0, 0, 1, 1], [], []>} : vector<8x9xbf16>, vector<9x36xbf16>, vector<8x36xf32> -> vector<8x36xf32>
    %c0_68 = arith.constant 0 : index
    %c0_69 = arith.constant 0 : index
    %103 = vector.load %arg28[%c0_68, %c0_69] : memref<16x8xbf16, #tpu.memory_space<vmem>>, vector<16x8xbf16>
    %104 = arith.truncf %102 : vector<8x36xf32> to vector<8x36xbf16>
    %cst_70 = arith.constant dense<0.000000e+00> : vector<16x36xf32>
    %105 = tpu.matmul %103, %104, %cst_70 {dimension_numbers = #tpu.dot_dimension_numbers<[1], [0], [0], [1], [0, 0, 1, 1], [], []>} : vector<16x8xbf16>, vector<8x36xbf16>, vector<16x36xf32> -> vector<16x36xf32>
    %106 = arith.addf %88, %105 : vector<16x36xf32>
    %c0_71 = arith.constant 0 : index
    %c0_72 = arith.constant 0 : index
    %107 = vector.load %arg23[%c0_71, %c0_72] : memref<36x36xbf16, #tpu.memory_space<vmem>>, vector<36x36xbf16>
    %108 = arith.truncf %49 : vector<32x36xf32> to vector<32x36xbf16>
    %cst_73 = arith.constant dense<0.000000e+00> : vector<32x36xf32>
    %109 = tpu.matmul %108, %107, %cst_73 {dimension_numbers = #tpu.dot_dimension_numbers<[1], [0], [0], [1], [0, 0, 1, 1], [], []>} : vector<32x36xbf16>, vector<36x36xbf16>, vector<32x36xf32> -> vector<32x36xf32>
    %c0_74 = arith.constant 0 : index
    %c0_75 = arith.constant 0 : index
    %110 = vector.load %arg21[%c0_74, %c0_75] : memref<8x32xbf16, #tpu.memory_space<vmem>>, vector<8x32xbf16>
    %111 = arith.truncf %109 : vector<32x36xf32> to vector<32x36xbf16>
    %cst_76 = arith.constant dense<0.000000e+00> : vector<8x36xf32>
    %112 = tpu.matmul %110, %111, %cst_76 {dimension_numbers = #tpu.dot_dimension_numbers<[1], [0], [0], [1], [0, 0, 1, 1], [], []>} : vector<8x32xbf16>, vector<32x36xbf16>, vector<8x36xf32> -> vector<8x36xf32>
    %c0_77 = arith.constant 0 : index
    %c0_78 = arith.constant 0 : index
    %113 = vector.load %arg22[%c0_77, %c0_78] : memref<8x1xf32, #tpu.memory_space<vmem>>, vector<8x1xf32>
    %114 = vector.broadcast %113 : vector<8x1xf32> to vector<8x36xf32>
    %115 = arith.addf %112, %114 : vector<8x36xf32>
    %cst_79 = arith.constant 0.000000e+00 : f32
    %116 = vector.broadcast %cst_79 : f32 to vector<8x36xf32>
    %117 = arith.maximumf %115, %116 : vector<8x36xf32>
    %c0_80 = arith.constant 0 : index
    %c0_81 = arith.constant 0 : index
    %118 = vector.load %arg24[%c0_80, %c0_81] : memref<36x36xbf16, #tpu.memory_space<vmem>>, vector<36x36xbf16>
    %119 = arith.truncf %117 : vector<8x36xf32> to vector<8x36xbf16>
    %cst_82 = arith.constant dense<0.000000e+00> : vector<8x36xf32>
    %120 = tpu.matmul %119, %118, %cst_82 {dimension_numbers = #tpu.dot_dimension_numbers<[1], [0], [0], [1], [0, 0, 1, 1], [], []>} : vector<8x36xbf16>, vector<36x36xbf16>, vector<8x36xf32> -> vector<8x36xf32>
    %c0_83 = arith.constant 0 : index
    %c0_84 = arith.constant 0 : index
    %121 = vector.load %arg29[%c0_83, %c0_84] : memref<16x8xbf16, #tpu.memory_space<vmem>>, vector<16x8xbf16>
    %122 = arith.truncf %120 : vector<8x36xf32> to vector<8x36xbf16>
    %cst_85 = arith.constant dense<0.000000e+00> : vector<16x36xf32>
    %123 = tpu.matmul %121, %122, %cst_85 {dimension_numbers = #tpu.dot_dimension_numbers<[1], [0], [0], [1], [0, 0, 1, 1], [], []>} : vector<16x8xbf16>, vector<8x36xbf16>, vector<16x36xf32> -> vector<16x36xf32>
    %124 = arith.addf %106, %123 : vector<16x36xf32>
    %c0_86 = arith.constant 0 : index
    %c0_87 = arith.constant 0 : index
    %125 = vector.load %arg30[%c0_86, %c0_87] : memref<16x1xf32, #tpu.memory_space<vmem>>, vector<16x1xf32>
    %126 = vector.broadcast %125 : vector<16x1xf32> to vector<16x36xf32>
    %127 = arith.addf %124, %126 : vector<16x36xf32>
    %cst_88 = arith.constant 0.000000e+00 : f32
    %128 = vector.broadcast %cst_88 : f32 to vector<16x36xf32>
    %129 = arith.maximumf %127, %128 : vector<16x36xf32>
    %c0_89 = arith.constant 0 : index
    %c0_90 = arith.constant 0 : index
    %130 = vector.load %arg31[%c0_89, %c0_90] : memref<5x16xbf16, #tpu.memory_space<vmem>>, vector<5x16xbf16>
    %131 = arith.truncf %129 : vector<16x36xf32> to vector<16x36xbf16>
    %cst_91 = arith.constant dense<0.000000e+00> : vector<5x36xf32>
    %132 = tpu.matmul %130, %131, %cst_91 {dimension_numbers = #tpu.dot_dimension_numbers<[1], [0], [0], [1], [0, 0, 1, 1], [], []>} : vector<5x16xbf16>, vector<16x36xbf16>, vector<5x36xf32> -> vector<5x36xf32>
    %c0_92 = arith.constant 0 : index
    %c0_93 = arith.constant 0 : index
    %133 = vector.load %arg32[%c0_92, %c0_93] : memref<5x1xf32, #tpu.memory_space<vmem>>, vector<5x1xf32>
    %134 = vector.broadcast %133 : vector<5x1xf32> to vector<5x36xf32>
    %135 = arith.addf %132, %134 : vector<5x36xf32>
    %c0_94 = arith.constant 0 : index
    %c0_95 = arith.constant 0 : index
    %136 = vector.load %arg33[%c0_94, %c0_95] : memref<36x2304xbf16, #tpu.memory_space<vmem>>, vector<36x2304xbf16>
    %137 = arith.truncf %135 : vector<5x36xf32> to vector<5x36xbf16>
    %cst_96 = arith.constant dense<0.000000e+00> : vector<5x2304xf32>
    %138 = tpu.matmul %137, %136, %cst_96 {dimension_numbers = #tpu.dot_dimension_numbers<[1], [0], [0], [1], [0, 0, 1, 1], [], []>} : vector<5x36xbf16>, vector<36x2304xbf16>, vector<5x2304xf32> -> vector<5x2304xf32>
    %c0_97 = arith.constant 0 : index
    %c0_98 = arith.constant 0 : index
    %c0_99 = arith.constant 0 : index
    %139 = vector.load %arg34[%c0_97, %c0_98, %c0_99] : memref<1x5x2304xf32, #tpu.memory_space<vmem>>, vector<1x5x2304xf32>
    %140 = vector.shape_cast %139 : vector<1x5x2304xf32> to vector<5x2304xf32>
    %141 = vector.shape_cast %138 : vector<5x2304xf32> to vector<1x5x2304xf32>
    tpu.vector_store %arg34[%c0_97, %c0_98, %c0_99], %141 {strides = array<i32>} : memref<1x5x2304xf32, #tpu.memory_space<vmem>>, vector<1x5x2304xf32>,
    return
  }
  func.func @transform_0(%arg0: i32) -> (i32, i32, i32) {
    %c0_i32 = arith.constant 0 : i32
    %c0_i32_0 = arith.constant 0 : i32
    %c0_i32_1 = arith.constant 0 : i32
    return %arg0, %c0_i32, %c0_i32_0 : i32, i32, i32
  }
  func.func @transform_1(%arg0: i32) -> (i32, i32) {
    %c0_i32 = arith.constant 0 : i32
    %c0_i32_0 = arith.constant 0 : i32
    %c0_i32_1 = arith.constant 0 : i32
    return %c0_i32, %c0_i32_0 : i32, i32
  }
  func.func @transform_2(%arg0: i32) -> (i32, i32) {
    %c0_i32 = arith.constant 0 : i32
    %c0_i32_0 = arith.constant 0 : i32
    %c0_i32_1 = arith.constant 0 : i32
    return %c0_i32, %c0_i32_0 : i32, i32
  }
  func.func @transform_3(%arg0: i32) -> (i32, i32) {
    %c0_i32 = arith.constant 0 : i32
    %c0_i32_0 = arith.constant 0 : i32
    %c0_i32_1 = arith.constant 0 : i32
    return %c0_i32, %c0_i32_0 : i32, i32
  }
  func.func @transform_4(%arg0: i32) -> (i32, i32) {
    %c0_i32 = arith.constant 0 : i32
    %c0_i32_0 = arith.constant 0 : i32
    %c0_i32_1 = arith.constant 0 : i32
    return %c0_i32, %c0_i32_0 : i32, i32
  }
  func.func @transform_5(%arg0: i32) -> (i32, i32) {
    %c0_i32 = arith.constant 0 : i32
    %c0_i32_0 = arith.constant 0 : i32
    %c0_i32_1 = arith.constant 0 : i32
    return %c0_i32, %c0_i32_0 : i32, i32
  }
  func.func @transform_6(%arg0: i32) -> (i32, i32) {
    %c0_i32 = arith.constant 0 : i32
    %c0_i32_0 = arith.constant 0 : i32
    %c0_i32_1 = arith.constant 0 : i32
    return %c0_i32, %c0_i32_0 : i32, i32
  }
  func.func @transform_7(%arg0: i32) -> (i32, i32) {
    %c0_i32 = arith.constant 0 : i32
    %c0_i32_0 = arith.constant 0 : i32
    %c0_i32_1 = arith.constant 0 : i32
    return %c0_i32, %c0_i32_0 : i32, i32
  }
  func.func @transform_8(%arg0: i32) -> (i32, i32) {
    %c0_i32 = arith.constant 0 : i32
    %c0_i32_0 = arith.constant 0 : i32
    %c0_i32_1 = arith.constant 0 : i32
    return %c0_i32, %c0_i32_0 : i32, i32
  }
  func.func @transform_9(%arg0: i32) -> (i32, i32) {
    %c0_i32 = arith.constant 0 : i32
    %c0_i32_0 = arith.constant 0 : i32
    %c0_i32_1 = arith.constant 0 : i32
    return %c0_i32, %c0_i32_0 : i32, i32
  }
  func.func @transform_10(%arg0: i32) -> (i32, i32) {
    %c0_i32 = arith.constant 0 : i32
    %c0_i32_0 = arith.constant 0 : i32
    %c0_i32_1 = arith.constant 0 : i32
    return %c0_i32, %c0_i32_0 : i32, i32
  }
  func.func @transform_11(%arg0: i32) -> (i32, i32) {
    %c0_i32 = arith.constant 0 : i32
    %c0_i32_0 = arith.constant 0 : i32
    %c0_i32_1 = arith.constant 0 : i32
    return %c0_i32, %c0_i32_0 : i32, i32
  }
  func.func @transform_12(%arg0: i32) -> (i32, i32) {
    %c0_i32 = arith.constant 0 : i32
    %c0_i32_0 = arith.constant 0 : i32
    %c0_i32_1 = arith.constant 0 : i32
    return %c0_i32, %c0_i32_0 : i32, i32
  }
  func.func @transform_13(%arg0: i32) -> (i32, i32) {
    %c0_i32 = arith.constant 0 : i32
    %c0_i32_0 = arith.constant 0 : i32
    %c0_i32_1 = arith.constant 0 : i32
    return %c0_i32, %c0_i32_0 : i32, i32
  }
  func.func @transform_14(%arg0: i32) -> (i32, i32) {
    %c0_i32 = arith.constant 0 : i32
    %c0_i32_0 = arith.constant 0 : i32
    %c0_i32_1 = arith.constant 0 : i32
    return %c0_i32, %c0_i32_0 : i32, i32
  }
  func.func @transform_15(%arg0: i32) -> (i32, i32) {
    %c0_i32 = arith.constant 0 : i32
    %c0_i32_0 = arith.constant 0 : i32
    %c0_i32_1 = arith.constant 0 : i32
    return %c0_i32, %c0_i32_0 : i32, i32
  }
  func.func @transform_16(%arg0: i32) -> (i32, i32) {
    %c0_i32 = arith.constant 0 : i32
    %c0_i32_0 = arith.constant 0 : i32
    %c0_i32_1 = arith.constant 0 : i32
    return %c0_i32, %c0_i32_0 : i32, i32
  }
  func.func @transform_17(%arg0: i32) -> (i32, i32) {
    %c0_i32 = arith.constant 0 : i32
    %c0_i32_0 = arith.constant 0 : i32
    %c0_i32_1 = arith.constant 0 : i32
    return %c0_i32, %c0_i32_0 : i32, i32
  }
  func.func @transform_18(%arg0: i32) -> (i32, i32) {
    %c0_i32 = arith.constant 0 : i32
    %c0_i32_0 = arith.constant 0 : i32
    %c0_i32_1 = arith.constant 0 : i32
    return %c0_i32, %c0_i32_0 : i32, i32
  }
  func.func @transform_19(%arg0: i32) -> (i32, i32) {
    %c0_i32 = arith.constant 0 : i32
    %c0_i32_0 = arith.constant 0 : i32
    %c0_i32_1 = arith.constant 0 : i32
    return %c0_i32, %c0_i32_0 : i32, i32
  }
  func.func @transform_20(%arg0: i32) -> (i32, i32) {
    %c0_i32 = arith.constant 0 : i32
    %c0_i32_0 = arith.constant 0 : i32
    %c0_i32_1 = arith.constant 0 : i32
    return %c0_i32, %c0_i32_0 : i32, i32
  }
  func.func @transform_21(%arg0: i32) -> (i32, i32) {
    %c0_i32 = arith.constant 0 : i32
    %c0_i32_0 = arith.constant 0 : i32
    %c0_i32_1 = arith.constant 0 : i32
    return %c0_i32, %c0_i32_0 : i32, i32
  }
  func.func @transform_22(%arg0: i32) -> (i32, i32) {
    %c0_i32 = arith.constant 0 : i32
    %c0_i32_0 = arith.constant 0 : i32
    %c0_i32_1 = arith.constant 0 : i32
    return %c0_i32, %c0_i32_0 : i32, i32
  }
  func.func @transform_23(%arg0: i32) -> (i32, i32) {
    %c0_i32 = arith.constant 0 : i32
    %c0_i32_0 = arith.constant 0 : i32
    %c0_i32_1 = arith.constant 0 : i32
    return %c0_i32, %c0_i32_0 : i32, i32
  }
  func.func @transform_24(%arg0: i32) -> (i32, i32) {
    %c0_i32 = arith.constant 0 : i32
    %c0_i32_0 = arith.constant 0 : i32
    %c0_i32_1 = arith.constant 0 : i32
    return %c0_i32, %c0_i32_0 : i32, i32
  }
  func.func @transform_25(%arg0: i32) -> (i32, i32) {
    %c0_i32 = arith.constant 0 : i32
    %c0_i32_0 = arith.constant 0 : i32
    %c0_i32_1 = arith.constant 0 : i32
    return %c0_i32, %c0_i32_0 : i32, i32
  }
  func.func @transform_26(%arg0: i32) -> (i32, i32) {
    %c0_i32 = arith.constant 0 : i32
    %c0_i32_0 = arith.constant 0 : i32
    %c0_i32_1 = arith.constant 0 : i32
    return %c0_i32, %c0_i32_0 : i32, i32
  }
  func.func @transform_27(%arg0: i32) -> (i32, i32) {
    %c0_i32 = arith.constant 0 : i32
    %c0_i32_0 = arith.constant 0 : i32
    %c0_i32_1 = arith.constant 0 : i32
    return %c0_i32, %c0_i32_0 : i32, i32
  }
  func.func @transform_28(%arg0: i32) -> (i32, i32) {
    %c0_i32 = arith.constant 0 : i32
    %c0_i32_0 = arith.constant 0 : i32
    %c0_i32_1 = arith.constant 0 : i32
    return %c0_i32, %c0_i32_0 : i32, i32
  }
  func.func @transform_29(%arg0: i32) -> (i32, i32) {
    %c0_i32 = arith.constant 0 : i32
    %c0_i32_0 = arith.constant 0 : i32
    %c0_i32_1 = arith.constant 0 : i32
    return %c0_i32, %c0_i32_0 : i32, i32
  }
  func.func @transform_30(%arg0: i32) -> (i32, i32) {
    %c0_i32 = arith.constant 0 : i32
    %c0_i32_0 = arith.constant 0 : i32
    %c0_i32_1 = arith.constant 0 : i32
    return %c0_i32, %c0_i32_0 : i32, i32
  }
  func.func @transform_31(%arg0: i32) -> (i32, i32) {
    %c0_i32 = arith.constant 0 : i32
    %c0_i32_0 = arith.constant 0 : i32
    %c0_i32_1 = arith.constant 0 : i32
    return %c0_i32, %c0_i32_0 : i32, i32
  }
  func.func @transform_32(%arg0: i32) -> (i32, i32) {
    %c0_i32 = arith.constant 0 : i32
    %c0_i32_0 = arith.constant 0 : i32
    %c0_i32_1 = arith.constant 0 : i32
    return %c0_i32, %c0_i32_0 : i32, i32
  }
  func.func @transform_33(%arg0: i32) -> (i32, i32, i32) {
    %c0_i32 = arith.constant 0 : i32
    %c0_i32_0 = arith.constant 0 : i32
    %c0_i32_1 = arith.constant 0 : i32
    return %arg0, %c0_i32, %c0_i32_0 : i32, i32, i32
  }
}

</mosaic_0001>

<llo_original>
// kernel: pspnet_forward.1
$region0: #{pspnet_forward.1}
  #allocation0 [shape = 'u32[]', space=smem, size = 0x4, offset = 0x4, fixed_abs, tag = 'smem constant byte address 0x4 - core index']
  #allocation1 [shape = 'u32[144,128]{1,0:T(1,128)}', space=vmem, size = 0x12000, scoped, tag = 'internal scratch']
  %s0 = inlined_call_operand.smem [shape: u32[34], index: -1, kind: input, shape index: {}]
  %s1 = sld [smem:[%s0]]
  %s2 = scalar_lea.smem %s0, 1
  %s3 = sld [smem:[%s2]]
  %s4 = scalar_lea.smem %s0, 2
  %s5 = sld [smem:[%s4]]
  %s6 = scalar_lea.smem %s0, 3
  %s7 = sld [smem:[%s6]]
  %s8 = scalar_lea.smem %s0, 4
  %s9 = sld [smem:[%s8]]
  %s10 = scalar_lea.smem %s0, 5
  %s11 = sld [smem:[%s10]]
  %s12 = scalar_lea.smem %s0, 6
  %s13 = sld [smem:[%s12]]
  %s14 = scalar_lea.smem %s0, 7
  %s15 = sld [smem:[%s14]]
  %s16 = scalar_lea.smem %s0, 8
  %s17 = sld [smem:[%s16]]
  %s18 = scalar_lea.smem %s0, 9
  %s19 = sld [smem:[%s18]]
  %s20 = scalar_lea.smem %s0, 10
  %s21 = sld [smem:[%s20]]
  %s22 = scalar_lea.smem %s0, 11
  %s23 = sld [smem:[%s22]]
  %s24 = scalar_lea.smem %s0, 12
  %s25 = sld [smem:[%s24]]
  %s26 = scalar_lea.smem %s0, 13
  %s27 = sld [smem:[%s26]]
  %s28 = scalar_lea.smem %s0, 14
  %s29 = sld [smem:[%s28]]
  %s30 = scalar_lea.smem %s0, 15
  %s31 = sld [smem:[%s30]]
  %s32 = scalar_lea.smem %s0, 16
  %s33 = sld [smem:[%s32]]
  %s34 = scalar_lea.smem %s0, 17
  %s35 = sld [smem:[%s34]]
  %s36 = scalar_lea.smem %s0, 18
  %s37 = sld [smem:[%s36]]
  %s38 = scalar_lea.smem %s0, 19
  %s39 = sld [smem:[%s38]]
  %s40 = scalar_lea.smem %s0, 20
  %s41 = sld [smem:[%s40]]
  %s42 = scalar_lea.smem %s0, 21
  %s43 = sld [smem:[%s42]]
  %s44 = scalar_lea.smem %s0, 22
  %s45 = sld [smem:[%s44]]
  %s46 = scalar_lea.smem %s0, 23
  %s47 = sld [smem:[%s46]]
  %s48 = scalar_lea.smem %s0, 24
  %s49 = sld [smem:[%s48]]
  %s50 = scalar_lea.smem %s0, 25
  %s51 = sld [smem:[%s50]]
  %s52 = scalar_lea.smem %s0, 26
  %s53 = sld [smem:[%s52]]
  %s54 = scalar_lea.smem %s0, 27
  %s55 = sld [smem:[%s54]]
  %s56 = scalar_lea.smem %s0, 28
  %s57 = sld [smem:[%s56]]
  %s58 = scalar_lea.smem %s0, 29
  %s59 = sld [smem:[%s58]]
  %s60 = scalar_lea.smem %s0, 30
  %s61 = sld [smem:[%s60]]
  %s62 = scalar_lea.smem %s0, 31
  %s63 = sld [smem:[%s62]]
  %s64 = scalar_lea.smem %s0, 32
  %s65 = sld [smem:[%s64]]
  %s66 = scalar_lea.smem %s0, 33
  %s67 = sld [smem:[%s66]]
  %s68 = sld [smem:[#allocation0]]
  $region205: #{pspnet_forward.1} parent=0
    _
  %s70 = ssub.s32 1, %s68
  %s71 = scalar_select 0, %s70, %s68
  $region1: #{pspnet_forward.1} parent=0
    #allocation2 [shape = 'u8[2949120]{0}', space=vmem, size = 0x2d0000, scoped, tag = 'input window, operand 3, single buffered']
    #allocation3 [shape = 's32[2]{0}', space=sflag, size = 0x8, scoped, tag = 'scoped memory for pspnet_forward.1']
    #allocation4 [shape = 'u8[294912]{0}', space=vmem, size = 0x48000, scoped, tag = 'input window, operand 6, single buffered']
    #allocation5 [shape = 's32[1]{0}', space=sflag, size = 0x4, scoped, tag = 'scoped memory for pspnet_forward.1']
    #allocation6 [shape = 'u8[36864]{0}', space=vmem, size = 0x9000, scoped, tag = 'input window, operand 9, single buffered']
    #allocation7 [shape = 'u8[10240]{0}', space=vmem, size = 0x2800, scoped, tag = 'input window, operand 14, single buffered']
    #allocation8 [shape = 's32[1]{0}', space=sflag, size = 0x4, scoped, tag = 'scoped memory for pspnet_forward.1']
    #allocation9 [shape = 'u8[1024]{0}', space=vmem, size = 0x400, scoped, tag = 'input window, operand 15, single buffered']
    #allocation10 [shape = 'u8[10240]{0}', space=vmem, size = 0x2800, scoped, tag = 'input window, operand 18, single buffered']
    #allocation11 [shape = 's32[1]{0}', space=sflag, size = 0x4, scoped, tag = 'scoped memory for pspnet_forward.1']
    #allocation12 [shape = 'u8[4096]{0}', space=vmem, size = 0x1000, scoped, tag = 'input window, operand 19, single buffered']
    #allocation13 [shape = 'u8[10240]{0}', space=vmem, size = 0x2800, scoped, tag = 'input window, operand 22, single buffered']
    #allocation14 [shape = 's32[1]{0}', space=sflag, size = 0x4, scoped, tag = 'scoped memory for pspnet_forward.1']
    #allocation15 [shape = 'u8[10240]{0}', space=vmem, size = 0x2800, scoped, tag = 'input window, operand 23, single buffered']
    #allocation16 [shape = 'u8[184320]{0}', space=vmem, size = 0x2d000, scoped, tag = 'input window, operand 32, single buffered']
    #allocation17 [shape = 's32[1]{0}', space=sflag, size = 0x4, scoped, tag = 'scoped memory for pspnet_forward.1']
    %72 = vsyncpa [#allocation3], 0
    %73 = vsyncpa [#allocation5], 0
    %74 = vsyncpa [#allocation8], 0
    %75 = vsyncpa [#allocation11], 0
    %76 = vsyncpa [#allocation14], 0
    %77 = vsyncpa [#allocation17], 0
    loop: start=0, step=1, limit=4
    $region2: #{pspnet_forward.1} parent=1 // loop_pre_header
      _
    $region3: #{pspnet_forward.1} parent=1 // loop_header
      %s79 = sphi 0, %s83
      %p80 = scmp.ge.s32.totalorder %s79, 4
      %s89 = sphi 0, %s91
      %s92 = sphi 0, %s89
      %s93 = sphi 0, %s92
      %s109 = sphi 0, %s93
      %s113 = sphi 0, %s113
      %s115 = sphi 0, %s113
      %s116 = sphi 0, %s115
      %s130 = sphi 0, %s116
      %s134 = sphi 0, %s134
      %s136 = sphi 0, %s134
      %s137 = sphi 0, %s136
      %s151 = sphi 0, %s137
      %s155 = sphi 0, %s155
      %s157 = sphi 0, %s155
      %s158 = sphi 0, %s157
      %s172 = sphi 0, %s158
      %s176 = sphi 0, %s176
      %s178 = sphi 0, %s176
      %s179 = sphi 0, %s178
      %s193 = sphi 0, %s179
      %s197 = sphi 0, %s197
      %s199 = sphi 0, %s197
      %s200 = sphi 0, %s199
      %s214 = sphi 0, %s200
      %s218 = sphi 0, %s218
      %s220 = sphi 0, %s218
      %s221 = sphi 0, %s220
      %s235 = sphi 0, %s221
      %s239 = sphi 0, %s239
      %s241 = sphi 0, %s239
      %s242 = sphi 0, %s241
      %s256 = sphi 0, %s242
      %s260 = sphi 0, %s260
      %s262 = sphi 0, %s260
      %s263 = sphi 0, %s262
      %s277 = sphi 0, %s263
      %s281 = sphi 0, %s281
      %s283 = sphi 0, %s281
      %s284 = sphi 0, %s283
      %s298 = sphi 0, %s284
      %s302 = sphi 0, %s302
      %s304 = sphi 0, %s302
      %s305 = sphi 0, %s304
      %s319 = sphi 0, %s305
      %s323 = sphi 0, %s323
      %s325 = sphi 0, %s323
      %s326 = sphi 0, %s325
      %s340 = sphi 0, %s326
      %s344 = sphi 0, %s344
      %s346 = sphi 0, %s344
      %s347 = sphi 0, %s346
      %s361 = sphi 0, %s347
      %s365 = sphi 0, %s365
      %s367 = sphi 0, %s365
      %s368 = sphi 0, %s367
      %s382 = sphi 0, %s368
      %s386 = sphi 0, %s386
      %s388 = sphi 0, %s386
      %s389 = sphi 0, %s388
      %s403 = sphi 0, %s389
      %s407 = sphi 0, %s407
      %s409 = sphi 0, %s407
      %s410 = sphi 0, %s409
      %s424 = sphi 0, %s410
      %s428 = sphi 0, %s428
      %s430 = sphi 0, %s428
      %s431 = sphi 0, %s430
      %s445 = sphi 0, %s431
      %s449 = sphi 0, %s449
      %s451 = sphi 0, %s449
      %s452 = sphi 0, %s451
      %s466 = sphi 0, %s452
      %s470 = sphi 0, %s470
      %s472 = sphi 0, %s470
      %s473 = sphi 0, %s472
      %s487 = sphi 0, %s473
      %s491 = sphi 0, %s491
      %s493 = sphi 0, %s491
      %s494 = sphi 0, %s493
      %s508 = sphi 0, %s494
      %s512 = sphi 0, %s512
      %s514 = sphi 0, %s512
      %s515 = sphi 0, %s514
      %s529 = sphi 0, %s515
      %s533 = sphi 0, %s533
      %s535 = sphi 0, %s533
      %s536 = sphi 0, %s535
      %s550 = sphi 0, %s536
      %s554 = sphi 0, %s554
      %s556 = sphi 0, %s554
      %s557 = sphi 0, %s556
      %s571 = sphi 0, %s557
      %s575 = sphi 0, %s575
      %s577 = sphi 0, %s575
      %s578 = sphi 0, %s577
      %s592 = sphi 0, %s578
      %s596 = sphi 0, %s596
      %s598 = sphi 0, %s596
      %s599 = sphi 0, %s598
      %s613 = sphi 0, %s599
      %s617 = sphi 0, %s617
      %s619 = sphi 0, %s617
      %s620 = sphi 0, %s619
      %s634 = sphi 0, %s620
      %s638 = sphi 0, %s638
      %s640 = sphi 0, %s638
      %s641 = sphi 0, %s640
      %s655 = sphi 0, %s641
      %s659 = sphi 0, %s659
      %s661 = sphi 0, %s659
      %s662 = sphi 0, %s661
      %s676 = sphi 0, %s662
      %s680 = sphi 0, %s680
      %s682 = sphi 0, %s680
      %s683 = sphi 0, %s682
      %s697 = sphi 0, %s683
      %s701 = sphi 0, %s701
      %s703 = sphi 0, %s701
      %s704 = sphi 0, %s703
      %s718 = sphi 0, %s704
      %s722 = sphi 0, %s722
      %s724 = sphi 0, %s722
      %s725 = sphi 0, %s724
      %s739 = sphi 0, %s725
      %s743 = sphi 0, %s743
      %s745 = sphi 0, %s743
      %s746 = sphi 0, %s745
      %s760 = sphi 0, %s746
      %s764 = sphi 0, %s764
      %s766 = sphi 0, %s764
      %s767 = sphi 0, %s766
      %s781 = sphi 0, %s767
      %s787 = sphi 0, %s789
      %s790 = sphi 0, %s787
      %s791 = sphi 0, %s790
      %s807 = sphi 0, %s791
    $region4: #{pspnet_forward.1} parent=1 // loop_header_branch
      %82 = sbr.rel (%p80) target = $region8
    $region5: #{pspnet_forward.1} parent=1 // loop_body
      %s84 = ssub.s32 %s79, 1
      %s85 = ssub.s32 %s79, 2
      %s86 = sadd.s32 %s79, 1
      %s87 = ssub.s32 %s79, %s86
      %p88 = scmp.eq.s32.totalorder %s87, 0
      %s90 = sadd.s32 %s89, 1
      %s91 = scalar_select %p88, %s89, %s90
      %p94 = pneg %p88
      %p95 = scmp.eq.s32.totalorder %s79, 1
      %p96 = por %p94, %p95
      %p97 = scmp.ne.s32.totalorder %s89, %s92
      %p98 = scmp.eq.s32.totalorder %s79, 0
      %p99 = por %p97, %p98
      %p100 = scmp.ne.s32.totalorder %s89, %s92
      %p101 = scmp.eq.s32.totalorder %s84, 1
      %p102 = por %p100, %p101
      %p103 = scmp.ne.s32.totalorder %s92, %s93
      %p104 = scmp.eq.s32.totalorder %s84, 0
      %p105 = por %p103, %p104
      %p106 = scmp.ne.s32.totalorder %s92, %s93
      %p107 = scmp.eq.s32.totalorder %s85, 1
      %p108 = por %p106, %p107
      %p110 = scmp.ne.s32.totalorder %s93, %s109
      %p111 = scmp.eq.s32.totalorder %s85, 0
      %p112 = por %p110, %p111
      %s114 = sadd.s32 %s113, 1
      %p117 = scmp.eq.s32.totalorder %s79, 1
      %p118 = scmp.ne.s32.totalorder %s113, %s115
      %p119 = scmp.eq.s32.totalorder %s79, 0
      %p120 = por %p118, %p119
      %p121 = scmp.ne.s32.totalorder %s113, %s115
      %p122 = scmp.eq.s32.totalorder %s84, 1
      %p123 = por %p121, %p122
      %p124 = scmp.ne.s32.totalorder %s115, %s116
      %p125 = scmp.eq.s32.totalorder %s84, 0
      %p126 = por %p124, %p125
      %p127 = scmp.ne.s32.totalorder %s115, %s116
      %p128 = scmp.eq.s32.totalorder %s85, 1
      %p129 = por %p127, %p128
      %p131 = scmp.ne.s32.totalorder %s116, %s130
      %p132 = scmp.eq.s32.totalorder %s85, 0
      %p133 = por %p131, %p132
      %s135 = sadd.s32 %s134, 1
      %p138 = scmp.eq.s32.totalorder %s79, 1
      %p139 = scmp.ne.s32.totalorder %s134, %s136
      %p140 = scmp.eq.s32.totalorder %s79, 0
      %p141 = por %p139, %p140
      %p142 = scmp.ne.s32.totalorder %s134, %s136
      %p143 = scmp.eq.s32.totalorder %s84, 1
      %p144 = por %p142, %p143
      %p145 = scmp.ne.s32.totalorder %s136, %s137
      %p146 = scmp.eq.s32.totalorder %s84, 0
      %p147 = por %p145, %p146
      %p148 = scmp.ne.s32.totalorder %s136, %s137
      %p149 = scmp.eq.s32.totalorder %s85, 1
      %p150 = por %p148, %p149
      %p152 = scmp.ne.s32.totalorder %s137, %s151
      %p153 = scmp.eq.s32.totalorder %s85, 0
      %p154 = por %p152, %p153
      %s156 = sadd.s32 %s155, 1
      %p159 = scmp.eq.s32.totalorder %s79, 1
      %p160 = scmp.ne.s32.totalorder %s155, %s157
      %p161 = scmp.eq.s32.totalorder %s79, 0
      %p162 = por %p160, %p161
      %p163 = scmp.ne.s32.totalorder %s155, %s157
      %p164 = scmp.eq.s32.totalorder %s84, 1
      %p165 = por %p163, %p164
      %p166 = scmp.ne.s32.totalorder %s157, %s158
      %p167 = scmp.eq.s32.totalorder %s84, 0
      %p168 = por %p166, %p167
      %p169 = scmp.ne.s32.totalorder %s157, %s158
      %p170 = scmp.eq.s32.totalorder %s85, 1
      %p171 = por %p169, %p170
      %p173 = scmp.ne.s32.totalorder %s158, %s172
      %p174 = scmp.eq.s32.totalorder %s85, 0
      %p175 = por %p173, %p174
      %s177 = sadd.s32 %s176, 1
      %p180 = scmp.eq.s32.totalorder %s79, 1
      %p181 = scmp.ne.s32.totalorder %s176, %s178
      %p182 = scmp.eq.s32.totalorder %s79, 0
      %p183 = por %p181, %p182
      %p184 = scmp.ne.s32.totalorder %s176, %s178
      %p185 = scmp.eq.s32.totalorder %s84, 1
      %p186 = por %p184, %p185
      %p187 = scmp.ne.s32.totalorder %s178, %s179
      %p188 = scmp.eq.s32.totalorder %s84, 0
      %p189 = por %p187, %p188
      %p190 = scmp.ne.s32.totalorder %s178, %s179
      %p191 = scmp.eq.s32.totalorder %s85, 1
      %p192 = por %p190, %p191
      %p194 = scmp.ne.s32.totalorder %s179, %s193
      %p195 = scmp.eq.s32.totalorder %s85, 0
      %p196 = por %p194, %p195
      %s198 = sadd.s32 %s197, 1
      %p201 = scmp.eq.s32.totalorder %s79, 1
      %p202 = scmp.ne.s32.totalorder %s197, %s199
      %p203 = scmp.eq.s32.totalorder %s79, 0
      %p204 = por %p202, %p203
      %p205 = scmp.ne.s32.totalorder %s197, %s199
      %p206 = scmp.eq.s32.totalorder %s84, 1
      %p207 = por %p205, %p206
      %p208 = scmp.ne.s32.totalorder %s199, %s200
      %p209 = scmp.eq.s32.totalorder %s84, 0
      %p210 = por %p208, %p209
      %p211 = scmp.ne.s32.totalorder %s199, %s200
      %p212 = scmp.eq.s32.totalorder %s85, 1
      %p213 = por %p211, %p212
      %p215 = scmp.ne.s32.totalorder %s200, %s214
      %p216 = scmp.eq.s32.totalorder %s85, 0
      %p217 = por %p215, %p216
      %s219 = sadd.s32 %s218, 1
      %p222 = scmp.eq.s32.totalorder %s79, 1
      %p223 = scmp.ne.s32.totalorder %s218, %s220
      %p224 = scmp.eq.s32.totalorder %s79, 0
      %p225 = por %p223, %p224
      %p226 = scmp.ne.s32.totalorder %s218, %s220
      %p227 = scmp.eq.s32.totalorder %s84, 1
      %p228 = por %p226, %p227
      %p229 = scmp.ne.s32.totalorder %s220, %s221
      %p230 = scmp.eq.s32.totalorder %s84, 0
      %p231 = por %p229, %p230
      %p232 = scmp.ne.s32.totalorder %s220, %s221
      %p233 = scmp.eq.s32.totalorder %s85, 1
      %p234 = por %p232, %p233
      %p236 = scmp.ne.s32.totalorder %s221, %s235
      %p237 = scmp.eq.s32.totalorder %s85, 0
      %p238 = por %p236, %p237
      %s240 = sadd.s32 %s239, 1
      %p243 = scmp.eq.s32.totalorder %s79, 1
      %p244 = scmp.ne.s32.totalorder %s239, %s241
      %p245 = scmp.eq.s32.totalorder %s79, 0
      %p246 = por %p244, %p245
      %p247 = scmp.ne.s32.totalorder %s239, %s241
      %p248 = scmp.eq.s32.totalorder %s84, 1
      %p249 = por %p247, %p248
      %p250 = scmp.ne.s32.totalorder %s241, %s242
      %p251 = scmp.eq.s32.totalorder %s84, 0
      %p252 = por %p250, %p251
      %p253 = scmp.ne.s32.totalorder %s241, %s242
      %p254 = scmp.eq.s32.totalorder %s85, 1
      %p255 = por %p253, %p254
      %p257 = scmp.ne.s32.totalorder %s242, %s256
      %p258 = scmp.eq.s32.totalorder %s85, 0
      %p259 = por %p257, %p258
      %s261 = sadd.s32 %s260, 1
      %p264 = scmp.eq.s32.totalorder %s79, 1
      %p265 = scmp.ne.s32.totalorder %s260, %s262
      %p266 = scmp.eq.s32.totalorder %s79, 0
      %p267 = por %p265, %p266
      %p268 = scmp.ne.s32.totalorder %s260, %s262
      %p269 = scmp.eq.s32.totalorder %s84, 1
      %p270 = por %p268, %p269
      %p271 = scmp.ne.s32.totalorder %s262, %s263
      %p272 = scmp.eq.s32.totalorder %s84, 0
      %p273 = por %p271, %p272
      %p274 = scmp.ne.s32.totalorder %s262, %s263
      %p275 = scmp.eq.s32.totalorder %s85, 1
      %p276 = por %p274, %p275
      %p278 = scmp.ne.s32.totalorder %s263, %s277
      %p279 = scmp.eq.s32.totalorder %s85, 0
      %p280 = por %p278, %p279
      %s282 = sadd.s32 %s281, 1
      %p285 = scmp.eq.s32.totalorder %s79, 1
      %p286 = scmp.ne.s32.totalorder %s281, %s283
      %p287 = scmp.eq.s32.totalorder %s79, 0
      %p288 = por %p286, %p287
      %p289 = scmp.ne.s32.totalorder %s281, %s283
      %p290 = scmp.eq.s32.totalorder %s84, 1
      %p291 = por %p289, %p290
      %p292 = scmp.ne.s32.totalorder %s283, %s284
      %p293 = scmp.eq.s32.totalorder %s84, 0
      %p294 = por %p292, %p293
      %p295 = scmp.ne.s32.totalorder %s283, %s284
      %p296 = scmp.eq.s32.totalorder %s85, 1
      %p297 = por %p295, %p296
      %p299 = scmp.ne.s32.totalorder %s284, %s298
      %p300 = scmp.eq.s32.totalorder %s85, 0
      %p301 = por %p299, %p300
      %s303 = sadd.s32 %s302, 1
      %p306 = scmp.eq.s32.totalorder %s79, 1
      %p307 = scmp.ne.s32.totalorder %s302, %s304
      %p308 = scmp.eq.s32.totalorder %s79, 0
      %p309 = por %p307, %p308
      %p310 = scmp.ne.s32.totalorder %s302, %s304
      %p311 = scmp.eq.s32.totalorder %s84, 1
      %p312 = por %p310, %p311
      %p313 = scmp.ne.s32.totalorder %s304, %s305
      %p314 = scmp.eq.s32.totalorder %s84, 0
      %p315 = por %p313, %p314
      %p316 = scmp.ne.s32.totalorder %s304, %s305
      %p317 = scmp.eq.s32.totalorder %s85, 1
      %p318 = por %p316, %p317
      %p320 = scmp.ne.s32.totalorder %s305, %s319
      %p321 = scmp.eq.s32.totalorder %s85, 0
      %p322 = por %p320, %p321
      %s324 = sadd.s32 %s323, 1
      %p327 = scmp.eq.s32.totalorder %s79, 1
      %p328 = scmp.ne.s32.totalorder %s323, %s325
      %p329 = scmp.eq.s32.totalorder %s79, 0
      %p330 = por %p328, %p329
      %p331 = scmp.ne.s32.totalorder %s323, %s325
      %p332 = scmp.eq.s32.totalorder %s84, 1
      %p333 = por %p331, %p332
      %p334 = scmp.ne.s32.totalorder %s325, %s326
      %p335 = scmp.eq.s32.totalorder %s84, 0
      %p336 = por %p334, %p335
      %p337 = scmp.ne.s32.totalorder %s325, %s326
      %p338 = scmp.eq.s32.totalorder %s85, 1
      %p339 = por %p337, %p338
      %p341 = scmp.ne.s32.totalorder %s326, %s340
      %p342 = scmp.eq.s32.totalorder %s85, 0
      %p343 = por %p341, %p342
      %s345 = sadd.s32 %s344, 1
      %p348 = scmp.eq.s32.totalorder %s79, 1
      %p349 = scmp.ne.s32.totalorder %s344, %s346
      %p350 = scmp.eq.s32.totalorder %s79, 0
      %p351 = por %p349, %p350
      %p352 = scmp.ne.s32.totalorder %s344, %s346
      %p353 = scmp.eq.s32.totalorder %s84, 1
      %p354 = por %p352, %p353
      %p355 = scmp.ne.s32.totalorder %s346, %s347
      %p356 = scmp.eq.s32.totalorder %s84, 0
      %p357 = por %p355, %p356
      %p358 = scmp.ne.s32.totalorder %s346, %s347
      %p359 = scmp.eq.s32.totalorder %s85, 1
      %p360 = por %p358, %p359
      %p362 = scmp.ne.s32.totalorder %s347, %s361
      %p363 = scmp.eq.s32.totalorder %s85, 0
      %p364 = por %p362, %p363
      %s366 = sadd.s32 %s365, 1
      %p369 = scmp.eq.s32.totalorder %s79, 1
      %p370 = scmp.ne.s32.totalorder %s365, %s367
      %p371 = scmp.eq.s32.totalorder %s79, 0
      %p372 = por %p370, %p371
      %p373 = scmp.ne.s32.totalorder %s365, %s367
      %p374 = scmp.eq.s32.totalorder %s84, 1
      %p375 = por %p373, %p374
      %p376 = scmp.ne.s32.totalorder %s367, %s368
      %p377 = scmp.eq.s32.totalorder %s84, 0
      %p378 = por %p376, %p377
      %p379 = scmp.ne.s32.totalorder %s367, %s368
      %p380 = scmp.eq.s32.totalorder %s85, 1
      %p381 = por %p379, %p380
      %p383 = scmp.ne.s32.totalorder %s368, %s382
      %p384 = scmp.eq.s32.totalorder %s85, 0
      %p385 = por %p383, %p384
      %s387 = sadd.s32 %s386, 1
      %p390 = scmp.eq.s32.totalorder %s79, 1
      %p391 = scmp.ne.s32.totalorder %s386, %s388
      %p392 = scmp.eq.s32.totalorder %s79, 0
      %p393 = por %p391, %p392
      %p394 = scmp.ne.s32.totalorder %s386, %s388
      %p395 = scmp.eq.s32.totalorder %s84, 1
      %p396 = por %p394, %p395
      %p397 = scmp.ne.s32.totalorder %s388, %s389
      %p398 = scmp.eq.s32.totalorder %s84, 0
      %p399 = por %p397, %p398
      %p400 = scmp.ne.s32.totalorder %s388, %s389
      %p401 = scmp.eq.s32.totalorder %s85, 1
      %p402 = por %p400, %p401
      %p404 = scmp.ne.s32.totalorder %s389, %s403
      %p405 = scmp.eq.s32.totalorder %s85, 0
      %p406 = por %p404, %p405
      %s408 = sadd.s32 %s407, 1
      %p411 = scmp.eq.s32.totalorder %s79, 1
      %p412 = scmp.ne.s32.totalorder %s407, %s409
      %p413 = scmp.eq.s32.totalorder %s79, 0
      %p414 = por %p412, %p413
      %p415 = scmp.ne.s32.totalorder %s407, %s409
      %p416 = scmp.eq.s32.totalorder %s84, 1
      %p417 = por %p415, %p416
      %p418 = scmp.ne.s32.totalorder %s409, %s410
      %p419 = scmp.eq.s32.totalorder %s84, 0
      %p420 = por %p418, %p419
      %p421 = scmp.ne.s32.totalorder %s409, %s410
      %p422 = scmp.eq.s32.totalorder %s85, 1
      %p423 = por %p421, %p422
      %p425 = scmp.ne.s32.totalorder %s410, %s424
      %p426 = scmp.eq.s32.totalorder %s85, 0
      %p427 = por %p425, %p426
      %s429 = sadd.s32 %s428, 1
      %p432 = scmp.eq.s32.totalorder %s79, 1
      %p433 = scmp.ne.s32.totalorder %s428, %s430
      %p434 = scmp.eq.s32.totalorder %s79, 0
      %p435 = por %p433, %p434
      %p436 = scmp.ne.s32.totalorder %s428, %s430
      %p437 = scmp.eq.s32.totalorder %s84, 1
      %p438 = por %p436, %p437
      %p439 = scmp.ne.s32.totalorder %s430, %s431
      %p440 = scmp.eq.s32.totalorder %s84, 0
      %p441 = por %p439, %p440
      %p442 = scmp.ne.s32.totalorder %s430, %s431
      %p443 = scmp.eq.s32.totalorder %s85, 1
      %p444 = por %p442, %p443
      %p446 = scmp.ne.s32.totalorder %s431, %s445
      %p447 = scmp.eq.s32.totalorder %s85, 0
      %p448 = por %p446, %p447
      %s450 = sadd.s32 %s449, 1
      %p453 = scmp.eq.s32.totalorder %s79, 1
      %p454 = scmp.ne.s32.totalorder %s449, %s451
      %p455 = scmp.eq.s32.totalorder %s79, 0
      %p456 = por %p454, %p455
      %p457 = scmp.ne.s32.totalorder %s449, %s451
      %p458 = scmp.eq.s32.totalorder %s84, 1
      %p459 = por %p457, %p458
      %p460 = scmp.ne.s32.totalorder %s451, %s452
      %p461 = scmp.eq.s32.totalorder %s84, 0
      %p462 = por %p460, %p461
      %p463 = scmp.ne.s32.totalorder %s451, %s452
      %p464 = scmp.eq.s32.totalorder %s85, 1
      %p465 = por %p463, %p464
      %p467 = scmp.ne.s32.totalorder %s452, %s466
      %p468 = scmp.eq.s32.totalorder %s85, 0
      %p469 = por %p467, %p468
      %s471 = sadd.s32 %s470, 1
      %p474 = scmp.eq.s32.totalorder %s79, 1
      %p475 = scmp.ne.s32.totalorder %s470, %s472
      %p476 = scmp.eq.s32.totalorder %s79, 0
      %p477 = por %p475, %p476
      %p478 = scmp.ne.s32.totalorder %s470, %s472
      %p479 = scmp.eq.s32.totalorder %s84, 1
      %p480 = por %p478, %p479
      %p481 = scmp.ne.s32.totalorder %s472, %s473
      %p482 = scmp.eq.s32.totalorder %s84, 0
      %p483 = por %p481, %p482
      %p484 = scmp.ne.s32.totalorder %s472, %s473
      %p485 = scmp.eq.s32.totalorder %s85, 1
      %p486 = por %p484, %p485
      %p488 = scmp.ne.s32.totalorder %s473, %s487
      %p489 = scmp.eq.s32.totalorder %s85, 0
      %p490 = por %p488, %p489
      %s492 = sadd.s32 %s491, 1
      %p495 = scmp.eq.s32.totalorder %s79, 1
      %p496 = scmp.ne.s32.totalorder %s491, %s493
      %p497 = scmp.eq.s32.totalorder %s79, 0
      %p498 = por %p496, %p497
      %p499 = scmp.ne.s32.totalorder %s491, %s493
      %p500 = scmp.eq.s32.totalorder %s84, 1
      %p501 = por %p499, %p500
      %p502 = scmp.ne.s32.totalorder %s493, %s494
      %p503 = scmp.eq.s32.totalorder %s84, 0
      %p504 = por %p502, %p503
      %p505 = scmp.ne.s32.totalorder %s493, %s494
      %p506 = scmp.eq.s32.totalorder %s85, 1
      %p507 = por %p505, %p506
      %p509 = scmp.ne.s32.totalorder %s494, %s508
      %p510 = scmp.eq.s32.totalorder %s85, 0
      %p511 = por %p509, %p510
      %s513 = sadd.s32 %s512, 1
      %p516 = scmp.eq.s32.totalorder %s79, 1
      %p517 = scmp.ne.s32.totalorder %s512, %s514
      %p518 = scmp.eq.s32.totalorder %s79, 0
      %p519 = por %p517, %p518
      %p520 = scmp.ne.s32.totalorder %s512, %s514
      %p521 = scmp.eq.s32.totalorder %s84, 1
      %p522 = por %p520, %p521
      %p523 = scmp.ne.s32.totalorder %s514, %s515
      %p524 = scmp.eq.s32.totalorder %s84, 0
      %p525 = por %p523, %p524
      %p526 = scmp.ne.s32.totalorder %s514, %s515
      %p527 = scmp.eq.s32.totalorder %s85, 1
      %p528 = por %p526, %p527
      %p530 = scmp.ne.s32.totalorder %s515, %s529
      %p531 = scmp.eq.s32.totalorder %s85, 0
      %p532 = por %p530, %p531
      %s534 = sadd.s32 %s533, 1
      %p537 = scmp.eq.s32.totalorder %s79, 1
      %p538 = scmp.ne.s32.totalorder %s533, %s535
      %p539 = scmp.eq.s32.totalorder %s79, 0
      %p540 = por %p538, %p539
      %p541 = scmp.ne.s32.totalorder %s533, %s535
      %p542 = scmp.eq.s32.totalorder %s84, 1
      %p543 = por %p541, %p542
      %p544 = scmp.ne.s32.totalorder %s535, %s536
      %p545 = scmp.eq.s32.totalorder %s84, 0
      %p546 = por %p544, %p545
      %p547 = scmp.ne.s32.totalorder %s535, %s536
      %p548 = scmp.eq.s32.totalorder %s85, 1
      %p549 = por %p547, %p548
      %p551 = scmp.ne.s32.totalorder %s536, %s550
      %p552 = scmp.eq.s32.totalorder %s85, 0
      %p553 = por %p551, %p552
      %s555 = sadd.s32 %s554, 1
      %p558 = scmp.eq.s32.totalorder %s79, 1
      %p559 = scmp.ne.s32.totalorder %s554, %s556
      %p560 = scmp.eq.s32.totalorder %s79, 0
      %p561 = por %p559, %p560
      %p562 = scmp.ne.s32.totalorder %s554, %s556
      %p563 = scmp.eq.s32.totalorder %s84, 1
      %p564 = por %p562, %p563
      %p565 = scmp.ne.s32.totalorder %s556, %s557
      %p566 = scmp.eq.s32.totalorder %s84, 0
      %p567 = por %p565, %p566
      %p568 = scmp.ne.s32.totalorder %s556, %s557
      %p569 = scmp.eq.s32.totalorder %s85, 1
      %p570 = por %p568, %p569
      %p572 = scmp.ne.s32.totalorder %s557, %s571
      %p573 = scmp.eq.s32.totalorder %s85, 0
      %p574 = por %p572, %p573
      %s576 = sadd.s32 %s575, 1
      %p579 = scmp.eq.s32.totalorder %s79, 1
      %p580 = scmp.ne.s32.totalorder %s575, %s577
      %p581 = scmp.eq.s32.totalorder %s79, 0
      %p582 = por %p580, %p581
      %p583 = scmp.ne.s32.totalorder %s575, %s577
      %p584 = scmp.eq.s32.totalorder %s84, 1
      %p585 = por %p583, %p584
      %p586 = scmp.ne.s32.totalorder %s577, %s578
      %p587 = scmp.eq.s32.totalorder %s84, 0
      %p588 = por %p586, %p587
      %p589 = scmp.ne.s32.totalorder %s577, %s578
      %p590 = scmp.eq.s32.totalorder %s85, 1
      %p591 = por %p589, %p590
      %p593 = scmp.ne.s32.totalorder %s578, %s592
      %p594 = scmp.eq.s32.totalorder %s85, 0
      %p595 = por %p593, %p594
      %s597 = sadd.s32 %s596, 1
      %p600 = scmp.eq.s32.totalorder %s79, 1
      %p601 = scmp.ne.s32.totalorder %s596, %s598
      %p602 = scmp.eq.s32.totalorder %s79, 0
      %p603 = por %p601, %p602
      %p604 = scmp.ne.s32.totalorder %s596, %s598
      %p605 = scmp.eq.s32.totalorder %s84, 1
      %p606 = por %p604, %p605
      %p607 = scmp.ne.s32.totalorder %s598, %s599
      %p608 = scmp.eq.s32.totalorder %s84, 0
      %p609 = por %p607, %p608
      %p610 = scmp.ne.s32.totalorder %s598, %s599
      %p611 = scmp.eq.s32.totalorder %s85, 1
      %p612 = por %p610, %p611
      %p614 = scmp.ne.s32.totalorder %s599, %s613
      %p615 = scmp.eq.s32.totalorder %s85, 0
      %p616 = por %p614, %p615
      %s618 = sadd.s32 %s617, 1
      %p621 = scmp.eq.s32.totalorder %s79, 1
      %p622 = scmp.ne.s32.totalorder %s617, %s619
      %p623 = scmp.eq.s32.totalorder %s79, 0
      %p624 = por %p622, %p623
      %p625 = scmp.ne.s32.totalorder %s617, %s619
      %p626 = scmp.eq.s32.totalorder %s84, 1
      %p627 = por %p625, %p626
      %p628 = scmp.ne.s32.totalorder %s619, %s620
      %p629 = scmp.eq.s32.totalorder %s84, 0
      %p630 = por %p628, %p629
      %p631 = scmp.ne.s32.totalorder %s619, %s620
      %p632 = scmp.eq.s32.totalorder %s85, 1
      %p633 = por %p631, %p632
      %p635 = scmp.ne.s32.totalorder %s620, %s634
      %p636 = scmp.eq.s32.totalorder %s85, 0
      %p637 = por %p635, %p636
      %s639 = sadd.s32 %s638, 1
      %p642 = scmp.eq.s32.totalorder %s79, 1
      %p643 = scmp.ne.s32.totalorder %s638, %s640
      %p644 = scmp.eq.s32.totalorder %s79, 0
      %p645 = por %p643, %p644
      %p646 = scmp.ne.s32.totalorder %s638, %s640
      %p647 = scmp.eq.s32.totalorder %s84, 1
      %p648 = por %p646, %p647
      %p649 = scmp.ne.s32.totalorder %s640, %s641
      %p650 = scmp.eq.s32.totalorder %s84, 0
      %p651 = por %p649, %p650
      %p652 = scmp.ne.s32.totalorder %s640, %s641
      %p653 = scmp.eq.s32.totalorder %s85, 1
      %p654 = por %p652, %p653
      %p656 = scmp.ne.s32.totalorder %s641, %s655
      %p657 = scmp.eq.s32.totalorder %s85, 0
      %p658 = por %p656, %p657
      %s660 = sadd.s32 %s659, 1
      %p663 = scmp.eq.s32.totalorder %s79, 1
      %p664 = scmp.ne.s32.totalorder %s659, %s661
      %p665 = scmp.eq.s32.totalorder %s79, 0
      %p666 = por %p664, %p665
      %p667 = scmp.ne.s32.totalorder %s659, %s661
      %p668 = scmp.eq.s32.totalorder %s84, 1
      %p669 = por %p667, %p668
      %p670 = scmp.ne.s32.totalorder %s661, %s662
      %p671 = scmp.eq.s32.totalorder %s84, 0
      %p672 = por %p670, %p671
      %p673 = scmp.ne.s32.totalorder %s661, %s662
      %p674 = scmp.eq.s32.totalorder %s85, 1
      %p675 = por %p673, %p674
      %p677 = scmp.ne.s32.totalorder %s662, %s676
      %p678 = scmp.eq.s32.totalorder %s85, 0
      %p679 = por %p677, %p678
      %s681 = sadd.s32 %s680, 1
      %p684 = scmp.eq.s32.totalorder %s79, 1
      %p685 = scmp.ne.s32.totalorder %s680, %s682
      %p686 = scmp.eq.s32.totalorder %s79, 0
      %p687 = por %p685, %p686
      %p688 = scmp.ne.s32.totalorder %s680, %s682
      %p689 = scmp.eq.s32.totalorder %s84, 1
      %p690 = por %p688, %p689
      %p691 = scmp.ne.s32.totalorder %s682, %s683
      %p692 = scmp.eq.s32.totalorder %s84, 0
      %p693 = por %p691, %p692
      %p694 = scmp.ne.s32.totalorder %s682, %s683
      %p695 = scmp.eq.s32.totalorder %s85, 1
      %p696 = por %p694, %p695
      %p698 = scmp.ne.s32.totalorder %s683, %s697
      %p699 = scmp.eq.s32.totalorder %s85, 0
      %p700 = por %p698, %p699
      %s702 = sadd.s32 %s701, 1
      %p705 = scmp.eq.s32.totalorder %s79, 1
      %p706 = scmp.ne.s32.totalorder %s701, %s703
      %p707 = scmp.eq.s32.totalorder %s79, 0
      %p708 = por %p706, %p707
      %p709 = scmp.ne.s32.totalorder %s701, %s703
      %p710 = scmp.eq.s32.totalorder %s84, 1
      %p711 = por %p709, %p710
      %p712 = scmp.ne.s32.totalorder %s703, %s704
      %p713 = scmp.eq.s32.totalorder %s84, 0
      %p714 = por %p712, %p713
      %p715 = scmp.ne.s32.totalorder %s703, %s704
      %p716 = scmp.eq.s32.totalorder %s85, 1
      %p717 = por %p715, %p716
      %p719 = scmp.ne.s32.totalorder %s704, %s718
      %p720 = scmp.eq.s32.totalorder %s85, 0
      %p721 = por %p719, %p720
      %s723 = sadd.s32 %s722, 1
      %p726 = scmp.eq.s32.totalorder %s79, 1
      %p727 = scmp.ne.s32.totalorder %s722, %s724
      %p728 = scmp.eq.s32.totalorder %s79, 0
      %p729 = por %p727, %p728
      %p730 = scmp.ne.s32.totalorder %s722, %s724
      %p731 = scmp.eq.s32.totalorder %s84, 1
      %p732 = por %p730, %p731
      %p733 = scmp.ne.s32.totalorder %s724, %s725
      %p734 = scmp.eq.s32.totalorder %s84, 0
      %p735 = por %p733, %p734
      %p736 = scmp.ne.s32.totalorder %s724, %s725
      %p737 = scmp.eq.s32.totalorder %s85, 1
      %p738 = por %p736, %p737
      %p740 = scmp.ne.s32.totalorder %s725, %s739
      %p741 = scmp.eq.s32.totalorder %s85, 0
      %p742 = por %p740, %p741
      %s744 = sadd.s32 %s743, 1
      %p747 = scmp.eq.s32.totalorder %s79, 1
      %p748 = scmp.ne.s32.totalorder %s743, %s745
      %p749 = scmp.eq.s32.totalorder %s79, 0
      %p750 = por %p748, %p749
      %p751 = scmp.ne.s32.totalorder %s743, %s745
      %p752 = scmp.eq.s32.totalorder %s84, 1
      %p753 = por %p751, %p752
      %p754 = scmp.ne.s32.totalorder %s745, %s746
      %p755 = scmp.eq.s32.totalorder %s84, 0
      %p756 = por %p754, %p755
      %p757 = scmp.ne.s32.totalorder %s745, %s746
      %p758 = scmp.eq.s32.totalorder %s85, 1
      %p759 = por %p757, %p758
      %p761 = scmp.ne.s32.totalorder %s746, %s760
      %p762 = scmp.eq.s32.totalorder %s85, 0
      %p763 = por %p761, %p762
      %s765 = sadd.s32 %s764, 1
      %p768 = scmp.eq.s32.totalorder %s79, 1
      %p769 = scmp.ne.s32.totalorder %s764, %s766
      %p770 = scmp.eq.s32.totalorder %s79, 0
      %p771 = por %p769, %p770
      %p772 = scmp.ne.s32.totalorder %s764, %s766
      %p773 = scmp.eq.s32.totalorder %s84, 1
      %p774 = por %p772, %p773
      %p775 = scmp.ne.s32.totalorder %s766, %s767
      %p776 = scmp.eq.s32.totalorder %s84, 0
      %p777 = por %p775, %p776
      %p778 = scmp.ne.s32.totalorder %s766, %s767
      %p779 = scmp.eq.s32.totalorder %s85, 1
      %p780 = por %p778, %p779
      %p782 = scmp.ne.s32.totalorder %s767, %s781
      %p783 = scmp.eq.s32.totalorder %s85, 0
      %p784 = por %p782, %p783
      %s785 = ssub.s32 %s79, %s86
      %p786 = scmp.eq.s32.totalorder %s785, 0
      %s788 = sadd.s32 %s787, 1
      %s789 = scalar_select %p786, %s787, %s788
      %p792 = pneg %p786
      %p793 = scmp.eq.s32.totalorder %s79, 1
      %p794 = por %p792, %p793
      %p795 = scmp.ne.s32.totalorder %s787, %s790
      %p796 = scmp.eq.s32.totalorder %s79, 0
      %p797 = por %p795, %p796
      %p798 = scmp.ne.s32.totalorder %s787, %s790
      %p799 = scmp.eq.s32.totalorder %s84, 1
      %p800 = por %p798, %p799
      %p801 = scmp.ne.s32.totalorder %s790, %s791
      %p802 = scmp.eq.s32.totalorder %s84, 0
      %p803 = por %p801, %p802
      %p804 = scmp.ne.s32.totalorder %s790, %s791
      %p805 = scmp.eq.s32.totalorder %s85, 1
      %p806 = por %p804, %p805
      %p808 = scmp.ne.s32.totalorder %s791, %s807
      %p809 = scmp.eq.s32.totalorder %s85, 0
      %p810 = por %p808, %p809
      %p811 = scmp.le.s32.totalorder 1, %s79
      %p812 = scmp.lt.s32.totalorder %s79, 3
      %p813 = pnand %p811, %p812
      %p814 = pneg %p813
      // Predicated region
      $region9: #{pspnet_forward.1} parent=5 // pred_check
        _
      $region10: #{pspnet_forward.1} parent=5 // pred_check_branch
        %816 = sbr.rel (%p813) target = $region12
      $region11: #{pspnet_forward.1} parent=5 // pred_region
        %s817 = ssub.s32 %s79, 1
        // Predicated region
        $region13: #{pspnet_forward.1} parent=11 // pred_check
          %p818 = pneg %p126
        $region14: #{pspnet_forward.1} parent=11 // pred_check_branch
          %820 = sbr.rel (%p818) target = $region16
        $region15: #{pspnet_forward.1} parent=11 // pred_region
          _
        $region16: #{pspnet_forward.1} parent=11 // pred_fallthru
          _
        // Predicated region
        $region17: #{pspnet_forward.1} parent=11 // pred_check
          %p821 = pneg %p147
        $region18: #{pspnet_forward.1} parent=11 // pred_check_branch
          %823 = sbr.rel (%p821) target = $region20
        $region19: #{pspnet_forward.1} parent=11 // pred_region
          _
        $region20: #{pspnet_forward.1} parent=11 // pred_fallthru
          _
        // Predicated region
        $region21: #{pspnet_forward.1} parent=11 // pred_check
          %p824 = pneg %p168
        $region22: #{pspnet_forward.1} parent=11 // pred_check_branch
          %826 = sbr.rel (%p824) target = $region24
        $region23: #{pspnet_forward.1} parent=11 // pred_region
          %s828 = ssub.s32 92160, 92160
          %829 = vsyncadd [#allocation3], %s828
          %s830 = sshll.u32 [#allocation2], 4
          %s831 = int_to_ptr.vmem [resolvable:$true] %s830
          %836 = dma.hbm_to_vmem [thread:$0]  %s7, 92160, %s831, [#allocation3], 320, 320, 20
        $region24: #{pspnet_forward.1} parent=11 // pred_fallthru
          _
        // Predicated region
        $region25: #{pspnet_forward.1} parent=11 // pred_check
          %p837 = pneg %p189
        $region26: #{pspnet_forward.1} parent=11 // pred_check_branch
          %839 = sbr.rel (%p837) target = $region28
        $region27: #{pspnet_forward.1} parent=11 // pred_region
          _
        $region28: #{pspnet_forward.1} parent=11 // pred_fallthru
          _
        // Predicated region
        $region29: #{pspnet_forward.1} parent=11 // pred_check
          %p840 = pneg %p210
        $region30: #{pspnet_forward.1} parent=11 // pred_check_branch
          %842 = sbr.rel (%p840) target = $region32
        $region31: #{pspnet_forward.1} parent=11 // pred_region
          _
        $region32: #{pspnet_forward.1} parent=11 // pred_fallthru
          _
        // Predicated region
        $region33: #{pspnet_forward.1} parent=11 // pred_check
          %p843 = pneg %p231
        $region34: #{pspnet_forward.1} parent=11 // pred_check_branch
          %845 = sbr.rel (%p843) target = $region36
        $region35: #{pspnet_forward.1} parent=11 // pred_region
          %s847 = ssub.s32 9216, 9216
          %848 = vsyncadd [#allocation5], %s847
          %s849 = sshll.u32 [#allocation4], 4
          %s850 = int_to_ptr.vmem [resolvable:$true] %s849
          %855 = dma.hbm_to_vmem [thread:$0]  %s13, 9216, %s850, [#allocation5], 128, 128, 8
        $region36: #{pspnet_forward.1} parent=11 // pred_fallthru
          _
        // Predicated region
        $region37: #{pspnet_forward.1} parent=11 // pred_check
          %p856 = pneg %p252
        $region38: #{pspnet_forward.1} parent=11 // pred_check_branch
          %858 = sbr.rel (%p856) target = $region40
        $region39: #{pspnet_forward.1} parent=11 // pred_region
          _
        $region40: #{pspnet_forward.1} parent=11 // pred_fallthru
          _
        // Predicated region
        $region41: #{pspnet_forward.1} parent=11 // pred_check
          %p859 = pneg %p273
        $region42: #{pspnet_forward.1} parent=11 // pred_check_branch
          %861 = sbr.rel (%p859) target = $region44
        $region43: #{pspnet_forward.1} parent=11 // pred_region
          _
        $region44: #{pspnet_forward.1} parent=11 // pred_fallthru
          _
        // Predicated region
        $region45: #{pspnet_forward.1} parent=11 // pred_check
          %p862 = pneg %p294
        $region46: #{pspnet_forward.1} parent=11 // pred_check_branch
          %864 = sbr.rel (%p862) target = $region48
        $region47: #{pspnet_forward.1} parent=11 // pred_region
          %s866 = ssub.s32 1152, 1152
          %867 = vsyncadd [#allocation5], %s866
          %s868 = sshll.u32 [#allocation6], 4
          %s869 = int_to_ptr.vmem [resolvable:$true] %s868
          %874 = dma.hbm_to_vmem [thread:$0]  %s19, 1152, %s869, [#allocation5], 64, 64, 4
        $region48: #{pspnet_forward.1} parent=11 // pred_fallthru
          _
        // Predicated region
        $region49: #{pspnet_forward.1} parent=11 // pred_check
          %p875 = pneg %p315
        $region50: #{pspnet_forward.1} parent=11 // pred_check_branch
          %877 = sbr.rel (%p875) target = $region52
        $region51: #{pspnet_forward.1} parent=11 // pred_region
          _
        $region52: #{pspnet_forward.1} parent=11 // pred_fallthru
          _
        // Predicated region
        $region53: #{pspnet_forward.1} parent=11 // pred_check
          %p878 = pneg %p336
        $region54: #{pspnet_forward.1} parent=11 // pred_check_branch
          %880 = sbr.rel (%p878) target = $region56
        $region55: #{pspnet_forward.1} parent=11 // pred_region
          _
        $region56: #{pspnet_forward.1} parent=11 // pred_fallthru
          _
        // Predicated region
        $region57: #{pspnet_forward.1} parent=11 // pred_check
          %p881 = pneg %p357
        $region58: #{pspnet_forward.1} parent=11 // pred_check_branch
          %883 = sbr.rel (%p881) target = $region60
        $region59: #{pspnet_forward.1} parent=11 // pred_region
          _
        $region60: #{pspnet_forward.1} parent=11 // pred_fallthru
          _
        // Predicated region
        $region61: #{pspnet_forward.1} parent=11 // pred_check
          %p884 = pneg %p378
        $region62: #{pspnet_forward.1} parent=11 // pred_check_branch
          %886 = sbr.rel (%p884) target = $region64
        $region63: #{pspnet_forward.1} parent=11 // pred_region
          _
        $region64: #{pspnet_forward.1} parent=11 // pred_fallthru
          _
        // Predicated region
        $region65: #{pspnet_forward.1} parent=11 // pred_check
          %p887 = pneg %p399
        $region66: #{pspnet_forward.1} parent=11 // pred_check_branch
          %889 = sbr.rel (%p887) target = $region68
        $region67: #{pspnet_forward.1} parent=11 // pred_region
          %s891 = ssub.s32 320, 320
          %892 = vsyncadd [#allocation8], %s891
          %s893 = sshll.u32 [#allocation7], 4
          %s894 = int_to_ptr.vmem [resolvable:$true] %s893
          %899 = dma.hbm_to_vmem [thread:$0]  %s29, 320, %s894, [#allocation8], 64, 64, 4
        $region68: #{pspnet_forward.1} parent=11 // pred_fallthru
          _
        // Predicated region
        $region69: #{pspnet_forward.1} parent=11 // pred_check
          %p900 = pneg %p420
        $region70: #{pspnet_forward.1} parent=11 // pred_check_branch
          %902 = sbr.rel (%p900) target = $region72
        $region71: #{pspnet_forward.1} parent=11 // pred_region
          %s904 = ssub.s32 32, 32
          %905 = vsyncadd [#allocation8], %s904
          %s907 = sshll.u32 [#allocation9], 4
          %s908 = int_to_ptr.vmem [resolvable:$true] %s907
          %910 = dma.hbm_to_vmem [thread:$0]  %s31, 32, %s908, [#allocation8]
        $region72: #{pspnet_forward.1} parent=11 // pred_fallthru
          _
        // Predicated region
        $region73: #{pspnet_forward.1} parent=11 // pred_check
          %p911 = pneg %p441
        $region74: #{pspnet_forward.1} parent=11 // pred_check_branch
          %913 = sbr.rel (%p911) target = $region76
        $region75: #{pspnet_forward.1} parent=11 // pred_region
          _
        $region76: #{pspnet_forward.1} parent=11 // pred_fallthru
          _
        // Predicated region
        $region77: #{pspnet_forward.1} parent=11 // pred_check
          %p914 = pneg %p462
        $region78: #{pspnet_forward.1} parent=11 // pred_check_branch
          %916 = sbr.rel (%p914) target = $region80
        $region79: #{pspnet_forward.1} parent=11 // pred_region
          _
        $region80: #{pspnet_forward.1} parent=11 // pred_fallthru
          _
        // Predicated region
        $region81: #{pspnet_forward.1} parent=11 // pred_check
          %p917 = pneg %p483
        $region82: #{pspnet_forward.1} parent=11 // pred_check_branch
          %919 = sbr.rel (%p917) target = $region84
        $region83: #{pspnet_forward.1} parent=11 // pred_region
          %s921 = ssub.s32 320, 320
          %922 = vsyncadd [#allocation11], %s921
          %s923 = sshll.u32 [#allocation10], 4
          %s924 = int_to_ptr.vmem [resolvable:$true] %s923
          %929 = dma.hbm_to_vmem [thread:$0]  %s37, 320, %s924, [#allocation11], 64, 64, 4
        $region84: #{pspnet_forward.1} parent=11 // pred_fallthru
          _
        // Predicated region
        $region85: #{pspnet_forward.1} parent=11 // pred_check
          %p930 = pneg %p504
        $region86: #{pspnet_forward.1} parent=11 // pred_check_branch
          %932 = sbr.rel (%p930) target = $region88
        $region87: #{pspnet_forward.1} parent=11 // pred_region
          %s934 = ssub.s32 128, 128
          %935 = vsyncadd [#allocation11], %s934
          %s936 = sshll.u32 [#allocation12], 4
          %s937 = int_to_ptr.vmem [resolvable:$true] %s936
          %942 = dma.hbm_to_vmem [thread:$0]  %s39, 128, %s937, [#allocation11], 64, 64, 4
        $region88: #{pspnet_forward.1} parent=11 // pred_fallthru
          _
        // Predicated region
        $region89: #{pspnet_forward.1} parent=11 // pred_check
          %p943 = pneg %p525
        $region90: #{pspnet_forward.1} parent=11 // pred_check_branch
          %945 = sbr.rel (%p943) target = $region92
        $region91: #{pspnet_forward.1} parent=11 // pred_region
          _
        $region92: #{pspnet_forward.1} parent=11 // pred_fallthru
          _
        // Predicated region
        $region93: #{pspnet_forward.1} parent=11 // pred_check
          %p946 = pneg %p546
        $region94: #{pspnet_forward.1} parent=11 // pred_check_branch
          %948 = sbr.rel (%p946) target = $region96
        $region95: #{pspnet_forward.1} parent=11 // pred_region
          _
        $region96: #{pspnet_forward.1} parent=11 // pred_fallthru
          _
        // Predicated region
        $region97: #{pspnet_forward.1} parent=11 // pred_check
          %p949 = pneg %p567
        $region98: #{pspnet_forward.1} parent=11 // pred_check_branch
          %951 = sbr.rel (%p949) target = $region100
        $region99: #{pspnet_forward.1} parent=11 // pred_region
          %s953 = ssub.s32 320, 320
          %954 = vsyncadd [#allocation14], %s953
          %s955 = sshll.u32 [#allocation13], 4
          %s956 = int_to_ptr.vmem [resolvable:$true] %s955
          %961 = dma.hbm_to_vmem [thread:$0]  %s45, 320, %s956, [#allocation14], 64, 64, 4
        $region100: #{pspnet_forward.1} parent=11 // pred_fallthru
          _
        // Predicated region
        $region101: #{pspnet_forward.1} parent=11 // pred_check
          %p962 = pneg %p588
        $region102: #{pspnet_forward.1} parent=11 // pred_check_branch
          %964 = sbr.rel (%p962) target = $region104
        $region103: #{pspnet_forward.1} parent=11 // pred_region
          %s966 = ssub.s32 320, 320
          %967 = vsyncadd [#allocation14], %s966
          %s968 = sshll.u32 [#allocation15], 4
          %s969 = int_to_ptr.vmem [resolvable:$true] %s968
          %974 = dma.hbm_to_vmem [thread:$0]  %s47, 320, %s969, [#allocation14], 64, 64, 4
        $region104: #{pspnet_forward.1} parent=11 // pred_fallthru
          _
        // Predicated region
        $region105: #{pspnet_forward.1} parent=11 // pred_check
          %p975 = pneg %p609
        $region106: #{pspnet_forward.1} parent=11 // pred_check_branch
          %977 = sbr.rel (%p975) target = $region108
        $region107: #{pspnet_forward.1} parent=11 // pred_region
          _
        $region108: #{pspnet_forward.1} parent=11 // pred_fallthru
          _
        // Predicated region
        $region109: #{pspnet_forward.1} parent=11 // pred_check
          %p978 = pneg %p630
        $region110: #{pspnet_forward.1} parent=11 // pred_check_branch
          %980 = sbr.rel (%p978) target = $region112
        $region111: #{pspnet_forward.1} parent=11 // pred_region
          _
        $region112: #{pspnet_forward.1} parent=11 // pred_fallthru
          _
        // Predicated region
        $region113: #{pspnet_forward.1} parent=11 // pred_check
          %p981 = pneg %p651
        $region114: #{pspnet_forward.1} parent=11 // pred_check_branch
          %983 = sbr.rel (%p981) target = $region116
        $region115: #{pspnet_forward.1} parent=11 // pred_region
          _
        $region116: #{pspnet_forward.1} parent=11 // pred_fallthru
          _
        // Predicated region
        $region117: #{pspnet_forward.1} parent=11 // pred_check
          %p984 = pneg %p672
        $region118: #{pspnet_forward.1} parent=11 // pred_check_branch
          %986 = sbr.rel (%p984) target = $region120
        $region119: #{pspnet_forward.1} parent=11 // pred_region
          _
        $region120: #{pspnet_forward.1} parent=11 // pred_fallthru
          _
        // Predicated region
        $region121: #{pspnet_forward.1} parent=11 // pred_check
          %p987 = pneg %p693
        $region122: #{pspnet_forward.1} parent=11 // pred_check_branch
          %989 = sbr.rel (%p987) target = $region124
        $region123: #{pspnet_forward.1} parent=11 // pred_region
          _
        $region124: #{pspnet_forward.1} parent=11 // pred_fallthru
          _
        // Predicated region
        $region125: #{pspnet_forward.1} parent=11 // pred_check
          %p990 = pneg %p714
        $region126: #{pspnet_forward.1} parent=11 // pred_check_branch
          %992 = sbr.rel (%p990) target = $region128
        $region127: #{pspnet_forward.1} parent=11 // pred_region
          _
        $region128: #{pspnet_forward.1} parent=11 // pred_fallthru
          _
        // Predicated region
        $region129: #{pspnet_forward.1} parent=11 // pred_check
          %p993 = pneg %p735
        $region130: #{pspnet_forward.1} parent=11 // pred_check_branch
          %995 = sbr.rel (%p993) target = $region132
        $region131: #{pspnet_forward.1} parent=11 // pred_region
          _
        $region132: #{pspnet_forward.1} parent=11 // pred_fallthru
          _
        // Predicated region
        $region133: #{pspnet_forward.1} parent=11 // pred_check
          %p996 = pneg %p756
        $region134: #{pspnet_forward.1} parent=11 // pred_check_branch
          %998 = sbr.rel (%p996) target = $region136
        $region135: #{pspnet_forward.1} parent=11 // pred_region
          _
        $region136: #{pspnet_forward.1} parent=11 // pred_fallthru
          _
        // Predicated region
        $region137: #{pspnet_forward.1} parent=11 // pred_check
          %p999 = pneg %p777
        $region138: #{pspnet_forward.1} parent=11 // pred_check_branch
          %1001 = sbr.rel (%p999) target = $region140
        $region139: #{pspnet_forward.1} parent=11 // pred_region
          %s1003 = ssub.s32 5760, 5760
          %1004 = vsyncadd [#allocation17], %s1003
          %s1005 = sshll.u32 [#allocation16], 4
          %s1006 = int_to_ptr.vmem [resolvable:$true] %s1005
          %1011 = dma.hbm_to_vmem [thread:$0]  %s65, 5760, %s1006, [#allocation17], 1152, 1152, 72
        $region140: #{pspnet_forward.1} parent=11 // pred_fallthru
          _
      $region12: #{pspnet_forward.1} parent=5 // pred_fallthru
        _
      %p1012 = scmp.lt.s32.totalorder %s79, 2
      // Predicated region
      $region141: #{pspnet_forward.1} parent=5 // pred_check
        %p1013 = pneg %p1012
      $region142: #{pspnet_forward.1} parent=5 // pred_check_branch
        %1015 = sbr.rel (%p1013) target = $region144
      $region143: #{pspnet_forward.1} parent=5 // pred_region
        // Predicated region
        $region145: #{pspnet_forward.1} parent=143 // pred_check
          %p1016 = pneg %p99
        $region146: #{pspnet_forward.1} parent=143 // pred_check_branch
          %1018 = sbr.rel (%p1016) target = $region148
        $region147: #{pspnet_forward.1} parent=143 // pred_region
          %p1019 = scmp.lt.s32.totalorder %s79, 1
          %s1020 = scalar_select %p1019, %s79, 1
          %s1021 = smul.addr %s1020, 18
          %s1022 = smul.addr %s1021, 4
          %s1023 = scalar_lea.vmem %s1, %s1022
        $region148: #{pspnet_forward.1} parent=143 // pred_fallthru
          _
      $region144: #{pspnet_forward.1} parent=5 // pred_fallthru
        _
      %p1024 = scmp.le.s32.totalorder 1, %s79
      %p1025 = scmp.lt.s32.totalorder %s79, 3
      %p1026 = pnand %p1024, %p1025
      %p1027 = pneg %p1026
      // Predicated region
      $region149: #{pspnet_forward.1} parent=5 // pred_check
        _
      $region150: #{pspnet_forward.1} parent=5 // pred_check_branch
        %1029 = sbr.rel (%p1026) target = $region152
      $region151: #{pspnet_forward.1} parent=5 // pred_region
        %s1030 = ssub.s32 %s79, 1
        // Predicated region
        $region153: #{pspnet_forward.1} parent=151 // pred_check
          %p1031 = pneg %p168
        $region154: #{pspnet_forward.1} parent=151 // pred_check_branch
          %1033 = sbr.rel (%p1031) target = $region156
        $region155: #{pspnet_forward.1} parent=151 // pred_region
          %1034 = dma.done [#allocation3], 92160
        $region156: #{pspnet_forward.1} parent=151 // pred_fallthru
          _
        // Predicated region
        $region157: #{pspnet_forward.1} parent=151 // pred_check
          %p1035 = pneg %p231
        $region158: #{pspnet_forward.1} parent=151 // pred_check_branch
          %1037 = sbr.rel (%p1035) target = $region160
        $region159: #{pspnet_forward.1} parent=151 // pred_region
          %1038 = dma.done [#allocation5], 9216
        $region160: #{pspnet_forward.1} parent=151 // pred_fallthru
          _
        // Predicated region
        $region161: #{pspnet_forward.1} parent=151 // pred_check
          %p1039 = pneg %p294
        $region162: #{pspnet_forward.1} parent=151 // pred_check_branch
          %1041 = sbr.rel (%p1039) target = $region164
        $region163: #{pspnet_forward.1} parent=151 // pred_region
          %1042 = dma.done [#allocation5], 1152
        $region164: #{pspnet_forward.1} parent=151 // pred_fallthru
          _
        // Predicated region
        $region165: #{pspnet_forward.1} parent=151 // pred_check
          %p1043 = pneg %p399
        $region166: #{pspnet_forward.1} parent=151 // pred_check_branch
          %1045 = sbr.rel (%p1043) target = $region168
        $region167: #{pspnet_forward.1} parent=151 // pred_region
          %1046 = dma.done [#allocation8], 320
        $region168: #{pspnet_forward.1} parent=151 // pred_fallthru
          _
        // Predicated region
        $region169: #{pspnet_forward.1} parent=151 // pred_check
          %p1047 = pneg %p420
        $region170: #{pspnet_forward.1} parent=151 // pred_check_branch
          %1049 = sbr.rel (%p1047) target = $region172
        $region171: #{pspnet_forward.1} parent=151 // pred_region
          %1050 = dma.done [#allocation8], 32
        $region172: #{pspnet_forward.1} parent=151 // pred_fallthru
          _
        // Predicated region
        $region173: #{pspnet_forward.1} parent=151 // pred_check
          %p1051 = pneg %p483
        $region174: #{pspnet_forward.1} parent=151 // pred_check_branch
          %1053 = sbr.rel (%p1051) target = $region176
        $region175: #{pspnet_forward.1} parent=151 // pred_region
          %1054 = dma.done [#allocation11], 320
        $region176: #{pspnet_forward.1} parent=151 // pred_fallthru
          _
        // Predicated region
        $region177: #{pspnet_forward.1} parent=151 // pred_check
          %p1055 = pneg %p504
        $region178: #{pspnet_forward.1} parent=151 // pred_check_branch
          %1057 = sbr.rel (%p1055) target = $region180
        $region179: #{pspnet_forward.1} parent=151 // pred_region
          %1058 = dma.done [#allocation11], 128
        $region180: #{pspnet_forward.1} parent=151 // pred_fallthru
          _
        // Predicated region
        $region181: #{pspnet_forward.1} parent=151 // pred_check
          %p1059 = pneg %p567
        $region182: #{pspnet_forward.1} parent=151 // pred_check_branch
          %1061 = sbr.rel (%p1059) target = $region184
        $region183: #{pspnet_forward.1} parent=151 // pred_region
          %1062 = dma.done [#allocation14], 320
        $region184: #{pspnet_forward.1} parent=151 // pred_fallthru
          _
        // Predicated region
        $region185: #{pspnet_forward.1} parent=151 // pred_check
          %p1063 = pneg %p588
        $region186: #{pspnet_forward.1} parent=151 // pred_check_branch
          %1065 = sbr.rel (%p1063) target = $region188
        $region187: #{pspnet_forward.1} parent=151 // pred_region
          %1066 = dma.done [#allocation14], 320
        $region188: #{pspnet_forward.1} parent=151 // pred_fallthru
          _
        // Predicated region
        $region189: #{pspnet_forward.1} parent=151 // pred_check
          %p1067 = pneg %p777
        $region190: #{pspnet_forward.1} parent=151 // pred_check_branch
          %1069 = sbr.rel (%p1067) target = $region192
        $region191: #{pspnet_forward.1} parent=151 // pred_region
          %1070 = dma.done [#allocation17], 5760
        $region192: #{pspnet_forward.1} parent=151 // pred_fallthru
          _
        %p1071 = scmp.lt.s32.totalorder %s84, 1
        %s1072 = scalar_select %p1071, %s84, 1
        %s1073 = smul.addr %s1072, 18
        %s1074 = smul.addr %s1073, 4
        %s1075 = scalar_lea.vmem %s1, %s1074
        %p1076 = pneg %p105
        %p1077 = pneg %p102
        %p1078 = pneg %p126
        %p1079 = pneg %p123
        %p1080 = pneg %p147
        %p1081 = pneg %p144
        %p1082 = pneg %p168
        %p1083 = pneg %p165
        %p1084 = pneg %p189
        %p1085 = pneg %p186
        %p1086 = pneg %p210
        %p1087 = pneg %p207
        %p1088 = pneg %p231
        %p1089 = pneg %p228
        %p1090 = pneg %p252
        %p1091 = pneg %p249
        %p1092 = pneg %p273
        %p1093 = pneg %p270
        %p1094 = pneg %p294
        %p1095 = pneg %p291
        %p1096 = pneg %p315
        %p1097 = pneg %p312
        %p1098 = pneg %p336
        %p1099 = pneg %p333
        %p1100 = pneg %p357
        %p1101 = pneg %p354
        %p1102 = pneg %p378
        %p1103 = pneg %p375
        %p1104 = pneg %p399
        %p1105 = pneg %p396
        %p1106 = pneg %p420
        %p1107 = pneg %p417
        %p1108 = pneg %p441
        %p1109 = pneg %p438
        %p1110 = pneg %p462
        %p1111 = pneg %p459
        %p1112 = pneg %p483
        %p1113 = pneg %p480
        %p1114 = pneg %p504
        %p1115 = pneg %p501
        %p1116 = pneg %p525
        %p1117 = pneg %p522
        %p1118 = pneg %p546
        %p1119 = pneg %p543
        %p1120 = pneg %p567
        %p1121 = pneg %p564
        %p1122 = pneg %p588
        %p1123 = pneg %p585
        %p1124 = pneg %p609
        %p1125 = pneg %p606
        %p1126 = pneg %p630
        %p1127 = pneg %p627
        %p1128 = pneg %p651
        %p1129 = pneg %p648
        %p1130 = pneg %p672
        %p1131 = pneg %p669
        %p1132 = pneg %p693
        %p1133 = pneg %p690
        %p1134 = pneg %p714
        %p1135 = pneg %p711
        %p1136 = pneg %p735
        %p1137 = pneg %p732
        %p1138 = pneg %p756
        %p1139 = pneg %p753
        %p1140 = pneg %p777
        %p1141 = pneg %p774
        %p1142 = pneg %p803
        %p1143 = pneg %p800
        %p1144 = scmp.lt.s32.totalorder %s84, 1
        %s1145 = scalar_select %p1144, %s84, 1
        %s1146 = smul.addr %s1145, 18
        %s1147 = smul.addr %s1146, 8
        %s1148 = scalar_lea.vmem %s67, %s1147
        %p1149 = scmp.lt.s32.totalorder %s84, 1
        %s1150 = scalar_select %p1149, %s84, 1
        %s1151 = smul.addr %s1150, 18
        %s1152 = smul.addr %s1151, 4
        %s1153 = scalar_lea.vmem %s1, %s1152
        %p1154 = scmp.lt.s32.totalorder %s84, 1
        %s1155 = scalar_select %p1154, %s84, 1
        %s1156 = smul.addr %s1155, 18
        %s1157 = smul.addr %s1156, 8
        %s1158 = scalar_lea.vmem %s67, %s1157
        %v1160 = vld [vmem:[%s1153] sm:$0x77]
        %v1161 = vld [vmem:[%s1153 + $0x8] sm:$0x77]
        %v1162 = vld [vmem:[%s1153 + $0x10] sm:$0x77]
        %v1163 = vld [vmem:[%s1153 + $0x18] sm:$0x77]
        %v1164 = vld [vmem:[%s1153 + $0x20] sm:$0x77]
        %v1165 = vld [vmem:[%s1153 + $0x28] sm:$0x77]
        %v1166 = vld [vmem:[%s1153 + $0x30] sm:$0x77]
        %v1167 = vld [vmem:[%s1153 + $0x38] sm:$0x77]
        %v1168 = vld [vmem:[%s1153 + $0x40] sm:$0x77]
        %v1169 = vld [vmem:[%s3] sm:$0xff]
        %v1170 = vld [vmem:[%s3 + $0x8] sm:$0xff]
        %1172 = vset.pattern.permute.xlu0 0
        %1173 = vperm.xlu0 %1172, %v1169
        %v1174 = vpop.permute.xlu0 %1173
        %1177 = vset.pattern.permute.xlu0 0
        %1178 = vperm.xlu0 %1177, %v1170
        %v1179 = vpop.permute.xlu0 %1178
        %v1190 = vlaneseq
        %v1191 = vshrl.u32 %v1190, 7
        %v1192 = vsub.s32 0, %v1191
        %v1193 = vrot.slane %v1160, %v1192
        %v1194 = vlaneseq
        %v1195 = vshrl.u32 %v1194, 7
        %v1196 = vsub.s32 4, %v1195
        %v1197 = vrot.slane %v1160, %v1196
        %v1198 = vlaneseq
        %v1199 = vshrl.u32 %v1198, 7
        %v1200 = vsub.s32 0, %v1199
        %v1201 = vrot.slane %v1161, %v1200
        %v1202 = vlaneseq
        %v1203 = vshrl.u32 %v1202, 7
        %v1204 = vsub.s32 4, %v1203
        %v1205 = vrot.slane %v1161, %v1204
        %v1206 = vlaneseq
        %v1207 = vshrl.u32 %v1206, 7
        %v1208 = vsub.s32 0, %v1207
        %v1209 = vrot.slane %v1162, %v1208
        %v1210 = vlaneseq
        %v1211 = vshrl.u32 %v1210, 7
        %v1212 = vsub.s32 4, %v1211
        %v1213 = vrot.slane %v1162, %v1212
        %v1214 = vlaneseq
        %v1215 = vshrl.u32 %v1214, 7
        %v1216 = vsub.s32 0, %v1215
        %v1217 = vrot.slane %v1163, %v1216
        %v1218 = vlaneseq
        %v1219 = vshrl.u32 %v1218, 7
        %v1220 = vsub.s32 4, %v1219
        %v1221 = vrot.slane %v1163, %v1220
        %v1222 = vlaneseq
        %v1223 = vshrl.u32 %v1222, 7
        %v1224 = vsub.s32 0, %v1223
        %v1225 = vrot.slane %v1164, %v1224
        %v1226 = vlaneseq
        %v1227 = vshrl.u32 %v1226, 7
        %v1228 = vsub.s32 4, %v1227
        %v1229 = vrot.slane %v1164, %v1228
        %v1230 = vlaneseq
        %v1231 = vshrl.u32 %v1230, 7
        %v1232 = vsub.s32 0, %v1231
        %v1233 = vrot.slane %v1165, %v1232
        %v1234 = vlaneseq
        %v1235 = vshrl.u32 %v1234, 7
        %v1236 = vsub.s32 4, %v1235
        %v1237 = vrot.slane %v1165, %v1236
        %v1238 = vlaneseq
        %v1239 = vshrl.u32 %v1238, 7
        %v1240 = vsub.s32 0, %v1239
        %v1241 = vrot.slane %v1166, %v1240
        %v1242 = vlaneseq
        %v1243 = vshrl.u32 %v1242, 7
        %v1244 = vsub.s32 4, %v1243
        %v1245 = vrot.slane %v1166, %v1244
        %v1246 = vlaneseq
        %v1247 = vshrl.u32 %v1246, 7
        %v1248 = vsub.s32 0, %v1247
        %v1249 = vrot.slane %v1167, %v1248
        %v1250 = vlaneseq
        %v1251 = vshrl.u32 %v1250, 7
        %v1252 = vsub.s32 4, %v1251
        %v1253 = vrot.slane %v1167, %v1252
        %v1254 = vlaneseq
        %v1255 = vshrl.u32 %v1254, 7
        %v1256 = vsub.s32 0, %v1255
        %v1257 = vrot.slane %v1168, %v1256
        %v1258 = vlaneseq
        %v1259 = vshrl.u32 %v1258, 7
        %v1260 = vsub.s32 4, %v1259
        %v1261 = vrot.slane %v1168, %v1260
        %v1280 = vlaneseq
        %v1281 = vshrl.u32 %v1280, 7
        %v1282 = vsub.s32 0, %v1281
        %v1283 = vrot.slane %v1193, %v1282
        %v1284 = vlaneseq
        %v1285 = vshrl.u32 %v1284, 7
        %v1286 = vsub.s32 0, %v1285
        %v1287 = vrot.slane %v1197, %v1286
        %v1288 = vlaneseq
        %v1289 = vshrl.u32 %v1288, 7
        %v1290 = vsub.s32 0, %v1289
        %v1291 = vrot.slane %v1201, %v1290
        %v1292 = vlaneseq
        %v1293 = vshrl.u32 %v1292, 7
        %v1294 = vsub.s32 0, %v1293
        %v1295 = vrot.slane %v1205, %v1294
        %v1296 = vlaneseq
        %v1297 = vshrl.u32 %v1296, 7
        %v1298 = vsub.s32 0, %v1297
        %v1299 = vrot.slane %v1209, %v1298
        %v1300 = vlaneseq
        %v1301 = vshrl.u32 %v1300, 7
        %v1302 = vsub.s32 0, %v1301
        %v1303 = vrot.slane %v1213, %v1302
        %v1304 = vlaneseq
        %v1305 = vshrl.u32 %v1304, 7
        %v1306 = vsub.s32 0, %v1305
        %v1307 = vrot.slane %v1217, %v1306
        %v1308 = vlaneseq
        %v1309 = vshrl.u32 %v1308, 7
        %v1310 = vsub.s32 0, %v1309
        %v1311 = vrot.slane %v1221, %v1310
        %v1312 = vlaneseq
        %v1313 = vshrl.u32 %v1312, 7
        %v1314 = vsub.s32 0, %v1313
        %v1315 = vrot.slane %v1225, %v1314
        %v1316 = vlaneseq
        %v1317 = vshrl.u32 %v1316, 7
        %v1318 = vsub.s32 0, %v1317
        %v1319 = vrot.slane %v1229, %v1318
        %v1320 = vlaneseq
        %v1321 = vshrl.u32 %v1320, 7
        %v1322 = vsub.s32 0, %v1321
        %v1323 = vrot.slane %v1233, %v1322
        %v1324 = vlaneseq
        %v1325 = vshrl.u32 %v1324, 7
        %v1326 = vsub.s32 0, %v1325
        %v1327 = vrot.slane %v1237, %v1326
        %v1328 = vlaneseq
        %v1329 = vshrl.u32 %v1328, 7
        %v1330 = vsub.s32 0, %v1329
        %v1331 = vrot.slane %v1241, %v1330
        %v1332 = vlaneseq
        %v1333 = vshrl.u32 %v1332, 7
        %v1334 = vsub.s32 0, %v1333
        %v1335 = vrot.slane %v1245, %v1334
        %v1336 = vlaneseq
        %v1337 = vshrl.u32 %v1336, 7
        %v1338 = vsub.s32 0, %v1337
        %v1339 = vrot.slane %v1249, %v1338
        %v1340 = vlaneseq
        %v1341 = vshrl.u32 %v1340, 7
        %v1342 = vsub.s32 0, %v1341
        %v1343 = vrot.slane %v1253, %v1342
        %v1344 = vlaneseq
        %v1345 = vshrl.u32 %v1344, 7
        %v1346 = vsub.s32 0, %v1345
        %v1347 = vrot.slane %v1257, %v1346
        %v1348 = vlaneseq
        %v1349 = vshrl.u32 %v1348, 7
        %v1350 = vsub.s32 0, %v1349
        %v1351 = vrot.slane %v1261, %v1350
        %v1352 = vmul.f32 %v1174, %v1283
        %v1353 = vmul.f32 %v1174, %v1287
        %v1354 = vmul.f32 %v1174, %v1291
        %v1355 = vmul.f32 %v1174, %v1295
        %v1356 = vmul.f32 %v1174, %v1299
        %v1357 = vmul.f32 %v1174, %v1303
        %v1358 = vmul.f32 %v1174, %v1307
        %v1359 = vmul.f32 %v1174, %v1311
        %v1360 = vmul.f32 %v1174, %v1315
        %v1361 = vmul.f32 %v1174, %v1319
        %v1362 = vmul.f32 %v1174, %v1323
        %v1363 = vmul.f32 %v1174, %v1327
        %v1364 = vmul.f32 %v1174, %v1331
        %v1365 = vmul.f32 %v1174, %v1335
        %v1366 = vmul.f32 %v1174, %v1339
        %v1367 = vmul.f32 %v1174, %v1343
        %v1368 = vmul.f32 %v1174, %v1347
        %v1369 = vmul.f32 %v1174, %v1351
        %v1370 = vmul.f32 %v1179, %v1283
        %v1371 = vmul.f32 %v1179, %v1287
        %v1372 = vmul.f32 %v1179, %v1291
        %v1373 = vmul.f32 %v1179, %v1295
        %v1374 = vmul.f32 %v1179, %v1299
        %v1375 = vmul.f32 %v1179, %v1303
        %v1376 = vmul.f32 %v1179, %v1307
        %v1377 = vmul.f32 %v1179, %v1311
        %v1378 = vmul.f32 %v1179, %v1315
        %v1379 = vmul.f32 %v1179, %v1319
        %v1380 = vmul.f32 %v1179, %v1323
        %v1381 = vmul.f32 %v1179, %v1327
        %v1382 = vmul.f32 %v1179, %v1331
        %v1383 = vmul.f32 %v1179, %v1335
        %v1384 = vmul.f32 %v1179, %v1339
        %v1385 = vmul.f32 %v1179, %v1343
        %v1386 = vmul.f32 %v1179, %v1347
        %v1387 = vmul.f32 %v1179, %v1351
        %1388 = vset.pattern.permute.xlu0 1
        %1389 = vperm.xlu0 %1388, %v1169
        %v1390 = vpop.permute.xlu0 %1389
        %1392 = vset.pattern.permute.xlu0 1
        %1393 = vperm.xlu0 %1392, %v1170
        %v1394 = vpop.permute.xlu0 %1393
        %v1396 = vlaneseq
        %v1397 = vshrl.u32 %v1396, 7
        %v1398 = vsub.s32 1, %v1397
        %v1399 = vrot.slane %v1160, %v1398
        %v1400 = vlaneseq
        %v1401 = vshrl.u32 %v1400, 7
        %v1402 = vsub.s32 5, %v1401
        %v1403 = vrot.slane %v1160, %v1402
        %v1404 = vlaneseq
        %v1405 = vshrl.u32 %v1404, 7
        %v1406 = vsub.s32 1, %v1405
        %v1407 = vrot.slane %v1161, %v1406
        %v1408 = vlaneseq
        %v1409 = vshrl.u32 %v1408, 7
        %v1410 = vsub.s32 5, %v1409
        %v1411 = vrot.slane %v1161, %v1410
        %v1412 = vlaneseq
        %v1413 = vshrl.u32 %v1412, 7
        %v1414 = vsub.s32 1, %v1413
        %v1415 = vrot.slane %v1162, %v1414
        %v1416 = vlaneseq
        %v1417 = vshrl.u32 %v1416, 7
        %v1418 = vsub.s32 5, %v1417
        %v1419 = vrot.slane %v1162, %v1418
        %v1420 = vlaneseq
        %v1421 = vshrl.u32 %v1420, 7
        %v1422 = vsub.s32 1, %v1421
        %v1423 = vrot.slane %v1163, %v1422
        %v1424 = vlaneseq
        %v1425 = vshrl.u32 %v1424, 7
        %v1426 = vsub.s32 5, %v1425
        %v1427 = vrot.slane %v1163, %v1426
        %v1428 = vlaneseq
        %v1429 = vshrl.u32 %v1428, 7
        %v1430 = vsub.s32 1, %v1429
        %v1431 = vrot.slane %v1164, %v1430
        %v1432 = vlaneseq
        %v1433 = vshrl.u32 %v1432, 7
        %v1434 = vsub.s32 5, %v1433
        %v1435 = vrot.slane %v1164, %v1434
        %v1436 = vlaneseq
        %v1437 = vshrl.u32 %v1436, 7
        %v1438 = vsub.s32 1, %v1437
        %v1439 = vrot.slane %v1165, %v1438
        %v1440 = vlaneseq
        %v1441 = vshrl.u32 %v1440, 7
        %v1442 = vsub.s32 5, %v1441
        %v1443 = vrot.slane %v1165, %v1442
        %v1444 = vlaneseq
        %v1445 = vshrl.u32 %v1444, 7
        %v1446 = vsub.s32 1, %v1445
        %v1447 = vrot.slane %v1166, %v1446
        %v1448 = vlaneseq
        %v1449 = vshrl.u32 %v1448, 7
        %v1450 = vsub.s32 5, %v1449
        %v1451 = vrot.slane %v1166, %v1450
        %v1452 = vlaneseq
        %v1453 = vshrl.u32 %v1452, 7
        %v1454 = vsub.s32 1, %v1453
        %v1455 = vrot.slane %v1167, %v1454
        %v1456 = vlaneseq
        %v1457 = vshrl.u32 %v1456, 7
        %v1458 = vsub.s32 5, %v1457
        %v1459 = vrot.slane %v1167, %v1458
        %v1460 = vlaneseq
        %v1461 = vshrl.u32 %v1460, 7
        %v1462 = vsub.s32 1, %v1461
        %v1463 = vrot.slane %v1168, %v1462
        %v1464 = vlaneseq
        %v1465 = vshrl.u32 %v1464, 7
        %v1466 = vsub.s32 5, %v1465
        %v1467 = vrot.slane %v1168, %v1466
        %v1486 = vlaneseq
        %v1487 = vshrl.u32 %v1486, 7
        %v1488 = vsub.s32 1, %v1487
        %v1489 = vrot.slane %v1399, %v1488
        %v1490 = vlaneseq
        %v1491 = vshrl.u32 %v1490, 7
        %v1492 = vsub.s32 1, %v1491
        %v1493 = vrot.slane %v1403, %v1492
        %v1494 = vlaneseq
        %v1495 = vshrl.u32 %v1494, 7
        %v1496 = vsub.s32 1, %v1495
        %v1497 = vrot.slane %v1407, %v1496
        %v1498 = vlaneseq
        %v1499 = vshrl.u32 %v1498, 7
        %v1500 = vsub.s32 1, %v1499
        %v1501 = vrot.slane %v1411, %v1500
        %v1502 = vlaneseq
        %v1503 = vshrl.u32 %v1502, 7
        %v1504 = vsub.s32 1, %v1503
        %v1505 = vrot.slane %v1415, %v1504
        %v1506 = vlaneseq
        %v1507 = vshrl.u32 %v1506, 7
        %v1508 = vsub.s32 1, %v1507
        %v1509 = vrot.slane %v1419, %v1508
        %v1510 = vlaneseq
        %v1511 = vshrl.u32 %v1510, 7
        %v1512 = vsub.s32 1, %v1511
        %v1513 = vrot.slane %v1423, %v1512
        %v1514 = vlaneseq
        %v1515 = vshrl.u32 %v1514, 7
        %v1516 = vsub.s32 1, %v1515
        %v1517 = vrot.slane %v1427, %v1516
        %v1518 = vlaneseq
        %v1519 = vshrl.u32 %v1518, 7
        %v1520 = vsub.s32 1, %v1519
        %v1521 = vrot.slane %v1431, %v1520
        %v1522 = vlaneseq
        %v1523 = vshrl.u32 %v1522, 7
        %v1524 = vsub.s32 1, %v1523
        %v1525 = vrot.slane %v1435, %v1524
        %v1526 = vlaneseq
        %v1527 = vshrl.u32 %v1526, 7
        %v1528 = vsub.s32 1, %v1527
        %v1529 = vrot.slane %v1439, %v1528
        %v1530 = vlaneseq
        %v1531 = vshrl.u32 %v1530, 7
        %v1532 = vsub.s32 1, %v1531
        %v1533 = vrot.slane %v1443, %v1532
        %v1534 = vlaneseq
        %v1535 = vshrl.u32 %v1534, 7
        %v1536 = vsub.s32 1, %v1535
        %v1537 = vrot.slane %v1447, %v1536
        %v1538 = vlaneseq
        %v1539 = vshrl.u32 %v1538, 7
        %v1540 = vsub.s32 1, %v1539
        %v1541 = vrot.slane %v1451, %v1540
        %v1542 = vlaneseq
        %v1543 = vshrl.u32 %v1542, 7
        %v1544 = vsub.s32 1, %v1543
        %v1545 = vrot.slane %v1455, %v1544
        %v1546 = vlaneseq
        %v1547 = vshrl.u32 %v1546, 7
        %v1548 = vsub.s32 1, %v1547
        %v1549 = vrot.slane %v1459, %v1548
        %v1550 = vlaneseq
        %v1551 = vshrl.u32 %v1550, 7
        %v1552 = vsub.s32 1, %v1551
        %v1553 = vrot.slane %v1463, %v1552
        %v1554 = vlaneseq
        %v1555 = vshrl.u32 %v1554, 7
        %v1556 = vsub.s32 1, %v1555
        %v1557 = vrot.slane %v1467, %v1556
        %v1558 = vmul.f32 %v1390, %v1489
        %v1559 = vmul.f32 %v1390, %v1493
        %v1560 = vmul.f32 %v1390, %v1497
        %v1561 = vmul.f32 %v1390, %v1501
        %v1562 = vmul.f32 %v1390, %v1505
        %v1563 = vmul.f32 %v1390, %v1509
        %v1564 = vmul.f32 %v1390, %v1513
        %v1565 = vmul.f32 %v1390, %v1517
        %v1566 = vmul.f32 %v1390, %v1521
        %v1567 = vmul.f32 %v1390, %v1525
        %v1568 = vmul.f32 %v1390, %v1529
        %v1569 = vmul.f32 %v1390, %v1533
        %v1570 = vmul.f32 %v1390, %v1537
        %v1571 = vmul.f32 %v1390, %v1541
        %v1572 = vmul.f32 %v1390, %v1545
        %v1573 = vmul.f32 %v1390, %v1549
        %v1574 = vmul.f32 %v1390, %v1553
        %v1575 = vmul.f32 %v1390, %v1557
        %v1576 = vmul.f32 %v1394, %v1489
        %v1577 = vmul.f32 %v1394, %v1493
        %v1578 = vmul.f32 %v1394, %v1497
        %v1579 = vmul.f32 %v1394, %v1501
        %v1580 = vmul.f32 %v1394, %v1505
        %v1581 = vmul.f32 %v1394, %v1509
        %v1582 = vmul.f32 %v1394, %v1513
        %v1583 = vmul.f32 %v1394, %v1517
        %v1584 = vmul.f32 %v1394, %v1521
        %v1585 = vmul.f32 %v1394, %v1525
        %v1586 = vmul.f32 %v1394, %v1529
        %v1587 = vmul.f32 %v1394, %v1533
        %v1588 = vmul.f32 %v1394, %v1537
        %v1589 = vmul.f32 %v1394, %v1541
        %v1590 = vmul.f32 %v1394, %v1545
        %v1591 = vmul.f32 %v1394, %v1549
        %v1592 = vmul.f32 %v1394, %v1553
        %v1593 = vmul.f32 %v1394, %v1557
        %v1594 = vadd.f32 %v1352, %v1558
        %v1595 = vadd.f32 %v1353, %v1559
        %v1596 = vadd.f32 %v1354, %v1560
        %v1597 = vadd.f32 %v1355, %v1561
        %v1598 = vadd.f32 %v1356, %v1562
        %v1599 = vadd.f32 %v1357, %v1563
        %v1600 = vadd.f32 %v1358, %v1564
        %v1601 = vadd.f32 %v1359, %v1565
        %v1602 = vadd.f32 %v1360, %v1566
        %v1603 = vadd.f32 %v1361, %v1567
        %v1604 = vadd.f32 %v1362, %v1568
        %v1605 = vadd.f32 %v1363, %v1569
        %v1606 = vadd.f32 %v1364, %v1570
        %v1607 = vadd.f32 %v1365, %v1571
        %v1608 = vadd.f32 %v1366, %v1572
        %v1609 = vadd.f32 %v1367, %v1573
        %v1610 = vadd.f32 %v1368, %v1574
        %v1611 = vadd.f32 %v1369, %v1575
        %v1612 = vadd.f32 %v1370, %v1576
        %v1613 = vadd.f32 %v1371, %v1577
        %v1614 = vadd.f32 %v1372, %v1578
        %v1615 = vadd.f32 %v1373, %v1579
        %v1616 = vadd.f32 %v1374, %v1580
        %v1617 = vadd.f32 %v1375, %v1581
        %v1618 = vadd.f32 %v1376, %v1582
        %v1619 = vadd.f32 %v1377, %v1583
        %v1620 = vadd.f32 %v1378, %v1584
        %v1621 = vadd.f32 %v1379, %v1585
        %v1622 = vadd.f32 %v1380, %v1586
        %v1623 = vadd.f32 %v1381, %v1587
        %v1624 = vadd.f32 %v1382, %v1588
        %v1625 = vadd.f32 %v1383, %v1589
        %v1626 = vadd.f32 %v1384, %v1590
        %v1627 = vadd.f32 %v1385, %v1591
        %v1628 = vadd.f32 %v1386, %v1592
        %v1629 = vadd.f32 %v1387, %v1593
        %1630 = vset.pattern.permute.xlu0 2
        %1631 = vperm.xlu0 %1630, %v1169
        %v1632 = vpop.permute.xlu0 %1631
        %1634 = vset.pattern.permute.xlu0 2
        %1635 = vperm.xlu0 %1634, %v1170
        %v1636 = vpop.permute.xlu0 %1635
        %v1638 = vlaneseq
        %v1639 = vshrl.u32 %v1638, 7
        %v1640 = vsub.s32 2, %v1639
        %v1641 = vrot.slane %v1160, %v1640
        %v1642 = vlaneseq
        %v1643 = vshrl.u32 %v1642, 7
        %v1644 = vsub.s32 6, %v1643
        %v1645 = vrot.slane %v1160, %v1644
        %v1646 = vlaneseq
        %v1647 = vshrl.u32 %v1646, 7
        %v1648 = vsub.s32 2, %v1647
        %v1649 = vrot.slane %v1161, %v1648
        %v1650 = vlaneseq
        %v1651 = vshrl.u32 %v1650, 7
        %v1652 = vsub.s32 6, %v1651
        %v1653 = vrot.slane %v1161, %v1652
        %v1654 = vlaneseq
        %v1655 = vshrl.u32 %v1654, 7
        %v1656 = vsub.s32 2, %v1655
        %v1657 = vrot.slane %v1162, %v1656
        %v1658 = vlaneseq
        %v1659 = vshrl.u32 %v1658, 7
        %v1660 = vsub.s32 6, %v1659
        %v1661 = vrot.slane %v1162, %v1660
        %v1662 = vlaneseq
        %v1663 = vshrl.u32 %v1662, 7
        %v1664 = vsub.s32 2, %v1663
        %v1665 = vrot.slane %v1163, %v1664
        %v1666 = vlaneseq
        %v1667 = vshrl.u32 %v1666, 7
        %v1668 = vsub.s32 6, %v1667
        %v1669 = vrot.slane %v1163, %v1668
        %v1670 = vlaneseq
        %v1671 = vshrl.u32 %v1670, 7
        %v1672 = vsub.s32 2, %v1671
        %v1673 = vrot.slane %v1164, %v1672
        %v1674 = vlaneseq
        %v1675 = vshrl.u32 %v1674, 7
        %v1676 = vsub.s32 6, %v1675
        %v1677 = vrot.slane %v1164, %v1676
        %v1678 = vlaneseq
        %v1679 = vshrl.u32 %v1678, 7
        %v1680 = vsub.s32 2, %v1679
        %v1681 = vrot.slane %v1165, %v1680
        %v1682 = vlaneseq
        %v1683 = vshrl.u32 %v1682, 7
        %v1684 = vsub.s32 6, %v1683
        %v1685 = vrot.slane %v1165, %v1684
        %v1686 = vlaneseq
        %v1687 = vshrl.u32 %v1686, 7
        %v1688 = vsub.s32 2, %v1687
        %v1689 = vrot.slane %v1166, %v1688
        %v1690 = vlaneseq
        %v1691 = vshrl.u32 %v1690, 7
        %v1692 = vsub.s32 6, %v1691
        %v1693 = vrot.slane %v1166, %v1692
        %v1694 = vlaneseq
        %v1695 = vshrl.u32 %v1694, 7
        %v1696 = vsub.s32 2, %v1695
        %v1697 = vrot.slane %v1167, %v1696
        %v1698 = vlaneseq
        %v1699 = vshrl.u32 %v1698, 7
        %v1700 = vsub.s32 6, %v1699
        %v1701 = vrot.slane %v1167, %v1700
        %v1702 = vlaneseq
        %v1703 = vshrl.u32 %v1702, 7
        %v1704 = vsub.s32 2, %v1703
        %v1705 = vrot.slane %v1168, %v1704
        %v1706 = vlaneseq
        %v1707 = vshrl.u32 %v1706, 7
        %v1708 = vsub.s32 6, %v1707
        %v1709 = vrot.slane %v1168, %v1708
        %v1728 = vlaneseq
        %v1729 = vshrl.u32 %v1728, 7
        %v1730 = vsub.s32 2, %v1729
        %v1731 = vrot.slane %v1641, %v1730
        %v1732 = vlaneseq
        %v1733 = vshrl.u32 %v1732, 7
        %v1734 = vsub.s32 2, %v1733
        %v1735 = vrot.slane %v1645, %v1734
        %v1736 = vlaneseq
        %v1737 = vshrl.u32 %v1736, 7
        %v1738 = vsub.s32 2, %v1737
        %v1739 = vrot.slane %v1649, %v1738
        %v1740 = vlaneseq
        %v1741 = vshrl.u32 %v1740, 7
        %v1742 = vsub.s32 2, %v1741
        %v1743 = vrot.slane %v1653, %v1742
        %v1744 = vlaneseq
        %v1745 = vshrl.u32 %v1744, 7
        %v1746 = vsub.s32 2, %v1745
        %v1747 = vrot.slane %v1657, %v1746
        %v1748 = vlaneseq
        %v1749 = vshrl.u32 %v1748, 7
        %v1750 = vsub.s32 2, %v1749
        %v1751 = vrot.slane %v1661, %v1750
        %v1752 = vlaneseq
        %v1753 = vshrl.u32 %v1752, 7
        %v1754 = vsub.s32 2, %v1753
        %v1755 = vrot.slane %v1665, %v1754
        %v1756 = vlaneseq
        %v1757 = vshrl.u32 %v1756, 7
        %v1758 = vsub.s32 2, %v1757
        %v1759 = vrot.slane %v1669, %v1758
        %v1760 = vlaneseq
        %v1761 = vshrl.u32 %v1760, 7
        %v1762 = vsub.s32 2, %v1761
        %v1763 = vrot.slane %v1673, %v1762
        %v1764 = vlaneseq
        %v1765 = vshrl.u32 %v1764, 7
        %v1766 = vsub.s32 2, %v1765
        %v1767 = vrot.slane %v1677, %v1766
        %v1768 = vlaneseq
        %v1769 = vshrl.u32 %v1768, 7
        %v1770 = vsub.s32 2, %v1769
        %v1771 = vrot.slane %v1681, %v1770
        %v1772 = vlaneseq
        %v1773 = vshrl.u32 %v1772, 7
        %v1774 = vsub.s32 2, %v1773
        %v1775 = vrot.slane %v1685, %v1774
        %v1776 = vlaneseq
        %v1777 = vshrl.u32 %v1776, 7
        %v1778 = vsub.s32 2, %v1777
        %v1779 = vrot.slane %v1689, %v1778
        %v1780 = vlaneseq
        %v1781 = vshrl.u32 %v1780, 7
        %v1782 = vsub.s32 2, %v1781
        %v1783 = vrot.slane %v1693, %v1782
        %v1784 = vlaneseq
        %v1785 = vshrl.u32 %v1784, 7
        %v1786 = vsub.s32 2, %v1785
        %v1787 = vrot.slane %v1697, %v1786
        %v1788 = vlaneseq
        %v1789 = vshrl.u32 %v1788, 7
        %v1790 = vsub.s32 2, %v1789
        %v1791 = vrot.slane %v1701, %v1790
        %v1792 = vlaneseq
        %v1793 = vshrl.u32 %v1792, 7
        %v1794 = vsub.s32 2, %v1793
        %v1795 = vrot.slane %v1705, %v1794
        %v1796 = vlaneseq
        %v1797 = vshrl.u32 %v1796, 7
        %v1798 = vsub.s32 2, %v1797
        %v1799 = vrot.slane %v1709, %v1798
        %v1800 = vmul.f32 %v1632, %v1731
        %v1801 = vmul.f32 %v1632, %v1735
        %v1802 = vmul.f32 %v1632, %v1739
        %v1803 = vmul.f32 %v1632, %v1743
        %v1804 = vmul.f32 %v1632, %v1747
        %v1805 = vmul.f32 %v1632, %v1751
        %v1806 = vmul.f32 %v1632, %v1755
        %v1807 = vmul.f32 %v1632, %v1759
        %v1808 = vmul.f32 %v1632, %v1763
        %v1809 = vmul.f32 %v1632, %v1767
        %v1810 = vmul.f32 %v1632, %v1771
        %v1811 = vmul.f32 %v1632, %v1775
        %v1812 = vmul.f32 %v1632, %v1779
        %v1813 = vmul.f32 %v1632, %v1783
        %v1814 = vmul.f32 %v1632, %v1787
        %v1815 = vmul.f32 %v1632, %v1791
        %v1816 = vmul.f32 %v1632, %v1795
        %v1817 = vmul.f32 %v1632, %v1799
        %v1818 = vmul.f32 %v1636, %v1731
        %v1819 = vmul.f32 %v1636, %v1735
        %v1820 = vmul.f32 %v1636, %v1739
        %v1821 = vmul.f32 %v1636, %v1743
        %v1822 = vmul.f32 %v1636, %v1747
        %v1823 = vmul.f32 %v1636, %v1751
        %v1824 = vmul.f32 %v1636, %v1755
        %v1825 = vmul.f32 %v1636, %v1759
        %v1826 = vmul.f32 %v1636, %v1763
        %v1827 = vmul.f32 %v1636, %v1767
        %v1828 = vmul.f32 %v1636, %v1771
        %v1829 = vmul.f32 %v1636, %v1775
        %v1830 = vmul.f32 %v1636, %v1779
        %v1831 = vmul.f32 %v1636, %v1783
        %v1832 = vmul.f32 %v1636, %v1787
        %v1833 = vmul.f32 %v1636, %v1791
        %v1834 = vmul.f32 %v1636, %v1795
        %v1835 = vmul.f32 %v1636, %v1799
        %v1836 = vadd.f32 %v1594, %v1800
        %v1837 = vadd.f32 %v1595, %v1801
        %v1838 = vadd.f32 %v1596, %v1802
        %v1839 = vadd.f32 %v1597, %v1803
        %v1840 = vadd.f32 %v1598, %v1804
        %v1841 = vadd.f32 %v1599, %v1805
        %v1842 = vadd.f32 %v1600, %v1806
        %v1843 = vadd.f32 %v1601, %v1807
        %v1844 = vadd.f32 %v1602, %v1808
        %v1845 = vadd.f32 %v1603, %v1809
        %v1846 = vadd.f32 %v1604, %v1810
        %v1847 = vadd.f32 %v1605, %v1811
        %v1848 = vadd.f32 %v1606, %v1812
        %v1849 = vadd.f32 %v1607, %v1813
        %v1850 = vadd.f32 %v1608, %v1814
        %v1851 = vadd.f32 %v1609, %v1815
        %v1852 = vadd.f32 %v1610, %v1816
        %v1853 = vadd.f32 %v1611, %v1817
        %v1854 = vadd.f32 %v1612, %v1818
        %v1855 = vadd.f32 %v1613, %v1819
        %v1856 = vadd.f32 %v1614, %v1820
        %v1857 = vadd.f32 %v1615, %v1821
        %v1858 = vadd.f32 %v1616, %v1822
        %v1859 = vadd.f32 %v1617, %v1823
        %v1860 = vadd.f32 %v1618, %v1824
        %v1861 = vadd.f32 %v1619, %v1825
        %v1862 = vadd.f32 %v1620, %v1826
        %v1863 = vadd.f32 %v1621, %v1827
        %v1864 = vadd.f32 %v1622, %v1828
        %v1865 = vadd.f32 %v1623, %v1829
        %v1866 = vadd.f32 %v1624, %v1830
        %v1867 = vadd.f32 %v1625, %v1831
        %v1868 = vadd.f32 %v1626, %v1832
        %v1869 = vadd.f32 %v1627, %v1833
        %v1870 = vadd.f32 %v1628, %v1834
        %v1871 = vadd.f32 %v1629, %v1835
        %v1872 = vld [vmem:[%s5] sm:$0xff]
        %v1873 = vld [vmem:[%s5 + $0x8] sm:$0xff]
        %1875 = vset.pattern.permute.xlu0 0
        %1876 = vperm.xlu0 %1875, %v1872
        %v1877 = vpop.permute.xlu0 %1876
        %1880 = vset.pattern.permute.xlu0 0
        %1881 = vperm.xlu0 %1880, %v1873
        %v1882 = vpop.permute.xlu0 %1881
        %v1884 = vadd.f32 %v1836, %v1877
        %v1885 = vadd.f32 %v1837, %v1877
        %v1886 = vadd.f32 %v1838, %v1877
        %v1887 = vadd.f32 %v1839, %v1877
        %v1888 = vadd.f32 %v1840, %v1877
        %v1889 = vadd.f32 %v1841, %v1877
        %v1890 = vadd.f32 %v1842, %v1877
        %v1891 = vadd.f32 %v1843, %v1877
        %v1892 = vadd.f32 %v1844, %v1877
        %v1893 = vadd.f32 %v1845, %v1877
        %v1894 = vadd.f32 %v1846, %v1877
        %v1895 = vadd.f32 %v1847, %v1877
        %v1896 = vadd.f32 %v1848, %v1877
        %v1897 = vadd.f32 %v1849, %v1877
        %v1898 = vadd.f32 %v1850, %v1877
        %v1899 = vadd.f32 %v1851, %v1877
        %v1900 = vadd.f32 %v1852, %v1877
        %v1901 = vadd.f32 %v1853, %v1877
        %v1902 = vadd.f32 %v1854, %v1882
        %v1903 = vadd.f32 %v1855, %v1882
        %v1904 = vadd.f32 %v1856, %v1882
        %v1905 = vadd.f32 %v1857, %v1882
        %v1906 = vadd.f32 %v1858, %v1882
        %v1907 = vadd.f32 %v1859, %v1882
        %v1908 = vadd.f32 %v1860, %v1882
        %v1909 = vadd.f32 %v1861, %v1882
        %v1910 = vadd.f32 %v1862, %v1882
        %v1911 = vadd.f32 %v1863, %v1882
        %v1912 = vadd.f32 %v1864, %v1882
        %v1913 = vadd.f32 %v1865, %v1882
        %v1914 = vadd.f32 %v1866, %v1882
        %v1915 = vadd.f32 %v1867, %v1882
        %v1916 = vadd.f32 %v1868, %v1882
        %v1917 = vadd.f32 %v1869, %v1882
        %v1918 = vadd.f32 %v1870, %v1882
        %v1919 = vadd.f32 %v1871, %v1882
        %v1920 = vmax.f32 %v1884, 0.0
        %v1921 = vmax.f32 %v1885, 0.0
        %v1922 = vmax.f32 %v1886, 0.0
        %v1923 = vmax.f32 %v1887, 0.0
        %v1924 = vmax.f32 %v1888, 0.0
        %v1925 = vmax.f32 %v1889, 0.0
        %v1926 = vmax.f32 %v1890, 0.0
        %v1927 = vmax.f32 %v1891, 0.0
        %v1928 = vmax.f32 %v1892, 0.0
        %v1929 = vmax.f32 %v1893, 0.0
        %v1930 = vmax.f32 %v1894, 0.0
        %v1931 = vmax.f32 %v1895, 0.0
        %v1932 = vmax.f32 %v1896, 0.0
        %v1933 = vmax.f32 %v1897, 0.0
        %v1934 = vmax.f32 %v1898, 0.0
        %v1935 = vmax.f32 %v1899, 0.0
        %v1936 = vmax.f32 %v1900, 0.0
        %v1937 = vmax.f32 %v1901, 0.0
        %v1938 = vmax.f32 %v1902, 0.0
        %v1939 = vmax.f32 %v1903, 0.0
        %v1940 = vmax.f32 %v1904, 0.0
        %v1941 = vmax.f32 %v1905, 0.0
        %v1942 = vmax.f32 %v1906, 0.0
        %v1943 = vmax.f32 %v1907, 0.0
        %v1944 = vmax.f32 %v1908, 0.0
        %v1945 = vmax.f32 %v1909, 0.0
        %v1946 = vmax.f32 %v1910, 0.0
        %v1947 = vmax.f32 %v1911, 0.0
        %v1948 = vmax.f32 %v1912, 0.0
        %v1949 = vmax.f32 %v1913, 0.0
        %v1950 = vmax.f32 %v1914, 0.0
        %v1951 = vmax.f32 %v1915, 0.0
        %v1952 = vmax.f32 %v1916, 0.0
        %v1953 = vmax.f32 %v1917, 0.0
        %v1954 = vmax.f32 %v1918, 0.0
        %v1955 = vmax.f32 %v1919, 0.0
        %v1956 = vld [vmem:[#allocation2] sm:$0xff]
        %v1957 = vld [vmem:[#allocation2 + $0x8] sm:$0xff]
        %v1958 = vld [vmem:[#allocation2 + $0x10] sm:$0xf]
        %v1959 = vld [vmem:[#allocation2 + $0x14] sm:$0xff]
        %v1960 = vld [vmem:[#allocation2 + $0x1c] sm:$0xff]
        %v1961 = vld [vmem:[#allocation2 + $0x24] sm:$0xf]
        %v1962 = vld [vmem:[#allocation2 + $0x28] sm:$0xff]
        %v1963 = vld [vmem:[#allocation2 + $0x30] sm:$0xff]
        %v1964 = vld [vmem:[#allocation2 + $0x38] sm:$0xf]
        %v1965 = vld [vmem:[#allocation2 + $0x3c] sm:$0xff]
        %v1966 = vld [vmem:[#allocation2 + $0x44] sm:$0xff]
        %v1967 = vld [vmem:[#allocation2 + $0x4c] sm:$0xf]
        %v1968 = vld [vmem:[#allocation2 + $0x50] sm:$0xff]
        %v1969 = vld [vmem:[#allocation2 + $0x58] sm:$0xff]
        %v1970 = vld [vmem:[#allocation2 + $0x60] sm:$0xf]
        %v1971 = vld [vmem:[#allocation2 + $0x64] sm:$0xff]
        %v1972 = vld [vmem:[#allocation2 + $0x6c] sm:$0xff]
        %v1973 = vld [vmem:[#allocation2 + $0x74] sm:$0xf]
        %v1974 = vld [vmem:[#allocation2 + $0x78] sm:$0xff]
        %v1975 = vld [vmem:[#allocation2 + $0x80] sm:$0xff]
        %v1976 = vld [vmem:[#allocation2 + $0x88] sm:$0xf]
        %v1977 = vld [vmem:[#allocation2 + $0x8c] sm:$0xff]
        %v1978 = vld [vmem:[#allocation2 + $0x94] sm:$0xff]
        %v1979 = vld [vmem:[#allocation2 + $0x9c] sm:$0xf]
        %v1980 = vld [vmem:[#allocation2 + $0xa0] sm:$0xff]
        %v1981 = vld [vmem:[#allocation2 + $0xa8] sm:$0xff]
        %v1982 = vld [vmem:[#allocation2 + $0xb0] sm:$0xf]
        %v1983 = vld [vmem:[#allocation2 + $0xb4] sm:$0xff]
        %v1984 = vld [vmem:[#allocation2 + $0xbc] sm:$0xff]
        %v1985 = vld [vmem:[#allocation2 + $0xc4] sm:$0xf]
        %v1986 = vld [vmem:[#allocation2 + $0xc8] sm:$0xff]
        %v1987 = vld [vmem:[#allocation2 + $0xd0] sm:$0xff]
        %v1988 = vld [vmem:[#allocation2 + $0xd8] sm:$0xf]
        %v1989 = vld [vmem:[#allocation2 + $0xdc] sm:$0xff]
        %v1990 = vld [vmem:[#allocation2 + $0xe4] sm:$0xff]
        %v1991 = vld [vmem:[#allocation2 + $0xec] sm:$0xf]
        %v1992 = vld [vmem:[#allocation2 + $0xf0] sm:$0xff]
        %v1993 = vld [vmem:[#allocation2 + $0xf8] sm:$0xff]
        %v1994 = vld [vmem:[#allocation2 + $0x100] sm:$0xf]
        %v1995 = vld [vmem:[#allocation2 + $0x104] sm:$0xff]
        %v1996 = vld [vmem:[#allocation2 + $0x10c] sm:$0xff]
        %v1997 = vld [vmem:[#allocation2 + $0x114] sm:$0xf]
        %v1998 = vld [vmem:[#allocation2 + $0x118] sm:$0xff]
        %v1999 = vld [vmem:[#allocation2 + $0x120] sm:$0xff]
        %v2000 = vld [vmem:[#allocation2 + $0x128] sm:$0xf]
        %v2001 = vld [vmem:[#allocation2 + $0x12c] sm:$0xff]
        %v2002 = vld [vmem:[#allocation2 + $0x134] sm:$0xff]
        %v2003 = vld [vmem:[#allocation2 + $0x13c] sm:$0xf]
        %v2004 = vld [vmem:[#allocation2 + $0x140] sm:$0xff]
        %v2005 = vld [vmem:[#allocation2 + $0x148] sm:$0xff]
        %v2006 = vld [vmem:[#allocation2 + $0x150] sm:$0xf]
        %v2007 = vld [vmem:[#allocation2 + $0x154] sm:$0xff]
        %v2008 = vld [vmem:[#allocation2 + $0x15c] sm:$0xff]
        %v2009 = vld [vmem:[#allocation2 + $0x164] sm:$0xf]
        %v2010 = vld [vmem:[#allocation2 + $0x168] sm:$0xff]
        %v2011 = vld [vmem:[#allocation2 + $0x170] sm:$0xff]
        %v2012 = vld [vmem:[#allocation2 + $0x178] sm:$0xf]
        %v2013 = vld [vmem:[#allocation2 + $0x17c] sm:$0xff]
        %v2014 = vld [vmem:[#allocation2 + $0x184] sm:$0xff]
        %v2015 = vld [vmem:[#allocation2 + $0x18c] sm:$0xf]
        %v2016 = vld [vmem:[#allocation2 + $0x190] sm:$0xff]
        %v2017 = vld [vmem:[#allocation2 + $0x198] sm:$0xff]
        %v2018 = vld [vmem:[#allocation2 + $0x1a0] sm:$0xf]
        %v2019 = vld [vmem:[#allocation2 + $0x1a4] sm:$0xff]
        %v2020 = vld [vmem:[#allocation2 + $0x1ac] sm:$0xff]
        %v2021 = vld [vmem:[#allocation2 + $0x1b4] sm:$0xf]
        %v2022 = vld [vmem:[#allocation2 + $0x1b8] sm:$0xff]
        %v2023 = vld [vmem:[#allocation2 + $0x1c0] sm:$0xff]
        %v2024 = vld [vmem:[#allocation2 + $0x1c8] sm:$0xf]
        %v2025 = vld [vmem:[#allocation2 + $0x1cc] sm:$0xff]
        %v2026 = vld [vmem:[#allocation2 + $0x1d4] sm:$0xff]
        %v2027 = vld [vmem:[#allocation2 + $0x1dc] sm:$0xf]
        %v2028 = vld [vmem:[#allocation2 + $0x1e0] sm:$0xff]
        %v2029 = vld [vmem:[#allocation2 + $0x1e8] sm:$0xff]
        %v2030 = vld [vmem:[#allocation2 + $0x1f0] sm:$0xf]
        %v2031 = vld [vmem:[#allocation2 + $0x1f4] sm:$0xff]
        %v2032 = vld [vmem:[#allocation2 + $0x1fc] sm:$0xff]
        %v2033 = vld [vmem:[#allocation2 + $0x204] sm:$0xf]
        %v2034 = vld [vmem:[#allocation2 + $0x208] sm:$0xff]
        %v2035 = vld [vmem:[#allocation2 + $0x210] sm:$0xff]
        %v2036 = vld [vmem:[#allocation2 + $0x218] sm:$0xf]
        %v2037 = vld [vmem:[#allocation2 + $0x21c] sm:$0xff]
        %v2038 = vld [vmem:[#allocation2 + $0x224] sm:$0xff]
        %v2039 = vld [vmem:[#allocation2 + $0x22c] sm:$0xf]
        %v2040 = vld [vmem:[#allocation2 + $0x230] sm:$0xff]
        %v2041 = vld [vmem:[#allocation2 + $0x238] sm:$0xff]
        %v2042 = vld [vmem:[#allocation2 + $0x240] sm:$0xf]
        %v2043 = vld [vmem:[#allocation2 + $0x244] sm:$0xff]
        %v2044 = vld [vmem:[#allocation2 + $0x24c] sm:$0xff]
        %v2045 = vld [vmem:[#allocation2 + $0x254] sm:$0xf]
        %v2046 = vld [vmem:[#allocation2 + $0x258] sm:$0xff]
        %v2047 = vld [vmem:[#allocation2 + $0x260] sm:$0xff]
        %v2048 = vld [vmem:[#allocation2 + $0x268] sm:$0xf]
        %v2049 = vld [vmem:[#allocation2 + $0x26c] sm:$0xff]
        %v2050 = vld [vmem:[#allocation2 + $0x274] sm:$0xff]
        %v2051 = vld [vmem:[#allocation2 + $0x27c] sm:$0xf]
        %v2052 = vld [vmem:[#allocation2 + $0x280] sm:$0xff]
        %v2053 = vld [vmem:[#allocation2 + $0x288] sm:$0xff]
        %v2054 = vld [vmem:[#allocation2 + $0x290] sm:$0xf]
        %v2055 = vld [vmem:[#allocation2 + $0x294] sm:$0xff]
        %v2056 = vld [vmem:[#allocation2 + $0x29c] sm:$0xff]
        %v2057 = vld [vmem:[#allocation2 + $0x2a4] sm:$0xf]
        %v2058 = vld [vmem:[#allocation2 + $0x2a8] sm:$0xff]
        %v2059 = vld [vmem:[#allocation2 + $0x2b0] sm:$0xff]
        %v2060 = vld [vmem:[#allocation2 + $0x2b8] sm:$0xf]
        %v2061 = vld [vmem:[#allocation2 + $0x2bc] sm:$0xff]
        %v2062 = vld [vmem:[#allocation2 + $0x2c4] sm:$0xff]
        %v2063 = vld [vmem:[#allocation2 + $0x2cc] sm:$0xf]
        %v2064 = vld [vmem:[#allocation2 + $0x2d0] sm:$0xff]
        %v2065 = vld [vmem:[#allocation2 + $0x2d8] sm:$0xff]
        %v2066 = vld [vmem:[#allocation2 + $0x2e0] sm:$0xf]
        %v2067 = vld [vmem:[#allocation2 + $0x2e4] sm:$0xff]
        %v2068 = vld [vmem:[#allocation2 + $0x2ec] sm:$0xff]
        %v2069 = vld [vmem:[#allocation2 + $0x2f4] sm:$0xf]
        %v2070 = vld [vmem:[#allocation2 + $0x2f8] sm:$0xff]
        %v2071 = vld [vmem:[#allocation2 + $0x300] sm:$0xff]
        %v2072 = vld [vmem:[#allocation2 + $0x308] sm:$0xf]
        %v2073 = vld [vmem:[#allocation2 + $0x30c] sm:$0xff]
        %v2074 = vld [vmem:[#allocation2 + $0x314] sm:$0xff]
        %v2075 = vld [vmem:[#allocation2 + $0x31c] sm:$0xf]
        %v2076 = vld [vmem:[#allocation2 + $0x320] sm:$0xff]
        %v2077 = vld [vmem:[#allocation2 + $0x328] sm:$0xff]
        %v2078 = vld [vmem:[#allocation2 + $0x330] sm:$0xf]
        %v2079 = vld [vmem:[#allocation2 + $0x334] sm:$0xff]
        %v2080 = vld [vmem:[#allocation2 + $0x33c] sm:$0xff]
        %v2081 = vld [vmem:[#allocation2 + $0x344] sm:$0xf]
        %v2082 = vld [vmem:[#allocation2 + $0x348] sm:$0xff]
        %v2083 = vld [vmem:[#allocation2 + $0x350] sm:$0xff]
        %v2084 = vld [vmem:[#allocation2 + $0x358] sm:$0xf]
        %v2085 = vld [vmem:[#allocation2 + $0x35c] sm:$0xff]
        %v2086 = vld [vmem:[#allocation2 + $0x364] sm:$0xff]
        %v2087 = vld [vmem:[#allocation2 + $0x36c] sm:$0xf]
        %v2088 = vld [vmem:[#allocation2 + $0x370] sm:$0xff]
        %v2089 = vld [vmem:[#allocation2 + $0x378] sm:$0xff]
        %v2090 = vld [vmem:[#allocation2 + $0x380] sm:$0xf]
        %v2091 = vld [vmem:[#allocation2 + $0x384] sm:$0xff]
        %v2092 = vld [vmem:[#allocation2 + $0x38c] sm:$0xff]
        %v2093 = vld [vmem:[#allocation2 + $0x394] sm:$0xf]
        %v2094 = vld [vmem:[#allocation2 + $0x398] sm:$0xff]
        %v2095 = vld [vmem:[#allocation2 + $0x3a0] sm:$0xff]
        %v2096 = vld [vmem:[#allocation2 + $0x3a8] sm:$0xf]
        %v2097 = vld [vmem:[#allocation2 + $0x3ac] sm:$0xff]
        %v2098 = vld [vmem:[#allocation2 + $0x3b4] sm:$0xff]
        %v2099 = vld [vmem:[#allocation2 + $0x3bc] sm:$0xf]
        %v2100 = vld [vmem:[#allocation2 + $0x3c0] sm:$0xff]
        %v2101 = vld [vmem:[#allocation2 + $0x3c8] sm:$0xff]
        %v2102 = vld [vmem:[#allocation2 + $0x3d0] sm:$0xf]
        %v2103 = vld [vmem:[#allocation2 + $0x3d4] sm:$0xff]
        %v2104 = vld [vmem:[#allocation2 + $0x3dc] sm:$0xff]
        %v2105 = vld [vmem:[#allocation2 + $0x3e4] sm:$0xf]
        %v2106 = vld [vmem:[#allocation2 + $0x3e8] sm:$0xff]
        %v2107 = vld [vmem:[#allocation2 + $0x3f0] sm:$0xff]
        %v2108 = vld [vmem:[#allocation2 + $0x3f8] sm:$0xf]
        %v2109 = vld [vmem:[#allocation2 + $0x3fc] sm:$0xff]
        %v2110 = vld [vmem:[#allocation2 + $0x404] sm:$0xff]
        %v2111 = vld [vmem:[#allocation2 + $0x40c] sm:$0xf]
        %v2112 = vld [vmem:[#allocation2 + $0x410] sm:$0xff]
        %v2113 = vld [vmem:[#allocation2 + $0x418] sm:$0xff]
        %v2114 = vld [vmem:[#allocation2 + $0x420] sm:$0xf]
        %v2115 = vld [vmem:[#allocation2 + $0x424] sm:$0xff]
        %v2116 = vld [vmem:[#allocation2 + $0x42c] sm:$0xff]
        %v2117 = vld [vmem:[#allocation2 + $0x434] sm:$0xf]
        %v2118 = vld [vmem:[#allocation2 + $0x438] sm:$0xff]
        %v2119 = vld [vmem:[#allocation2 + $0x440] sm:$0xff]
        %v2120 = vld [vmem:[#allocation2 + $0x448] sm:$0xf]
        %v2121 = vld [vmem:[#allocation2 + $0x44c] sm:$0xff]
        %v2122 = vld [vmem:[#allocation2 + $0x454] sm:$0xff]
        %v2123 = vld [vmem:[#allocation2 + $0x45c] sm:$0xf]
        %v2124 = vld [vmem:[#allocation2 + $0x460] sm:$0xff]
        %v2125 = vld [vmem:[#allocation2 + $0x468] sm:$0xff]
        %v2126 = vld [vmem:[#allocation2 + $0x470] sm:$0xf]
        %v2127 = vld [vmem:[#allocation2 + $0x474] sm:$0xff]
        %v2128 = vld [vmem:[#allocation2 + $0x47c] sm:$0xff]
        %v2129 = vld [vmem:[#allocation2 + $0x484] sm:$0xf]
        %v2130 = vld [vmem:[#allocation2 + $0x488] sm:$0xff]
        %v2131 = vld [vmem:[#allocation2 + $0x490] sm:$0xff]
        %v2132 = vld [vmem:[#allocation2 + $0x498] sm:$0xf]
        %v2133 = vld [vmem:[#allocation2 + $0x49c] sm:$0xff]
        %v2134 = vld [vmem:[#allocation2 + $0x4a4] sm:$0xff]
        %v2135 = vld [vmem:[#allocation2 + $0x4ac] sm:$0xf]
        %v2136 = vld [vmem:[#allocation2 + $0x4b0] sm:$0xff]
        %v2137 = vld [vmem:[#allocation2 + $0x4b8] sm:$0xff]
        %v2138 = vld [vmem:[#allocation2 + $0x4c0] sm:$0xf]
        %v2139 = vld [vmem:[#allocation2 + $0x4c4] sm:$0xff]
        %v2140 = vld [vmem:[#allocation2 + $0x4cc] sm:$0xff]
        %v2141 = vld [vmem:[#allocation2 + $0x4d4] sm:$0xf]
        %v2142 = vld [vmem:[#allocation2 + $0x4d8] sm:$0xff]
        %v2143 = vld [vmem:[#allocation2 + $0x4e0] sm:$0xff]
        %v2144 = vld [vmem:[#allocation2 + $0x4e8] sm:$0xf]
        %v2145 = vld [vmem:[#allocation2 + $0x4ec] sm:$0xff]
        %v2146 = vld [vmem:[#allocation2 + $0x4f4] sm:$0xff]
        %v2147 = vld [vmem:[#allocation2 + $0x4fc] sm:$0xf]
        %v2148 = vld [vmem:[#allocation2 + $0x500] sm:$0xff]
        %v2149 = vld [vmem:[#allocation2 + $0x508] sm:$0xff]
        %v2150 = vld [vmem:[#allocation2 + $0x510] sm:$0xf]
        %v2151 = vld [vmem:[#allocation2 + $0x514] sm:$0xff]
        %v2152 = vld [vmem:[#allocation2 + $0x51c] sm:$0xff]
        %v2153 = vld [vmem:[#allocation2 + $0x524] sm:$0xf]
        %v2154 = vld [vmem:[#allocation2 + $0x528] sm:$0xff]
        %v2155 = vld [vmem:[#allocation2 + $0x530] sm:$0xff]
        %v2156 = vld [vmem:[#allocation2 + $0x538] sm:$0xf]
        %v2157 = vld [vmem:[#allocation2 + $0x53c] sm:$0xff]
        %v2158 = vld [vmem:[#allocation2 + $0x544] sm:$0xff]
        %v2159 = vld [vmem:[#allocation2 + $0x54c] sm:$0xf]
        %v2160 = vld [vmem:[#allocation2 + $0x550] sm:$0xff]
        %v2161 = vld [vmem:[#allocation2 + $0x558] sm:$0xff]
        %v2162 = vld [vmem:[#allocation2 + $0x560] sm:$0xf]
        %v2163 = vld [vmem:[#allocation2 + $0x564] sm:$0xff]
        %v2164 = vld [vmem:[#allocation2 + $0x56c] sm:$0xff]
        %v2165 = vld [vmem:[#allocation2 + $0x574] sm:$0xf]
        %v2166 = vld [vmem:[#allocation2 + $0x578] sm:$0xff]
        %v2167 = vld [vmem:[#allocation2 + $0x580] sm:$0xff]
        %v2168 = vld [vmem:[#allocation2 + $0x588] sm:$0xf]
        %v2169 = vld [vmem:[#allocation2 + $0x58c] sm:$0xff]
        %v2170 = vld [vmem:[#allocation2 + $0x594] sm:$0xff]
        %v2171 = vld [vmem:[#allocation2 + $0x59c] sm:$0xf]
        %v2172 = vld [vmem:[#allocation2 + $0x5a0] sm:$0xff]
        %v2173 = vld [vmem:[#allocation2 + $0x5a8] sm:$0xff]
        %v2174 = vld [vmem:[#allocation2 + $0x5b0] sm:$0xf]
        %v2175 = vld [vmem:[#allocation2 + $0x5b4] sm:$0xff]
        %v2176 = vld [vmem:[#allocation2 + $0x5bc] sm:$0xff]
        %v2177 = vld [vmem:[#allocation2 + $0x5c4] sm:$0xf]
        %v2178 = vld [vmem:[#allocation2 + $0x5c8] sm:$0xff]
        %v2179 = vld [vmem:[#allocation2 + $0x5d0] sm:$0xff]
        %v2180 = vld [vmem:[#allocation2 + $0x5d8] sm:$0xf]
        %v2181 = vld [vmem:[#allocation2 + $0x5dc] sm:$0xff]
        %v2182 = vld [vmem:[#allocation2 + $0x5e4] sm:$0xff]
        %v2183 = vld [vmem:[#allocation2 + $0x5ec] sm:$0xf]
        %v2184 = vld [vmem:[#allocation2 + $0x5f0] sm:$0xff]
        %v2185 = vld [vmem:[#allocation2 + $0x5f8] sm:$0xff]
        %v2186 = vld [vmem:[#allocation2 + $0x600] sm:$0xf]
        %v2187 = vld [vmem:[#allocation2 + $0x604] sm:$0xff]
        %v2188 = vld [vmem:[#allocation2 + $0x60c] sm:$0xff]
        %v2189 = vld [vmem:[#allocation2 + $0x614] sm:$0xf]
        %v2190 = vld [vmem:[#allocation2 + $0x618] sm:$0xff]
        %v2191 = vld [vmem:[#allocation2 + $0x620] sm:$0xff]
        %v2192 = vld [vmem:[#allocation2 + $0x628] sm:$0xf]
        %v2193 = vld [vmem:[#allocation2 + $0x62c] sm:$0xff]
        %v2194 = vld [vmem:[#allocation2 + $0x634] sm:$0xff]
        %v2195 = vld [vmem:[#allocation2 + $0x63c] sm:$0xf]
        %v2196 = vld [vmem:[#allocation2 + $0x640] sm:$0xff]
        %v2197 = vld [vmem:[#allocation2 + $0x648] sm:$0xff]
        %v2198 = vld [vmem:[#allocation2 + $0x650] sm:$0xf]
        %v2199 = vld [vmem:[#allocation2 + $0x654] sm:$0xff]
        %v2200 = vld [vmem:[#allocation2 + $0x65c] sm:$0xff]
        %v2201 = vld [vmem:[#allocation2 + $0x664] sm:$0xf]
        %v2202 = vld [vmem:[#allocation2 + $0x668] sm:$0xff]
        %v2203 = vld [vmem:[#allocation2 + $0x670] sm:$0xff]
        %v2204 = vld [vmem:[#allocation2 + $0x678] sm:$0xf]
        %v2205 = vld [vmem:[#allocation2 + $0x67c] sm:$0xff]
        %v2206 = vld [vmem:[#allocation2 + $0x684] sm:$0xff]
        %v2207 = vld [vmem:[#allocation2 + $0x68c] sm:$0xf]
        %v2208 = vld [vmem:[#allocation2 + $0x690] sm:$0xff]
        %v2209 = vld [vmem:[#allocation2 + $0x698] sm:$0xff]
        %v2210 = vld [vmem:[#allocation2 + $0x6a0] sm:$0xf]
        %v2211 = vld [vmem:[#allocation2 + $0x6a4] sm:$0xff]
        %v2212 = vld [vmem:[#allocation2 + $0x6ac] sm:$0xff]
        %v2213 = vld [vmem:[#allocation2 + $0x6b4] sm:$0xf]
        %v2214 = vld [vmem:[#allocation2 + $0x6b8] sm:$0xff]
        %v2215 = vld [vmem:[#allocation2 + $0x6c0] sm:$0xff]
        %v2216 = vld [vmem:[#allocation2 + $0x6c8] sm:$0xf]
        %v2217 = vld [vmem:[#allocation2 + $0x6cc] sm:$0xff]
        %v2218 = vld [vmem:[#allocation2 + $0x6d4] sm:$0xff]
        %v2219 = vld [vmem:[#allocation2 + $0x6dc] sm:$0xf]
        %v2220 = vld [vmem:[#allocation2 + $0x6e0] sm:$0xff]
        %v2221 = vld [vmem:[#allocation2 + $0x6e8] sm:$0xff]
        %v2222 = vld [vmem:[#allocation2 + $0x6f0] sm:$0xf]
        %v2223 = vld [vmem:[#allocation2 + $0x6f4] sm:$0xff]
        %v2224 = vld [vmem:[#allocation2 + $0x6fc] sm:$0xff]
        %v2225 = vld [vmem:[#allocation2 + $0x704] sm:$0xf]
        %v2226 = vld [vmem:[#allocation2 + $0x708] sm:$0xff]
        %v2227 = vld [vmem:[#allocation2 + $0x710] sm:$0xff]
        %v2228 = vld [vmem:[#allocation2 + $0x718] sm:$0xf]
        %v2229 = vld [vmem:[#allocation2 + $0x71c] sm:$0xff]
        %v2230 = vld [vmem:[#allocation2 + $0x724] sm:$0xff]
        %v2231 = vld [vmem:[#allocation2 + $0x72c] sm:$0xf]
        %v2232 = vld [vmem:[#allocation2 + $0x730] sm:$0xff]
        %v2233 = vld [vmem:[#allocation2 + $0x738] sm:$0xff]
        %v2234 = vld [vmem:[#allocation2 + $0x740] sm:$0xf]
        %v2235 = vld [vmem:[#allocation2 + $0x744] sm:$0xff]
        %v2236 = vld [vmem:[#allocation2 + $0x74c] sm:$0xff]
        %v2237 = vld [vmem:[#allocation2 + $0x754] sm:$0xf]
        %v2238 = vld [vmem:[#allocation2 + $0x758] sm:$0xff]
        %v2239 = vld [vmem:[#allocation2 + $0x760] sm:$0xff]
        %v2240 = vld [vmem:[#allocation2 + $0x768] sm:$0xf]
        %v2241 = vld [vmem:[#allocation2 + $0x76c] sm:$0xff]
        %v2242 = vld [vmem:[#allocation2 + $0x774] sm:$0xff]
        %v2243 = vld [vmem:[#allocation2 + $0x77c] sm:$0xf]
        %v2244 = vld [vmem:[#allocation2 + $0x780] sm:$0xff]
        %v2245 = vld [vmem:[#allocation2 + $0x788] sm:$0xff]
        %v2246 = vld [vmem:[#allocation2 + $0x790] sm:$0xf]
        %v2247 = vld [vmem:[#allocation2 + $0x794] sm:$0xff]
        %v2248 = vld [vmem:[#allocation2 + $0x79c] sm:$0xff]
        %v2249 = vld [vmem:[#allocation2 + $0x7a4] sm:$0xf]
        %v2250 = vld [vmem:[#allocation2 + $0x7a8] sm:$0xff]
        %v2251 = vld [vmem:[#allocation2 + $0x7b0] sm:$0xff]
        %v2252 = vld [vmem:[#allocation2 + $0x7b8] sm:$0xf]
        %v2253 = vld [vmem:[#allocation2 + $0x7bc] sm:$0xff]
        %v2254 = vld [vmem:[#allocation2 + $0x7c4] sm:$0xff]
        %v2255 = vld [vmem:[#allocation2 + $0x7cc] sm:$0xf]
        %v2256 = vld [vmem:[#allocation2 + $0x7d0] sm:$0xff]
        %v2257 = vld [vmem:[#allocation2 + $0x7d8] sm:$0xff]
        %v2258 = vld [vmem:[#allocation2 + $0x7e0] sm:$0xf]
        %v2259 = vld [vmem:[#allocation2 + $0x7e4] sm:$0xff]
        %v2260 = vld [vmem:[#allocation2 + $0x7ec] sm:$0xff]
        %v2261 = vld [vmem:[#allocation2 + $0x7f4] sm:$0xf]
        %v2262 = vld [vmem:[#allocation2 + $0x7f8] sm:$0xff]
        %v2263 = vld [vmem:[#allocation2 + $0x800] sm:$0xff]
        %v2264 = vld [vmem:[#allocation2 + $0x808] sm:$0xf]
        %v2265 = vld [vmem:[#allocation2 + $0x80c] sm:$0xff]
        %v2266 = vld [vmem:[#allocation2 + $0x814] sm:$0xff]
        %v2267 = vld [vmem:[#allocation2 + $0x81c] sm:$0xf]
        %v2268 = vld [vmem:[#allocation2 + $0x820] sm:$0xff]
        %v2269 = vld [vmem:[#allocation2 + $0x828] sm:$0xff]
        %v2270 = vld [vmem:[#allocation2 + $0x830] sm:$0xf]
        %v2271 = vld [vmem:[#allocation2 + $0x834] sm:$0xff]
        %v2272 = vld [vmem:[#allocation2 + $0x83c] sm:$0xff]
        %v2273 = vld [vmem:[#allocation2 + $0x844] sm:$0xf]
        %v2274 = vld [vmem:[#allocation2 + $0x848] sm:$0xff]
        %v2275 = vld [vmem:[#allocation2 + $0x850] sm:$0xff]
        %v2276 = vld [vmem:[#allocation2 + $0x858] sm:$0xf]
        %v2277 = vld [vmem:[#allocation2 + $0x85c] sm:$0xff]
        %v2278 = vld [vmem:[#allocation2 + $0x864] sm:$0xff]
        %v2279 = vld [vmem:[#allocation2 + $0x86c] sm:$0xf]
        %v2280 = vld [vmem:[#allocation2 + $0x870] sm:$0xff]
        %v2281 = vld [vmem:[#allocation2 + $0x878] sm:$0xff]
        %v2282 = vld [vmem:[#allocation2 + $0x880] sm:$0xf]
        %v2283 = vld [vmem:[#allocation2 + $0x884] sm:$0xff]
        %v2284 = vld [vmem:[#allocation2 + $0x88c] sm:$0xff]
        %v2285 = vld [vmem:[#allocation2 + $0x894] sm:$0xf]
        %v2286 = vld [vmem:[#allocation2 + $0x898] sm:$0xff]
        %v2287 = vld [vmem:[#allocation2 + $0x8a0] sm:$0xff]
        %v2288 = vld [vmem:[#allocation2 + $0x8a8] sm:$0xf]
        %v2289 = vld [vmem:[#allocation2 + $0x8ac] sm:$0xff]
        %v2290 = vld [vmem:[#allocation2 + $0x8b4] sm:$0xff]
        %v2291 = vld [vmem:[#allocation2 + $0x8bc] sm:$0xf]
        %v2292 = vld [vmem:[#allocation2 + $0x8c0] sm:$0xff]
        %v2293 = vld [vmem:[#allocation2 + $0x8c8] sm:$0xff]
        %v2294 = vld [vmem:[#allocation2 + $0x8d0] sm:$0xf]
        %v2295 = vld [vmem:[#allocation2 + $0x8d4] sm:$0xff]
        %v2296 = vld [vmem:[#allocation2 + $0x8dc] sm:$0xff]
        %v2297 = vld [vmem:[#allocation2 + $0x8e4] sm:$0xf]
        %v2298 = vld [vmem:[#allocation2 + $0x8e8] sm:$0xff]
        %v2299 = vld [vmem:[#allocation2 + $0x8f0] sm:$0xff]
        %v2300 = vld [vmem:[#allocation2 + $0x8f8] sm:$0xf]
        %v2301 = vld [vmem:[#allocation2 + $0x8fc] sm:$0xff]
        %v2302 = vld [vmem:[#allocation2 + $0x904] sm:$0xff]
        %v2303 = vld [vmem:[#allocation2 + $0x90c] sm:$0xf]
        %v2304 = vld [vmem:[#allocation2 + $0x910] sm:$0xff]
        %v2305 = vld [vmem:[#allocation2 + $0x918] sm:$0xff]
        %v2306 = vld [vmem:[#allocation2 + $0x920] sm:$0xf]
        %v2307 = vld [vmem:[#allocation2 + $0x924] sm:$0xff]
        %v2308 = vld [vmem:[#allocation2 + $0x92c] sm:$0xff]
        %v2309 = vld [vmem:[#allocation2 + $0x934] sm:$0xf]
        %v2310 = vld [vmem:[#allocation2 + $0x938] sm:$0xff]
        %v2311 = vld [vmem:[#allocation2 + $0x940] sm:$0xff]
        %v2312 = vld [vmem:[#allocation2 + $0x948] sm:$0xf]
        %v2313 = vld [vmem:[#allocation2 + $0x94c] sm:$0xff]
        %v2314 = vld [vmem:[#allocation2 + $0x954] sm:$0xff]
        %v2315 = vld [vmem:[#allocation2 + $0x95c] sm:$0xf]
        %v2316 = vld [vmem:[#allocation2 + $0x960] sm:$0xff]
        %v2317 = vld [vmem:[#allocation2 + $0x968] sm:$0xff]
        %v2318 = vld [vmem:[#allocation2 + $0x970] sm:$0xf]
        %v2319 = vld [vmem:[#allocation2 + $0x974] sm:$0xff]
        %v2320 = vld [vmem:[#allocation2 + $0x97c] sm:$0xff]
        %v2321 = vld [vmem:[#allocation2 + $0x984] sm:$0xf]
        %v2322 = vld [vmem:[#allocation2 + $0x988] sm:$0xff]
        %v2323 = vld [vmem:[#allocation2 + $0x990] sm:$0xff]
        %v2324 = vld [vmem:[#allocation2 + $0x998] sm:$0xf]
        %v2325 = vld [vmem:[#allocation2 + $0x99c] sm:$0xff]
        %v2326 = vld [vmem:[#allocation2 + $0x9a4] sm:$0xff]
        %v2327 = vld [vmem:[#allocation2 + $0x9ac] sm:$0xf]
        %v2328 = vld [vmem:[#allocation2 + $0x9b0] sm:$0xff]
        %v2329 = vld [vmem:[#allocation2 + $0x9b8] sm:$0xff]
        %v2330 = vld [vmem:[#allocation2 + $0x9c0] sm:$0xf]
        %v2331 = vld [vmem:[#allocation2 + $0x9c4] sm:$0xff]
        %v2332 = vld [vmem:[#allocation2 + $0x9cc] sm:$0xff]
        %v2333 = vld [vmem:[#allocation2 + $0x9d4] sm:$0xf]
        %v2334 = vld [vmem:[#allocation2 + $0x9d8] sm:$0xff]
        %v2335 = vld [vmem:[#allocation2 + $0x9e0] sm:$0xff]
        %v2336 = vld [vmem:[#allocation2 + $0x9e8] sm:$0xf]
        %v2337 = vld [vmem:[#allocation2 + $0x9ec] sm:$0xff]
        %v2338 = vld [vmem:[#allocation2 + $0x9f4] sm:$0xff]
        %v2339 = vld [vmem:[#allocation2 + $0x9fc] sm:$0xf]
        %v2340 = vld [vmem:[#allocation2 + $0xa00] sm:$0xff]
        %v2341 = vld [vmem:[#allocation2 + $0xa08] sm:$0xff]
        %v2342 = vld [vmem:[#allocation2 + $0xa10] sm:$0xf]
        %v2343 = vld [vmem:[#allocation2 + $0xa14] sm:$0xff]
        %v2344 = vld [vmem:[#allocation2 + $0xa1c] sm:$0xff]
        %v2345 = vld [vmem:[#allocation2 + $0xa24] sm:$0xf]
        %v2346 = vld [vmem:[#allocation2 + $0xa28] sm:$0xff]
        %v2347 = vld [vmem:[#allocation2 + $0xa30] sm:$0xff]
        %v2348 = vld [vmem:[#allocation2 + $0xa38] sm:$0xf]
        %v2349 = vld [vmem:[#allocation2 + $0xa3c] sm:$0xff]
        %v2350 = vld [vmem:[#allocation2 + $0xa44] sm:$0xff]
        %v2351 = vld [vmem:[#allocation2 + $0xa4c] sm:$0xf]
        %v2352 = vld [vmem:[#allocation2 + $0xa50] sm:$0xff]
        %v2353 = vld [vmem:[#allocation2 + $0xa58] sm:$0xff]
        %v2354 = vld [vmem:[#allocation2 + $0xa60] sm:$0xf]
        %v2355 = vld [vmem:[#allocation2 + $0xa64] sm:$0xff]
        %v2356 = vld [vmem:[#allocation2 + $0xa6c] sm:$0xff]
        %v2357 = vld [vmem:[#allocation2 + $0xa74] sm:$0xf]
        %v2358 = vld [vmem:[#allocation2 + $0xa78] sm:$0xff]
        %v2359 = vld [vmem:[#allocation2 + $0xa80] sm:$0xff]
        %v2360 = vld [vmem:[#allocation2 + $0xa88] sm:$0xf]
        %v2361 = vld [vmem:[#allocation2 + $0xa8c] sm:$0xff]
        %v2362 = vld [vmem:[#allocation2 + $0xa94] sm:$0xff]
        %v2363 = vld [vmem:[#allocation2 + $0xa9c] sm:$0xf]
        %v2364 = vld [vmem:[#allocation2 + $0xaa0] sm:$0xff]
        %v2365 = vld [vmem:[#allocation2 + $0xaa8] sm:$0xff]
        %v2366 = vld [vmem:[#allocation2 + $0xab0] sm:$0xf]
        %v2367 = vld [vmem:[#allocation2 + $0xab4] sm:$0xff]
        %v2368 = vld [vmem:[#allocation2 + $0xabc] sm:$0xff]
        %v2369 = vld [vmem:[#allocation2 + $0xac4] sm:$0xf]
        %v2370 = vld [vmem:[#allocation2 + $0xac8] sm:$0xff]
        %v2371 = vld [vmem:[#allocation2 + $0xad0] sm:$0xff]
        %v2372 = vld [vmem:[#allocation2 + $0xad8] sm:$0xf]
        %v2373 = vld [vmem:[#allocation2 + $0xadc] sm:$0xff]
        %v2374 = vld [vmem:[#allocation2 + $0xae4] sm:$0xff]
        %v2375 = vld [vmem:[#allocation2 + $0xaec] sm:$0xf]
        %v2376 = vld [vmem:[#allocation2 + $0xaf0] sm:$0xff]
        %v2377 = vld [vmem:[#allocation2 + $0xaf8] sm:$0xff]
        %v2378 = vld [vmem:[#allocation2 + $0xb00] sm:$0xf]
        %v2379 = vld [vmem:[#allocation2 + $0xb04] sm:$0xff]
        %v2380 = vld [vmem:[#allocation2 + $0xb0c] sm:$0xff]
        %v2381 = vld [vmem:[#allocation2 + $0xb14] sm:$0xf]
        %v2382 = vld [vmem:[#allocation2 + $0xb18] sm:$0xff]
        %v2383 = vld [vmem:[#allocation2 + $0xb20] sm:$0xff]
        %v2384 = vld [vmem:[#allocation2 + $0xb28] sm:$0xf]
        %v2385 = vld [vmem:[#allocation2 + $0xb2c] sm:$0xff]
        %v2386 = vld [vmem:[#allocation2 + $0xb34] sm:$0xff]
        %v2387 = vld [vmem:[#allocation2 + $0xb3c] sm:$0xf]
        %v2388 = vld [vmem:[#allocation2 + $0xb40] sm:$0xff]
        %v2389 = vld [vmem:[#allocation2 + $0xb48] sm:$0xff]
        %v2390 = vld [vmem:[#allocation2 + $0xb50] sm:$0xf]
        %v2391 = vld [vmem:[#allocation2 + $0xb54] sm:$0xff]
        %v2392 = vld [vmem:[#allocation2 + $0xb5c] sm:$0xff]
        %v2393 = vld [vmem:[#allocation2 + $0xb64] sm:$0xf]
        %v2394 = vld [vmem:[#allocation2 + $0xb68] sm:$0xff]
        %v2395 = vld [vmem:[#allocation2 + $0xb70] sm:$0xff]
        %v2396 = vld [vmem:[#allocation2 + $0xb78] sm:$0xf]
        %v2397 = vld [vmem:[#allocation2 + $0xb7c] sm:$0xff]
        %v2398 = vld [vmem:[#allocation2 + $0xb84] sm:$0xff]
        %v2399 = vld [vmem:[#allocation2 + $0xb8c] sm:$0xf]
        %v2400 = vld [vmem:[#allocation2 + $0xb90] sm:$0xff]
        %v2401 = vld [vmem:[#allocation2 + $0xb98] sm:$0xff]
        %v2402 = vld [vmem:[#allocation2 + $0xba0] sm:$0xf]
        %v2403 = vld [vmem:[#allocation2 + $0xba4] sm:$0xff]
        %v2404 = vld [vmem:[#allocation2 + $0xbac] sm:$0xff]
        %v2405 = vld [vmem:[#allocation2 + $0xbb4] sm:$0xf]
        %v2406 = vld [vmem:[#allocation2 + $0xbb8] sm:$0xff]
        %v2407 = vld [vmem:[#allocation2 + $0xbc0] sm:$0xff]
        %v2408 = vld [vmem:[#allocation2 + $0xbc8] sm:$0xf]
        %v2409 = vld [vmem:[#allocation2 + $0xbcc] sm:$0xff]
        %v2410 = vld [vmem:[#allocation2 + $0xbd4] sm:$0xff]
        %v2411 = vld [vmem:[#allocation2 + $0xbdc] sm:$0xf]
        %v2412 = vld [vmem:[#allocation2 + $0xbe0] sm:$0xff]
        %v2413 = vld [vmem:[#allocation2 + $0xbe8] sm:$0xff]
        %v2414 = vld [vmem:[#allocation2 + $0xbf0] sm:$0xf]
        %v2415 = vld [vmem:[#allocation2 + $0xbf4] sm:$0xff]
        %v2416 = vld [vmem:[#allocation2 + $0xbfc] sm:$0xff]
        %v2417 = vld [vmem:[#allocation2 + $0xc04] sm:$0xf]
        %v2418 = vld [vmem:[#allocation2 + $0xc08] sm:$0xff]
        %v2419 = vld [vmem:[#allocation2 + $0xc10] sm:$0xff]
        %v2420 = vld [vmem:[#allocation2 + $0xc18] sm:$0xf]
        %v2421 = vld [vmem:[#allocation2 + $0xc1c] sm:$0xff]
        %v2422 = vld [vmem:[#allocation2 + $0xc24] sm:$0xff]
        %v2423 = vld [vmem:[#allocation2 + $0xc2c] sm:$0xf]
        %v2424 = vld [vmem:[#allocation2 + $0xc30] sm:$0xff]
        %v2425 = vld [vmem:[#allocation2 + $0xc38] sm:$0xff]
        %v2426 = vld [vmem:[#allocation2 + $0xc40] sm:$0xf]
        %v2427 = vld [vmem:[#allocation2 + $0xc44] sm:$0xff]
        %v2428 = vld [vmem:[#allocation2 + $0xc4c] sm:$0xff]
        %v2429 = vld [vmem:[#allocation2 + $0xc54] sm:$0xf]
        %v2430 = vld [vmem:[#allocation2 + $0xc58] sm:$0xff]
        %v2431 = vld [vmem:[#allocation2 + $0xc60] sm:$0xff]
        %v2432 = vld [vmem:[#allocation2 + $0xc68] sm:$0xf]
        %v2433 = vld [vmem:[#allocation2 + $0xc6c] sm:$0xff]
        %v2434 = vld [vmem:[#allocation2 + $0xc74] sm:$0xff]
        %v2435 = vld [vmem:[#allocation2 + $0xc7c] sm:$0xf]
        %v2436 = vld [vmem:[#allocation2 + $0xc80] sm:$0xff]
        %v2437 = vld [vmem:[#allocation2 + $0xc88] sm:$0xff]
        %v2438 = vld [vmem:[#allocation2 + $0xc90] sm:$0xf]
        %v2439 = vld [vmem:[#allocation2 + $0xc94] sm:$0xff]
        %v2440 = vld [vmem:[#allocation2 + $0xc9c] sm:$0xff]
        %v2441 = vld [vmem:[#allocation2 + $0xca4] sm:$0xf]
        %v2442 = vld [vmem:[#allocation2 + $0xca8] sm:$0xff]
        %v2443 = vld [vmem:[#allocation2 + $0xcb0] sm:$0xff]
        %v2444 = vld [vmem:[#allocation2 + $0xcb8] sm:$0xf]
        %v2445 = vld [vmem:[#allocation2 + $0xcbc] sm:$0xff]
        %v2446 = vld [vmem:[#allocation2 + $0xcc4] sm:$0xff]
        %v2447 = vld [vmem:[#allocation2 + $0xccc] sm:$0xf]
        %v2448 = vld [vmem:[#allocation2 + $0xcd0] sm:$0xff]
        %v2449 = vld [vmem:[#allocation2 + $0xcd8] sm:$0xff]
        %v2450 = vld [vmem:[#allocation2 + $0xce0] sm:$0xf]
        %v2451 = vld [vmem:[#allocation2 + $0xce4] sm:$0xff]
        %v2452 = vld [vmem:[#allocation2 + $0xcec] sm:$0xff]
        %v2453 = vld [vmem:[#allocation2 + $0xcf4] sm:$0xf]
        %v2454 = vld [vmem:[#allocation2 + $0xcf8] sm:$0xff]
        %v2455 = vld [vmem:[#allocation2 + $0xd00] sm:$0xff]
        %v2456 = vld [vmem:[#allocation2 + $0xd08] sm:$0xf]
        %v2457 = vld [vmem:[#allocation2 + $0xd0c] sm:$0xff]
        %v2458 = vld [vmem:[#allocation2 + $0xd14] sm:$0xff]
        %v2459 = vld [vmem:[#allocation2 + $0xd1c] sm:$0xf]
        %v2460 = vld [vmem:[#allocation2 + $0xd20] sm:$0xff]
        %v2461 = vld [vmem:[#allocation2 + $0xd28] sm:$0xff]
        %v2462 = vld [vmem:[#allocation2 + $0xd30] sm:$0xf]
        %v2463 = vld [vmem:[#allocation2 + $0xd34] sm:$0xff]
        %v2464 = vld [vmem:[#allocation2 + $0xd3c] sm:$0xff]
        %v2465 = vld [vmem:[#allocation2 + $0xd44] sm:$0xf]
        %v2466 = vld [vmem:[#allocation2 + $0xd48] sm:$0xff]
        %v2467 = vld [vmem:[#allocation2 + $0xd50] sm:$0xff]
        %v2468 = vld [vmem:[#allocation2 + $0xd58] sm:$0xf]
        %v2469 = vld [vmem:[#allocation2 + $0xd5c] sm:$0xff]
        %v2470 = vld [vmem:[#allocation2 + $0xd64] sm:$0xff]
        %v2471 = vld [vmem:[#allocation2 + $0xd6c] sm:$0xf]
        %v2472 = vld [vmem:[#allocation2 + $0xd70] sm:$0xff]
        %v2473 = vld [vmem:[#allocation2 + $0xd78] sm:$0xff]
        %v2474 = vld [vmem:[#allocation2 + $0xd80] sm:$0xf]
        %v2475 = vld [vmem:[#allocation2 + $0xd84] sm:$0xff]
        %v2476 = vld [vmem:[#allocation2 + $0xd8c] sm:$0xff]
        %v2477 = vld [vmem:[#allocation2 + $0xd94] sm:$0xf]
        %v2478 = vld [vmem:[#allocation2 + $0xd98] sm:$0xff]
        %v2479 = vld [vmem:[#allocation2 + $0xda0] sm:$0xff]
        %v2480 = vld [vmem:[#allocation2 + $0xda8] sm:$0xf]
        %v2481 = vld [vmem:[#allocation2 + $0xdac] sm:$0xff]
        %v2482 = vld [vmem:[#allocation2 + $0xdb4] sm:$0xff]
        %v2483 = vld [vmem:[#allocation2 + $0xdbc] sm:$0xf]
        %v2484 = vld [vmem:[#allocation2 + $0xdc0] sm:$0xff]
        %v2485 = vld [vmem:[#allocation2 + $0xdc8] sm:$0xff]
        %v2486 = vld [vmem:[#allocation2 + $0xdd0] sm:$0xf]
        %v2487 = vld [vmem:[#allocation2 + $0xdd4] sm:$0xff]
        %v2488 = vld [vmem:[#allocation2 + $0xddc] sm:$0xff]
        %v2489 = vld [vmem:[#allocation2 + $0xde4] sm:$0xf]
        %v2490 = vld [vmem:[#allocation2 + $0xde8] sm:$0xff]
        %v2491 = vld [vmem:[#allocation2 + $0xdf0] sm:$0xff]
        %v2492 = vld [vmem:[#allocation2 + $0xdf8] sm:$0xf]
        %v2493 = vld [vmem:[#allocation2 + $0xdfc] sm:$0xff]
        %v2494 = vld [vmem:[#allocation2 + $0xe04] sm:$0xff]
        %v2495 = vld [vmem:[#allocation2 + $0xe0c] sm:$0xf]
        %v2496 = vld [vmem:[#allocation2 + $0xe10] sm:$0xff]
        %v2497 = vld [vmem:[#allocation2 + $0xe18] sm:$0xff]
        %v2498 = vld [vmem:[#allocation2 + $0xe20] sm:$0xf]
        %v2499 = vld [vmem:[#allocation2 + $0xe24] sm:$0xff]
        %v2500 = vld [vmem:[#allocation2 + $0xe2c] sm:$0xff]
        %v2501 = vld [vmem:[#allocation2 + $0xe34] sm:$0xf]
        %v2502 = vld [vmem:[#allocation2 + $0xe38] sm:$0xff]
        %v2503 = vld [vmem:[#allocation2 + $0xe40] sm:$0xff]
        %v2504 = vld [vmem:[#allocation2 + $0xe48] sm:$0xf]
        %v2505 = vld [vmem:[#allocation2 + $0xe4c] sm:$0xff]
        %v2506 = vld [vmem:[#allocation2 + $0xe54] sm:$0xff]
        %v2507 = vld [vmem:[#allocation2 + $0xe5c] sm:$0xf]
        %v2508 = vld [vmem:[#allocation2 + $0xe60] sm:$0xff]
        %v2509 = vld [vmem:[#allocation2 + $0xe68] sm:$0xff]
        %v2510 = vld [vmem:[#allocation2 + $0xe70] sm:$0xf]
        %v2511 = vld [vmem:[#allocation2 + $0xe74] sm:$0xff]
        %v2512 = vld [vmem:[#allocation2 + $0xe7c] sm:$0xff]
        %v2513 = vld [vmem:[#allocation2 + $0xe84] sm:$0xf]
        %v2514 = vld [vmem:[#allocation2 + $0xe88] sm:$0xff]
        %v2515 = vld [vmem:[#allocation2 + $0xe90] sm:$0xff]
        %v2516 = vld [vmem:[#allocation2 + $0xe98] sm:$0xf]
        %v2517 = vld [vmem:[#allocation2 + $0xe9c] sm:$0xff]
        %v2518 = vld [vmem:[#allocation2 + $0xea4] sm:$0xff]
        %v2519 = vld [vmem:[#allocation2 + $0xeac] sm:$0xf]
        %v2520 = vld [vmem:[#allocation2 + $0xeb0] sm:$0xff]
        %v2521 = vld [vmem:[#allocation2 + $0xeb8] sm:$0xff]
        %v2522 = vld [vmem:[#allocation2 + $0xec0] sm:$0xf]
        %v2523 = vld [vmem:[#allocation2 + $0xec4] sm:$0xff]
        %v2524 = vld [vmem:[#allocation2 + $0xecc] sm:$0xff]
        %v2525 = vld [vmem:[#allocation2 + $0xed4] sm:$0xf]
        %v2526 = vld [vmem:[#allocation2 + $0xed8] sm:$0xff]
        %v2527 = vld [vmem:[#allocation2 + $0xee0] sm:$0xff]
        %v2528 = vld [vmem:[#allocation2 + $0xee8] sm:$0xf]
        %v2529 = vld [vmem:[#allocation2 + $0xeec] sm:$0xff]
        %v2530 = vld [vmem:[#allocation2 + $0xef4] sm:$0xff]
        %v2531 = vld [vmem:[#allocation2 + $0xefc] sm:$0xf]
        %v2532 = vld [vmem:[#allocation2 + $0xf00] sm:$0xff]
        %v2533 = vld [vmem:[#allocation2 + $0xf08] sm:$0xff]
        %v2534 = vld [vmem:[#allocation2 + $0xf10] sm:$0xf]
        %v2535 = vld [vmem:[#allocation2 + $0xf14] sm:$0xff]
        %v2536 = vld [vmem:[#allocation2 + $0xf1c] sm:$0xff]
        %v2537 = vld [vmem:[#allocation2 + $0xf24] sm:$0xf]
        %v2538 = vld [vmem:[#allocation2 + $0xf28] sm:$0xff]
        %v2539 = vld [vmem:[#allocation2 + $0xf30] sm:$0xff]
        %v2540 = vld [vmem:[#allocation2 + $0xf38] sm:$0xf]
        %v2541 = vld [vmem:[#allocation2 + $0xf3c] sm:$0xff]
        %v2542 = vld [vmem:[#allocation2 + $0xf44] sm:$0xff]
        %v2543 = vld [vmem:[#allocation2 + $0xf4c] sm:$0xf]
        %v2544 = vld [vmem:[#allocation2 + $0xf50] sm:$0xff]
        %v2545 = vld [vmem:[#allocation2 + $0xf58] sm:$0xff]
        %v2546 = vld [vmem:[#allocation2 + $0xf60] sm:$0xf]
        %v2547 = vld [vmem:[#allocation2 + $0xf64] sm:$0xff]
        %v2548 = vld [vmem:[#allocation2 + $0xf6c] sm:$0xff]
        %v2549 = vld [vmem:[#allocation2 + $0xf74] sm:$0xf]
        %v2550 = vld [vmem:[#allocation2 + $0xf78] sm:$0xff]
        %v2551 = vld [vmem:[#allocation2 + $0xf80] sm:$0xff]
        %v2552 = vld [vmem:[#allocation2 + $0xf88] sm:$0xf]
        %v2553 = vld [vmem:[#allocation2 + $0xf8c] sm:$0xff]
        %v2554 = vld [vmem:[#allocation2 + $0xf94] sm:$0xff]
        %v2555 = vld [vmem:[#allocation2 + $0xf9c] sm:$0xf]
        %v2556 = vld [vmem:[#allocation2 + $0xfa0] sm:$0xff]
        %v2557 = vld [vmem:[#allocation2 + $0xfa8] sm:$0xff]
        %v2558 = vld [vmem:[#allocation2 + $0xfb0] sm:$0xf]
        %v2559 = vld [vmem:[#allocation2 + $0xfb4] sm:$0xff]
        %v2560 = vld [vmem:[#allocation2 + $0xfbc] sm:$0xff]
        %v2561 = vld [vmem:[#allocation2 + $0xfc4] sm:$0xf]
        %v2562 = vld [vmem:[#allocation2 + $0xfc8] sm:$0xff]
        %v2563 = vld [vmem:[#allocation2 + $0xfd0] sm:$0xff]
        %v2564 = vld [vmem:[#allocation2 + $0xfd8] sm:$0xf]
        %v2565 = vld [vmem:[#allocation2 + $0xfdc] sm:$0xff]
        %v2566 = vld [vmem:[#allocation2 + $0xfe4] sm:$0xff]
        %v2567 = vld [vmem:[#allocation2 + $0xfec] sm:$0xf]
        %v2568 = vld [vmem:[#allocation2 + $0xff0] sm:$0xff]
        %v2569 = vld [vmem:[#allocation2 + $0xff8] sm:$0xff]
        %v2570 = vld [vmem:[#allocation2 + $0x1000] sm:$0xf]
        %v2571 = vld [vmem:[#allocation2 + $0x1004] sm:$0xff]
        %v2572 = vld [vmem:[#allocation2 + $0x100c] sm:$0xff]
        %v2573 = vld [vmem:[#allocation2 + $0x1014] sm:$0xf]
        %v2574 = vld [vmem:[#allocation2 + $0x1018] sm:$0xff]
        %v2575 = vld [vmem:[#allocation2 + $0x1020] sm:$0xff]
        %v2576 = vld [vmem:[#allocation2 + $0x1028] sm:$0xf]
        %v2577 = vld [vmem:[#allocation2 + $0x102c] sm:$0xff]
        %v2578 = vld [vmem:[#allocation2 + $0x1034] sm:$0xff]
        %v2579 = vld [vmem:[#allocation2 + $0x103c] sm:$0xf]
        %v2580 = vld [vmem:[#allocation2 + $0x1040] sm:$0xff]
        %v2581 = vld [vmem:[#allocation2 + $0x1048] sm:$0xff]
        %v2582 = vld [vmem:[#allocation2 + $0x1050] sm:$0xf]
        %v2583 = vld [vmem:[#allocation2 + $0x1054] sm:$0xff]
        %v2584 = vld [vmem:[#allocation2 + $0x105c] sm:$0xff]
        %v2585 = vld [vmem:[#allocation2 + $0x1064] sm:$0xf]
        %v2586 = vld [vmem:[#allocation2 + $0x1068] sm:$0xff]
        %v2587 = vld [vmem:[#allocation2 + $0x1070] sm:$0xff]
        %v2588 = vld [vmem:[#allocation2 + $0x1078] sm:$0xf]
        %v2589 = vld [vmem:[#allocation2 + $0x107c] sm:$0xff]
        %v2590 = vld [vmem:[#allocation2 + $0x1084] sm:$0xff]
        %v2591 = vld [vmem:[#allocation2 + $0x108c] sm:$0xf]
        %v2592 = vld [vmem:[#allocation2 + $0x1090] sm:$0xff]
        %v2593 = vld [vmem:[#allocation2 + $0x1098] sm:$0xff]
        %v2594 = vld [vmem:[#allocation2 + $0x10a0] sm:$0xf]
        %v2595 = vld [vmem:[#allocation2 + $0x10a4] sm:$0xff]
        %v2596 = vld [vmem:[#allocation2 + $0x10ac] sm:$0xff]
        %v2597 = vld [vmem:[#allocation2 + $0x10b4] sm:$0xf]
        %v2598 = vld [vmem:[#allocation2 + $0x10b8] sm:$0xff]
        %v2599 = vld [vmem:[#allocation2 + $0x10c0] sm:$0xff]
        %v2600 = vld [vmem:[#allocation2 + $0x10c8] sm:$0xf]
        %v2601 = vld [vmem:[#allocation2 + $0x10cc] sm:$0xff]
        %v2602 = vld [vmem:[#allocation2 + $0x10d4] sm:$0xff]
        %v2603 = vld [vmem:[#allocation2 + $0x10dc] sm:$0xf]
        %v2604 = vld [vmem:[#allocation2 + $0x10e0] sm:$0xff]
        %v2605 = vld [vmem:[#allocation2 + $0x10e8] sm:$0xff]
        %v2606 = vld [vmem:[#allocation2 + $0x10f0] sm:$0xf]
        %v2607 = vld [vmem:[#allocation2 + $0x10f4] sm:$0xff]
        %v2608 = vld [vmem:[#allocation2 + $0x10fc] sm:$0xff]
        %v2609 = vld [vmem:[#allocation2 + $0x1104] sm:$0xf]
        %v2610 = vld [vmem:[#allocation2 + $0x1108] sm:$0xff]
        %v2611 = vld [vmem:[#allocation2 + $0x1110] sm:$0xff]
        %v2612 = vld [vmem:[#allocation2 + $0x1118] sm:$0xf]
        %v2613 = vld [vmem:[#allocation2 + $0x111c] sm:$0xff]
        %v2614 = vld [vmem:[#allocation2 + $0x1124] sm:$0xff]
        %v2615 = vld [vmem:[#allocation2 + $0x112c] sm:$0xf]
        %v2616 = vld [vmem:[#allocation2 + $0x1130] sm:$0xff]
        %v2617 = vld [vmem:[#allocation2 + $0x1138] sm:$0xff]
        %v2618 = vld [vmem:[#allocation2 + $0x1140] sm:$0xf]
        %v2619 = vld [vmem:[#allocation2 + $0x1144] sm:$0xff]
        %v2620 = vld [vmem:[#allocation2 + $0x114c] sm:$0xff]
        %v2621 = vld [vmem:[#allocation2 + $0x1154] sm:$0xf]
        %v2622 = vld [vmem:[#allocation2 + $0x1158] sm:$0xff]
        %v2623 = vld [vmem:[#allocation2 + $0x1160] sm:$0xff]
        %v2624 = vld [vmem:[#allocation2 + $0x1168] sm:$0xf]
        %v2625 = vld [vmem:[#allocation2 + $0x116c] sm:$0xff]
        %v2626 = vld [vmem:[#allocation2 + $0x1174] sm:$0xff]
        %v2627 = vld [vmem:[#allocation2 + $0x117c] sm:$0xf]
        %v2628 = vld [vmem:[#allocation2 + $0x1180] sm:$0xff]
        %v2629 = vld [vmem:[#allocation2 + $0x1188] sm:$0xff]
        %v2630 = vld [vmem:[#allocation2 + $0x1190] sm:$0xf]
        %v2631 = vld [vmem:[#allocation2 + $0x1194] sm:$0xff]
        %v2632 = vld [vmem:[#allocation2 + $0x119c] sm:$0xff]
        %v2633 = vld [vmem:[#allocation2 + $0x11a4] sm:$0xf]
        %v2634 = vld [vmem:[#allocation2 + $0x11a8] sm:$0xff]
        %v2635 = vld [vmem:[#allocation2 + $0x11b0] sm:$0xff]
        %v2636 = vld [vmem:[#allocation2 + $0x11b8] sm:$0xf]
        %v2637 = vld [vmem:[#allocation2 + $0x11bc] sm:$0xff]
        %v2638 = vld [vmem:[#allocation2 + $0x11c4] sm:$0xff]
        %v2639 = vld [vmem:[#allocation2 + $0x11cc] sm:$0xf]
        %v2640 = vld [vmem:[#allocation2 + $0x11d0] sm:$0xff]
        %v2641 = vld [vmem:[#allocation2 + $0x11d8] sm:$0xff]
        %v2642 = vld [vmem:[#allocation2 + $0x11e0] sm:$0xf]
        %v2643 = vld [vmem:[#allocation2 + $0x11e4] sm:$0xff]
        %v2644 = vld [vmem:[#allocation2 + $0x11ec] sm:$0xff]
        %v2645 = vld [vmem:[#allocation2 + $0x11f4] sm:$0xf]
        %v2646 = vld [vmem:[#allocation2 + $0x11f8] sm:$0xff]
        %v2647 = vld [vmem:[#allocation2 + $0x1200] sm:$0xff]
        %v2648 = vld [vmem:[#allocation2 + $0x1208] sm:$0xf]
        %v2649 = vld [vmem:[#allocation2 + $0x120c] sm:$0xff]
        %v2650 = vld [vmem:[#allocation2 + $0x1214] sm:$0xff]
        %v2651 = vld [vmem:[#allocation2 + $0x121c] sm:$0xf]
        %v2652 = vld [vmem:[#allocation2 + $0x1220] sm:$0xff]
        %v2653 = vld [vmem:[#allocation2 + $0x1228] sm:$0xff]
        %v2654 = vld [vmem:[#allocation2 + $0x1230] sm:$0xf]
        %v2655 = vld [vmem:[#allocation2 + $0x1234] sm:$0xff]
        %v2656 = vld [vmem:[#allocation2 + $0x123c] sm:$0xff]
        %v2657 = vld [vmem:[#allocation2 + $0x1244] sm:$0xf]
        %v2658 = vld [vmem:[#allocation2 + $0x1248] sm:$0xff]
        %v2659 = vld [vmem:[#allocation2 + $0x1250] sm:$0xff]
        %v2660 = vld [vmem:[#allocation2 + $0x1258] sm:$0xf]
        %v2661 = vld [vmem:[#allocation2 + $0x125c] sm:$0xff]
        %v2662 = vld [vmem:[#allocation2 + $0x1264] sm:$0xff]
        %v2663 = vld [vmem:[#allocation2 + $0x126c] sm:$0xf]
        %v2664 = vld [vmem:[#allocation2 + $0x1270] sm:$0xff]
        %v2665 = vld [vmem:[#allocation2 + $0x1278] sm:$0xff]
        %v2666 = vld [vmem:[#allocation2 + $0x1280] sm:$0xf]
        %v2667 = vld [vmem:[#allocation2 + $0x1284] sm:$0xff]
        %v2668 = vld [vmem:[#allocation2 + $0x128c] sm:$0xff]
        %v2669 = vld [vmem:[#allocation2 + $0x1294] sm:$0xf]
        %v2670 = vld [vmem:[#allocation2 + $0x1298] sm:$0xff]
        %v2671 = vld [vmem:[#allocation2 + $0x12a0] sm:$0xff]
        %v2672 = vld [vmem:[#allocation2 + $0x12a8] sm:$0xf]
        %v2673 = vld [vmem:[#allocation2 + $0x12ac] sm:$0xff]
        %v2674 = vld [vmem:[#allocation2 + $0x12b4] sm:$0xff]
        %v2675 = vld [vmem:[#allocation2 + $0x12bc] sm:$0xf]
        %v2676 = vld [vmem:[#allocation2 + $0x12c0] sm:$0xff]
        %v2677 = vld [vmem:[#allocation2 + $0x12c8] sm:$0xff]
        %v2678 = vld [vmem:[#allocation2 + $0x12d0] sm:$0xf]
        %v2679 = vld [vmem:[#allocation2 + $0x12d4] sm:$0xff]
        %v2680 = vld [vmem:[#allocation2 + $0x12dc] sm:$0xff]
        %v2681 = vld [vmem:[#allocation2 + $0x12e4] sm:$0xf]
        %v2682 = vld [vmem:[#allocation2 + $0x12e8] sm:$0xff]
        %v2683 = vld [vmem:[#allocation2 + $0x12f0] sm:$0xff]
        %v2684 = vld [vmem:[#allocation2 + $0x12f8] sm:$0xf]
        %v2685 = vld [vmem:[#allocation2 + $0x12fc] sm:$0xff]
        %v2686 = vld [vmem:[#allocation2 + $0x1304] sm:$0xff]
        %v2687 = vld [vmem:[#allocation2 + $0x130c] sm:$0xf]
        %v2688 = vld [vmem:[#allocation2 + $0x1310] sm:$0xff]
        %v2689 = vld [vmem:[#allocation2 + $0x1318] sm:$0xff]
        %v2690 = vld [vmem:[#allocation2 + $0x1320] sm:$0xf]
        %v2691 = vld [vmem:[#allocation2 + $0x1324] sm:$0xff]
        %v2692 = vld [vmem:[#allocation2 + $0x132c] sm:$0xff]
        %v2693 = vld [vmem:[#allocation2 + $0x1334] sm:$0xf]
        %v2694 = vld [vmem:[#allocation2 + $0x1338] sm:$0xff]
        %v2695 = vld [vmem:[#allocation2 + $0x1340] sm:$0xff]
        %v2696 = vld [vmem:[#allocation2 + $0x1348] sm:$0xf]
        %v2697 = vld [vmem:[#allocation2 + $0x134c] sm:$0xff]
        %v2698 = vld [vmem:[#allocation2 + $0x1354] sm:$0xff]
        %v2699 = vld [vmem:[#allocation2 + $0x135c] sm:$0xf]
        %v2700 = vld [vmem:[#allocation2 + $0x1360] sm:$0xff]
        %v2701 = vld [vmem:[#allocation2 + $0x1368] sm:$0xff]
        %v2702 = vld [vmem:[#allocation2 + $0x1370] sm:$0xf]
        %v2703 = vld [vmem:[#allocation2 + $0x1374] sm:$0xff]
        %v2704 = vld [vmem:[#allocation2 + $0x137c] sm:$0xff]
        %v2705 = vld [vmem:[#allocation2 + $0x1384] sm:$0xf]
        %v2706 = vld [vmem:[#allocation2 + $0x1388] sm:$0xff]
        %v2707 = vld [vmem:[#allocation2 + $0x1390] sm:$0xff]
        %v2708 = vld [vmem:[#allocation2 + $0x1398] sm:$0xf]
        %v2709 = vld [vmem:[#allocation2 + $0x139c] sm:$0xff]
        %v2710 = vld [vmem:[#allocation2 + $0x13a4] sm:$0xff]
        %v2711 = vld [vmem:[#allocation2 + $0x13ac] sm:$0xf]
        %v2712 = vld [vmem:[#allocation2 + $0x13b0] sm:$0xff]
        %v2713 = vld [vmem:[#allocation2 + $0x13b8] sm:$0xff]
        %v2714 = vld [vmem:[#allocation2 + $0x13c0] sm:$0xf]
        %v2715 = vld [vmem:[#allocation2 + $0x13c4] sm:$0xff]
        %v2716 = vld [vmem:[#allocation2 + $0x13cc] sm:$0xff]
        %v2717 = vld [vmem:[#allocation2 + $0x13d4] sm:$0xf]
        %v2718 = vld [vmem:[#allocation2 + $0x13d8] sm:$0xff]
        %v2719 = vld [vmem:[#allocation2 + $0x13e0] sm:$0xff]
        %v2720 = vld [vmem:[#allocation2 + $0x13e8] sm:$0xf]
        %v2721 = vld [vmem:[#allocation2 + $0x13ec] sm:$0xff]
        %v2722 = vld [vmem:[#allocation2 + $0x13f4] sm:$0xff]
        %v2723 = vld [vmem:[#allocation2 + $0x13fc] sm:$0xf]
        %v2724 = vld [vmem:[#allocation2 + $0x1400] sm:$0xff]
        %v2725 = vld [vmem:[#allocation2 + $0x1408] sm:$0xff]
        %v2726 = vld [vmem:[#allocation2 + $0x1410] sm:$0xf]
        %v2727 = vld [vmem:[#allocation2 + $0x1414] sm:$0xff]
        %v2728 = vld [vmem:[#allocation2 + $0x141c] sm:$0xff]
        %v2729 = vld [vmem:[#allocation2 + $0x1424] sm:$0xf]
        %v2730 = vld [vmem:[#allocation2 + $0x1428] sm:$0xff]
        %v2731 = vld [vmem:[#allocation2 + $0x1430] sm:$0xff]
        %v2732 = vld [vmem:[#allocation2 + $0x1438] sm:$0xf]
        %v2733 = vld [vmem:[#allocation2 + $0x143c] sm:$0xff]
        %v2734 = vld [vmem:[#allocation2 + $0x1444] sm:$0xff]
        %v2735 = vld [vmem:[#allocation2 + $0x144c] sm:$0xf]
        %v2736 = vld [vmem:[#allocation2 + $0x1450] sm:$0xff]
        %v2737 = vld [vmem:[#allocation2 + $0x1458] sm:$0xff]
        %v2738 = vld [vmem:[#allocation2 + $0x1460] sm:$0xf]
        %v2739 = vld [vmem:[#allocation2 + $0x1464] sm:$0xff]
        %v2740 = vld [vmem:[#allocation2 + $0x146c] sm:$0xff]
        %v2741 = vld [vmem:[#allocation2 + $0x1474] sm:$0xf]
        %v2742 = vld [vmem:[#allocation2 + $0x1478] sm:$0xff]
        %v2743 = vld [vmem:[#allocation2 + $0x1480] sm:$0xff]
        %v2744 = vld [vmem:[#allocation2 + $0x1488] sm:$0xf]
        %v2745 = vld [vmem:[#allocation2 + $0x148c] sm:$0xff]
        %v2746 = vld [vmem:[#allocation2 + $0x1494] sm:$0xff]
        %v2747 = vld [vmem:[#allocation2 + $0x149c] sm:$0xf]
        %v2748 = vld [vmem:[#allocation2 + $0x14a0] sm:$0xff]
        %v2749 = vld [vmem:[#allocation2 + $0x14a8] sm:$0xff]
        %v2750 = vld [vmem:[#allocation2 + $0x14b0] sm:$0xf]
        %v2751 = vld [vmem:[#allocation2 + $0x14b4] sm:$0xff]
        %v2752 = vld [vmem:[#allocation2 + $0x14bc] sm:$0xff]
        %v2753 = vld [vmem:[#allocation2 + $0x14c4] sm:$0xf]
        %v2754 = vld [vmem:[#allocation2 + $0x14c8] sm:$0xff]
        %v2755 = vld [vmem:[#allocation2 + $0x14d0] sm:$0xff]
        %v2756 = vld [vmem:[#allocation2 + $0x14d8] sm:$0xf]
        %v2757 = vld [vmem:[#allocation2 + $0x14dc] sm:$0xff]
        %v2758 = vld [vmem:[#allocation2 + $0x14e4] sm:$0xff]
        %v2759 = vld [vmem:[#allocation2 + $0x14ec] sm:$0xf]
        %v2760 = vld [vmem:[#allocation2 + $0x14f0] sm:$0xff]
        %v2761 = vld [vmem:[#allocation2 + $0x14f8] sm:$0xff]
        %v2762 = vld [vmem:[#allocation2 + $0x1500] sm:$0xf]
        %v2763 = vld [vmem:[#allocation2 + $0x1504] sm:$0xff]
        %v2764 = vld [vmem:[#allocation2 + $0x150c] sm:$0xff]
        %v2765 = vld [vmem:[#allocation2 + $0x1514] sm:$0xf]
        %v2766 = vld [vmem:[#allocation2 + $0x1518] sm:$0xff]
        %v2767 = vld [vmem:[#allocation2 + $0x1520] sm:$0xff]
        %v2768 = vld [vmem:[#allocation2 + $0x1528] sm:$0xf]
        %v2769 = vld [vmem:[#allocation2 + $0x152c] sm:$0xff]
        %v2770 = vld [vmem:[#allocation2 + $0x1534] sm:$0xff]
        %v2771 = vld [vmem:[#allocation2 + $0x153c] sm:$0xf]
        %v2772 = vld [vmem:[#allocation2 + $0x1540] sm:$0xff]
        %v2773 = vld [vmem:[#allocation2 + $0x1548] sm:$0xff]
        %v2774 = vld [vmem:[#allocation2 + $0x1550] sm:$0xf]
        %v2775 = vld [vmem:[#allocation2 + $0x1554] sm:$0xff]
        %v2776 = vld [vmem:[#allocation2 + $0x155c] sm:$0xff]
        %v2777 = vld [vmem:[#allocation2 + $0x1564] sm:$0xf]
        %v2778 = vld [vmem:[#allocation2 + $0x1568] sm:$0xff]
        %v2779 = vld [vmem:[#allocation2 + $0x1570] sm:$0xff]
        %v2780 = vld [vmem:[#allocation2 + $0x1578] sm:$0xf]
        %v2781 = vld [vmem:[#allocation2 + $0x157c] sm:$0xff]
        %v2782 = vld [vmem:[#allocation2 + $0x1584] sm:$0xff]
        %v2783 = vld [vmem:[#allocation2 + $0x158c] sm:$0xf]
        %v2784 = vld [vmem:[#allocation2 + $0x1590] sm:$0xff]
        %v2785 = vld [vmem:[#allocation2 + $0x1598] sm:$0xff]
        %v2786 = vld [vmem:[#allocation2 + $0x15a0] sm:$0xf]
        %v2787 = vld [vmem:[#allocation2 + $0x15a4] sm:$0xff]
        %v2788 = vld [vmem:[#allocation2 + $0x15ac] sm:$0xff]
        %v2789 = vld [vmem:[#allocation2 + $0x15b4] sm:$0xf]
        %v2790 = vld [vmem:[#allocation2 + $0x15b8] sm:$0xff]
        %v2791 = vld [vmem:[#allocation2 + $0x15c0] sm:$0xff]
        %v2792 = vld [vmem:[#allocation2 + $0x15c8] sm:$0xf]
        %v2793 = vld [vmem:[#allocation2 + $0x15cc] sm:$0xff]
        %v2794 = vld [vmem:[#allocation2 + $0x15d4] sm:$0xff]
        %v2795 = vld [vmem:[#allocation2 + $0x15dc] sm:$0xf]
        %v2796 = vld [vmem:[#allocation2 + $0x15e0] sm:$0xff]
        %v2797 = vld [vmem:[#allocation2 + $0x15e8] sm:$0xff]
        %v2798 = vld [vmem:[#allocation2 + $0x15f0] sm:$0xf]
        %v2799 = vld [vmem:[#allocation2 + $0x15f4] sm:$0xff]
        %v2800 = vld [vmem:[#allocation2 + $0x15fc] sm:$0xff]
        %v2801 = vld [vmem:[#allocation2 + $0x1604] sm:$0xf]
        %v2802 = vld [vmem:[#allocation2 + $0x1608] sm:$0xff]
        %v2803 = vld [vmem:[#allocation2 + $0x1610] sm:$0xff]
        %v2804 = vld [vmem:[#allocation2 + $0x1618] sm:$0xf]
        %v2805 = vld [vmem:[#allocation2 + $0x161c] sm:$0xff]
        %v2806 = vld [vmem:[#allocation2 + $0x1624] sm:$0xff]
        %v2807 = vld [vmem:[#allocation2 + $0x162c] sm:$0xf]
        %v2808 = vld [vmem:[#allocation2 + $0x1630] sm:$0xff]
        %v2809 = vld [vmem:[#allocation2 + $0x1638] sm:$0xff]
        %v2810 = vld [vmem:[#allocation2 + $0x1640] sm:$0xf]
        %v2811 = vld [vmem:[#allocation2 + $0x1644] sm:$0xff]
        %v2812 = vld [vmem:[#allocation2 + $0x164c] sm:$0xff]
        %v2813 = vld [vmem:[#allocation2 + $0x1654] sm:$0xf]
        %v2814 = vld [vmem:[#allocation2 + $0x1658] sm:$0xff]
        %v2815 = vld [vmem:[#allocation2 + $0x1660] sm:$0xff]
        %v2816 = vld [vmem:[#allocation2 + $0x1668] sm:$0xf]
        %v2817 = vld [vmem:[#allocation2 + $0x166c] sm:$0xff]
        %v2818 = vld [vmem:[#allocation2 + $0x1674] sm:$0xff]
        %v2819 = vld [vmem:[#allocation2 + $0x167c] sm:$0xf]
        %v2820 = vpack.c.bf16 %v1938, %v1920
        %v2821 = vpack.c.bf16 %v1939, %v1921
        %v2822 = vpack.c.bf16 %v1940, %v1922
        %v2823 = vpack.c.bf16 %v1941, %v1923
        %v2824 = vpack.c.bf16 %v1942, %v1924
        %v2825 = vpack.c.bf16 %v1943, %v1925
        %v2826 = vpack.c.bf16 %v1944, %v1926
        %v2827 = vpack.c.bf16 %v1945, %v1927
        %v2828 = vpack.c.bf16 %v1946, %v1928
        %v2829 = vpack.c.bf16 %v1947, %v1929
        %v2830 = vpack.c.bf16 %v1948, %v1930
        %v2831 = vpack.c.bf16 %v1949, %v1931
        %v2832 = vpack.c.bf16 %v1950, %v1932
        %v2833 = vpack.c.bf16 %v1951, %v1933
        %v2834 = vpack.c.bf16 %v1952, %v1934
        %v2835 = vpack.c.bf16 %v1953, %v1935
        %v2836 = vpack.c.bf16 %v1954, %v1936
        %v2837 = vpack.c.bf16 %v1955, %v1937
        %v3702 = vunpack.c.l.b16 %v1956
        %v3703 = vunpack.c.h.b16 %v1956
        %v3704 = vunpack.c.l.b16 %v1957
        %v3705 = vunpack.c.h.b16 %v1957
        %v3706 = vunpack.c.l.b16 %v1958
        %v3707 = vunpack.c.l.b16 %v1959
        %v3708 = vunpack.c.h.b16 %v1959
        %v3709 = vunpack.c.l.b16 %v1960
        %v3710 = vunpack.c.h.b16 %v1960
        %v3711 = vunpack.c.l.b16 %v1961
        %v3712 = vunpack.c.l.b16 %v1962
        %v3713 = vunpack.c.h.b16 %v1962
        %v3714 = vunpack.c.l.b16 %v1963
        %v3715 = vunpack.c.h.b16 %v1963
        %v3716 = vunpack.c.l.b16 %v1964
        %v3717 = vunpack.c.l.b16 %v1965
        %v3718 = vunpack.c.h.b16 %v1965
        %v3719 = vunpack.c.l.b16 %v1966
        %v3720 = vunpack.c.h.b16 %v1966
        %v3721 = vunpack.c.l.b16 %v1967
        %v3722 = vunpack.c.l.b16 %v1968
        %v3723 = vunpack.c.h.b16 %v1968
        %v3724 = vunpack.c.l.b16 %v1969
        %v3725 = vunpack.c.h.b16 %v1969
        %v3726 = vunpack.c.l.b16 %v1970
        %v3727 = vunpack.c.l.b16 %v1971
        %v3728 = vunpack.c.h.b16 %v1971
        %v3729 = vunpack.c.l.b16 %v1972
        %v3730 = vunpack.c.h.b16 %v1972
        %v3731 = vunpack.c.l.b16 %v1973
        %v3732 = vunpack.c.l.b16 %v1974
        %v3733 = vunpack.c.h.b16 %v1974
        %v3734 = vunpack.c.l.b16 %v1975
        %v3735 = vunpack.c.h.b16 %v1975
        %v3736 = vunpack.c.l.b16 %v1976
        %v3737 = vunpack.c.l.b16 %v1977
        %v3738 = vunpack.c.h.b16 %v1977
        %v3739 = vunpack.c.l.b16 %v1978
        %v3740 = vunpack.c.h.b16 %v1978
        %v3741 = vunpack.c.l.b16 %v1979
        %v3742 = vunpack.c.l.b16 %v1980
        %v3743 = vunpack.c.h.b16 %v1980
        %v3744 = vunpack.c.l.b16 %v1981
        %v3745 = vunpack.c.h.b16 %v1981
        %v3746 = vunpack.c.l.b16 %v1982
        %v3747 = vunpack.c.l.b16 %v1983
        %v3748 = vunpack.c.h.b16 %v1983
        %v3749 = vunpack.c.l.b16 %v1984
        %v3750 = vunpack.c.h.b16 %v1984
        %v3751 = vunpack.c.l.b16 %v1985
        %v3752 = vunpack.c.l.b16 %v1986
        %v3753 = vunpack.c.h.b16 %v1986
        %v3754 = vunpack.c.l.b16 %v1987
        %v3755 = vunpack.c.h.b16 %v1987
        %v3756 = vunpack.c.l.b16 %v1988
        %v3757 = vunpack.c.l.b16 %v1989
        %v3758 = vunpack.c.h.b16 %v1989
        %v3759 = vunpack.c.l.b16 %v1990
        %v3760 = vunpack.c.h.b16 %v1990
        %v3761 = vunpack.c.l.b16 %v1991
        %v3762 = vunpack.c.l.b16 %v1992
        %v3763 = vunpack.c.h.b16 %v1992
        %v3764 = vunpack.c.l.b16 %v1993
        %v3765 = vunpack.c.h.b16 %v1993
        %v3766 = vunpack.c.l.b16 %v1994
        %v3767 = vunpack.c.l.b16 %v1995
        %v3768 = vunpack.c.h.b16 %v1995
        %v3769 = vunpack.c.l.b16 %v1996
        %v3770 = vunpack.c.h.b16 %v1996
        %v3771 = vunpack.c.l.b16 %v1997
        %v3772 = vunpack.c.l.b16 %v1998
        %v3773 = vunpack.c.h.b16 %v1998
        %v3774 = vunpack.c.l.b16 %v1999
        %v3775 = vunpack.c.h.b16 %v1999
        %v3776 = vunpack.c.l.b16 %v2000
        %v3777 = vunpack.c.l.b16 %v2001
        %v3778 = vunpack.c.h.b16 %v2001
        %v3779 = vunpack.c.l.b16 %v2002
        %v3780 = vunpack.c.h.b16 %v2002
        %v3781 = vunpack.c.l.b16 %v2003
        %v3782 = vunpack.c.l.b16 %v2004
        %v3783 = vunpack.c.h.b16 %v2004
        %v3784 = vunpack.c.l.b16 %v2005
        %v3785 = vunpack.c.h.b16 %v2005
        %v3786 = vunpack.c.l.b16 %v2006
        %v3787 = vunpack.c.l.b16 %v2007
        %v3788 = vunpack.c.h.b16 %v2007
        %v3789 = vunpack.c.l.b16 %v2008
        %v3790 = vunpack.c.h.b16 %v2008
        %v3791 = vunpack.c.l.b16 %v2009
        %v3792 = vunpack.c.l.b16 %v2010
        %v3793 = vunpack.c.h.b16 %v2010
        %v3794 = vunpack.c.l.b16 %v2011
        %v3795 = vunpack.c.h.b16 %v2011
        %v3796 = vunpack.c.l.b16 %v2012
        %v3797 = vunpack.c.l.b16 %v2013
        %v3798 = vunpack.c.h.b16 %v2013
        %v3799 = vunpack.c.l.b16 %v2014
        %v3800 = vunpack.c.h.b16 %v2014
        %v3801 = vunpack.c.l.b16 %v2015
        %v3802 = vunpack.c.l.b16 %v2016
        %v3803 = vunpack.c.h.b16 %v2016
        %v3804 = vunpack.c.l.b16 %v2017
        %v3805 = vunpack.c.h.b16 %v2017
        %v3806 = vunpack.c.l.b16 %v2018
        %v3807 = vunpack.c.l.b16 %v2019
        %v3808 = vunpack.c.h.b16 %v2019
        %v3809 = vunpack.c.l.b16 %v2020
        %v3810 = vunpack.c.h.b16 %v2020
        %v3811 = vunpack.c.l.b16 %v2021
        %v3812 = vunpack.c.l.b16 %v2022
        %v3813 = vunpack.c.h.b16 %v2022
        %v3814 = vunpack.c.l.b16 %v2023
        %v3815 = vunpack.c.h.b16 %v2023
        %v3816 = vunpack.c.l.b16 %v2024
        %v3817 = vunpack.c.l.b16 %v2025
        %v3818 = vunpack.c.h.b16 %v2025
        %v3819 = vunpack.c.l.b16 %v2026
        %v3820 = vunpack.c.h.b16 %v2026
        %v3821 = vunpack.c.l.b16 %v2027
        %v3822 = vunpack.c.l.b16 %v2028
        %v3823 = vunpack.c.h.b16 %v2028
        %v3824 = vunpack.c.l.b16 %v2029
        %v3825 = vunpack.c.h.b16 %v2029
        %v3826 = vunpack.c.l.b16 %v2030
        %v3827 = vunpack.c.l.b16 %v2031
        %v3828 = vunpack.c.h.b16 %v2031
        %v3829 = vunpack.c.l.b16 %v2032
        %v3830 = vunpack.c.h.b16 %v2032
        %v3831 = vunpack.c.l.b16 %v2033
        %v3832 = vunpack.c.l.b16 %v2034
        %v3833 = vunpack.c.h.b16 %v2034
        %v3834 = vunpack.c.l.b16 %v2035
        %v3835 = vunpack.c.h.b16 %v2035
        %v3836 = vunpack.c.l.b16 %v2036
        %v3837 = vunpack.c.l.b16 %v2037
        %v3838 = vunpack.c.h.b16 %v2037
        %v3839 = vunpack.c.l.b16 %v2038
        %v3840 = vunpack.c.h.b16 %v2038
        %v3841 = vunpack.c.l.b16 %v2039
        %v3842 = vunpack.c.l.b16 %v2040
        %v3843 = vunpack.c.h.b16 %v2040
        %v3844 = vunpack.c.l.b16 %v2041
        %v3845 = vunpack.c.h.b16 %v2041
        %v3846 = vunpack.c.l.b16 %v2042
        %v3847 = vunpack.c.l.b16 %v2043
        %v3848 = vunpack.c.h.b16 %v2043
        %v3849 = vunpack.c.l.b16 %v2044
        %v3850 = vunpack.c.h.b16 %v2044
        %v3851 = vunpack.c.l.b16 %v2045
        %v3852 = vunpack.c.l.b16 %v2046
        %v3853 = vunpack.c.h.b16 %v2046
        %v3854 = vunpack.c.l.b16 %v2047
        %v3855 = vunpack.c.h.b16 %v2047
        %v3856 = vunpack.c.l.b16 %v2048
        %v3857 = vunpack.c.l.b16 %v2049
        %v3858 = vunpack.c.h.b16 %v2049
        %v3859 = vunpack.c.l.b16 %v2050
        %v3860 = vunpack.c.h.b16 %v2050
        %v3861 = vunpack.c.l.b16 %v2051
        %v3862 = vunpack.c.l.b16 %v2052
        %v3863 = vunpack.c.h.b16 %v2052
        %v3864 = vunpack.c.l.b16 %v2053
        %v3865 = vunpack.c.h.b16 %v2053
        %v3866 = vunpack.c.l.b16 %v2054
        %v3867 = vunpack.c.l.b16 %v2055
        %v3868 = vunpack.c.h.b16 %v2055
        %v3869 = vunpack.c.l.b16 %v2056
        %v3870 = vunpack.c.h.b16 %v2056
        %v3871 = vunpack.c.l.b16 %v2057
        %v3872 = vunpack.c.l.b16 %v2058
        %v3873 = vunpack.c.h.b16 %v2058
        %v3874 = vunpack.c.l.b16 %v2059
        %v3875 = vunpack.c.h.b16 %v2059
        %v3876 = vunpack.c.l.b16 %v2060
        %v3877 = vunpack.c.l.b16 %v2061
        %v3878 = vunpack.c.h.b16 %v2061
        %v3879 = vunpack.c.l.b16 %v2062
        %v3880 = vunpack.c.h.b16 %v2062
        %v3881 = vunpack.c.l.b16 %v2063
        %v3882 = vunpack.c.l.b16 %v2064
        %v3883 = vunpack.c.h.b16 %v2064
        %v3884 = vunpack.c.l.b16 %v2065
        %v3885 = vunpack.c.h.b16 %v2065
        %v3886 = vunpack.c.l.b16 %v2066
        %v3887 = vunpack.c.l.b16 %v2067
        %v3888 = vunpack.c.h.b16 %v2067
        %v3889 = vunpack.c.l.b16 %v2068
        %v3890 = vunpack.c.h.b16 %v2068
        %v3891 = vunpack.c.l.b16 %v2069
        %v3892 = vunpack.c.l.b16 %v2070
        %v3893 = vunpack.c.h.b16 %v2070
        %v3894 = vunpack.c.l.b16 %v2071
        %v3895 = vunpack.c.h.b16 %v2071
        %v3896 = vunpack.c.l.b16 %v2072
        %v3897 = vunpack.c.l.b16 %v2073
        %v3898 = vunpack.c.h.b16 %v2073
        %v3899 = vunpack.c.l.b16 %v2074
        %v3900 = vunpack.c.h.b16 %v2074
        %v3901 = vunpack.c.l.b16 %v2075
        %v3902 = vunpack.c.l.b16 %v2076
        %v3903 = vunpack.c.h.b16 %v2076
        %v3904 = vunpack.c.l.b16 %v2077
        %v3905 = vunpack.c.h.b16 %v2077
        %v3906 = vunpack.c.l.b16 %v2078
        %v3907 = vunpack.c.l.b16 %v2079
        %v3908 = vunpack.c.h.b16 %v2079
        %v3909 = vunpack.c.l.b16 %v2080
        %v3910 = vunpack.c.h.b16 %v2080
        %v3911 = vunpack.c.l.b16 %v2081
        %v3912 = vunpack.c.l.b16 %v2082
        %v3913 = vunpack.c.h.b16 %v2082
        %v3914 = vunpack.c.l.b16 %v2083
        %v3915 = vunpack.c.h.b16 %v2083
        %v3916 = vunpack.c.l.b16 %v2084
        %v3917 = vunpack.c.l.b16 %v2085
        %v3918 = vunpack.c.h.b16 %v2085
        %v3919 = vunpack.c.l.b16 %v2086
        %v3920 = vunpack.c.h.b16 %v2086
        %v3921 = vunpack.c.l.b16 %v2087
        %v3922 = vunpack.c.l.b16 %v2088
        %v3923 = vunpack.c.h.b16 %v2088
        %v3924 = vunpack.c.l.b16 %v2089
        %v3925 = vunpack.c.h.b16 %v2089
        %v3926 = vunpack.c.l.b16 %v2090
        %v3927 = vunpack.c.l.b16 %v2091
        %v3928 = vunpack.c.h.b16 %v2091
        %v3929 = vunpack.c.l.b16 %v2092
        %v3930 = vunpack.c.h.b16 %v2092
        %v3931 = vunpack.c.l.b16 %v2093
        %v3932 = vunpack.c.l.b16 %v2094
        %v3933 = vunpack.c.h.b16 %v2094
        %v3934 = vunpack.c.l.b16 %v2095
        %v3935 = vunpack.c.h.b16 %v2095
        %v3936 = vunpack.c.l.b16 %v2096
        %v3937 = vunpack.c.l.b16 %v2097
        %v3938 = vunpack.c.h.b16 %v2097
        %v3939 = vunpack.c.l.b16 %v2098
        %v3940 = vunpack.c.h.b16 %v2098
        %v3941 = vunpack.c.l.b16 %v2099
        %v3942 = vunpack.c.l.b16 %v2100
        %v3943 = vunpack.c.h.b16 %v2100
        %v3944 = vunpack.c.l.b16 %v2101
        %v3945 = vunpack.c.h.b16 %v2101
        %v3946 = vunpack.c.l.b16 %v2102
        %v3947 = vunpack.c.l.b16 %v2103
        %v3948 = vunpack.c.h.b16 %v2103
        %v3949 = vunpack.c.l.b16 %v2104
        %v3950 = vunpack.c.h.b16 %v2104
        %v3951 = vunpack.c.l.b16 %v2105
        %v3952 = vunpack.c.l.b16 %v2106
        %v3953 = vunpack.c.h.b16 %v2106
        %v3954 = vunpack.c.l.b16 %v2107
        %v3955 = vunpack.c.h.b16 %v2107
        %v3956 = vunpack.c.l.b16 %v2108
        %v3957 = vunpack.c.l.b16 %v2109
        %v3958 = vunpack.c.h.b16 %v2109
        %v3959 = vunpack.c.l.b16 %v2110
        %v3960 = vunpack.c.h.b16 %v2110
        %v3961 = vunpack.c.l.b16 %v2111
        %v3962 = vunpack.c.l.b16 %v2112
        %v3963 = vunpack.c.h.b16 %v2112
        %v3964 = vunpack.c.l.b16 %v2113
        %v3965 = vunpack.c.h.b16 %v2113
        %v3966 = vunpack.c.l.b16 %v2114
        %v3967 = vunpack.c.l.b16 %v2115
        %v3968 = vunpack.c.h.b16 %v2115
        %v3969 = vunpack.c.l.b16 %v2116
        %v3970 = vunpack.c.h.b16 %v2116
        %v3971 = vunpack.c.l.b16 %v2117
        %v3972 = vunpack.c.l.b16 %v2118
        %v3973 = vunpack.c.h.b16 %v2118
        %v3974 = vunpack.c.l.b16 %v2119
        %v3975 = vunpack.c.h.b16 %v2119
        %v3976 = vunpack.c.l.b16 %v2120
        %v3977 = vunpack.c.l.b16 %v2121
        %v3978 = vunpack.c.h.b16 %v2121
        %v3979 = vunpack.c.l.b16 %v2122
        %v3980 = vunpack.c.h.b16 %v2122
        %v3981 = vunpack.c.l.b16 %v2123
        %v3982 = vunpack.c.l.b16 %v2124
        %v3983 = vunpack.c.h.b16 %v2124
        %v3984 = vunpack.c.l.b16 %v2125
        %v3985 = vunpack.c.h.b16 %v2125
        %v3986 = vunpack.c.l.b16 %v2126
        %v3987 = vunpack.c.l.b16 %v2127
        %v3988 = vunpack.c.h.b16 %v2127
        %v3989 = vunpack.c.l.b16 %v2128
        %v3990 = vunpack.c.h.b16 %v2128
        %v3991 = vunpack.c.l.b16 %v2129
        %v3992 = vunpack.c.l.b16 %v2130
        %v3993 = vunpack.c.h.b16 %v2130
        %v3994 = vunpack.c.l.b16 %v2131
        %v3995 = vunpack.c.h.b16 %v2131
        %v3996 = vunpack.c.l.b16 %v2132
        %v3997 = vunpack.c.l.b16 %v2133
        %v3998 = vunpack.c.h.b16 %v2133
        %v3999 = vunpack.c.l.b16 %v2134
        %v4000 = vunpack.c.h.b16 %v2134
        %v4001 = vunpack.c.l.b16 %v2135
        %v4002 = vunpack.c.l.b16 %v2136
        %v4003 = vunpack.c.h.b16 %v2136
        %v4004 = vunpack.c.l.b16 %v2137
        %v4005 = vunpack.c.h.b16 %v2137
        %v4006 = vunpack.c.l.b16 %v2138
        %v4007 = vunpack.c.l.b16 %v2139
        %v4008 = vunpack.c.h.b16 %v2139
        %v4009 = vunpack.c.l.b16 %v2140
        %v4010 = vunpack.c.h.b16 %v2140
        %v4011 = vunpack.c.l.b16 %v2141
        %v4012 = vunpack.c.l.b16 %v2142
        %v4013 = vunpack.c.h.b16 %v2142
        %v4014 = vunpack.c.l.b16 %v2143
        %v4015 = vunpack.c.h.b16 %v2143
        %v4016 = vunpack.c.l.b16 %v2144
        %v4017 = vunpack.c.l.b16 %v2145
        %v4018 = vunpack.c.h.b16 %v2145
        %v4019 = vunpack.c.l.b16 %v2146
        %v4020 = vunpack.c.h.b16 %v2146
        %v4021 = vunpack.c.l.b16 %v2147
        %v4022 = vunpack.c.l.b16 %v2148
        %v4023 = vunpack.c.h.b16 %v2148
        %v4024 = vunpack.c.l.b16 %v2149
        %v4025 = vunpack.c.h.b16 %v2149
        %v4026 = vunpack.c.l.b16 %v2150
        %v4027 = vunpack.c.l.b16 %v2151
        %v4028 = vunpack.c.h.b16 %v2151
        %v4029 = vunpack.c.l.b16 %v2152
        %v4030 = vunpack.c.h.b16 %v2152
        %v4031 = vunpack.c.l.b16 %v2153
        %v4032 = vunpack.c.l.b16 %v2154
        %v4033 = vunpack.c.h.b16 %v2154
        %v4034 = vunpack.c.l.b16 %v2155
        %v4035 = vunpack.c.h.b16 %v2155
        %v4036 = vunpack.c.l.b16 %v2156
        %v4037 = vunpack.c.l.b16 %v2157
        %v4038 = vunpack.c.h.b16 %v2157
        %v4039 = vunpack.c.l.b16 %v2158
        %v4040 = vunpack.c.h.b16 %v2158
        %v4041 = vunpack.c.l.b16 %v2159
        %v4042 = vunpack.c.l.b16 %v2160
        %v4043 = vunpack.c.h.b16 %v2160
        %v4044 = vunpack.c.l.b16 %v2161
        %v4045 = vunpack.c.h.b16 %v2161
        %v4046 = vunpack.c.l.b16 %v2162
        %v4047 = vunpack.c.l.b16 %v2163
        %v4048 = vunpack.c.h.b16 %v2163
        %v4049 = vunpack.c.l.b16 %v2164
        %v4050 = vunpack.c.h.b16 %v2164
        %v4051 = vunpack.c.l.b16 %v2165
        %v4052 = vunpack.c.l.b16 %v2166
        %v4053 = vunpack.c.h.b16 %v2166
        %v4054 = vunpack.c.l.b16 %v2167
        %v4055 = vunpack.c.h.b16 %v2167
        %v4056 = vunpack.c.l.b16 %v2168
        %v4057 = vunpack.c.l.b16 %v2169
        %v4058 = vunpack.c.h.b16 %v2169
        %v4059 = vunpack.c.l.b16 %v2170
        %v4060 = vunpack.c.h.b16 %v2170
        %v4061 = vunpack.c.l.b16 %v2171
        %v4062 = vunpack.c.l.b16 %v2172
        %v4063 = vunpack.c.h.b16 %v2172
        %v4064 = vunpack.c.l.b16 %v2173
        %v4065 = vunpack.c.h.b16 %v2173
        %v4066 = vunpack.c.l.b16 %v2174
        %v4067 = vunpack.c.l.b16 %v2175
        %v4068 = vunpack.c.h.b16 %v2175
        %v4069 = vunpack.c.l.b16 %v2176
        %v4070 = vunpack.c.h.b16 %v2176
        %v4071 = vunpack.c.l.b16 %v2177
        %v4072 = vunpack.c.l.b16 %v2178
        %v4073 = vunpack.c.h.b16 %v2178
        %v4074 = vunpack.c.l.b16 %v2179
        %v4075 = vunpack.c.h.b16 %v2179
        %v4076 = vunpack.c.l.b16 %v2180
        %v4077 = vunpack.c.l.b16 %v2181
        %v4078 = vunpack.c.h.b16 %v2181
        %v4079 = vunpack.c.l.b16 %v2182
        %v4080 = vunpack.c.h.b16 %v2182
        %v4081 = vunpack.c.l.b16 %v2183
        %v4082 = vunpack.c.l.b16 %v2184
        %v4083 = vunpack.c.h.b16 %v2184
        %v4084 = vunpack.c.l.b16 %v2185
        %v4085 = vunpack.c.h.b16 %v2185
        %v4086 = vunpack.c.l.b16 %v2186
        %v4087 = vunpack.c.l.b16 %v2187
        %v4088 = vunpack.c.h.b16 %v2187
        %v4089 = vunpack.c.l.b16 %v2188
        %v4090 = vunpack.c.h.b16 %v2188
        %v4091 = vunpack.c.l.b16 %v2189
        %v4092 = vunpack.c.l.b16 %v2190
        %v4093 = vunpack.c.h.b16 %v2190
        %v4094 = vunpack.c.l.b16 %v2191
        %v4095 = vunpack.c.h.b16 %v2191
        %v4096 = vunpack.c.l.b16 %v2192
        %v4097 = vunpack.c.l.b16 %v2193
        %v4098 = vunpack.c.h.b16 %v2193
        %v4099 = vunpack.c.l.b16 %v2194
        %v4100 = vunpack.c.h.b16 %v2194
        %v4101 = vunpack.c.l.b16 %v2195
        %v4102 = vunpack.c.l.b16 %v2196
        %v4103 = vunpack.c.h.b16 %v2196
        %v4104 = vunpack.c.l.b16 %v2197
        %v4105 = vunpack.c.h.b16 %v2197
        %v4106 = vunpack.c.l.b16 %v2198
        %v4107 = vunpack.c.l.b16 %v2199
        %v4108 = vunpack.c.h.b16 %v2199
        %v4109 = vunpack.c.l.b16 %v2200
        %v4110 = vunpack.c.h.b16 %v2200
        %v4111 = vunpack.c.l.b16 %v2201
        %v4112 = vunpack.c.l.b16 %v2202
        %v4113 = vunpack.c.h.b16 %v2202
        %v4114 = vunpack.c.l.b16 %v2203
        %v4115 = vunpack.c.h.b16 %v2203
        %v4116 = vunpack.c.l.b16 %v2204
        %v4117 = vunpack.c.l.b16 %v2205
        %v4118 = vunpack.c.h.b16 %v2205
        %v4119 = vunpack.c.l.b16 %v2206
        %v4120 = vunpack.c.h.b16 %v2206
        %v4121 = vunpack.c.l.b16 %v2207
        %v4122 = vunpack.c.l.b16 %v2208
        %v4123 = vunpack.c.h.b16 %v2208
        %v4124 = vunpack.c.l.b16 %v2209
        %v4125 = vunpack.c.h.b16 %v2209
        %v4126 = vunpack.c.l.b16 %v2210
        %v4127 = vunpack.c.l.b16 %v2211
        %v4128 = vunpack.c.h.b16 %v2211
        %v4129 = vunpack.c.l.b16 %v2212
        %v4130 = vunpack.c.h.b16 %v2212
        %v4131 = vunpack.c.l.b16 %v2213
        %v4132 = vunpack.c.l.b16 %v2214
        %v4133 = vunpack.c.h.b16 %v2214
        %v4134 = vunpack.c.l.b16 %v2215
        %v4135 = vunpack.c.h.b16 %v2215
        %v4136 = vunpack.c.l.b16 %v2216
        %v4137 = vunpack.c.l.b16 %v2217
        %v4138 = vunpack.c.h.b16 %v2217
        %v4139 = vunpack.c.l.b16 %v2218
        %v4140 = vunpack.c.h.b16 %v2218
        %v4141 = vunpack.c.l.b16 %v2219
        %v4142 = vunpack.c.l.b16 %v2220
        %v4143 = vunpack.c.h.b16 %v2220
        %v4144 = vunpack.c.l.b16 %v2221
        %v4145 = vunpack.c.h.b16 %v2221
        %v4146 = vunpack.c.l.b16 %v2222
        %v4147 = vunpack.c.l.b16 %v2223
        %v4148 = vunpack.c.h.b16 %v2223
        %v4149 = vunpack.c.l.b16 %v2224
        %v4150 = vunpack.c.h.b16 %v2224
        %v4151 = vunpack.c.l.b16 %v2225
        %v4152 = vunpack.c.l.b16 %v2226
        %v4153 = vunpack.c.h.b16 %v2226
        %v4154 = vunpack.c.l.b16 %v2227
        %v4155 = vunpack.c.h.b16 %v2227
        %v4156 = vunpack.c.l.b16 %v2228
        %v4157 = vunpack.c.l.b16 %v2229
        %v4158 = vunpack.c.h.b16 %v2229
        %v4159 = vunpack.c.l.b16 %v2230
        %v4160 = vunpack.c.h.b16 %v2230
        %v4161 = vunpack.c.l.b16 %v2231
        %v4162 = vunpack.c.l.b16 %v2232
        %v4163 = vunpack.c.h.b16 %v2232
        %v4164 = vunpack.c.l.b16 %v2233
        %v4165 = vunpack.c.h.b16 %v2233
        %v4166 = vunpack.c.l.b16 %v2234
        %v4167 = vunpack.c.l.b16 %v2235
        %v4168 = vunpack.c.h.b16 %v2235
        %v4169 = vunpack.c.l.b16 %v2236
        %v4170 = vunpack.c.h.b16 %v2236
        %v4171 = vunpack.c.l.b16 %v2237
        %v4172 = vunpack.c.l.b16 %v2238
        %v4173 = vunpack.c.h.b16 %v2238
        %v4174 = vunpack.c.l.b16 %v2239
        %v4175 = vunpack.c.h.b16 %v2239
        %v4176 = vunpack.c.l.b16 %v2240
        %v4177 = vunpack.c.l.b16 %v2241
        %v4178 = vunpack.c.h.b16 %v2241
        %v4179 = vunpack.c.l.b16 %v2242
        %v4180 = vunpack.c.h.b16 %v2242
        %v4181 = vunpack.c.l.b16 %v2243
        %v4182 = vunpack.c.l.b16 %v2244
        %v4183 = vunpack.c.h.b16 %v2244
        %v4184 = vunpack.c.l.b16 %v2245
        %v4185 = vunpack.c.h.b16 %v2245
        %v4186 = vunpack.c.l.b16 %v2246
        %v4187 = vunpack.c.l.b16 %v2247
        %v4188 = vunpack.c.h.b16 %v2247
        %v4189 = vunpack.c.l.b16 %v2248
        %v4190 = vunpack.c.h.b16 %v2248
        %v4191 = vunpack.c.l.b16 %v2249
        %v4192 = vunpack.c.l.b16 %v2250
        %v4193 = vunpack.c.h.b16 %v2250
        %v4194 = vunpack.c.l.b16 %v2251
        %v4195 = vunpack.c.h.b16 %v2251
        %v4196 = vunpack.c.l.b16 %v2252
        %v4197 = vunpack.c.l.b16 %v2253
        %v4198 = vunpack.c.h.b16 %v2253
        %v4199 = vunpack.c.l.b16 %v2254
        %v4200 = vunpack.c.h.b16 %v2254
        %v4201 = vunpack.c.l.b16 %v2255
        %v4202 = vunpack.c.l.b16 %v2256
        %v4203 = vunpack.c.h.b16 %v2256
        %v4204 = vunpack.c.l.b16 %v2257
        %v4205 = vunpack.c.h.b16 %v2257
        %v4206 = vunpack.c.l.b16 %v2258
        %v4207 = vunpack.c.l.b16 %v2259
        %v4208 = vunpack.c.h.b16 %v2259
        %v4209 = vunpack.c.l.b16 %v2260
        %v4210 = vunpack.c.h.b16 %v2260
        %v4211 = vunpack.c.l.b16 %v2261
        %v4212 = vunpack.c.l.b16 %v2262
        %v4213 = vunpack.c.h.b16 %v2262
        %v4214 = vunpack.c.l.b16 %v2263
        %v4215 = vunpack.c.h.b16 %v2263
        %v4216 = vunpack.c.l.b16 %v2264
        %v4217 = vunpack.c.l.b16 %v2265
        %v4218 = vunpack.c.h.b16 %v2265
        %v4219 = vunpack.c.l.b16 %v2266
        %v4220 = vunpack.c.h.b16 %v2266
        %v4221 = vunpack.c.l.b16 %v2267
        %v4222 = vunpack.c.l.b16 %v2268
        %v4223 = vunpack.c.h.b16 %v2268
        %v4224 = vunpack.c.l.b16 %v2269
        %v4225 = vunpack.c.h.b16 %v2269
        %v4226 = vunpack.c.l.b16 %v2270
        %v4227 = vunpack.c.l.b16 %v2271
        %v4228 = vunpack.c.h.b16 %v2271
        %v4229 = vunpack.c.l.b16 %v2272
        %v4230 = vunpack.c.h.b16 %v2272
        %v4231 = vunpack.c.l.b16 %v2273
        %v4232 = vunpack.c.l.b16 %v2274
        %v4233 = vunpack.c.h.b16 %v2274
        %v4234 = vunpack.c.l.b16 %v2275
        %v4235 = vunpack.c.h.b16 %v2275
        %v4236 = vunpack.c.l.b16 %v2276
        %v4237 = vunpack.c.l.b16 %v2277
        %v4238 = vunpack.c.h.b16 %v2277
        %v4239 = vunpack.c.l.b16 %v2278
        %v4240 = vunpack.c.h.b16 %v2278
        %v4241 = vunpack.c.l.b16 %v2279
        %v4242 = vunpack.c.l.b16 %v2280
        %v4243 = vunpack.c.h.b16 %v2280
        %v4244 = vunpack.c.l.b16 %v2281
        %v4245 = vunpack.c.h.b16 %v2281
        %v4246 = vunpack.c.l.b16 %v2282
        %v4247 = vunpack.c.l.b16 %v2283
        %v4248 = vunpack.c.h.b16 %v2283
        %v4249 = vunpack.c.l.b16 %v2284
        %v4250 = vunpack.c.h.b16 %v2284
        %v4251 = vunpack.c.l.b16 %v2285
        %v4252 = vunpack.c.l.b16 %v2286
        %v4253 = vunpack.c.h.b16 %v2286
        %v4254 = vunpack.c.l.b16 %v2287
        %v4255 = vunpack.c.h.b16 %v2287
        %v4256 = vunpack.c.l.b16 %v2288
        %v4257 = vunpack.c.l.b16 %v2289
        %v4258 = vunpack.c.h.b16 %v2289
        %v4259 = vunpack.c.l.b16 %v2290
        %v4260 = vunpack.c.h.b16 %v2290
        %v4261 = vunpack.c.l.b16 %v2291
        %v4262 = vunpack.c.l.b16 %v2292
        %v4263 = vunpack.c.h.b16 %v2292
        %v4264 = vunpack.c.l.b16 %v2293
        %v4265 = vunpack.c.h.b16 %v2293
        %v4266 = vunpack.c.l.b16 %v2294
        %v4267 = vunpack.c.l.b16 %v2295
        %v4268 = vunpack.c.h.b16 %v2295
        %v4269 = vunpack.c.l.b16 %v2296
        %v4270 = vunpack.c.h.b16 %v2296
        %v4271 = vunpack.c.l.b16 %v2297
        %v4272 = vunpack.c.l.b16 %v2298
        %v4273 = vunpack.c.h.b16 %v2298
        %v4274 = vunpack.c.l.b16 %v2299
        %v4275 = vunpack.c.h.b16 %v2299
        %v4276 = vunpack.c.l.b16 %v2300
        %v4277 = vunpack.c.l.b16 %v2301
        %v4278 = vunpack.c.h.b16 %v2301
        %v4279 = vunpack.c.l.b16 %v2302
        %v4280 = vunpack.c.h.b16 %v2302
        %v4281 = vunpack.c.l.b16 %v2303
        %v4282 = vunpack.c.l.b16 %v2304
        %v4283 = vunpack.c.h.b16 %v2304
        %v4284 = vunpack.c.l.b16 %v2305
        %v4285 = vunpack.c.h.b16 %v2305
        %v4286 = vunpack.c.l.b16 %v2306
        %v4287 = vunpack.c.l.b16 %v2307
        %v4288 = vunpack.c.h.b16 %v2307
        %v4289 = vunpack.c.l.b16 %v2308
        %v4290 = vunpack.c.h.b16 %v2308
        %v4291 = vunpack.c.l.b16 %v2309
        %v4292 = vunpack.c.l.b16 %v2310
        %v4293 = vunpack.c.h.b16 %v2310
        %v4294 = vunpack.c.l.b16 %v2311
        %v4295 = vunpack.c.h.b16 %v2311
        %v4296 = vunpack.c.l.b16 %v2312
        %v4297 = vunpack.c.l.b16 %v2313
        %v4298 = vunpack.c.h.b16 %v2313
        %v4299 = vunpack.c.l.b16 %v2314
        %v4300 = vunpack.c.h.b16 %v2314
        %v4301 = vunpack.c.l.b16 %v2315
        %v4302 = vunpack.c.l.b16 %v2316
        %v4303 = vunpack.c.h.b16 %v2316
        %v4304 = vunpack.c.l.b16 %v2317
        %v4305 = vunpack.c.h.b16 %v2317
        %v4306 = vunpack.c.l.b16 %v2318
        %v4307 = vunpack.c.l.b16 %v2319
        %v4308 = vunpack.c.h.b16 %v2319
        %v4309 = vunpack.c.l.b16 %v2320
        %v4310 = vunpack.c.h.b16 %v2320
        %v4311 = vunpack.c.l.b16 %v2321
        %v4312 = vunpack.c.l.b16 %v2322
        %v4313 = vunpack.c.h.b16 %v2322
        %v4314 = vunpack.c.l.b16 %v2323
        %v4315 = vunpack.c.h.b16 %v2323
        %v4316 = vunpack.c.l.b16 %v2324
        %v4317 = vunpack.c.l.b16 %v2325
        %v4318 = vunpack.c.h.b16 %v2325
        %v4319 = vunpack.c.l.b16 %v2326
        %v4320 = vunpack.c.h.b16 %v2326
        %v4321 = vunpack.c.l.b16 %v2327
        %v4322 = vunpack.c.l.b16 %v2328
        %v4323 = vunpack.c.h.b16 %v2328
        %v4324 = vunpack.c.l.b16 %v2329
        %v4325 = vunpack.c.h.b16 %v2329
        %v4326 = vunpack.c.l.b16 %v2330
        %v4327 = vunpack.c.l.b16 %v2331
        %v4328 = vunpack.c.h.b16 %v2331
        %v4329 = vunpack.c.l.b16 %v2332
        %v4330 = vunpack.c.h.b16 %v2332
        %v4331 = vunpack.c.l.b16 %v2333
        %v4332 = vunpack.c.l.b16 %v2334
        %v4333 = vunpack.c.h.b16 %v2334
        %v4334 = vunpack.c.l.b16 %v2335
        %v4335 = vunpack.c.h.b16 %v2335
        %v4336 = vunpack.c.l.b16 %v2336
        %v4337 = vunpack.c.l.b16 %v2337
        %v4338 = vunpack.c.h.b16 %v2337
        %v4339 = vunpack.c.l.b16 %v2338
        %v4340 = vunpack.c.h.b16 %v2338
        %v4341 = vunpack.c.l.b16 %v2339
        %v4342 = vunpack.c.l.b16 %v2340
        %v4343 = vunpack.c.h.b16 %v2340
        %v4344 = vunpack.c.l.b16 %v2341
        %v4345 = vunpack.c.h.b16 %v2341
        %v4346 = vunpack.c.l.b16 %v2342
        %v4347 = vunpack.c.l.b16 %v2343
        %v4348 = vunpack.c.h.b16 %v2343
        %v4349 = vunpack.c.l.b16 %v2344
        %v4350 = vunpack.c.h.b16 %v2344
        %v4351 = vunpack.c.l.b16 %v2345
        %v4352 = vunpack.c.l.b16 %v2346
        %v4353 = vunpack.c.h.b16 %v2346
        %v4354 = vunpack.c.l.b16 %v2347
        %v4355 = vunpack.c.h.b16 %v2347
        %v4356 = vunpack.c.l.b16 %v2348
        %v4357 = vunpack.c.l.b16 %v2349
        %v4358 = vunpack.c.h.b16 %v2349
        %v4359 = vunpack.c.l.b16 %v2350
        %v4360 = vunpack.c.h.b16 %v2350
        %v4361 = vunpack.c.l.b16 %v2351
        %v4362 = vunpack.c.l.b16 %v2352
        %v4363 = vunpack.c.h.b16 %v2352
        %v4364 = vunpack.c.l.b16 %v2353
        %v4365 = vunpack.c.h.b16 %v2353
        %v4366 = vunpack.c.l.b16 %v2354
        %v4367 = vunpack.c.l.b16 %v2355
        %v4368 = vunpack.c.h.b16 %v2355
        %v4369 = vunpack.c.l.b16 %v2356
        %v4370 = vunpack.c.h.b16 %v2356
        %v4371 = vunpack.c.l.b16 %v2357
        %v4372 = vunpack.c.l.b16 %v2358
        %v4373 = vunpack.c.h.b16 %v2358
        %v4374 = vunpack.c.l.b16 %v2359
        %v4375 = vunpack.c.h.b16 %v2359
        %v4376 = vunpack.c.l.b16 %v2360
        %v4377 = vunpack.c.l.b16 %v2361
        %v4378 = vunpack.c.h.b16 %v2361
        %v4379 = vunpack.c.l.b16 %v2362
        %v4380 = vunpack.c.h.b16 %v2362
        %v4381 = vunpack.c.l.b16 %v2363
        %v4382 = vunpack.c.l.b16 %v2364
        %v4383 = vunpack.c.h.b16 %v2364
        %v4384 = vunpack.c.l.b16 %v2365
        %v4385 = vunpack.c.h.b16 %v2365
        %v4386 = vunpack.c.l.b16 %v2366
        %v4387 = vunpack.c.l.b16 %v2367
        %v4388 = vunpack.c.h.b16 %v2367
        %v4389 = vunpack.c.l.b16 %v2368
        %v4390 = vunpack.c.h.b16 %v2368
        %v4391 = vunpack.c.l.b16 %v2369
        %v4392 = vunpack.c.l.b16 %v2370
        %v4393 = vunpack.c.h.b16 %v2370
        %v4394 = vunpack.c.l.b16 %v2371
        %v4395 = vunpack.c.h.b16 %v2371
        %v4396 = vunpack.c.l.b16 %v2372
        %v4397 = vunpack.c.l.b16 %v2373
        %v4398 = vunpack.c.h.b16 %v2373
        %v4399 = vunpack.c.l.b16 %v2374
        %v4400 = vunpack.c.h.b16 %v2374
        %v4401 = vunpack.c.l.b16 %v2375
        %v4402 = vunpack.c.l.b16 %v2376
        %v4403 = vunpack.c.h.b16 %v2376
        %v4404 = vunpack.c.l.b16 %v2377
        %v4405 = vunpack.c.h.b16 %v2377
        %v4406 = vunpack.c.l.b16 %v2378
        %v4407 = vunpack.c.l.b16 %v2379
        %v4408 = vunpack.c.h.b16 %v2379
        %v4409 = vunpack.c.l.b16 %v2380
        %v4410 = vunpack.c.h.b16 %v2380
        %v4411 = vunpack.c.l.b16 %v2381
        %v4412 = vunpack.c.l.b16 %v2382
        %v4413 = vunpack.c.h.b16 %v2382
        %v4414 = vunpack.c.l.b16 %v2383
        %v4415 = vunpack.c.h.b16 %v2383
        %v4416 = vunpack.c.l.b16 %v2384
        %v4417 = vunpack.c.l.b16 %v2385
        %v4418 = vunpack.c.h.b16 %v2385
        %v4419 = vunpack.c.l.b16 %v2386
        %v4420 = vunpack.c.h.b16 %v2386
        %v4421 = vunpack.c.l.b16 %v2387
        %v4422 = vunpack.c.l.b16 %v2388
        %v4423 = vunpack.c.h.b16 %v2388
        %v4424 = vunpack.c.l.b16 %v2389
        %v4425 = vunpack.c.h.b16 %v2389
        %v4426 = vunpack.c.l.b16 %v2390
        %v4427 = vunpack.c.l.b16 %v2391
        %v4428 = vunpack.c.h.b16 %v2391
        %v4429 = vunpack.c.l.b16 %v2392
        %v4430 = vunpack.c.h.b16 %v2392
        %v4431 = vunpack.c.l.b16 %v2393
        %v4432 = vunpack.c.l.b16 %v2394
        %v4433 = vunpack.c.h.b16 %v2394
        %v4434 = vunpack.c.l.b16 %v2395
        %v4435 = vunpack.c.h.b16 %v2395
        %v4436 = vunpack.c.l.b16 %v2396
        %v4437 = vunpack.c.l.b16 %v2397
        %v4438 = vunpack.c.h.b16 %v2397
        %v4439 = vunpack.c.l.b16 %v2398
        %v4440 = vunpack.c.h.b16 %v2398
        %v4441 = vunpack.c.l.b16 %v2399
        %v4442 = vunpack.c.l.b16 %v2400
        %v4443 = vunpack.c.h.b16 %v2400
        %v4444 = vunpack.c.l.b16 %v2401
        %v4445 = vunpack.c.h.b16 %v2401
        %v4446 = vunpack.c.l.b16 %v2402
        %v4447 = vunpack.c.l.b16 %v2403
        %v4448 = vunpack.c.h.b16 %v2403
        %v4449 = vunpack.c.l.b16 %v2404
        %v4450 = vunpack.c.h.b16 %v2404
        %v4451 = vunpack.c.l.b16 %v2405
        %v4452 = vunpack.c.l.b16 %v2406
        %v4453 = vunpack.c.h.b16 %v2406
        %v4454 = vunpack.c.l.b16 %v2407
        %v4455 = vunpack.c.h.b16 %v2407
        %v4456 = vunpack.c.l.b16 %v2408
        %v4457 = vunpack.c.l.b16 %v2409
        %v4458 = vunpack.c.h.b16 %v2409
        %v4459 = vunpack.c.l.b16 %v2410
        %v4460 = vunpack.c.h.b16 %v2410
        %v4461 = vunpack.c.l.b16 %v2411
        %v4462 = vunpack.c.l.b16 %v2412
        %v4463 = vunpack.c.h.b16 %v2412
        %v4464 = vunpack.c.l.b16 %v2413
        %v4465 = vunpack.c.h.b16 %v2413
        %v4466 = vunpack.c.l.b16 %v2414
        %v4467 = vunpack.c.l.b16 %v2415
        %v4468 = vunpack.c.h.b16 %v2415
        %v4469 = vunpack.c.l.b16 %v2416
        %v4470 = vunpack.c.h.b16 %v2416
        %v4471 = vunpack.c.l.b16 %v2417
        %v4472 = vunpack.c.l.b16 %v2418
        %v4473 = vunpack.c.h.b16 %v2418
        %v4474 = vunpack.c.l.b16 %v2419
        %v4475 = vunpack.c.h.b16 %v2419
        %v4476 = vunpack.c.l.b16 %v2420
        %v4477 = vunpack.c.l.b16 %v2421
        %v4478 = vunpack.c.h.b16 %v2421
        %v4479 = vunpack.c.l.b16 %v2422
        %v4480 = vunpack.c.h.b16 %v2422
        %v4481 = vunpack.c.l.b16 %v2423
        %v4482 = vunpack.c.l.b16 %v2424
        %v4483 = vunpack.c.h.b16 %v2424
        %v4484 = vunpack.c.l.b16 %v2425
        %v4485 = vunpack.c.h.b16 %v2425
        %v4486 = vunpack.c.l.b16 %v2426
        %v4487 = vunpack.c.l.b16 %v2427
        %v4488 = vunpack.c.h.b16 %v2427
        %v4489 = vunpack.c.l.b16 %v2428
        %v4490 = vunpack.c.h.b16 %v2428
        %v4491 = vunpack.c.l.b16 %v2429
        %v4492 = vunpack.c.l.b16 %v2430
        %v4493 = vunpack.c.h.b16 %v2430
        %v4494 = vunpack.c.l.b16 %v2431
        %v4495 = vunpack.c.h.b16 %v2431
        %v4496 = vunpack.c.l.b16 %v2432
        %v4497 = vunpack.c.l.b16 %v2433
        %v4498 = vunpack.c.h.b16 %v2433
        %v4499 = vunpack.c.l.b16 %v2434
        %v4500 = vunpack.c.h.b16 %v2434
        %v4501 = vunpack.c.l.b16 %v2435
        %v4502 = vunpack.c.l.b16 %v2436
        %v4503 = vunpack.c.h.b16 %v2436
        %v4504 = vunpack.c.l.b16 %v2437
        %v4505 = vunpack.c.h.b16 %v2437
        %v4506 = vunpack.c.l.b16 %v2438
        %v4507 = vunpack.c.l.b16 %v2439
        %v4508 = vunpack.c.h.b16 %v2439
        %v4509 = vunpack.c.l.b16 %v2440
        %v4510 = vunpack.c.h.b16 %v2440
        %v4511 = vunpack.c.l.b16 %v2441
        %v4512 = vunpack.c.l.b16 %v2442
        %v4513 = vunpack.c.h.b16 %v2442
        %v4514 = vunpack.c.l.b16 %v2443
        %v4515 = vunpack.c.h.b16 %v2443
        %v4516 = vunpack.c.l.b16 %v2444
        %v4517 = vunpack.c.l.b16 %v2445
        %v4518 = vunpack.c.h.b16 %v2445
        %v4519 = vunpack.c.l.b16 %v2446
        %v4520 = vunpack.c.h.b16 %v2446
        %v4521 = vunpack.c.l.b16 %v2447
        %v4522 = vunpack.c.l.b16 %v2448
        %v4523 = vunpack.c.h.b16 %v2448
        %v4524 = vunpack.c.l.b16 %v2449
        %v4525 = vunpack.c.h.b16 %v2449
        %v4526 = vunpack.c.l.b16 %v2450
        %v4527 = vunpack.c.l.b16 %v2451
        %v4528 = vunpack.c.h.b16 %v2451
        %v4529 = vunpack.c.l.b16 %v2452
        %v4530 = vunpack.c.h.b16 %v2452
        %v4531 = vunpack.c.l.b16 %v2453
        %v4532 = vunpack.c.l.b16 %v2454
        %v4533 = vunpack.c.h.b16 %v2454
        %v4534 = vunpack.c.l.b16 %v2455
        %v4535 = vunpack.c.h.b16 %v2455
        %v4536 = vunpack.c.l.b16 %v2456
        %v4537 = vunpack.c.l.b16 %v2457
        %v4538 = vunpack.c.h.b16 %v2457
        %v4539 = vunpack.c.l.b16 %v2458
        %v4540 = vunpack.c.h.b16 %v2458
        %v4541 = vunpack.c.l.b16 %v2459
        %v4542 = vunpack.c.l.b16 %v2460
        %v4543 = vunpack.c.h.b16 %v2460
        %v4544 = vunpack.c.l.b16 %v2461
        %v4545 = vunpack.c.h.b16 %v2461
        %v4546 = vunpack.c.l.b16 %v2462
        %v4547 = vunpack.c.l.b16 %v2463
        %v4548 = vunpack.c.h.b16 %v2463
        %v4549 = vunpack.c.l.b16 %v2464
        %v4550 = vunpack.c.h.b16 %v2464
        %v4551 = vunpack.c.l.b16 %v2465
        %v4552 = vunpack.c.l.b16 %v2466
        %v4553 = vunpack.c.h.b16 %v2466
        %v4554 = vunpack.c.l.b16 %v2467
        %v4555 = vunpack.c.h.b16 %v2467
        %v4556 = vunpack.c.l.b16 %v2468
        %v4557 = vunpack.c.l.b16 %v2469
        %v4558 = vunpack.c.h.b16 %v2469
        %v4559 = vunpack.c.l.b16 %v2470
        %v4560 = vunpack.c.h.b16 %v2470
        %v4561 = vunpack.c.l.b16 %v2471
        %v4562 = vunpack.c.l.b16 %v2472
        %v4563 = vunpack.c.h.b16 %v2472
        %v4564 = vunpack.c.l.b16 %v2473
        %v4565 = vunpack.c.h.b16 %v2473
        %v4566 = vunpack.c.l.b16 %v2474
        %v4567 = vunpack.c.l.b16 %v2475
        %v4568 = vunpack.c.h.b16 %v2475
        %v4569 = vunpack.c.l.b16 %v2476
        %v4570 = vunpack.c.h.b16 %v2476
        %v4571 = vunpack.c.l.b16 %v2477
        %v4572 = vunpack.c.l.b16 %v2478
        %v4573 = vunpack.c.h.b16 %v2478
        %v4574 = vunpack.c.l.b16 %v2479
        %v4575 = vunpack.c.h.b16 %v2479
        %v4576 = vunpack.c.l.b16 %v2480
        %v4577 = vunpack.c.l.b16 %v2481
        %v4578 = vunpack.c.h.b16 %v2481
        %v4579 = vunpack.c.l.b16 %v2482
        %v4580 = vunpack.c.h.b16 %v2482
        %v4581 = vunpack.c.l.b16 %v2483
        %v4582 = vunpack.c.l.b16 %v2484
        %v4583 = vunpack.c.h.b16 %v2484
        %v4584 = vunpack.c.l.b16 %v2485
        %v4585 = vunpack.c.h.b16 %v2485
        %v4586 = vunpack.c.l.b16 %v2486
        %v4587 = vunpack.c.l.b16 %v2487
        %v4588 = vunpack.c.h.b16 %v2487
        %v4589 = vunpack.c.l.b16 %v2488
        %v4590 = vunpack.c.h.b16 %v2488
        %v4591 = vunpack.c.l.b16 %v2489
        %v4592 = vunpack.c.l.b16 %v2490
        %v4593 = vunpack.c.h.b16 %v2490
        %v4594 = vunpack.c.l.b16 %v2491
        %v4595 = vunpack.c.h.b16 %v2491
        %v4596 = vunpack.c.l.b16 %v2492
        %v4597 = vunpack.c.l.b16 %v2493
        %v4598 = vunpack.c.h.b16 %v2493
        %v4599 = vunpack.c.l.b16 %v2494
        %v4600 = vunpack.c.h.b16 %v2494
        %v4601 = vunpack.c.l.b16 %v2495
        %v4602 = vunpack.c.l.b16 %v2496
        %v4603 = vunpack.c.h.b16 %v2496
        %v4604 = vunpack.c.l.b16 %v2497
        %v4605 = vunpack.c.h.b16 %v2497
        %v4606 = vunpack.c.l.b16 %v2498
        %v4607 = vunpack.c.l.b16 %v2499
        %v4608 = vunpack.c.h.b16 %v2499
        %v4609 = vunpack.c.l.b16 %v2500
        %v4610 = vunpack.c.h.b16 %v2500
        %v4611 = vunpack.c.l.b16 %v2501
        %v4612 = vunpack.c.l.b16 %v2502
        %v4613 = vunpack.c.h.b16 %v2502
        %v4614 = vunpack.c.l.b16 %v2503
        %v4615 = vunpack.c.h.b16 %v2503
        %v4616 = vunpack.c.l.b16 %v2504
        %v4617 = vunpack.c.l.b16 %v2505
        %v4618 = vunpack.c.h.b16 %v2505
        %v4619 = vunpack.c.l.b16 %v2506
        %v4620 = vunpack.c.h.b16 %v2506
        %v4621 = vunpack.c.l.b16 %v2507
        %v4622 = vunpack.c.l.b16 %v2508
        %v4623 = vunpack.c.h.b16 %v2508
        %v4624 = vunpack.c.l.b16 %v2509
        %v4625 = vunpack.c.h.b16 %v2509
        %v4626 = vunpack.c.l.b16 %v2510
        %v4627 = vunpack.c.l.b16 %v2511
        %v4628 = vunpack.c.h.b16 %v2511
        %v4629 = vunpack.c.l.b16 %v2512
        %v4630 = vunpack.c.h.b16 %v2512
        %v4631 = vunpack.c.l.b16 %v2513
        %v4632 = vunpack.c.l.b16 %v2514
        %v4633 = vunpack.c.h.b16 %v2514
        %v4634 = vunpack.c.l.b16 %v2515
        %v4635 = vunpack.c.h.b16 %v2515
        %v4636 = vunpack.c.l.b16 %v2516
        %v4637 = vunpack.c.l.b16 %v2517
        %v4638 = vunpack.c.h.b16 %v2517
        %v4639 = vunpack.c.l.b16 %v2518
        %v4640 = vunpack.c.h.b16 %v2518
        %v4641 = vunpack.c.l.b16 %v2519
        %v4642 = vunpack.c.l.b16 %v2520
        %v4643 = vunpack.c.h.b16 %v2520
        %v4644 = vunpack.c.l.b16 %v2521
        %v4645 = vunpack.c.h.b16 %v2521
        %v4646 = vunpack.c.l.b16 %v2522
        %v4647 = vunpack.c.l.b16 %v2523
        %v4648 = vunpack.c.h.b16 %v2523
        %v4649 = vunpack.c.l.b16 %v2524
        %v4650 = vunpack.c.h.b16 %v2524
        %v4651 = vunpack.c.l.b16 %v2525
        %v4652 = vunpack.c.l.b16 %v2526
        %v4653 = vunpack.c.h.b16 %v2526
        %v4654 = vunpack.c.l.b16 %v2527
        %v4655 = vunpack.c.h.b16 %v2527
        %v4656 = vunpack.c.l.b16 %v2528
        %v4657 = vunpack.c.l.b16 %v2529
        %v4658 = vunpack.c.h.b16 %v2529
        %v4659 = vunpack.c.l.b16 %v2530
        %v4660 = vunpack.c.h.b16 %v2530
        %v4661 = vunpack.c.l.b16 %v2531
        %v4662 = vunpack.c.l.b16 %v2532
        %v4663 = vunpack.c.h.b16 %v2532
        %v4664 = vunpack.c.l.b16 %v2533
        %v4665 = vunpack.c.h.b16 %v2533
        %v4666 = vunpack.c.l.b16 %v2534
        %v4667 = vunpack.c.l.b16 %v2535
        %v4668 = vunpack.c.h.b16 %v2535
        %v4669 = vunpack.c.l.b16 %v2536
        %v4670 = vunpack.c.h.b16 %v2536
        %v4671 = vunpack.c.l.b16 %v2537
        %v4672 = vunpack.c.l.b16 %v2538
        %v4673 = vunpack.c.h.b16 %v2538
        %v4674 = vunpack.c.l.b16 %v2539
        %v4675 = vunpack.c.h.b16 %v2539
        %v4676 = vunpack.c.l.b16 %v2540
        %v4677 = vunpack.c.l.b16 %v2541
        %v4678 = vunpack.c.h.b16 %v2541
        %v4679 = vunpack.c.l.b16 %v2542
        %v4680 = vunpack.c.h.b16 %v2542
        %v4681 = vunpack.c.l.b16 %v2543
        %v4682 = vunpack.c.l.b16 %v2544
        %v4683 = vunpack.c.h.b16 %v2544
        %v4684 = vunpack.c.l.b16 %v2545
        %v4685 = vunpack.c.h.b16 %v2545
        %v4686 = vunpack.c.l.b16 %v2546
        %v4687 = vunpack.c.l.b16 %v2547
        %v4688 = vunpack.c.h.b16 %v2547
        %v4689 = vunpack.c.l.b16 %v2548
        %v4690 = vunpack.c.h.b16 %v2548
        %v4691 = vunpack.c.l.b16 %v2549
        %v4692 = vunpack.c.l.b16 %v2550
        %v4693 = vunpack.c.h.b16 %v2550
        %v4694 = vunpack.c.l.b16 %v2551
        %v4695 = vunpack.c.h.b16 %v2551
        %v4696 = vunpack.c.l.b16 %v2552
        %v4697 = vunpack.c.l.b16 %v2553
        %v4698 = vunpack.c.h.b16 %v2553
        %v4699 = vunpack.c.l.b16 %v2554
        %v4700 = vunpack.c.h.b16 %v2554
        %v4701 = vunpack.c.l.b16 %v2555
        %v4702 = vunpack.c.l.b16 %v2556
        %v4703 = vunpack.c.h.b16 %v2556
        %v4704 = vunpack.c.l.b16 %v2557
        %v4705 = vunpack.c.h.b16 %v2557
        %v4706 = vunpack.c.l.b16 %v2558
        %v4707 = vunpack.c.l.b16 %v2559
        %v4708 = vunpack.c.h.b16 %v2559
        %v4709 = vunpack.c.l.b16 %v2560
        %v4710 = vunpack.c.h.b16 %v2560
        %v4711 = vunpack.c.l.b16 %v2561
        %v4712 = vunpack.c.l.b16 %v2562
        %v4713 = vunpack.c.h.b16 %v2562
        %v4714 = vunpack.c.l.b16 %v2563
        %v4715 = vunpack.c.h.b16 %v2563
        %v4716 = vunpack.c.l.b16 %v2564
        %v4717 = vunpack.c.l.b16 %v2565
        %v4718 = vunpack.c.h.b16 %v2565
        %v4719 = vunpack.c.l.b16 %v2566
        %v4720 = vunpack.c.h.b16 %v2566
        %v4721 = vunpack.c.l.b16 %v2567
        %v4722 = vunpack.c.l.b16 %v2568
        %v4723 = vunpack.c.h.b16 %v2568
        %v4724 = vunpack.c.l.b16 %v2569
        %v4725 = vunpack.c.h.b16 %v2569
        %v4726 = vunpack.c.l.b16 %v2570
        %v4727 = vunpack.c.l.b16 %v2571
        %v4728 = vunpack.c.h.b16 %v2571
        %v4729 = vunpack.c.l.b16 %v2572
        %v4730 = vunpack.c.h.b16 %v2572
        %v4731 = vunpack.c.l.b16 %v2573
        %v4732 = vunpack.c.l.b16 %v2574
        %v4733 = vunpack.c.h.b16 %v2574
        %v4734 = vunpack.c.l.b16 %v2575
        %v4735 = vunpack.c.h.b16 %v2575
        %v4736 = vunpack.c.l.b16 %v2576
        %v4737 = vunpack.c.l.b16 %v2577
        %v4738 = vunpack.c.h.b16 %v2577
        %v4739 = vunpack.c.l.b16 %v2578
        %v4740 = vunpack.c.h.b16 %v2578
        %v4741 = vunpack.c.l.b16 %v2579
        %v4742 = vunpack.c.l.b16 %v2580
        %v4743 = vunpack.c.h.b16 %v2580
        %v4744 = vunpack.c.l.b16 %v2581
        %v4745 = vunpack.c.h.b16 %v2581
        %v4746 = vunpack.c.l.b16 %v2582
        %v4747 = vunpack.c.l.b16 %v2583
        %v4748 = vunpack.c.h.b16 %v2583
        %v4749 = vunpack.c.l.b16 %v2584
        %v4750 = vunpack.c.h.b16 %v2584
        %v4751 = vunpack.c.l.b16 %v2585
        %v4752 = vunpack.c.l.b16 %v2586
        %v4753 = vunpack.c.h.b16 %v2586
        %v4754 = vunpack.c.l.b16 %v2587
        %v4755 = vunpack.c.h.b16 %v2587
        %v4756 = vunpack.c.l.b16 %v2588
        %v4757 = vunpack.c.l.b16 %v2589
        %v4758 = vunpack.c.h.b16 %v2589
        %v4759 = vunpack.c.l.b16 %v2590
        %v4760 = vunpack.c.h.b16 %v2590
        %v4761 = vunpack.c.l.b16 %v2591
        %v4762 = vunpack.c.l.b16 %v2592
        %v4763 = vunpack.c.h.b16 %v2592
        %v4764 = vunpack.c.l.b16 %v2593
        %v4765 = vunpack.c.h.b16 %v2593
        %v4766 = vunpack.c.l.b16 %v2594
        %v4767 = vunpack.c.l.b16 %v2595
        %v4768 = vunpack.c.h.b16 %v2595
        %v4769 = vunpack.c.l.b16 %v2596
        %v4770 = vunpack.c.h.b16 %v2596
        %v4771 = vunpack.c.l.b16 %v2597
        %v4772 = vunpack.c.l.b16 %v2598
        %v4773 = vunpack.c.h.b16 %v2598
        %v4774 = vunpack.c.l.b16 %v2599
        %v4775 = vunpack.c.h.b16 %v2599
        %v4776 = vunpack.c.l.b16 %v2600
        %v4777 = vunpack.c.l.b16 %v2601
        %v4778 = vunpack.c.h.b16 %v2601
        %v4779 = vunpack.c.l.b16 %v2602
        %v4780 = vunpack.c.h.b16 %v2602
        %v4781 = vunpack.c.l.b16 %v2603
        %v4782 = vunpack.c.l.b16 %v2604
        %v4783 = vunpack.c.h.b16 %v2604
        %v4784 = vunpack.c.l.b16 %v2605
        %v4785 = vunpack.c.h.b16 %v2605
        %v4786 = vunpack.c.l.b16 %v2606
        %v4787 = vunpack.c.l.b16 %v2607
        %v4788 = vunpack.c.h.b16 %v2607
        %v4789 = vunpack.c.l.b16 %v2608
        %v4790 = vunpack.c.h.b16 %v2608
        %v4791 = vunpack.c.l.b16 %v2609
        %v4792 = vunpack.c.l.b16 %v2610
        %v4793 = vunpack.c.h.b16 %v2610
        %v4794 = vunpack.c.l.b16 %v2611
        %v4795 = vunpack.c.h.b16 %v2611
        %v4796 = vunpack.c.l.b16 %v2612
        %v4797 = vunpack.c.l.b16 %v2613
        %v4798 = vunpack.c.h.b16 %v2613
        %v4799 = vunpack.c.l.b16 %v2614
        %v4800 = vunpack.c.h.b16 %v2614
        %v4801 = vunpack.c.l.b16 %v2615
        %v4802 = vunpack.c.l.b16 %v2616
        %v4803 = vunpack.c.h.b16 %v2616
        %v4804 = vunpack.c.l.b16 %v2617
        %v4805 = vunpack.c.h.b16 %v2617
        %v4806 = vunpack.c.l.b16 %v2618
        %v4807 = vunpack.c.l.b16 %v2619
        %v4808 = vunpack.c.h.b16 %v2619
        %v4809 = vunpack.c.l.b16 %v2620
        %v4810 = vunpack.c.h.b16 %v2620
        %v4811 = vunpack.c.l.b16 %v2621
        %v4812 = vunpack.c.l.b16 %v2622
        %v4813 = vunpack.c.h.b16 %v2622
        %v4814 = vunpack.c.l.b16 %v2623
        %v4815 = vunpack.c.h.b16 %v2623
        %v4816 = vunpack.c.l.b16 %v2624
        %v4817 = vunpack.c.l.b16 %v2625
        %v4818 = vunpack.c.h.b16 %v2625
        %v4819 = vunpack.c.l.b16 %v2626
        %v4820 = vunpack.c.h.b16 %v2626
        %v4821 = vunpack.c.l.b16 %v2627
        %v4822 = vunpack.c.l.b16 %v2628
        %v4823 = vunpack.c.h.b16 %v2628
        %v4824 = vunpack.c.l.b16 %v2629
        %v4825 = vunpack.c.h.b16 %v2629
        %v4826 = vunpack.c.l.b16 %v2630
        %v4827 = vunpack.c.l.b16 %v2631
        %v4828 = vunpack.c.h.b16 %v2631
        %v4829 = vunpack.c.l.b16 %v2632
        %v4830 = vunpack.c.h.b16 %v2632
        %v4831 = vunpack.c.l.b16 %v2633
        %v4832 = vunpack.c.l.b16 %v2634
        %v4833 = vunpack.c.h.b16 %v2634
        %v4834 = vunpack.c.l.b16 %v2635
        %v4835 = vunpack.c.h.b16 %v2635
        %v4836 = vunpack.c.l.b16 %v2636
        %v4837 = vunpack.c.l.b16 %v2637
        %v4838 = vunpack.c.h.b16 %v2637
        %v4839 = vunpack.c.l.b16 %v2638
        %v4840 = vunpack.c.h.b16 %v2638
        %v4841 = vunpack.c.l.b16 %v2639
        %v4842 = vunpack.c.l.b16 %v2640
        %v4843 = vunpack.c.h.b16 %v2640
        %v4844 = vunpack.c.l.b16 %v2641
        %v4845 = vunpack.c.h.b16 %v2641
        %v4846 = vunpack.c.l.b16 %v2642
        %v4847 = vunpack.c.l.b16 %v2643
        %v4848 = vunpack.c.h.b16 %v2643
        %v4849 = vunpack.c.l.b16 %v2644
        %v4850 = vunpack.c.h.b16 %v2644
        %v4851 = vunpack.c.l.b16 %v2645
        %v4852 = vunpack.c.l.b16 %v2646
        %v4853 = vunpack.c.h.b16 %v2646
        %v4854 = vunpack.c.l.b16 %v2647
        %v4855 = vunpack.c.h.b16 %v2647
        %v4856 = vunpack.c.l.b16 %v2648
        %v4857 = vunpack.c.l.b16 %v2649
        %v4858 = vunpack.c.h.b16 %v2649
        %v4859 = vunpack.c.l.b16 %v2650
        %v4860 = vunpack.c.h.b16 %v2650
        %v4861 = vunpack.c.l.b16 %v2651
        %v4862 = vunpack.c.l.b16 %v2652
        %v4863 = vunpack.c.h.b16 %v2652
        %v4864 = vunpack.c.l.b16 %v2653
        %v4865 = vunpack.c.h.b16 %v2653
        %v4866 = vunpack.c.l.b16 %v2654
        %v4867 = vunpack.c.l.b16 %v2655
        %v4868 = vunpack.c.h.b16 %v2655
        %v4869 = vunpack.c.l.b16 %v2656
        %v4870 = vunpack.c.h.b16 %v2656
        %v4871 = vunpack.c.l.b16 %v2657
        %v4872 = vunpack.c.l.b16 %v2658
        %v4873 = vunpack.c.h.b16 %v2658
        %v4874 = vunpack.c.l.b16 %v2659
        %v4875 = vunpack.c.h.b16 %v2659
        %v4876 = vunpack.c.l.b16 %v2660
        %v4877 = vunpack.c.l.b16 %v2661
        %v4878 = vunpack.c.h.b16 %v2661
        %v4879 = vunpack.c.l.b16 %v2662
        %v4880 = vunpack.c.h.b16 %v2662
        %v4881 = vunpack.c.l.b16 %v2663
        %v4882 = vunpack.c.l.b16 %v2664
        %v4883 = vunpack.c.h.b16 %v2664
        %v4884 = vunpack.c.l.b16 %v2665
        %v4885 = vunpack.c.h.b16 %v2665
        %v4886 = vunpack.c.l.b16 %v2666
        %v4887 = vunpack.c.l.b16 %v2667
        %v4888 = vunpack.c.h.b16 %v2667
        %v4889 = vunpack.c.l.b16 %v2668
        %v4890 = vunpack.c.h.b16 %v2668
        %v4891 = vunpack.c.l.b16 %v2669
        %v4892 = vunpack.c.l.b16 %v2670
        %v4893 = vunpack.c.h.b16 %v2670
        %v4894 = vunpack.c.l.b16 %v2671
        %v4895 = vunpack.c.h.b16 %v2671
        %v4896 = vunpack.c.l.b16 %v2672
        %v4897 = vunpack.c.l.b16 %v2673
        %v4898 = vunpack.c.h.b16 %v2673
        %v4899 = vunpack.c.l.b16 %v2674
        %v4900 = vunpack.c.h.b16 %v2674
        %v4901 = vunpack.c.l.b16 %v2675
        %v4902 = vunpack.c.l.b16 %v2676
        %v4903 = vunpack.c.h.b16 %v2676
        %v4904 = vunpack.c.l.b16 %v2677
        %v4905 = vunpack.c.h.b16 %v2677
        %v4906 = vunpack.c.l.b16 %v2678
        %v4907 = vunpack.c.l.b16 %v2679
        %v4908 = vunpack.c.h.b16 %v2679
        %v4909 = vunpack.c.l.b16 %v2680
        %v4910 = vunpack.c.h.b16 %v2680
        %v4911 = vunpack.c.l.b16 %v2681
        %v4912 = vunpack.c.l.b16 %v2682
        %v4913 = vunpack.c.h.b16 %v2682
        %v4914 = vunpack.c.l.b16 %v2683
        %v4915 = vunpack.c.h.b16 %v2683
        %v4916 = vunpack.c.l.b16 %v2684
        %v4917 = vunpack.c.l.b16 %v2685
        %v4918 = vunpack.c.h.b16 %v2685
        %v4919 = vunpack.c.l.b16 %v2686
        %v4920 = vunpack.c.h.b16 %v2686
        %v4921 = vunpack.c.l.b16 %v2687
        %v4922 = vunpack.c.l.b16 %v2688
        %v4923 = vunpack.c.h.b16 %v2688
        %v4924 = vunpack.c.l.b16 %v2689
        %v4925 = vunpack.c.h.b16 %v2689
        %v4926 = vunpack.c.l.b16 %v2690
        %v4927 = vunpack.c.l.b16 %v2691
        %v4928 = vunpack.c.h.b16 %v2691
        %v4929 = vunpack.c.l.b16 %v2692
        %v4930 = vunpack.c.h.b16 %v2692
        %v4931 = vunpack.c.l.b16 %v2693
        %v4932 = vunpack.c.l.b16 %v2694
        %v4933 = vunpack.c.h.b16 %v2694
        %v4934 = vunpack.c.l.b16 %v2695
        %v4935 = vunpack.c.h.b16 %v2695
        %v4936 = vunpack.c.l.b16 %v2696
        %v4937 = vunpack.c.l.b16 %v2697
        %v4938 = vunpack.c.h.b16 %v2697
        %v4939 = vunpack.c.l.b16 %v2698
        %v4940 = vunpack.c.h.b16 %v2698
        %v4941 = vunpack.c.l.b16 %v2699
        %v4942 = vunpack.c.l.b16 %v2700
        %v4943 = vunpack.c.h.b16 %v2700
        %v4944 = vunpack.c.l.b16 %v2701
        %v4945 = vunpack.c.h.b16 %v2701
        %v4946 = vunpack.c.l.b16 %v2702
        %v4947 = vunpack.c.l.b16 %v2703
        %v4948 = vunpack.c.h.b16 %v2703
        %v4949 = vunpack.c.l.b16 %v2704
        %v4950 = vunpack.c.h.b16 %v2704
        %v4951 = vunpack.c.l.b16 %v2705
        %v4952 = vunpack.c.l.b16 %v2706
        %v4953 = vunpack.c.h.b16 %v2706
        %v4954 = vunpack.c.l.b16 %v2707
        %v4955 = vunpack.c.h.b16 %v2707
        %v4956 = vunpack.c.l.b16 %v2708
        %v4957 = vunpack.c.l.b16 %v2709
        %v4958 = vunpack.c.h.b16 %v2709
        %v4959 = vunpack.c.l.b16 %v2710
        %v4960 = vunpack.c.h.b16 %v2710
        %v4961 = vunpack.c.l.b16 %v2711
        %v4962 = vunpack.c.l.b16 %v2712
        %v4963 = vunpack.c.h.b16 %v2712
        %v4964 = vunpack.c.l.b16 %v2713
        %v4965 = vunpack.c.h.b16 %v2713
        %v4966 = vunpack.c.l.b16 %v2714
        %v4967 = vunpack.c.l.b16 %v2715
        %v4968 = vunpack.c.h.b16 %v2715
        %v4969 = vunpack.c.l.b16 %v2716
        %v4970 = vunpack.c.h.b16 %v2716
        %v4971 = vunpack.c.l.b16 %v2717
        %v4972 = vunpack.c.l.b16 %v2718
        %v4973 = vunpack.c.h.b16 %v2718
        %v4974 = vunpack.c.l.b16 %v2719
        %v4975 = vunpack.c.h.b16 %v2719
        %v4976 = vunpack.c.l.b16 %v2720
        %v4977 = vunpack.c.l.b16 %v2721
        %v4978 = vunpack.c.h.b16 %v2721
        %v4979 = vunpack.c.l.b16 %v2722
        %v4980 = vunpack.c.h.b16 %v2722
        %v4981 = vunpack.c.l.b16 %v2723
        %v4982 = vunpack.c.l.b16 %v2724
        %v4983 = vunpack.c.h.b16 %v2724
        %v4984 = vunpack.c.l.b16 %v2725
        %v4985 = vunpack.c.h.b16 %v2725
        %v4986 = vunpack.c.l.b16 %v2726
        %v4987 = vunpack.c.l.b16 %v2727
        %v4988 = vunpack.c.h.b16 %v2727
        %v4989 = vunpack.c.l.b16 %v2728
        %v4990 = vunpack.c.h.b16 %v2728
        %v4991 = vunpack.c.l.b16 %v2729
        %v4992 = vunpack.c.l.b16 %v2730
        %v4993 = vunpack.c.h.b16 %v2730
        %v4994 = vunpack.c.l.b16 %v2731
        %v4995 = vunpack.c.h.b16 %v2731
        %v4996 = vunpack.c.l.b16 %v2732
        %v4997 = vunpack.c.l.b16 %v2733
        %v4998 = vunpack.c.h.b16 %v2733
        %v4999 = vunpack.c.l.b16 %v2734
        %v5000 = vunpack.c.h.b16 %v2734
        %v5001 = vunpack.c.l.b16 %v2735
        %v5002 = vunpack.c.l.b16 %v2736
        %v5003 = vunpack.c.h.b16 %v2736
        %v5004 = vunpack.c.l.b16 %v2737
        %v5005 = vunpack.c.h.b16 %v2737
        %v5006 = vunpack.c.l.b16 %v2738
        %v5007 = vunpack.c.l.b16 %v2739
        %v5008 = vunpack.c.h.b16 %v2739
        %v5009 = vunpack.c.l.b16 %v2740
        %v5010 = vunpack.c.h.b16 %v2740
        %v5011 = vunpack.c.l.b16 %v2741
        %v5012 = vunpack.c.l.b16 %v2742
        %v5013 = vunpack.c.h.b16 %v2742
        %v5014 = vunpack.c.l.b16 %v2743
        %v5015 = vunpack.c.h.b16 %v2743
        %v5016 = vunpack.c.l.b16 %v2744
        %v5017 = vunpack.c.l.b16 %v2745
        %v5018 = vunpack.c.h.b16 %v2745
        %v5019 = vunpack.c.l.b16 %v2746
        %v5020 = vunpack.c.h.b16 %v2746
        %v5021 = vunpack.c.l.b16 %v2747
        %v5022 = vunpack.c.l.b16 %v2748
        %v5023 = vunpack.c.h.b16 %v2748
        %v5024 = vunpack.c.l.b16 %v2749
        %v5025 = vunpack.c.h.b16 %v2749
        %v5026 = vunpack.c.l.b16 %v2750
        %v5027 = vunpack.c.l.b16 %v2751
        %v5028 = vunpack.c.h.b16 %v2751
        %v5029 = vunpack.c.l.b16 %v2752
        %v5030 = vunpack.c.h.b16 %v2752
        %v5031 = vunpack.c.l.b16 %v2753
        %v5032 = vunpack.c.l.b16 %v2754
        %v5033 = vunpack.c.h.b16 %v2754
        %v5034 = vunpack.c.l.b16 %v2755
        %v5035 = vunpack.c.h.b16 %v2755
        %v5036 = vunpack.c.l.b16 %v2756
        %v5037 = vunpack.c.l.b16 %v2757
        %v5038 = vunpack.c.h.b16 %v2757
        %v5039 = vunpack.c.l.b16 %v2758
        %v5040 = vunpack.c.h.b16 %v2758
        %v5041 = vunpack.c.l.b16 %v2759
        %v5042 = vunpack.c.l.b16 %v2760
        %v5043 = vunpack.c.h.b16 %v2760
        %v5044 = vunpack.c.l.b16 %v2761
        %v5045 = vunpack.c.h.b16 %v2761
        %v5046 = vunpack.c.l.b16 %v2762
        %v5047 = vunpack.c.l.b16 %v2763
        %v5048 = vunpack.c.h.b16 %v2763
        %v5049 = vunpack.c.l.b16 %v2764
        %v5050 = vunpack.c.h.b16 %v2764
        %v5051 = vunpack.c.l.b16 %v2765
        %v5052 = vunpack.c.l.b16 %v2766
        %v5053 = vunpack.c.h.b16 %v2766
        %v5054 = vunpack.c.l.b16 %v2767
        %v5055 = vunpack.c.h.b16 %v2767
        %v5056 = vunpack.c.l.b16 %v2768
        %v5057 = vunpack.c.l.b16 %v2769
        %v5058 = vunpack.c.h.b16 %v2769
        %v5059 = vunpack.c.l.b16 %v2770
        %v5060 = vunpack.c.h.b16 %v2770
        %v5061 = vunpack.c.l.b16 %v2771
        %v5062 = vunpack.c.l.b16 %v2772
        %v5063 = vunpack.c.h.b16 %v2772
        %v5064 = vunpack.c.l.b16 %v2773
        %v5065 = vunpack.c.h.b16 %v2773
        %v5066 = vunpack.c.l.b16 %v2774
        %v5067 = vunpack.c.l.b16 %v2775
        %v5068 = vunpack.c.h.b16 %v2775
        %v5069 = vunpack.c.l.b16 %v2776
        %v5070 = vunpack.c.h.b16 %v2776
        %v5071 = vunpack.c.l.b16 %v2777
        %v5072 = vunpack.c.l.b16 %v2778
        %v5073 = vunpack.c.h.b16 %v2778
        %v5074 = vunpack.c.l.b16 %v2779
        %v5075 = vunpack.c.h.b16 %v2779
        %v5076 = vunpack.c.l.b16 %v2780
        %v5077 = vunpack.c.l.b16 %v2781
        %v5078 = vunpack.c.h.b16 %v2781
        %v5079 = vunpack.c.l.b16 %v2782
        %v5080 = vunpack.c.h.b16 %v2782
        %v5081 = vunpack.c.l.b16 %v2783
        %v5082 = vunpack.c.l.b16 %v2784
        %v5083 = vunpack.c.h.b16 %v2784
        %v5084 = vunpack.c.l.b16 %v2785
        %v5085 = vunpack.c.h.b16 %v2785
        %v5086 = vunpack.c.l.b16 %v2786
        %v5087 = vunpack.c.l.b16 %v2787
        %v5088 = vunpack.c.h.b16 %v2787
        %v5089 = vunpack.c.l.b16 %v2788
        %v5090 = vunpack.c.h.b16 %v2788
        %v5091 = vunpack.c.l.b16 %v2789
        %v5092 = vunpack.c.l.b16 %v2790
        %v5093 = vunpack.c.h.b16 %v2790
        %v5094 = vunpack.c.l.b16 %v2791
        %v5095 = vunpack.c.h.b16 %v2791
        %v5096 = vunpack.c.l.b16 %v2792
        %v5097 = vunpack.c.l.b16 %v2793
        %v5098 = vunpack.c.h.b16 %v2793
        %v5099 = vunpack.c.l.b16 %v2794
        %v5100 = vunpack.c.h.b16 %v2794
        %v5101 = vunpack.c.l.b16 %v2795
        %v5102 = vunpack.c.l.b16 %v2796
        %v5103 = vunpack.c.h.b16 %v2796
        %v5104 = vunpack.c.l.b16 %v2797
        %v5105 = vunpack.c.h.b16 %v2797
        %v5106 = vunpack.c.l.b16 %v2798
        %v5107 = vunpack.c.l.b16 %v2799
        %v5108 = vunpack.c.h.b16 %v2799
        %v5109 = vunpack.c.l.b16 %v2800
        %v5110 = vunpack.c.h.b16 %v2800
        %v5111 = vunpack.c.l.b16 %v2801
        %v5112 = vunpack.c.l.b16 %v2802
        %v5113 = vunpack.c.h.b16 %v2802
        %v5114 = vunpack.c.l.b16 %v2803
        %v5115 = vunpack.c.h.b16 %v2803
        %v5116 = vunpack.c.l.b16 %v2804
        %v5117 = vunpack.c.l.b16 %v2805
        %v5118 = vunpack.c.h.b16 %v2805
        %v5119 = vunpack.c.l.b16 %v2806
        %v5120 = vunpack.c.h.b16 %v2806
        %v5121 = vunpack.c.l.b16 %v2807
        %v5122 = vunpack.c.l.b16 %v2808
        %v5123 = vunpack.c.h.b16 %v2808
        %v5124 = vunpack.c.l.b16 %v2809
        %v5125 = vunpack.c.h.b16 %v2809
        %v5126 = vunpack.c.l.b16 %v2810
        %v5127 = vunpack.c.l.b16 %v2811
        %v5128 = vunpack.c.h.b16 %v2811
        %v5129 = vunpack.c.l.b16 %v2812
        %v5130 = vunpack.c.h.b16 %v2812
        %v5131 = vunpack.c.l.b16 %v2813
        %v5132 = vunpack.c.l.b16 %v2814
        %v5133 = vunpack.c.h.b16 %v2814
        %v5134 = vunpack.c.l.b16 %v2815
        %v5135 = vunpack.c.h.b16 %v2815
        %v5136 = vunpack.c.l.b16 %v2816
        %v5137 = vunpack.c.l.b16 %v2817
        %v5138 = vunpack.c.h.b16 %v2817
        %v5139 = vunpack.c.l.b16 %v2818
        %v5140 = vunpack.c.h.b16 %v2818
        %v5141 = vunpack.c.l.b16 %v2819
        %v5142 = vpack.c.b16 %v3707, %v3702
        %v5143 = vpack.c.b16 %v3708, %v3703
        %v5144 = vpack.c.b16 %v3709, %v3704
        %v5145 = vpack.c.b16 %v3710, %v3705
        %v5146 = vpack.c.b16 %v3711, %v3706
        %v5147 = vpack.c.b16 %v3717, %v3712
        %v5148 = vpack.c.b16 %v3718, %v3713
        %v5149 = vpack.c.b16 %v3719, %v3714
        %v5150 = vpack.c.b16 %v3720, %v3715
        %v5151 = vpack.c.b16 %v3721, %v3716
        %v5152 = vpack.c.b16 %v3727, %v3722
        %v5153 = vpack.c.b16 %v3728, %v3723
        %v5154 = vpack.c.b16 %v3729, %v3724
        %v5155 = vpack.c.b16 %v3730, %v3725
        %v5156 = vpack.c.b16 %v3731, %v3726
        %v5157 = vpack.c.b16 %v3737, %v3732
        %v5158 = vpack.c.b16 %v3738, %v3733
        %v5159 = vpack.c.b16 %v3739, %v3734
        %v5160 = vpack.c.b16 %v3740, %v3735
        %v5161 = vpack.c.b16 %v3741, %v3736
        %v5162 = vpack.c.b16 %v3747, %v3742
        %v5163 = vpack.c.b16 %v3748, %v3743
        %v5164 = vpack.c.b16 %v3749, %v3744
        %v5165 = vpack.c.b16 %v3750, %v3745
        %v5166 = vpack.c.b16 %v3751, %v3746
        %v5167 = vpack.c.b16 %v3757, %v3752
        %v5168 = vpack.c.b16 %v3758, %v3753
        %v5169 = vpack.c.b16 %v3759, %v3754
        %v5170 = vpack.c.b16 %v3760, %v3755
        %v5171 = vpack.c.b16 %v3761, %v3756
        %v5172 = vpack.c.b16 %v3767, %v3762
        %v5173 = vpack.c.b16 %v3768, %v3763
        %v5174 = vpack.c.b16 %v3769, %v3764
        %v5175 = vpack.c.b16 %v3770, %v3765
        %v5176 = vpack.c.b16 %v3771, %v3766
        %v5177 = vpack.c.b16 %v3777, %v3772
        %v5178 = vpack.c.b16 %v3778, %v3773
        %v5179 = vpack.c.b16 %v3779, %v3774
        %v5180 = vpack.c.b16 %v3780, %v3775
        %v5181 = vpack.c.b16 %v3781, %v3776
        %v5182 = vpack.c.b16 %v3787, %v3782
        %v5183 = vpack.c.b16 %v3788, %v3783
        %v5184 = vpack.c.b16 %v3789, %v3784
        %v5185 = vpack.c.b16 %v3790, %v3785
        %v5186 = vpack.c.b16 %v3791, %v3786
        %v5187 = vpack.c.b16 %v3797, %v3792
        %v5188 = vpack.c.b16 %v3798, %v3793
        %v5189 = vpack.c.b16 %v3799, %v3794
        %v5190 = vpack.c.b16 %v3800, %v3795
        %v5191 = vpack.c.b16 %v3801, %v3796
        %v5192 = vpack.c.b16 %v3807, %v3802
        %v5193 = vpack.c.b16 %v3808, %v3803
        %v5194 = vpack.c.b16 %v3809, %v3804
        %v5195 = vpack.c.b16 %v3810, %v3805
        %v5196 = vpack.c.b16 %v3811, %v3806
        %v5197 = vpack.c.b16 %v3817, %v3812
        %v5198 = vpack.c.b16 %v3818, %v3813
        %v5199 = vpack.c.b16 %v3819, %v3814
        %v5200 = vpack.c.b16 %v3820, %v3815
        %v5201 = vpack.c.b16 %v3821, %v3816
        %v5202 = vpack.c.b16 %v3827, %v3822
        %v5203 = vpack.c.b16 %v3828, %v3823
        %v5204 = vpack.c.b16 %v3829, %v3824
        %v5205 = vpack.c.b16 %v3830, %v3825
        %v5206 = vpack.c.b16 %v3831, %v3826
        %v5207 = vpack.c.b16 %v3837, %v3832
        %v5208 = vpack.c.b16 %v3838, %v3833
        %v5209 = vpack.c.b16 %v3839, %v3834
        %v5210 = vpack.c.b16 %v3840, %v3835
        %v5211 = vpack.c.b16 %v3841, %v3836
        %v5212 = vpack.c.b16 %v3847, %v3842
        %v5213 = vpack.c.b16 %v3848, %v3843
        %v5214 = vpack.c.b16 %v3849, %v3844
        %v5215 = vpack.c.b16 %v3850, %v3845
        %v5216 = vpack.c.b16 %v3851, %v3846
        %v5217 = vpack.c.b16 %v3857, %v3852
        %v5218 = vpack.c.b16 %v3858, %v3853
        %v5219 = vpack.c.b16 %v3859, %v3854
        %v5220 = vpack.c.b16 %v3860, %v3855
        %v5221 = vpack.c.b16 %v3861, %v3856
        %v5222 = vpack.c.b16 %v3867, %v3862
        %v5223 = vpack.c.b16 %v3868, %v3863
        %v5224 = vpack.c.b16 %v3869, %v3864
        %v5225 = vpack.c.b16 %v3870, %v3865
        %v5226 = vpack.c.b16 %v3871, %v3866
        %v5227 = vpack.c.b16 %v3877, %v3872
        %v5228 = vpack.c.b16 %v3878, %v3873
        %v5229 = vpack.c.b16 %v3879, %v3874
        %v5230 = vpack.c.b16 %v3880, %v3875
        %v5231 = vpack.c.b16 %v3881, %v3876
        %v5232 = vpack.c.b16 %v3887, %v3882
        %v5233 = vpack.c.b16 %v3888, %v3883
        %v5234 = vpack.c.b16 %v3889, %v3884
        %v5235 = vpack.c.b16 %v3890, %v3885
        %v5236 = vpack.c.b16 %v3891, %v3886
        %v5237 = vpack.c.b16 %v3897, %v3892
        %v5238 = vpack.c.b16 %v3898, %v3893
        %v5239 = vpack.c.b16 %v3899, %v3894
        %v5240 = vpack.c.b16 %v3900, %v3895
        %v5241 = vpack.c.b16 %v3901, %v3896
        %v5242 = vpack.c.b16 %v3907, %v3902
        %v5243 = vpack.c.b16 %v3908, %v3903
        %v5244 = vpack.c.b16 %v3909, %v3904
        %v5245 = vpack.c.b16 %v3910, %v3905
        %v5246 = vpack.c.b16 %v3911, %v3906
        %v5247 = vpack.c.b16 %v3917, %v3912
        %v5248 = vpack.c.b16 %v3918, %v3913
        %v5249 = vpack.c.b16 %v3919, %v3914
        %v5250 = vpack.c.b16 %v3920, %v3915
        %v5251 = vpack.c.b16 %v3921, %v3916
        %v5252 = vpack.c.b16 %v3927, %v3922
        %v5253 = vpack.c.b16 %v3928, %v3923
        %v5254 = vpack.c.b16 %v3929, %v3924
        %v5255 = vpack.c.b16 %v3930, %v3925
        %v5256 = vpack.c.b16 %v3931, %v3926
        %v5257 = vpack.c.b16 %v3937, %v3932
        %v5258 = vpack.c.b16 %v3938, %v3933
        %v5259 = vpack.c.b16 %v3939, %v3934
        %v5260 = vpack.c.b16 %v3940, %v3935
        %v5261 = vpack.c.b16 %v3941, %v3936
        %v5262 = vpack.c.b16 %v3947, %v3942
        %v5263 = vpack.c.b16 %v3948, %v3943
        %v5264 = vpack.c.b16 %v3949, %v3944
        %v5265 = vpack.c.b16 %v3950, %v3945
        %v5266 = vpack.c.b16 %v3951, %v3946
        %v5267 = vpack.c.b16 %v3957, %v3952
        %v5268 = vpack.c.b16 %v3958, %v3953
        %v5269 = vpack.c.b16 %v3959, %v3954
        %v5270 = vpack.c.b16 %v3960, %v3955
        %v5271 = vpack.c.b16 %v3961, %v3956
        %v5272 = vpack.c.b16 %v3967, %v3962
        %v5273 = vpack.c.b16 %v3968, %v3963
        %v5274 = vpack.c.b16 %v3969, %v3964
        %v5275 = vpack.c.b16 %v3970, %v3965
        %v5276 = vpack.c.b16 %v3971, %v3966
        %v5277 = vpack.c.b16 %v3977, %v3972
        %v5278 = vpack.c.b16 %v3978, %v3973
        %v5279 = vpack.c.b16 %v3979, %v3974
        %v5280 = vpack.c.b16 %v3980, %v3975
        %v5281 = vpack.c.b16 %v3981, %v3976
        %v5282 = vpack.c.b16 %v3987, %v3982
        %v5283 = vpack.c.b16 %v3988, %v3983
        %v5284 = vpack.c.b16 %v3989, %v3984
        %v5285 = vpack.c.b16 %v3990, %v3985
        %v5286 = vpack.c.b16 %v3991, %v3986
        %v5287 = vpack.c.b16 %v3997, %v3992
        %v5288 = vpack.c.b16 %v3998, %v3993
        %v5289 = vpack.c.b16 %v3999, %v3994
        %v5290 = vpack.c.b16 %v4000, %v3995
        %v5291 = vpack.c.b16 %v4001, %v3996
        %v5292 = vpack.c.b16 %v4007, %v4002
        %v5293 = vpack.c.b16 %v4008, %v4003
        %v5294 = vpack.c.b16 %v4009, %v4004
        %v5295 = vpack.c.b16 %v4010, %v4005
        %v5296 = vpack.c.b16 %v4011, %v4006
        %v5297 = vpack.c.b16 %v4017, %v4012
        %v5298 = vpack.c.b16 %v4018, %v4013
        %v5299 = vpack.c.b16 %v4019, %v4014
        %v5300 = vpack.c.b16 %v4020, %v4015
        %v5301 = vpack.c.b16 %v4021, %v4016
        %v5302 = vpack.c.b16 %v4027, %v4022
        %v5303 = vpack.c.b16 %v4028, %v4023
        %v5304 = vpack.c.b16 %v4029, %v4024
        %v5305 = vpack.c.b16 %v4030, %v4025
        %v5306 = vpack.c.b16 %v4031, %v4026
        %v5307 = vpack.c.b16 %v4037, %v4032
        %v5308 = vpack.c.b16 %v4038, %v4033
        %v5309 = vpack.c.b16 %v4039, %v4034
        %v5310 = vpack.c.b16 %v4040, %v4035
        %v5311 = vpack.c.b16 %v4041, %v4036
        %v5312 = vpack.c.b16 %v4047, %v4042
        %v5313 = vpack.c.b16 %v4048, %v4043
        %v5314 = vpack.c.b16 %v4049, %v4044
        %v5315 = vpack.c.b16 %v4050, %v4045
        %v5316 = vpack.c.b16 %v4051, %v4046
        %v5317 = vpack.c.b16 %v4057, %v4052
        %v5318 = vpack.c.b16 %v4058, %v4053
        %v5319 = vpack.c.b16 %v4059, %v4054
        %v5320 = vpack.c.b16 %v4060, %v4055
        %v5321 = vpack.c.b16 %v4061, %v4056
        %v5322 = vpack.c.b16 %v4067, %v4062
        %v5323 = vpack.c.b16 %v4068, %v4063
        %v5324 = vpack.c.b16 %v4069, %v4064
        %v5325 = vpack.c.b16 %v4070, %v4065
        %v5326 = vpack.c.b16 %v4071, %v4066
        %v5327 = vpack.c.b16 %v4077, %v4072
        %v5328 = vpack.c.b16 %v4078, %v4073
        %v5329 = vpack.c.b16 %v4079, %v4074
        %v5330 = vpack.c.b16 %v4080, %v4075
        %v5331 = vpack.c.b16 %v4081, %v4076
        %v5332 = vpack.c.b16 %v4087, %v4082
        %v5333 = vpack.c.b16 %v4088, %v4083
        %v5334 = vpack.c.b16 %v4089, %v4084
        %v5335 = vpack.c.b16 %v4090, %v4085
        %v5336 = vpack.c.b16 %v4091, %v4086
        %v5337 = vpack.c.b16 %v4097, %v4092
        %v5338 = vpack.c.b16 %v4098, %v4093
        %v5339 = vpack.c.b16 %v4099, %v4094
        %v5340 = vpack.c.b16 %v4100, %v4095
        %v5341 = vpack.c.b16 %v4101, %v4096
        %v5342 = vpack.c.b16 %v4107, %v4102
        %v5343 = vpack.c.b16 %v4108, %v4103
        %v5344 = vpack.c.b16 %v4109, %v4104
        %v5345 = vpack.c.b16 %v4110, %v4105
        %v5346 = vpack.c.b16 %v4111, %v4106
        %v5347 = vpack.c.b16 %v4117, %v4112
        %v5348 = vpack.c.b16 %v4118, %v4113
        %v5349 = vpack.c.b16 %v4119, %v4114
        %v5350 = vpack.c.b16 %v4120, %v4115
        %v5351 = vpack.c.b16 %v4121, %v4116
        %v5352 = vpack.c.b16 %v4127, %v4122
        %v5353 = vpack.c.b16 %v4128, %v4123
        %v5354 = vpack.c.b16 %v4129, %v4124
        %v5355 = vpack.c.b16 %v4130, %v4125
        %v5356 = vpack.c.b16 %v4131, %v4126
        %v5357 = vpack.c.b16 %v4137, %v4132
        %v5358 = vpack.c.b16 %v4138, %v4133
        %v5359 = vpack.c.b16 %v4139, %v4134
        %v5360 = vpack.c.b16 %v4140, %v4135
        %v5361 = vpack.c.b16 %v4141, %v4136
        %v5362 = vpack.c.b16 %v4147, %v4142
        %v5363 = vpack.c.b16 %v4148, %v4143
        %v5364 = vpack.c.b16 %v4149, %v4144
        %v5365 = vpack.c.b16 %v4150, %v4145
        %v5366 = vpack.c.b16 %v4151, %v4146
        %v5367 = vpack.c.b16 %v4157, %v4152
        %v5368 = vpack.c.b16 %v4158, %v4153
        %v5369 = vpack.c.b16 %v4159, %v4154
        %v5370 = vpack.c.b16 %v4160, %v4155
        %v5371 = vpack.c.b16 %v4161, %v4156
        %v5372 = vpack.c.b16 %v4167, %v4162
        %v5373 = vpack.c.b16 %v4168, %v4163
        %v5374 = vpack.c.b16 %v4169, %v4164
        %v5375 = vpack.c.b16 %v4170, %v4165
        %v5376 = vpack.c.b16 %v4171, %v4166
        %v5377 = vpack.c.b16 %v4177, %v4172
        %v5378 = vpack.c.b16 %v4178, %v4173
        %v5379 = vpack.c.b16 %v4179, %v4174
        %v5380 = vpack.c.b16 %v4180, %v4175
        %v5381 = vpack.c.b16 %v4181, %v4176
        %v5382 = vpack.c.b16 %v4187, %v4182
        %v5383 = vpack.c.b16 %v4188, %v4183
        %v5384 = vpack.c.b16 %v4189, %v4184
        %v5385 = vpack.c.b16 %v4190, %v4185
        %v5386 = vpack.c.b16 %v4191, %v4186
        %v5387 = vpack.c.b16 %v4197, %v4192
        %v5388 = vpack.c.b16 %v4198, %v4193
        %v5389 = vpack.c.b16 %v4199, %v4194
        %v5390 = vpack.c.b16 %v4200, %v4195
        %v5391 = vpack.c.b16 %v4201, %v4196
        %v5392 = vpack.c.b16 %v4207, %v4202
        %v5393 = vpack.c.b16 %v4208, %v4203
        %v5394 = vpack.c.b16 %v4209, %v4204
        %v5395 = vpack.c.b16 %v4210, %v4205
        %v5396 = vpack.c.b16 %v4211, %v4206
        %v5397 = vpack.c.b16 %v4217, %v4212
        %v5398 = vpack.c.b16 %v4218, %v4213
        %v5399 = vpack.c.b16 %v4219, %v4214
        %v5400 = vpack.c.b16 %v4220, %v4215
        %v5401 = vpack.c.b16 %v4221, %v4216
        %v5402 = vpack.c.b16 %v4227, %v4222
        %v5403 = vpack.c.b16 %v4228, %v4223
        %v5404 = vpack.c.b16 %v4229, %v4224
        %v5405 = vpack.c.b16 %v4230, %v4225
        %v5406 = vpack.c.b16 %v4231, %v4226
        %v5407 = vpack.c.b16 %v4237, %v4232
        %v5408 = vpack.c.b16 %v4238, %v4233
        %v5409 = vpack.c.b16 %v4239, %v4234
        %v5410 = vpack.c.b16 %v4240, %v4235
        %v5411 = vpack.c.b16 %v4241, %v4236
        %v5412 = vpack.c.b16 %v4247, %v4242
        %v5413 = vpack.c.b16 %v4248, %v4243
        %v5414 = vpack.c.b16 %v4249, %v4244
        %v5415 = vpack.c.b16 %v4250, %v4245
        %v5416 = vpack.c.b16 %v4251, %v4246
        %v5417 = vpack.c.b16 %v4257, %v4252
        %v5418 = vpack.c.b16 %v4258, %v4253
        %v5419 = vpack.c.b16 %v4259, %v4254
        %v5420 = vpack.c.b16 %v4260, %v4255
        %v5421 = vpack.c.b16 %v4261, %v4256
        %v5422 = vpack.c.b16 %v4267, %v4262
        %v5423 = vpack.c.b16 %v4268, %v4263
        %v5424 = vpack.c.b16 %v4269, %v4264
        %v5425 = vpack.c.b16 %v4270, %v4265
        %v5426 = vpack.c.b16 %v4271, %v4266
        %v5427 = vpack.c.b16 %v4277, %v4272
        %v5428 = vpack.c.b16 %v4278, %v4273
        %v5429 = vpack.c.b16 %v4279, %v4274
        %v5430 = vpack.c.b16 %v4280, %v4275
        %v5431 = vpack.c.b16 %v4281, %v4276
        %v5432 = vpack.c.b16 %v4287, %v4282
        %v5433 = vpack.c.b16 %v4288, %v4283
        %v5434 = vpack.c.b16 %v4289, %v4284
        %v5435 = vpack.c.b16 %v4290, %v4285
        %v5436 = vpack.c.b16 %v4291, %v4286
        %v5437 = vpack.c.b16 %v4297, %v4292
        %v5438 = vpack.c.b16 %v4298, %v4293
        %v5439 = vpack.c.b16 %v4299, %v4294
        %v5440 = vpack.c.b16 %v4300, %v4295
        %v5441 = vpack.c.b16 %v4301, %v4296
        %v5442 = vpack.c.b16 %v4307, %v4302
        %v5443 = vpack.c.b16 %v4308, %v4303
        %v5444 = vpack.c.b16 %v4309, %v4304
        %v5445 = vpack.c.b16 %v4310, %v4305
        %v5446 = vpack.c.b16 %v4311, %v4306
        %v5447 = vpack.c.b16 %v4317, %v4312
        %v5448 = vpack.c.b16 %v4318, %v4313
        %v5449 = vpack.c.b16 %v4319, %v4314
        %v5450 = vpack.c.b16 %v4320, %v4315
        %v5451 = vpack.c.b16 %v4321, %v4316
        %v5452 = vpack.c.b16 %v4327, %v4322
        %v5453 = vpack.c.b16 %v4328, %v4323
        %v5454 = vpack.c.b16 %v4329, %v4324
        %v5455 = vpack.c.b16 %v4330, %v4325
        %v5456 = vpack.c.b16 %v4331, %v4326
        %v5457 = vpack.c.b16 %v4337, %v4332
        %v5458 = vpack.c.b16 %v4338, %v4333
        %v5459 = vpack.c.b16 %v4339, %v4334
        %v5460 = vpack.c.b16 %v4340, %v4335
        %v5461 = vpack.c.b16 %v4341, %v4336
        %v5462 = vpack.c.b16 %v4347, %v4342
        %v5463 = vpack.c.b16 %v4348, %v4343
        %v5464 = vpack.c.b16 %v4349, %v4344
        %v5465 = vpack.c.b16 %v4350, %v4345
        %v5466 = vpack.c.b16 %v4351, %v4346
        %v5467 = vpack.c.b16 %v4357, %v4352
        %v5468 = vpack.c.b16 %v4358, %v4353
        %v5469 = vpack.c.b16 %v4359, %v4354
        %v5470 = vpack.c.b16 %v4360, %v4355
        %v5471 = vpack.c.b16 %v4361, %v4356
        %v5472 = vpack.c.b16 %v4367, %v4362
        %v5473 = vpack.c.b16 %v4368, %v4363
        %v5474 = vpack.c.b16 %v4369, %v4364
        %v5475 = vpack.c.b16 %v4370, %v4365
        %v5476 = vpack.c.b16 %v4371, %v4366
        %v5477 = vpack.c.b16 %v4377, %v4372
        %v5478 = vpack.c.b16 %v4378, %v4373
        %v5479 = vpack.c.b16 %v4379, %v4374
        %v5480 = vpack.c.b16 %v4380, %v4375
        %v5481 = vpack.c.b16 %v4381, %v4376
        %v5482 = vpack.c.b16 %v4387, %v4382
        %v5483 = vpack.c.b16 %v4388, %v4383
        %v5484 = vpack.c.b16 %v4389, %v4384
        %v5485 = vpack.c.b16 %v4390, %v4385
        %v5486 = vpack.c.b16 %v4391, %v4386
        %v5487 = vpack.c.b16 %v4397, %v4392
        %v5488 = vpack.c.b16 %v4398, %v4393
        %v5489 = vpack.c.b16 %v4399, %v4394
        %v5490 = vpack.c.b16 %v4400, %v4395
        %v5491 = vpack.c.b16 %v4401, %v4396
        %v5492 = vpack.c.b16 %v4407, %v4402
        %v5493 = vpack.c.b16 %v4408, %v4403
        %v5494 = vpack.c.b16 %v4409, %v4404
        %v5495 = vpack.c.b16 %v4410, %v4405
        %v5496 = vpack.c.b16 %v4411, %v4406
        %v5497 = vpack.c.b16 %v4417, %v4412
        %v5498 = vpack.c.b16 %v4418, %v4413
        %v5499 = vpack.c.b16 %v4419, %v4414
        %v5500 = vpack.c.b16 %v4420, %v4415
        %v5501 = vpack.c.b16 %v4421, %v4416
        %v5502 = vpack.c.b16 %v4427, %v4422
        %v5503 = vpack.c.b16 %v4428, %v4423
        %v5504 = vpack.c.b16 %v4429, %v4424
        %v5505 = vpack.c.b16 %v4430, %v4425
        %v5506 = vpack.c.b16 %v4431, %v4426
        %v5507 = vpack.c.b16 %v4437, %v4432
        %v5508 = vpack.c.b16 %v4438, %v4433
        %v5509 = vpack.c.b16 %v4439, %v4434
        %v5510 = vpack.c.b16 %v4440, %v4435
        %v5511 = vpack.c.b16 %v4441, %v4436
        %v5512 = vpack.c.b16 %v4447, %v4442
        %v5513 = vpack.c.b16 %v4448, %v4443
        %v5514 = vpack.c.b16 %v4449, %v4444
        %v5515 = vpack.c.b16 %v4450, %v4445
        %v5516 = vpack.c.b16 %v4451, %v4446
        %v5517 = vpack.c.b16 %v4457, %v4452
        %v5518 = vpack.c.b16 %v4458, %v4453
        %v5519 = vpack.c.b16 %v4459, %v4454
        %v5520 = vpack.c.b16 %v4460, %v4455
        %v5521 = vpack.c.b16 %v4461, %v4456
        %v5522 = vpack.c.b16 %v4467, %v4462
        %v5523 = vpack.c.b16 %v4468, %v4463
        %v5524 = vpack.c.b16 %v4469, %v4464
        %v5525 = vpack.c.b16 %v4470, %v4465
        %v5526 = vpack.c.b16 %v4471, %v4466
        %v5527 = vpack.c.b16 %v4477, %v4472
        %v5528 = vpack.c.b16 %v4478, %v4473
        %v5529 = vpack.c.b16 %v4479, %v4474
        %v5530 = vpack.c.b16 %v4480, %v4475
        %v5531 = vpack.c.b16 %v4481, %v4476
        %v5532 = vpack.c.b16 %v4487, %v4482
        %v5533 = vpack.c.b16 %v4488, %v4483
        %v5534 = vpack.c.b16 %v4489, %v4484
        %v5535 = vpack.c.b16 %v4490, %v4485
        %v5536 = vpack.c.b16 %v4491, %v4486
        %v5537 = vpack.c.b16 %v4497, %v4492
        %v5538 = vpack.c.b16 %v4498, %v4493
        %v5539 = vpack.c.b16 %v4499, %v4494
        %v5540 = vpack.c.b16 %v4500, %v4495
        %v5541 = vpack.c.b16 %v4501, %v4496
        %v5542 = vpack.c.b16 %v4507, %v4502
        %v5543 = vpack.c.b16 %v4508, %v4503
        %v5544 = vpack.c.b16 %v4509, %v4504
        %v5545 = vpack.c.b16 %v4510, %v4505
        %v5546 = vpack.c.b16 %v4511, %v4506
        %v5547 = vpack.c.b16 %v4517, %v4512
        %v5548 = vpack.c.b16 %v4518, %v4513
        %v5549 = vpack.c.b16 %v4519, %v4514
        %v5550 = vpack.c.b16 %v4520, %v4515
        %v5551 = vpack.c.b16 %v4521, %v4516
        %v5552 = vpack.c.b16 %v4527, %v4522
        %v5553 = vpack.c.b16 %v4528, %v4523
        %v5554 = vpack.c.b16 %v4529, %v4524
        %v5555 = vpack.c.b16 %v4530, %v4525
        %v5556 = vpack.c.b16 %v4531, %v4526
        %v5557 = vpack.c.b16 %v4537, %v4532
        %v5558 = vpack.c.b16 %v4538, %v4533
        %v5559 = vpack.c.b16 %v4539, %v4534
        %v5560 = vpack.c.b16 %v4540, %v4535
        %v5561 = vpack.c.b16 %v4541, %v4536
        %v5562 = vpack.c.b16 %v4547, %v4542
        %v5563 = vpack.c.b16 %v4548, %v4543
        %v5564 = vpack.c.b16 %v4549, %v4544
        %v5565 = vpack.c.b16 %v4550, %v4545
        %v5566 = vpack.c.b16 %v4551, %v4546
        %v5567 = vpack.c.b16 %v4557, %v4552
        %v5568 = vpack.c.b16 %v4558, %v4553
        %v5569 = vpack.c.b16 %v4559, %v4554
        %v5570 = vpack.c.b16 %v4560, %v4555
        %v5571 = vpack.c.b16 %v4561, %v4556
        %v5572 = vpack.c.b16 %v4567, %v4562
        %v5573 = vpack.c.b16 %v4568, %v4563
        %v5574 = vpack.c.b16 %v4569, %v4564
        %v5575 = vpack.c.b16 %v4570, %v4565
        %v5576 = vpack.c.b16 %v4571, %v4566
        %v5577 = vpack.c.b16 %v4577, %v4572
        %v5578 = vpack.c.b16 %v4578, %v4573
        %v5579 = vpack.c.b16 %v4579, %v4574
        %v5580 = vpack.c.b16 %v4580, %v4575
        %v5581 = vpack.c.b16 %v4581, %v4576
        %v5582 = vpack.c.b16 %v4587, %v4582
        %v5583 = vpack.c.b16 %v4588, %v4583
        %v5584 = vpack.c.b16 %v4589, %v4584
        %v5585 = vpack.c.b16 %v4590, %v4585
        %v5586 = vpack.c.b16 %v4591, %v4586
        %v5587 = vpack.c.b16 %v4597, %v4592
        %v5588 = vpack.c.b16 %v4598, %v4593
        %v5589 = vpack.c.b16 %v4599, %v4594
        %v5590 = vpack.c.b16 %v4600, %v4595
        %v5591 = vpack.c.b16 %v4601, %v4596
        %v5592 = vpack.c.b16 %v4607, %v4602
        %v5593 = vpack.c.b16 %v4608, %v4603
        %v5594 = vpack.c.b16 %v4609, %v4604
        %v5595 = vpack.c.b16 %v4610, %v4605
        %v5596 = vpack.c.b16 %v4611, %v4606
        %v5597 = vpack.c.b16 %v4617, %v4612
        %v5598 = vpack.c.b16 %v4618, %v4613
        %v5599 = vpack.c.b16 %v4619, %v4614
        %v5600 = vpack.c.b16 %v4620, %v4615
        %v5601 = vpack.c.b16 %v4621, %v4616
        %v5602 = vpack.c.b16 %v4627, %v4622
        %v5603 = vpack.c.b16 %v4628, %v4623
        %v5604 = vpack.c.b16 %v4629, %v4624
        %v5605 = vpack.c.b16 %v4630, %v4625
        %v5606 = vpack.c.b16 %v4631, %v4626
        %v5607 = vpack.c.b16 %v4637, %v4632
        %v5608 = vpack.c.b16 %v4638, %v4633
        %v5609 = vpack.c.b16 %v4639, %v4634
        %v5610 = vpack.c.b16 %v4640, %v4635
        %v5611 = vpack.c.b16 %v4641, %v4636
        %v5612 = vpack.c.b16 %v4647, %v4642
        %v5613 = vpack.c.b16 %v4648, %v4643
        %v5614 = vpack.c.b16 %v4649, %v4644
        %v5615 = vpack.c.b16 %v4650, %v4645
        %v5616 = vpack.c.b16 %v4651, %v4646
        %v5617 = vpack.c.b16 %v4657, %v4652
        %v5618 = vpack.c.b16 %v4658, %v4653
        %v5619 = vpack.c.b16 %v4659, %v4654
        %v5620 = vpack.c.b16 %v4660, %v4655
        %v5621 = vpack.c.b16 %v4661, %v4656
        %v5622 = vpack.c.b16 %v4667, %v4662
        %v5623 = vpack.c.b16 %v4668, %v4663
        %v5624 = vpack.c.b16 %v4669, %v4664
        %v5625 = vpack.c.b16 %v4670, %v4665
        %v5626 = vpack.c.b16 %v4671, %v4666
        %v5627 = vpack.c.b16 %v4677, %v4672
        %v5628 = vpack.c.b16 %v4678, %v4673
        %v5629 = vpack.c.b16 %v4679, %v4674
        %v5630 = vpack.c.b16 %v4680, %v4675
        %v5631 = vpack.c.b16 %v4681, %v4676
        %v5632 = vpack.c.b16 %v4687, %v4682
        %v5633 = vpack.c.b16 %v4688, %v4683
        %v5634 = vpack.c.b16 %v4689, %v4684
        %v5635 = vpack.c.b16 %v4690, %v4685
        %v5636 = vpack.c.b16 %v4691, %v4686
        %v5637 = vpack.c.b16 %v4697, %v4692
        %v5638 = vpack.c.b16 %v4698, %v4693
        %v5639 = vpack.c.b16 %v4699, %v4694
        %v5640 = vpack.c.b16 %v4700, %v4695
        %v5641 = vpack.c.b16 %v4701, %v4696
        %v5642 = vpack.c.b16 %v4707, %v4702
        %v5643 = vpack.c.b16 %v4708, %v4703
        %v5644 = vpack.c.b16 %v4709, %v4704
        %v5645 = vpack.c.b16 %v4710, %v4705
        %v5646 = vpack.c.b16 %v4711, %v4706
        %v5647 = vpack.c.b16 %v4717, %v4712
        %v5648 = vpack.c.b16 %v4718, %v4713
        %v5649 = vpack.c.b16 %v4719, %v4714
        %v5650 = vpack.c.b16 %v4720, %v4715
        %v5651 = vpack.c.b16 %v4721, %v4716
        %v5652 = vpack.c.b16 %v4727, %v4722
        %v5653 = vpack.c.b16 %v4728, %v4723
        %v5654 = vpack.c.b16 %v4729, %v4724
        %v5655 = vpack.c.b16 %v4730, %v4725
        %v5656 = vpack.c.b16 %v4731, %v4726
        %v5657 = vpack.c.b16 %v4737, %v4732
        %v5658 = vpack.c.b16 %v4738, %v4733
        %v5659 = vpack.c.b16 %v4739, %v4734
        %v5660 = vpack.c.b16 %v4740, %v4735
        %v5661 = vpack.c.b16 %v4741, %v4736
        %v5662 = vpack.c.b16 %v4747, %v4742
        %v5663 = vpack.c.b16 %v4748, %v4743
        %v5664 = vpack.c.b16 %v4749, %v4744
        %v5665 = vpack.c.b16 %v4750, %v4745
        %v5666 = vpack.c.b16 %v4751, %v4746
        %v5667 = vpack.c.b16 %v4757, %v4752
        %v5668 = vpack.c.b16 %v4758, %v4753
        %v5669 = vpack.c.b16 %v4759, %v4754
        %v5670 = vpack.c.b16 %v4760, %v4755
        %v5671 = vpack.c.b16 %v4761, %v4756
        %v5672 = vpack.c.b16 %v4767, %v4762
        %v5673 = vpack.c.b16 %v4768, %v4763
        %v5674 = vpack.c.b16 %v4769, %v4764
        %v5675 = vpack.c.b16 %v4770, %v4765
        %v5676 = vpack.c.b16 %v4771, %v4766
        %v5677 = vpack.c.b16 %v4777, %v4772
        %v5678 = vpack.c.b16 %v4778, %v4773
        %v5679 = vpack.c.b16 %v4779, %v4774
        %v5680 = vpack.c.b16 %v4780, %v4775
        %v5681 = vpack.c.b16 %v4781, %v4776
        %v5682 = vpack.c.b16 %v4787, %v4782
        %v5683 = vpack.c.b16 %v4788, %v4783
        %v5684 = vpack.c.b16 %v4789, %v4784
        %v5685 = vpack.c.b16 %v4790, %v4785
        %v5686 = vpack.c.b16 %v4791, %v4786
        %v5687 = vpack.c.b16 %v4797, %v4792
        %v5688 = vpack.c.b16 %v4798, %v4793
        %v5689 = vpack.c.b16 %v4799, %v4794
        %v5690 = vpack.c.b16 %v4800, %v4795
        %v5691 = vpack.c.b16 %v4801, %v4796
        %v5692 = vpack.c.b16 %v4807, %v4802
        %v5693 = vpack.c.b16 %v4808, %v4803
        %v5694 = vpack.c.b16 %v4809, %v4804
        %v5695 = vpack.c.b16 %v4810, %v4805
        %v5696 = vpack.c.b16 %v4811, %v4806
        %v5697 = vpack.c.b16 %v4817, %v4812
        %v5698 = vpack.c.b16 %v4818, %v4813
        %v5699 = vpack.c.b16 %v4819, %v4814
        %v5700 = vpack.c.b16 %v4820, %v4815
        %v5701 = vpack.c.b16 %v4821, %v4816
        %v5702 = vpack.c.b16 %v4827, %v4822
        %v5703 = vpack.c.b16 %v4828, %v4823
        %v5704 = vpack.c.b16 %v4829, %v4824
        %v5705 = vpack.c.b16 %v4830, %v4825
        %v5706 = vpack.c.b16 %v4831, %v4826
        %v5707 = vpack.c.b16 %v4837, %v4832
        %v5708 = vpack.c.b16 %v4838, %v4833
        %v5709 = vpack.c.b16 %v4839, %v4834
        %v5710 = vpack.c.b16 %v4840, %v4835
        %v5711 = vpack.c.b16 %v4841, %v4836
        %v5712 = vpack.c.b16 %v4847, %v4842
        %v5713 = vpack.c.b16 %v4848, %v4843
        %v5714 = vpack.c.b16 %v4849, %v4844
        %v5715 = vpack.c.b16 %v4850, %v4845
        %v5716 = vpack.c.b16 %v4851, %v4846
        %v5717 = vpack.c.b16 %v4857, %v4852
        %v5718 = vpack.c.b16 %v4858, %v4853
        %v5719 = vpack.c.b16 %v4859, %v4854
        %v5720 = vpack.c.b16 %v4860, %v4855
        %v5721 = vpack.c.b16 %v4861, %v4856
        %v5722 = vpack.c.b16 %v4867, %v4862
        %v5723 = vpack.c.b16 %v4868, %v4863
        %v5724 = vpack.c.b16 %v4869, %v4864
        %v5725 = vpack.c.b16 %v4870, %v4865
        %v5726 = vpack.c.b16 %v4871, %v4866
        %v5727 = vpack.c.b16 %v4877, %v4872
        %v5728 = vpack.c.b16 %v4878, %v4873
        %v5729 = vpack.c.b16 %v4879, %v4874
        %v5730 = vpack.c.b16 %v4880, %v4875
        %v5731 = vpack.c.b16 %v4881, %v4876
        %v5732 = vpack.c.b16 %v4887, %v4882
        %v5733 = vpack.c.b16 %v4888, %v4883
        %v5734 = vpack.c.b16 %v4889, %v4884
        %v5735 = vpack.c.b16 %v4890, %v4885
        %v5736 = vpack.c.b16 %v4891, %v4886
        %v5737 = vpack.c.b16 %v4897, %v4892
        %v5738 = vpack.c.b16 %v4898, %v4893
        %v5739 = vpack.c.b16 %v4899, %v4894
        %v5740 = vpack.c.b16 %v4900, %v4895
        %v5741 = vpack.c.b16 %v4901, %v4896
        %v5742 = vpack.c.b16 %v4907, %v4902
        %v5743 = vpack.c.b16 %v4908, %v4903
        %v5744 = vpack.c.b16 %v4909, %v4904
        %v5745 = vpack.c.b16 %v4910, %v4905
        %v5746 = vpack.c.b16 %v4911, %v4906
        %v5747 = vpack.c.b16 %v4917, %v4912
        %v5748 = vpack.c.b16 %v4918, %v4913
        %v5749 = vpack.c.b16 %v4919, %v4914
        %v5750 = vpack.c.b16 %v4920, %v4915
        %v5751 = vpack.c.b16 %v4921, %v4916
        %v5752 = vpack.c.b16 %v4927, %v4922
        %v5753 = vpack.c.b16 %v4928, %v4923
        %v5754 = vpack.c.b16 %v4929, %v4924
        %v5755 = vpack.c.b16 %v4930, %v4925
        %v5756 = vpack.c.b16 %v4931, %v4926
        %v5757 = vpack.c.b16 %v4937, %v4932
        %v5758 = vpack.c.b16 %v4938, %v4933
        %v5759 = vpack.c.b16 %v4939, %v4934
        %v5760 = vpack.c.b16 %v4940, %v4935
        %v5761 = vpack.c.b16 %v4941, %v4936
        %v5762 = vpack.c.b16 %v4947, %v4942
        %v5763 = vpack.c.b16 %v4948, %v4943
        %v5764 = vpack.c.b16 %v4949, %v4944
        %v5765 = vpack.c.b16 %v4950, %v4945
        %v5766 = vpack.c.b16 %v4951, %v4946
        %v5767 = vpack.c.b16 %v4957, %v4952
        %v5768 = vpack.c.b16 %v4958, %v4953
        %v5769 = vpack.c.b16 %v4959, %v4954
        %v5770 = vpack.c.b16 %v4960, %v4955
        %v5771 = vpack.c.b16 %v4961, %v4956
        %v5772 = vpack.c.b16 %v4967, %v4962
        %v5773 = vpack.c.b16 %v4968, %v4963
        %v5774 = vpack.c.b16 %v4969, %v4964
        %v5775 = vpack.c.b16 %v4970, %v4965
        %v5776 = vpack.c.b16 %v4971, %v4966
        %v5777 = vpack.c.b16 %v4977, %v4972
        %v5778 = vpack.c.b16 %v4978, %v4973
        %v5779 = vpack.c.b16 %v4979, %v4974
        %v5780 = vpack.c.b16 %v4980, %v4975
        %v5781 = vpack.c.b16 %v4981, %v4976
        %v5782 = vpack.c.b16 %v4987, %v4982
        %v5783 = vpack.c.b16 %v4988, %v4983
        %v5784 = vpack.c.b16 %v4989, %v4984
        %v5785 = vpack.c.b16 %v4990, %v4985
        %v5786 = vpack.c.b16 %v4991, %v4986
        %v5787 = vpack.c.b16 %v4997, %v4992
        %v5788 = vpack.c.b16 %v4998, %v4993
        %v5789 = vpack.c.b16 %v4999, %v4994
        %v5790 = vpack.c.b16 %v5000, %v4995
        %v5791 = vpack.c.b16 %v5001, %v4996
        %v5792 = vpack.c.b16 %v5007, %v5002
        %v5793 = vpack.c.b16 %v5008, %v5003
        %v5794 = vpack.c.b16 %v5009, %v5004
        %v5795 = vpack.c.b16 %v5010, %v5005
        %v5796 = vpack.c.b16 %v5011, %v5006
        %v5797 = vpack.c.b16 %v5017, %v5012
        %v5798 = vpack.c.b16 %v5018, %v5013
        %v5799 = vpack.c.b16 %v5019, %v5014
        %v5800 = vpack.c.b16 %v5020, %v5015
        %v5801 = vpack.c.b16 %v5021, %v5016
        %v5802 = vpack.c.b16 %v5027, %v5022
        %v5803 = vpack.c.b16 %v5028, %v5023
        %v5804 = vpack.c.b16 %v5029, %v5024
        %v5805 = vpack.c.b16 %v5030, %v5025
        %v5806 = vpack.c.b16 %v5031, %v5026
        %v5807 = vpack.c.b16 %v5037, %v5032
        %v5808 = vpack.c.b16 %v5038, %v5033
        %v5809 = vpack.c.b16 %v5039, %v5034
        %v5810 = vpack.c.b16 %v5040, %v5035
        %v5811 = vpack.c.b16 %v5041, %v5036
        %v5812 = vpack.c.b16 %v5047, %v5042
        %v5813 = vpack.c.b16 %v5048, %v5043
        %v5814 = vpack.c.b16 %v5049, %v5044
        %v5815 = vpack.c.b16 %v5050, %v5045
        %v5816 = vpack.c.b16 %v5051, %v5046
        %v5817 = vpack.c.b16 %v5057, %v5052
        %v5818 = vpack.c.b16 %v5058, %v5053
        %v5819 = vpack.c.b16 %v5059, %v5054
        %v5820 = vpack.c.b16 %v5060, %v5055
        %v5821 = vpack.c.b16 %v5061, %v5056
        %v5822 = vpack.c.b16 %v5067, %v5062
        %v5823 = vpack.c.b16 %v5068, %v5063
        %v5824 = vpack.c.b16 %v5069, %v5064
        %v5825 = vpack.c.b16 %v5070, %v5065
        %v5826 = vpack.c.b16 %v5071, %v5066
        %v5827 = vpack.c.b16 %v5077, %v5072
        %v5828 = vpack.c.b16 %v5078, %v5073
        %v5829 = vpack.c.b16 %v5079, %v5074
        %v5830 = vpack.c.b16 %v5080, %v5075
        %v5831 = vpack.c.b16 %v5081, %v5076
        %v5832 = vpack.c.b16 %v5087, %v5082
        %v5833 = vpack.c.b16 %v5088, %v5083
        %v5834 = vpack.c.b16 %v5089, %v5084
        %v5835 = vpack.c.b16 %v5090, %v5085
        %v5836 = vpack.c.b16 %v5091, %v5086
        %v5837 = vpack.c.b16 %v5097, %v5092
        %v5838 = vpack.c.b16 %v5098, %v5093
        %v5839 = vpack.c.b16 %v5099, %v5094
        %v5840 = vpack.c.b16 %v5100, %v5095
        %v5841 = vpack.c.b16 %v5101, %v5096
        %v5842 = vpack.c.b16 %v5107, %v5102
        %v5843 = vpack.c.b16 %v5108, %v5103
        %v5844 = vpack.c.b16 %v5109, %v5104
        %v5845 = vpack.c.b16 %v5110, %v5105
        %v5846 = vpack.c.b16 %v5111, %v5106
        %v5847 = vpack.c.b16 %v5117, %v5112
        %v5848 = vpack.c.b16 %v5118, %v5113
        %v5849 = vpack.c.b16 %v5119, %v5114
        %v5850 = vpack.c.b16 %v5120, %v5115
        %v5851 = vpack.c.b16 %v5121, %v5116
        %v5852 = vpack.c.b16 %v5127, %v5122
        %v5853 = vpack.c.b16 %v5128, %v5123
        %v5854 = vpack.c.b16 %v5129, %v5124
        %v5855 = vpack.c.b16 %v5130, %v5125
        %v5856 = vpack.c.b16 %v5131, %v5126
        %v5857 = vpack.c.b16 %v5137, %v5132
        %v5858 = vpack.c.b16 %v5138, %v5133
        %v5859 = vpack.c.b16 %v5139, %v5134
        %v5860 = vpack.c.b16 %v5140, %v5135
        %v5861 = vpack.c.b16 %v5141, %v5136
        %6582 = vmatprep.subr.bf16.mxu0 %v5178
        %6583 = vmatpush1.bf16.msra.mxu0 %v5177
        %6584 = vmatprep.subr.bf16.mxu0 %v5173
        %6585 = vmatpush1.bf16.msra.mxu0 %v5172
        %6586 = vmatprep.subr.bf16.mxu0 %v5168
        %6587 = vmatpush1.bf16.msra.mxu0 %v5167
        %6588 = vmatprep.subr.bf16.mxu0 %v5163
        %6589 = vmatpush1.bf16.msra.mxu0 %v5162
        %6590 = vmatprep.subr.bf16.mxu0 %v5158
        %6591 = vmatpush1.bf16.msra.mxu0 %v5157
        %6592 = vmatprep.subr.bf16.mxu0 %v5153
        %6593 = vmatpush1.bf16.msra.mxu0 %v5152
        %6594 = vmatprep.subr.bf16.mxu0 %v5148
        %6595 = vmatpush1.bf16.msra.mxu0 %v5147
        %6596 = vmatprep.subr.bf16.mxu0 %v5143
        %6597 = vmatpush1.bf16.msra.mxu0 %v5142
        %6598 = vmatprep.subr.bf16.mxu0 %v5218
        %6599 = vmatpush2.bf16.msra.mxu0 %v5217
        %6600 = vmatprep.subr.bf16.mxu0 %v5213
        %6601 = vmatpush2.bf16.msra.mxu0 %v5212
        %6602 = vmatprep.subr.bf16.mxu0 %v5208
        %6603 = vmatpush2.bf16.msra.mxu0 %v5207
        %6604 = vmatprep.subr.bf16.mxu0 %v5203
        %6605 = vmatpush2.bf16.msra.mxu0 %v5202
        %6606 = vmatprep.subr.bf16.mxu0 %v5198
        %6607 = vmatpush2.bf16.msra.mxu0 %v5197
        %6608 = vmatprep.subr.bf16.mxu0 %v5193
        %6609 = vmatpush2.bf16.msra.mxu0 %v5192
        %6610 = vmatprep.subr.bf16.mxu0 %v5188
        %6611 = vmatpush2.bf16.msra.mxu0 %v5187
        %6612 = vmatprep.subr.bf16.mxu0 %v5183
        %6613 = vmatpush2.bf16.msra.mxu0 %v5182
        %6614 = vmatprep.mubr.bf16.mxu0 %v2821
        %6615 = vmatmul.mubr.bf16.gmra.mxu0 %v2820
        %v6616 = vpop.f32.mrf.mxu0
        %v6617 = vadd.f32 0.0, %v6616
        %v6618 = vpop.f32.mrf.mxu0
        %v6619 = vadd.f32 0.0, %v6618
        %v6620 = vpop.f32.mrf.mxu0
        %v6621 = vadd.f32 0.0, %v6620
        %v6622 = vpop.f32.mrf.mxu0
        %v6623 = vadd.f32 0.0, %v6622
        %6624 = vdwg.mxu0
        %6625 = vmatprep.subr.bf16.mxu0 %v5258
        %6626 = vmatpush1.bf16.msra.mxu0 %v5257
        %6627 = vmatprep.subr.bf16.mxu0 %v5253
        %6628 = vmatpush1.bf16.msra.mxu0 %v5252
        %6629 = vmatprep.subr.bf16.mxu0 %v5248
        %6630 = vmatpush1.bf16.msra.mxu0 %v5247
        %6631 = vmatprep.subr.bf16.mxu0 %v5243
        %6632 = vmatpush1.bf16.msra.mxu0 %v5242
        %6633 = vmatprep.subr.bf16.mxu0 %v5238
        %6634 = vmatpush1.bf16.msra.mxu0 %v5237
        %6635 = vmatprep.subr.bf16.mxu0 %v5233
        %6636 = vmatpush1.bf16.msra.mxu0 %v5232
        %6637 = vmatprep.subr.bf16.mxu0 %v5228
        %6638 = vmatpush1.bf16.msra.mxu0 %v5227
        %6639 = vmatprep.subr.bf16.mxu0 %v5223
        %6640 = vmatpush1.bf16.msra.mxu0 %v5222
        %6641 = vmatprep.subr.bf16.mxu0 %v5298
        %6642 = vmatpush2.bf16.msra.mxu0 %v5297
        %6643 = vmatprep.subr.bf16.mxu0 %v5293
        %6644 = vmatpush2.bf16.msra.mxu0 %v5292
        %6645 = vmatprep.subr.bf16.mxu0 %v5288
        %6646 = vmatpush2.bf16.msra.mxu0 %v5287
        %6647 = vmatprep.subr.bf16.mxu0 %v5283
        %6648 = vmatpush2.bf16.msra.mxu0 %v5282
        %6649 = vmatprep.subr.bf16.mxu0 %v5278
        %6650 = vmatpush2.bf16.msra.mxu0 %v5277
        %6651 = vmatprep.subr.bf16.mxu0 %v5273
        %6652 = vmatpush2.bf16.msra.mxu0 %v5272
        %6653 = vmatprep.subr.bf16.mxu0 %v5268
        %6654 = vmatpush2.bf16.msra.mxu0 %v5267
        %6655 = vmatprep.subr.bf16.mxu0 %v5263
        %6656 = vmatpush2.bf16.msra.mxu0 %v5262
        %6657 = vmatprep.mubr.bf16.mxu0 %v2823
        %6658 = vmatmul.mubr.bf16.gmra.mxu0 %v2822
        %v6659 = vpop.f32.mrf.mxu0
        %v6660 = vadd.f32 %v6617, %v6659
        %v6661 = vpop.f32.mrf.mxu0
        %v6662 = vadd.f32 %v6619, %v6661
        %v6663 = vpop.f32.mrf.mxu0
        %v6664 = vadd.f32 %v6621, %v6663
        %v6665 = vpop.f32.mrf.mxu0
        %v6666 = vadd.f32 %v6623, %v6665
        %6667 = vdwg.mxu0
        %6668 = vmatprep.subr.bf16.mxu0 %v5338
        %6669 = vmatpush1.bf16.msra.mxu0 %v5337
        %6670 = vmatprep.subr.bf16.mxu0 %v5333
        %6671 = vmatpush1.bf16.msra.mxu0 %v5332
        %6672 = vmatprep.subr.bf16.mxu0 %v5328
        %6673 = vmatpush1.bf16.msra.mxu0 %v5327
        %6674 = vmatprep.subr.bf16.mxu0 %v5323
        %6675 = vmatpush1.bf16.msra.mxu0 %v5322
        %6676 = vmatprep.subr.bf16.mxu0 %v5318
        %6677 = vmatpush1.bf16.msra.mxu0 %v5317
        %6678 = vmatprep.subr.bf16.mxu0 %v5313
        %6679 = vmatpush1.bf16.msra.mxu0 %v5312
        %6680 = vmatprep.subr.bf16.mxu0 %v5308
        %6681 = vmatpush1.bf16.msra.mxu0 %v5307
        %6682 = vmatprep.subr.bf16.mxu0 %v5303
        %6683 = vmatpush1.bf16.msra.mxu0 %v5302
        %6684 = vmatprep.subr.bf16.mxu0 %v5378
        %6685 = vmatpush2.bf16.msra.mxu0 %v5377
        %6686 = vmatprep.subr.bf16.mxu0 %v5373
        %6687 = vmatpush2.bf16.msra.mxu0 %v5372
        %6688 = vmatprep.subr.bf16.mxu0 %v5368
        %6689 = vmatpush2.bf16.msra.mxu0 %v5367
        %6690 = vmatprep.subr.bf16.mxu0 %v5363
        %6691 = vmatpush2.bf16.msra.mxu0 %v5362
        %6692 = vmatprep.subr.bf16.mxu0 %v5358
        %6693 = vmatpush2.bf16.msra.mxu0 %v5357
        %6694 = vmatprep.subr.bf16.mxu0 %v5353
        %6695 = vmatpush2.bf16.msra.mxu0 %v5352
        %6696 = vmatprep.subr.bf16.mxu0 %v5348
        %6697 = vmatpush2.bf16.msra.mxu0 %v5347
        %6698 = vmatprep.subr.bf16.mxu0 %v5343
        %6699 = vmatpush2.bf16.msra.mxu0 %v5342
        %6700 = vmatprep.mubr.bf16.mxu0 %v2825
        %6701 = vmatmul.mubr.bf16.gmra.mxu0 %v2824
        %v6702 = vpop.f32.mrf.mxu0
        %v6703 = vadd.f32 %v6660, %v6702
        %v6704 = vpop.f32.mrf.mxu0
        %v6705 = vadd.f32 %v6662, %v6704
        %v6706 = vpop.f32.mrf.mxu0
        %v6707 = vadd.f32 %v6664, %v6706
        %v6708 = vpop.f32.mrf.mxu0
        %v6709 = vadd.f32 %v6666, %v6708
        %6710 = vdwg.mxu0
        %6711 = vmatprep.subr.bf16.mxu0 %v5418
        %6712 = vmatpush1.bf16.msra.mxu0 %v5417
        %6713 = vmatprep.subr.bf16.mxu0 %v5413
        %6714 = vmatpush1.bf16.msra.mxu0 %v5412
        %6715 = vmatprep.subr.bf16.mxu0 %v5408
        %6716 = vmatpush1.bf16.msra.mxu0 %v5407
        %6717 = vmatprep.subr.bf16.mxu0 %v5403
        %6718 = vmatpush1.bf16.msra.mxu0 %v5402
        %6719 = vmatprep.subr.bf16.mxu0 %v5398
        %6720 = vmatpush1.bf16.msra.mxu0 %v5397
        %6721 = vmatprep.subr.bf16.mxu0 %v5393
        %6722 = vmatpush1.bf16.msra.mxu0 %v5392
        %6723 = vmatprep.subr.bf16.mxu0 %v5388
        %6724 = vmatpush1.bf16.msra.mxu0 %v5387
        %6725 = vmatprep.subr.bf16.mxu0 %v5383
        %6726 = vmatpush1.bf16.msra.mxu0 %v5382
        %6727 = vmatprep.subr.bf16.mxu0 %v5458
        %6728 = vmatpush2.bf16.msra.mxu0 %v5457
        %6729 = vmatprep.subr.bf16.mxu0 %v5453
        %6730 = vmatpush2.bf16.msra.mxu0 %v5452
        %6731 = vmatprep.subr.bf16.mxu0 %v5448
        %6732 = vmatpush2.bf16.msra.mxu0 %v5447
        %6733 = vmatprep.subr.bf16.mxu0 %v5443
        %6734 = vmatpush2.bf16.msra.mxu0 %v5442
        %6735 = vmatprep.subr.bf16.mxu0 %v5438
        %6736 = vmatpush2.bf16.msra.mxu0 %v5437
        %6737 = vmatprep.subr.bf16.mxu0 %v5433
        %6738 = vmatpush2.bf16.msra.mxu0 %v5432
        %6739 = vmatprep.subr.bf16.mxu0 %v5428
        %6740 = vmatpush2.bf16.msra.mxu0 %v5427
        %6741 = vmatprep.subr.bf16.mxu0 %v5423
        %6742 = vmatpush2.bf16.msra.mxu0 %v5422
        %6743 = vmatprep.mubr.bf16.mxu0 %v2827
        %6744 = vmatmul.mubr.bf16.gmra.mxu0 %v2826
        %v6745 = vpop.f32.mrf.mxu0
        %v6746 = vadd.f32 %v6703, %v6745
        %v6747 = vpop.f32.mrf.mxu0
        %v6748 = vadd.f32 %v6705, %v6747
        %v6749 = vpop.f32.mrf.mxu0
        %v6750 = vadd.f32 %v6707, %v6749
        %v6751 = vpop.f32.mrf.mxu0
        %v6752 = vadd.f32 %v6709, %v6751
        %6753 = vdwg.mxu0
        %6754 = vmatprep.subr.bf16.mxu0 %v5498
        %6755 = vmatpush1.bf16.msra.mxu0 %v5497
        %6756 = vmatprep.subr.bf16.mxu0 %v5493
        %6757 = vmatpush1.bf16.msra.mxu0 %v5492
        %6758 = vmatprep.subr.bf16.mxu0 %v5488
        %6759 = vmatpush1.bf16.msra.mxu0 %v5487
        %6760 = vmatprep.subr.bf16.mxu0 %v5483
        %6761 = vmatpush1.bf16.msra.mxu0 %v5482
        %6762 = vmatprep.subr.bf16.mxu0 %v5478
        %6763 = vmatpush1.bf16.msra.mxu0 %v5477
        %6764 = vmatprep.subr.bf16.mxu0 %v5473
        %6765 = vmatpush1.bf16.msra.mxu0 %v5472
        %6766 = vmatprep.subr.bf16.mxu0 %v5468
        %6767 = vmatpush1.bf16.msra.mxu0 %v5467
        %6768 = vmatprep.subr.bf16.mxu0 %v5463
        %6769 = vmatpush1.bf16.msra.mxu0 %v5462
        %6770 = vmatprep.subr.bf16.mxu0 %v5538
        %6771 = vmatpush2.bf16.msra.mxu0 %v5537
        %6772 = vmatprep.subr.bf16.mxu0 %v5533
        %6773 = vmatpush2.bf16.msra.mxu0 %v5532
        %6774 = vmatprep.subr.bf16.mxu0 %v5528
        %6775 = vmatpush2.bf16.msra.mxu0 %v5527
        %6776 = vmatprep.subr.bf16.mxu0 %v5523
        %6777 = vmatpush2.bf16.msra.mxu0 %v5522
        %6778 = vmatprep.subr.bf16.mxu0 %v5518
        %6779 = vmatpush2.bf16.msra.mxu0 %v5517
        %6780 = vmatprep.subr.bf16.mxu0 %v5513
        %6781 = vmatpush2.bf16.msra.mxu0 %v5512
        %6782 = vmatprep.subr.bf16.mxu0 %v5508
        %6783 = vmatpush2.bf16.msra.mxu0 %v5507
        %6784 = vmatprep.subr.bf16.mxu0 %v5503
        %6785 = vmatpush2.bf16.msra.mxu0 %v5502
        %6786 = vmatprep.mubr.bf16.mxu0 %v2829
        %6787 = vmatmul.mubr.bf16.gmra.mxu0 %v2828
        %v6788 = vpop.f32.mrf.mxu0
        %v6789 = vadd.f32 %v6746, %v6788
        %v6790 = vpop.f32.mrf.mxu0
        %v6791 = vadd.f32 %v6748, %v6790
        %v6792 = vpop.f32.mrf.mxu0
        %v6793 = vadd.f32 %v6750, %v6792
        %v6794 = vpop.f32.mrf.mxu0
        %v6795 = vadd.f32 %v6752, %v6794
        %6796 = vdwg.mxu0
        %6797 = vmatprep.subr.bf16.mxu0 %v5578
        %6798 = vmatpush1.bf16.msra.mxu0 %v5577
        %6799 = vmatprep.subr.bf16.mxu0 %v5573
        %6800 = vmatpush1.bf16.msra.mxu0 %v5572
        %6801 = vmatprep.subr.bf16.mxu0 %v5568
        %6802 = vmatpush1.bf16.msra.mxu0 %v5567
        %6803 = vmatprep.subr.bf16.mxu0 %v5563
        %6804 = vmatpush1.bf16.msra.mxu0 %v5562
        %6805 = vmatprep.subr.bf16.mxu0 %v5558
        %6806 = vmatpush1.bf16.msra.mxu0 %v5557
        %6807 = vmatprep.subr.bf16.mxu0 %v5553
        %6808 = vmatpush1.bf16.msra.mxu0 %v5552
        %6809 = vmatprep.subr.bf16.mxu0 %v5548
        %6810 = vmatpush1.bf16.msra.mxu0 %v5547
        %6811 = vmatprep.subr.bf16.mxu0 %v5543
        %6812 = vmatpush1.bf16.msra.mxu0 %v5542
        %6813 = vmatprep.subr.bf16.mxu0 %v5618
        %6814 = vmatpush2.bf16.msra.mxu0 %v5617
        %6815 = vmatprep.subr.bf16.mxu0 %v5613
        %6816 = vmatpush2.bf16.msra.mxu0 %v5612
        %6817 = vmatprep.subr.bf16.mxu0 %v5608
        %6818 = vmatpush2.bf16.msra.mxu0 %v5607
        %6819 = vmatprep.subr.bf16.mxu0 %v5603
        %6820 = vmatpush2.bf16.msra.mxu0 %v5602
        %6821 = vmatprep.subr.bf16.mxu0 %v5598
        %6822 = vmatpush2.bf16.msra.mxu0 %v5597
        %6823 = vmatprep.subr.bf16.mxu0 %v5593
        %6824 = vmatpush2.bf16.msra.mxu0 %v5592
        %6825 = vmatprep.subr.bf16.mxu0 %v5588
        %6826 = vmatpush2.bf16.msra.mxu0 %v5587
        %6827 = vmatprep.subr.bf16.mxu0 %v5583
        %6828 = vmatpush2.bf16.msra.mxu0 %v5582
        %6829 = vmatprep.mubr.bf16.mxu0 %v2831
        %6830 = vmatmul.mubr.bf16.gmra.mxu0 %v2830
        %v6831 = vpop.f32.mrf.mxu0
        %v6832 = vadd.f32 %v6789, %v6831
        %v6833 = vpop.f32.mrf.mxu0
        %v6834 = vadd.f32 %v6791, %v6833
        %v6835 = vpop.f32.mrf.mxu0
        %v6836 = vadd.f32 %v6793, %v6835
        %v6837 = vpop.f32.mrf.mxu0
        %v6838 = vadd.f32 %v6795, %v6837
        %6839 = vdwg.mxu0
        %6840 = vmatprep.subr.bf16.mxu0 %v5658
        %6841 = vmatpush1.bf16.msra.mxu0 %v5657
        %6842 = vmatprep.subr.bf16.mxu0 %v5653
        %6843 = vmatpush1.bf16.msra.mxu0 %v5652
        %6844 = vmatprep.subr.bf16.mxu0 %v5648
        %6845 = vmatpush1.bf16.msra.mxu0 %v5647
        %6846 = vmatprep.subr.bf16.mxu0 %v5643
        %6847 = vmatpush1.bf16.msra.mxu0 %v5642
        %6848 = vmatprep.subr.bf16.mxu0 %v5638
        %6849 = vmatpush1.bf16.msra.mxu0 %v5637
        %6850 = vmatprep.subr.bf16.mxu0 %v5633
        %6851 = vmatpush1.bf16.msra.mxu0 %v5632
        %6852 = vmatprep.subr.bf16.mxu0 %v5628
        %6853 = vmatpush1.bf16.msra.mxu0 %v5627
        %6854 = vmatprep.subr.bf16.mxu0 %v5623
        %6855 = vmatpush1.bf16.msra.mxu0 %v5622
        %6856 = vmatprep.subr.bf16.mxu0 %v5698
        %6857 = vmatpush2.bf16.msra.mxu0 %v5697
        %6858 = vmatprep.subr.bf16.mxu0 %v5693
        %6859 = vmatpush2.bf16.msra.mxu0 %v5692
        %6860 = vmatprep.subr.bf16.mxu0 %v5688
        %6861 = vmatpush2.bf16.msra.mxu0 %v5687
        %6862 = vmatprep.subr.bf16.mxu0 %v5683
        %6863 = vmatpush2.bf16.msra.mxu0 %v5682
        %6864 = vmatprep.subr.bf16.mxu0 %v5678
        %6865 = vmatpush2.bf16.msra.mxu0 %v5677
        %6866 = vmatprep.subr.bf16.mxu0 %v5673
        %6867 = vmatpush2.bf16.msra.mxu0 %v5672
        %6868 = vmatprep.subr.bf16.mxu0 %v5668
        %6869 = vmatpush2.bf16.msra.mxu0 %v5667
        %6870 = vmatprep.subr.bf16.mxu0 %v5663
        %6871 = vmatpush2.bf16.msra.mxu0 %v5662
        %6872 = vmatprep.mubr.bf16.mxu0 %v2833
        %6873 = vmatmul.mubr.bf16.gmra.mxu0 %v2832
        %v6874 = vpop.f32.mrf.mxu0
        %v6875 = vadd.f32 %v6832, %v6874
        %v6876 = vpop.f32.mrf.mxu0
        %v6877 = vadd.f32 %v6834, %v6876
        %v6878 = vpop.f32.mrf.mxu0
        %v6879 = vadd.f32 %v6836, %v6878
        %v6880 = vpop.f32.mrf.mxu0
        %v6881 = vadd.f32 %v6838, %v6880
        %6882 = vdwg.mxu0
        %6883 = vmatprep.subr.bf16.mxu0 %v5738
        %6884 = vmatpush1.bf16.msra.mxu0 %v5737
        %6885 = vmatprep.subr.bf16.mxu0 %v5733
        %6886 = vmatpush1.bf16.msra.mxu0 %v5732
        %6887 = vmatprep.subr.bf16.mxu0 %v5728
        %6888 = vmatpush1.bf16.msra.mxu0 %v5727
        %6889 = vmatprep.subr.bf16.mxu0 %v5723
        %6890 = vmatpush1.bf16.msra.mxu0 %v5722
        %6891 = vmatprep.subr.bf16.mxu0 %v5718
        %6892 = vmatpush1.bf16.msra.mxu0 %v5717
        %6893 = vmatprep.subr.bf16.mxu0 %v5713
        %6894 = vmatpush1.bf16.msra.mxu0 %v5712
        %6895 = vmatprep.subr.bf16.mxu0 %v5708
        %6896 = vmatpush1.bf16.msra.mxu0 %v5707
        %6897 = vmatprep.subr.bf16.mxu0 %v5703
        %6898 = vmatpush1.bf16.msra.mxu0 %v5702
        %6899 = vmatprep.subr.bf16.mxu0 %v5778
        %6900 = vmatpush2.bf16.msra.mxu0 %v5777
        %6901 = vmatprep.subr.bf16.mxu0 %v5773
        %6902 = vmatpush2.bf16.msra.mxu0 %v5772
        %6903 = vmatprep.subr.bf16.mxu0 %v5768
        %6904 = vmatpush2.bf16.msra.mxu0 %v5767
        %6905 = vmatprep.subr.bf16.mxu0 %v5763
        %6906 = vmatpush2.bf16.msra.mxu0 %v5762
        %6907 = vmatprep.subr.bf16.mxu0 %v5758
        %6908 = vmatpush2.bf16.msra.mxu0 %v5757
        %6909 = vmatprep.subr.bf16.mxu0 %v5753
        %6910 = vmatpush2.bf16.msra.mxu0 %v5752
        %6911 = vmatprep.subr.bf16.mxu0 %v5748
        %6912 = vmatpush2.bf16.msra.mxu0 %v5747
        %6913 = vmatprep.subr.bf16.mxu0 %v5743
        %6914 = vmatpush2.bf16.msra.mxu0 %v5742
        %6915 = vmatprep.mubr.bf16.mxu0 %v2835
        %6916 = vmatmul.mubr.bf16.gmra.mxu0 %v2834
        %v6917 = vpop.f32.mrf.mxu0
        %v6918 = vadd.f32 %v6875, %v6917
        %v6919 = vpop.f32.mrf.mxu0
        %v6920 = vadd.f32 %v6877, %v6919
        %v6921 = vpop.f32.mrf.mxu0
        %v6922 = vadd.f32 %v6879, %v6921
        %v6923 = vpop.f32.mrf.mxu0
        %v6924 = vadd.f32 %v6881, %v6923
        %6925 = vdwg.mxu0
        %6926 = vmatprep.subr.bf16.mxu0 %v5818
        %6927 = vmatpush1.bf16.msra.mxu0 %v5817
        %6928 = vmatprep.subr.bf16.mxu0 %v5813
        %6929 = vmatpush1.bf16.msra.mxu0 %v5812
        %6930 = vmatprep.subr.bf16.mxu0 %v5808
        %6931 = vmatpush1.bf16.msra.mxu0 %v5807
        %6932 = vmatprep.subr.bf16.mxu0 %v5803
        %6933 = vmatpush1.bf16.msra.mxu0 %v5802
        %6934 = vmatprep.subr.bf16.mxu0 %v5798
        %6935 = vmatpush1.bf16.msra.mxu0 %v5797
        %6936 = vmatprep.subr.bf16.mxu0 %v5793
        %6937 = vmatpush1.bf16.msra.mxu0 %v5792
        %6938 = vmatprep.subr.bf16.mxu0 %v5788
        %6939 = vmatpush1.bf16.msra.mxu0 %v5787
        %6940 = vmatprep.subr.bf16.mxu0 %v5783
        %6941 = vmatpush1.bf16.msra.mxu0 %v5782
        %6942 = vmatprep.subr.bf16.mxu0 %v5858
        %6943 = vmatpush2.bf16.msra.mxu0 %v5857
        %6944 = vmatprep.subr.bf16.mxu0 %v5853
        %6945 = vmatpush2.bf16.msra.mxu0 %v5852
        %6946 = vmatprep.subr.bf16.mxu0 %v5848
        %6947 = vmatpush2.bf16.msra.mxu0 %v5847
        %6948 = vmatprep.subr.bf16.mxu0 %v5843
        %6949 = vmatpush2.bf16.msra.mxu0 %v5842
        %6950 = vmatprep.subr.bf16.mxu0 %v5838
        %6951 = vmatpush2.bf16.msra.mxu0 %v5837
        %6952 = vmatprep.subr.bf16.mxu0 %v5833
        %6953 = vmatpush2.bf16.msra.mxu0 %v5832
        %6954 = vmatprep.subr.bf16.mxu0 %v5828
        %6955 = vmatpush2.bf16.msra.mxu0 %v5827
        %6956 = vmatprep.subr.bf16.mxu0 %v5823
        %6957 = vmatpush2.bf16.msra.mxu0 %v5822
        %6958 = vmatprep.mubr.bf16.mxu0 %v2837
        %6959 = vmatmul.mubr.bf16.gmra.mxu0 %v2836
        %v6960 = vpop.f32.mrf.mxu0
        %v6961 = vadd.f32 %v6918, %v6960
        %v6962 = vpop.f32.mrf.mxu0
        %v6963 = vadd.f32 %v6920, %v6962
        %v6964 = vpop.f32.mrf.mxu0
        %v6965 = vadd.f32 %v6922, %v6964
        %v6966 = vpop.f32.mrf.mxu0
        %v6967 = vadd.f32 %v6924, %v6966
        %6968 = vdwg.mxu0
        %6969 = vmatprep.subr.bf16.mxu0 %v5180
        %6970 = vmatpush1.bf16.msra.mxu0 %v5179
        %6971 = vmatprep.subr.bf16.mxu0 %v5175
        %6972 = vmatpush1.bf16.msra.mxu0 %v5174
        %6973 = vmatprep.subr.bf16.mxu0 %v5170
        %6974 = vmatpush1.bf16.msra.mxu0 %v5169
        %6975 = vmatprep.subr.bf16.mxu0 %v5165
        %6976 = vmatpush1.bf16.msra.mxu0 %v5164
        %6977 = vmatprep.subr.bf16.mxu0 %v5160
        %6978 = vmatpush1.bf16.msra.mxu0 %v5159
        %6979 = vmatprep.subr.bf16.mxu0 %v5155
        %6980 = vmatpush1.bf16.msra.mxu0 %v5154
        %6981 = vmatprep.subr.bf16.mxu0 %v5150
        %6982 = vmatpush1.bf16.msra.mxu0 %v5149
        %6983 = vmatprep.subr.bf16.mxu0 %v5145
        %6984 = vmatpush1.bf16.msra.mxu0 %v5144
        %6985 = vmatprep.subr.bf16.mxu0 %v5220
        %6986 = vmatpush2.bf16.msra.mxu0 %v5219
        %6987 = vmatprep.subr.bf16.mxu0 %v5215
        %6988 = vmatpush2.bf16.msra.mxu0 %v5214
        %6989 = vmatprep.subr.bf16.mxu0 %v5210
        %6990 = vmatpush2.bf16.msra.mxu0 %v5209
        %6991 = vmatprep.subr.bf16.mxu0 %v5205
        %6992 = vmatpush2.bf16.msra.mxu0 %v5204
        %6993 = vmatprep.subr.bf16.mxu0 %v5200
        %6994 = vmatpush2.bf16.msra.mxu0 %v5199
        %6995 = vmatprep.subr.bf16.mxu0 %v5195
        %6996 = vmatpush2.bf16.msra.mxu0 %v5194
        %6997 = vmatprep.subr.bf16.mxu0 %v5190
        %6998 = vmatpush2.bf16.msra.mxu0 %v5189
        %6999 = vmatprep.subr.bf16.mxu0 %v5185
        %7000 = vmatpush2.bf16.msra.mxu0 %v5184
        %7001 = vmatprep.mubr.bf16.mxu0 %v2821
        %7002 = vmatmul.mubr.bf16.gmra.mxu0 %v2820
        %v7003 = vpop.f32.mrf.mxu0
        %v7004 = vadd.f32 0.0, %v7003
        %v7005 = vpop.f32.mrf.mxu0
        %v7006 = vadd.f32 0.0, %v7005
        %v7007 = vpop.f32.mrf.mxu0
        %v7008 = vadd.f32 0.0, %v7007
        %v7009 = vpop.f32.mrf.mxu0
        %v7010 = vadd.f32 0.0, %v7009
        %7011 = vdwg.mxu0
        %7012 = vmatprep.subr.bf16.mxu0 %v5260
        %7013 = vmatpush1.bf16.msra.mxu0 %v5259
        %7014 = vmatprep.subr.bf16.mxu0 %v5255
        %7015 = vmatpush1.bf16.msra.mxu0 %v5254
        %7016 = vmatprep.subr.bf16.mxu0 %v5250
        %7017 = vmatpush1.bf16.msra.mxu0 %v5249
        %7018 = vmatprep.subr.bf16.mxu0 %v5245
        %7019 = vmatpush1.bf16.msra.mxu0 %v5244
        %7020 = vmatprep.subr.bf16.mxu0 %v5240
        %7021 = vmatpush1.bf16.msra.mxu0 %v5239
        %7022 = vmatprep.subr.bf16.mxu0 %v5235
        %7023 = vmatpush1.bf16.msra.mxu0 %v5234
        %7024 = vmatprep.subr.bf16.mxu0 %v5230
        %7025 = vmatpush1.bf16.msra.mxu0 %v5229
        %7026 = vmatprep.subr.bf16.mxu0 %v5225
        %7027 = vmatpush1.bf16.msra.mxu0 %v5224
        %7028 = vmatprep.subr.bf16.mxu0 %v5300
        %7029 = vmatpush2.bf16.msra.mxu0 %v5299
        %7030 = vmatprep.subr.bf16.mxu0 %v5295
        %7031 = vmatpush2.bf16.msra.mxu0 %v5294
        %7032 = vmatprep.subr.bf16.mxu0 %v5290
        %7033 = vmatpush2.bf16.msra.mxu0 %v5289
        %7034 = vmatprep.subr.bf16.mxu0 %v5285
        %7035 = vmatpush2.bf16.msra.mxu0 %v5284
        %7036 = vmatprep.subr.bf16.mxu0 %v5280
        %7037 = vmatpush2.bf16.msra.mxu0 %v5279
        %7038 = vmatprep.subr.bf16.mxu0 %v5275
        %7039 = vmatpush2.bf16.msra.mxu0 %v5274
        %7040 = vmatprep.subr.bf16.mxu0 %v5270
        %7041 = vmatpush2.bf16.msra.mxu0 %v5269
        %7042 = vmatprep.subr.bf16.mxu0 %v5265
        %7043 = vmatpush2.bf16.msra.mxu0 %v5264
        %7044 = vmatprep.mubr.bf16.mxu0 %v2823
        %7045 = vmatmul.mubr.bf16.gmra.mxu0 %v2822
        %v7046 = vpop.f32.mrf.mxu0
        %v7047 = vadd.f32 %v7004, %v7046
        %v7048 = vpop.f32.mrf.mxu0
        %v7049 = vadd.f32 %v7006, %v7048
        %v7050 = vpop.f32.mrf.mxu0
        %v7051 = vadd.f32 %v7008, %v7050
        %v7052 = vpop.f32.mrf.mxu0
        %v7053 = vadd.f32 %v7010, %v7052
        %7054 = vdwg.mxu0
        %7055 = vmatprep.subr.bf16.mxu0 %v5340
        %7056 = vmatpush1.bf16.msra.mxu0 %v5339
        %7057 = vmatprep.subr.bf16.mxu0 %v5335
        %7058 = vmatpush1.bf16.msra.mxu0 %v5334
        %7059 = vmatprep.subr.bf16.mxu0 %v5330
        %7060 = vmatpush1.bf16.msra.mxu0 %v5329
        %7061 = vmatprep.subr.bf16.mxu0 %v5325
        %7062 = vmatpush1.bf16.msra.mxu0 %v5324
        %7063 = vmatprep.subr.bf16.mxu0 %v5320
        %7064 = vmatpush1.bf16.msra.mxu0 %v5319
        %7065 = vmatprep.subr.bf16.mxu0 %v5315
        %7066 = vmatpush1.bf16.msra.mxu0 %v5314
        %7067 = vmatprep.subr.bf16.mxu0 %v5310
        %7068 = vmatpush1.bf16.msra.mxu0 %v5309
        %7069 = vmatprep.subr.bf16.mxu0 %v5305
        %7070 = vmatpush1.bf16.msra.mxu0 %v5304
        %7071 = vmatprep.subr.bf16.mxu0 %v5380
        %7072 = vmatpush2.bf16.msra.mxu0 %v5379
        %7073 = vmatprep.subr.bf16.mxu0 %v5375
        %7074 = vmatpush2.bf16.msra.mxu0 %v5374
        %7075 = vmatprep.subr.bf16.mxu0 %v5370
        %7076 = vmatpush2.bf16.msra.mxu0 %v5369
        %7077 = vmatprep.subr.bf16.mxu0 %v5365
        %7078 = vmatpush2.bf16.msra.mxu0 %v5364
        %7079 = vmatprep.subr.bf16.mxu0 %v5360
        %7080 = vmatpush2.bf16.msra.mxu0 %v5359
        %7081 = vmatprep.subr.bf16.mxu0 %v5355
        %7082 = vmatpush2.bf16.msra.mxu0 %v5354
        %7083 = vmatprep.subr.bf16.mxu0 %v5350
        %7084 = vmatpush2.bf16.msra.mxu0 %v5349
        %7085 = vmatprep.subr.bf16.mxu0 %v5345
        %7086 = vmatpush2.bf16.msra.mxu0 %v5344
        %7087 = vmatprep.mubr.bf16.mxu0 %v2825
        %7088 = vmatmul.mubr.bf16.gmra.mxu0 %v2824
        %v7089 = vpop.f32.mrf.mxu0
        %v7090 = vadd.f32 %v7047, %v7089
        %v7091 = vpop.f32.mrf.mxu0
        %v7092 = vadd.f32 %v7049, %v7091
        %v7093 = vpop.f32.mrf.mxu0
        %v7094 = vadd.f32 %v7051, %v7093
        %v7095 = vpop.f32.mrf.mxu0
        %v7096 = vadd.f32 %v7053, %v7095
        %7097 = vdwg.mxu0
        %7098 = vmatprep.subr.bf16.mxu0 %v5420
        %7099 = vmatpush1.bf16.msra.mxu0 %v5419
        %7100 = vmatprep.subr.bf16.mxu0 %v5415
        %7101 = vmatpush1.bf16.msra.mxu0 %v5414
        %7102 = vmatprep.subr.bf16.mxu0 %v5410
        %7103 = vmatpush1.bf16.msra.mxu0 %v5409
        %7104 = vmatprep.subr.bf16.mxu0 %v5405
        %7105 = vmatpush1.bf16.msra.mxu0 %v5404
        %7106 = vmatprep.subr.bf16.mxu0 %v5400
        %7107 = vmatpush1.bf16.msra.mxu0 %v5399
        %7108 = vmatprep.subr.bf16.mxu0 %v5395
        %7109 = vmatpush1.bf16.msra.mxu0 %v5394
        %7110 = vmatprep.subr.bf16.mxu0 %v5390
        %7111 = vmatpush1.bf16.msra.mxu0 %v5389
        %7112 = vmatprep.subr.bf16.mxu0 %v5385
        %7113 = vmatpush1.bf16.msra.mxu0 %v5384
        %7114 = vmatprep.subr.bf16.mxu0 %v5460
        %7115 = vmatpush2.bf16.msra.mxu0 %v5459
        %7116 = vmatprep.subr.bf16.mxu0 %v5455
        %7117 = vmatpush2.bf16.msra.mxu0 %v5454
        %7118 = vmatprep.subr.bf16.mxu0 %v5450
        %7119 = vmatpush2.bf16.msra.mxu0 %v5449
        %7120 = vmatprep.subr.bf16.mxu0 %v5445
        %7121 = vmatpush2.bf16.msra.mxu0 %v5444
        %7122 = vmatprep.subr.bf16.mxu0 %v5440
        %7123 = vmatpush2.bf16.msra.mxu0 %v5439
        %7124 = vmatprep.subr.bf16.mxu0 %v5435
        %7125 = vmatpush2.bf16.msra.mxu0 %v5434
        %7126 = vmatprep.subr.bf16.mxu0 %v5430
        %7127 = vmatpush2.bf16.msra.mxu0 %v5429
        %7128 = vmatprep.subr.bf16.mxu0 %v5425
        %7129 = vmatpush2.bf16.msra.mxu0 %v5424
        %7130 = vmatprep.mubr.bf16.mxu0 %v2827
        %7131 = vmatmul.mubr.bf16.gmra.mxu0 %v2826
        %v7132 = vpop.f32.mrf.mxu0
        %v7133 = vadd.f32 %v7090, %v7132
        %v7134 = vpop.f32.mrf.mxu0
        %v7135 = vadd.f32 %v7092, %v7134
        %v7136 = vpop.f32.mrf.mxu0
        %v7137 = vadd.f32 %v7094, %v7136
        %v7138 = vpop.f32.mrf.mxu0
        %v7139 = vadd.f32 %v7096, %v7138
        %7140 = vdwg.mxu0
        %7141 = vmatprep.subr.bf16.mxu0 %v5500
        %7142 = vmatpush1.bf16.msra.mxu0 %v5499
        %7143 = vmatprep.subr.bf16.mxu0 %v5495
        %7144 = vmatpush1.bf16.msra.mxu0 %v5494
        %7145 = vmatprep.subr.bf16.mxu0 %v5490
        %7146 = vmatpush1.bf16.msra.mxu0 %v5489
        %7147 = vmatprep.subr.bf16.mxu0 %v5485
        %7148 = vmatpush1.bf16.msra.mxu0 %v5484
        %7149 = vmatprep.subr.bf16.mxu0 %v5480
        %7150 = vmatpush1.bf16.msra.mxu0 %v5479
        %7151 = vmatprep.subr.bf16.mxu0 %v5475
        %7152 = vmatpush1.bf16.msra.mxu0 %v5474
        %7153 = vmatprep.subr.bf16.mxu0 %v5470
        %7154 = vmatpush1.bf16.msra.mxu0 %v5469
        %7155 = vmatprep.subr.bf16.mxu0 %v5465
        %7156 = vmatpush1.bf16.msra.mxu0 %v5464
        %7157 = vmatprep.subr.bf16.mxu0 %v5540
        %7158 = vmatpush2.bf16.msra.mxu0 %v5539
        %7159 = vmatprep.subr.bf16.mxu0 %v5535
        %7160 = vmatpush2.bf16.msra.mxu0 %v5534
        %7161 = vmatprep.subr.bf16.mxu0 %v5530
        %7162 = vmatpush2.bf16.msra.mxu0 %v5529
        %7163 = vmatprep.subr.bf16.mxu0 %v5525
        %7164 = vmatpush2.bf16.msra.mxu0 %v5524
        %7165 = vmatprep.subr.bf16.mxu0 %v5520
        %7166 = vmatpush2.bf16.msra.mxu0 %v5519
        %7167 = vmatprep.subr.bf16.mxu0 %v5515
        %7168 = vmatpush2.bf16.msra.mxu0 %v5514
        %7169 = vmatprep.subr.bf16.mxu0 %v5510
        %7170 = vmatpush2.bf16.msra.mxu0 %v5509
        %7171 = vmatprep.subr.bf16.mxu0 %v5505
        %7172 = vmatpush2.bf16.msra.mxu0 %v5504
        %7173 = vmatprep.mubr.bf16.mxu0 %v2829
        %7174 = vmatmul.mubr.bf16.gmra.mxu0 %v2828
        %v7175 = vpop.f32.mrf.mxu0
        %v7176 = vadd.f32 %v7133, %v7175
        %v7177 = vpop.f32.mrf.mxu0
        %v7178 = vadd.f32 %v7135, %v7177
        %v7179 = vpop.f32.mrf.mxu0
        %v7180 = vadd.f32 %v7137, %v7179
        %v7181 = vpop.f32.mrf.mxu0
        %v7182 = vadd.f32 %v7139, %v7181
        %7183 = vdwg.mxu0
        %7184 = vmatprep.subr.bf16.mxu0 %v5580
        %7185 = vmatpush1.bf16.msra.mxu0 %v5579
        %7186 = vmatprep.subr.bf16.mxu0 %v5575
        %7187 = vmatpush1.bf16.msra.mxu0 %v5574
        %7188 = vmatprep.subr.bf16.mxu0 %v5570
        %7189 = vmatpush1.bf16.msra.mxu0 %v5569
        %7190 = vmatprep.subr.bf16.mxu0 %v5565
        %7191 = vmatpush1.bf16.msra.mxu0 %v5564
        %7192 = vmatprep.subr.bf16.mxu0 %v5560
        %7193 = vmatpush1.bf16.msra.mxu0 %v5559
        %7194 = vmatprep.subr.bf16.mxu0 %v5555
        %7195 = vmatpush1.bf16.msra.mxu0 %v5554
        %7196 = vmatprep.subr.bf16.mxu0 %v5550
        %7197 = vmatpush1.bf16.msra.mxu0 %v5549
        %7198 = vmatprep.subr.bf16.mxu0 %v5545
        %7199 = vmatpush1.bf16.msra.mxu0 %v5544
        %7200 = vmatprep.subr.bf16.mxu0 %v5620
        %7201 = vmatpush2.bf16.msra.mxu0 %v5619
        %7202 = vmatprep.subr.bf16.mxu0 %v5615
        %7203 = vmatpush2.bf16.msra.mxu0 %v5614
        %7204 = vmatprep.subr.bf16.mxu0 %v5610
        %7205 = vmatpush2.bf16.msra.mxu0 %v5609
        %7206 = vmatprep.subr.bf16.mxu0 %v5605
        %7207 = vmatpush2.bf16.msra.mxu0 %v5604
        %7208 = vmatprep.subr.bf16.mxu0 %v5600
        %7209 = vmatpush2.bf16.msra.mxu0 %v5599
        %7210 = vmatprep.subr.bf16.mxu0 %v5595
        %7211 = vmatpush2.bf16.msra.mxu0 %v5594
        %7212 = vmatprep.subr.bf16.mxu0 %v5590
        %7213 = vmatpush2.bf16.msra.mxu0 %v5589
        %7214 = vmatprep.subr.bf16.mxu0 %v5585
        %7215 = vmatpush2.bf16.msra.mxu0 %v5584
        %7216 = vmatprep.mubr.bf16.mxu0 %v2831
        %7217 = vmatmul.mubr.bf16.gmra.mxu0 %v2830
        %v7218 = vpop.f32.mrf.mxu0
        %v7219 = vadd.f32 %v7176, %v7218
        %v7220 = vpop.f32.mrf.mxu0
        %v7221 = vadd.f32 %v7178, %v7220
        %v7222 = vpop.f32.mrf.mxu0
        %v7223 = vadd.f32 %v7180, %v7222
        %v7224 = vpop.f32.mrf.mxu0
        %v7225 = vadd.f32 %v7182, %v7224
        %7226 = vdwg.mxu0
        %7227 = vmatprep.subr.bf16.mxu0 %v5660
        %7228 = vmatpush1.bf16.msra.mxu0 %v5659
        %7229 = vmatprep.subr.bf16.mxu0 %v5655
        %7230 = vmatpush1.bf16.msra.mxu0 %v5654
        %7231 = vmatprep.subr.bf16.mxu0 %v5650
        %7232 = vmatpush1.bf16.msra.mxu0 %v5649
        %7233 = vmatprep.subr.bf16.mxu0 %v5645
        %7234 = vmatpush1.bf16.msra.mxu0 %v5644
        %7235 = vmatprep.subr.bf16.mxu0 %v5640
        %7236 = vmatpush1.bf16.msra.mxu0 %v5639
        %7237 = vmatprep.subr.bf16.mxu0 %v5635
        %7238 = vmatpush1.bf16.msra.mxu0 %v5634
        %7239 = vmatprep.subr.bf16.mxu0 %v5630
        %7240 = vmatpush1.bf16.msra.mxu0 %v5629
        %7241 = vmatprep.subr.bf16.mxu0 %v5625
        %7242 = vmatpush1.bf16.msra.mxu0 %v5624
        %7243 = vmatprep.subr.bf16.mxu0 %v5700
        %7244 = vmatpush2.bf16.msra.mxu0 %v5699
        %7245 = vmatprep.subr.bf16.mxu0 %v5695
        %7246 = vmatpush2.bf16.msra.mxu0 %v5694
        %7247 = vmatprep.subr.bf16.mxu0 %v5690
        %7248 = vmatpush2.bf16.msra.mxu0 %v5689
        %7249 = vmatprep.subr.bf16.mxu0 %v5685
        %7250 = vmatpush2.bf16.msra.mxu0 %v5684
        %7251 = vmatprep.subr.bf16.mxu0 %v5680
        %7252 = vmatpush2.bf16.msra.mxu0 %v5679
        %7253 = vmatprep.subr.bf16.mxu0 %v5675
        %7254 = vmatpush2.bf16.msra.mxu0 %v5674
        %7255 = vmatprep.subr.bf16.mxu0 %v5670
        %7256 = vmatpush2.bf16.msra.mxu0 %v5669
        %7257 = vmatprep.subr.bf16.mxu0 %v5665
        %7258 = vmatpush2.bf16.msra.mxu0 %v5664
        %7259 = vmatprep.mubr.bf16.mxu0 %v2833
        %7260 = vmatmul.mubr.bf16.gmra.mxu0 %v2832
        %v7261 = vpop.f32.mrf.mxu0
        %v7262 = vadd.f32 %v7219, %v7261
        %v7263 = vpop.f32.mrf.mxu0
        %v7264 = vadd.f32 %v7221, %v7263
        %v7265 = vpop.f32.mrf.mxu0
        %v7266 = vadd.f32 %v7223, %v7265
        %v7267 = vpop.f32.mrf.mxu0
        %v7268 = vadd.f32 %v7225, %v7267
        %7269 = vdwg.mxu0
        %7270 = vmatprep.subr.bf16.mxu0 %v5740
        %7271 = vmatpush1.bf16.msra.mxu0 %v5739
        %7272 = vmatprep.subr.bf16.mxu0 %v5735
        %7273 = vmatpush1.bf16.msra.mxu0 %v5734
        %7274 = vmatprep.subr.bf16.mxu0 %v5730
        %7275 = vmatpush1.bf16.msra.mxu0 %v5729
        %7276 = vmatprep.subr.bf16.mxu0 %v5725
        %7277 = vmatpush1.bf16.msra.mxu0 %v5724
        %7278 = vmatprep.subr.bf16.mxu0 %v5720
        %7279 = vmatpush1.bf16.msra.mxu0 %v5719
        %7280 = vmatprep.subr.bf16.mxu0 %v5715
        %7281 = vmatpush1.bf16.msra.mxu0 %v5714
        %7282 = vmatprep.subr.bf16.mxu0 %v5710
        %7283 = vmatpush1.bf16.msra.mxu0 %v5709
        %7284 = vmatprep.subr.bf16.mxu0 %v5705
        %7285 = vmatpush1.bf16.msra.mxu0 %v5704
        %7286 = vmatprep.subr.bf16.mxu0 %v5780
        %7287 = vmatpush2.bf16.msra.mxu0 %v5779
        %7288 = vmatprep.subr.bf16.mxu0 %v5775
        %7289 = vmatpush2.bf16.msra.mxu0 %v5774
        %7290 = vmatprep.subr.bf16.mxu0 %v5770
        %7291 = vmatpush2.bf16.msra.mxu0 %v5769
        %7292 = vmatprep.subr.bf16.mxu0 %v5765
        %7293 = vmatpush2.bf16.msra.mxu0 %v5764
        %7294 = vmatprep.subr.bf16.mxu0 %v5760
        %7295 = vmatpush2.bf16.msra.mxu0 %v5759
        %7296 = vmatprep.subr.bf16.mxu0 %v5755
        %7297 = vmatpush2.bf16.msra.mxu0 %v5754
        %7298 = vmatprep.subr.bf16.mxu0 %v5750
        %7299 = vmatpush2.bf16.msra.mxu0 %v5749
        %7300 = vmatprep.subr.bf16.mxu0 %v5745
        %7301 = vmatpush2.bf16.msra.mxu0 %v5744
        %7302 = vmatprep.mubr.bf16.mxu0 %v2835
        %7303 = vmatmul.mubr.bf16.gmra.mxu0 %v2834
        %v7304 = vpop.f32.mrf.mxu0
        %v7305 = vadd.f32 %v7262, %v7304
        %v7306 = vpop.f32.mrf.mxu0
        %v7307 = vadd.f32 %v7264, %v7306
        %v7308 = vpop.f32.mrf.mxu0
        %v7309 = vadd.f32 %v7266, %v7308
        %v7310 = vpop.f32.mrf.mxu0
        %v7311 = vadd.f32 %v7268, %v7310
        %7312 = vdwg.mxu0
        %7313 = vmatprep.subr.bf16.mxu0 %v5820
        %7314 = vmatpush1.bf16.msra.mxu0 %v5819
        %7315 = vmatprep.subr.bf16.mxu0 %v5815
        %7316 = vmatpush1.bf16.msra.mxu0 %v5814
        %7317 = vmatprep.subr.bf16.mxu0 %v5810
        %7318 = vmatpush1.bf16.msra.mxu0 %v5809
        %7319 = vmatprep.subr.bf16.mxu0 %v5805
        %7320 = vmatpush1.bf16.msra.mxu0 %v5804
        %7321 = vmatprep.subr.bf16.mxu0 %v5800
        %7322 = vmatpush1.bf16.msra.mxu0 %v5799
        %7323 = vmatprep.subr.bf16.mxu0 %v5795
        %7324 = vmatpush1.bf16.msra.mxu0 %v5794
        %7325 = vmatprep.subr.bf16.mxu0 %v5790
        %7326 = vmatpush1.bf16.msra.mxu0 %v5789
        %7327 = vmatprep.subr.bf16.mxu0 %v5785
        %7328 = vmatpush1.bf16.msra.mxu0 %v5784
        %7329 = vmatprep.subr.bf16.mxu0 %v5860
        %7330 = vmatpush2.bf16.msra.mxu0 %v5859
        %7331 = vmatprep.subr.bf16.mxu0 %v5855
        %7332 = vmatpush2.bf16.msra.mxu0 %v5854
        %7333 = vmatprep.subr.bf16.mxu0 %v5850
        %7334 = vmatpush2.bf16.msra.mxu0 %v5849
        %7335 = vmatprep.subr.bf16.mxu0 %v5845
        %7336 = vmatpush2.bf16.msra.mxu0 %v5844
        %7337 = vmatprep.subr.bf16.mxu0 %v5840
        %7338 = vmatpush2.bf16.msra.mxu0 %v5839
        %7339 = vmatprep.subr.bf16.mxu0 %v5835
        %7340 = vmatpush2.bf16.msra.mxu0 %v5834
        %7341 = vmatprep.subr.bf16.mxu0 %v5830
        %7342 = vmatpush2.bf16.msra.mxu0 %v5829
        %7343 = vmatprep.subr.bf16.mxu0 %v5825
        %7344 = vmatpush2.bf16.msra.mxu0 %v5824
        %7345 = vmatprep.mubr.bf16.mxu0 %v2837
        %7346 = vmatmul.mubr.bf16.gmra.mxu0 %v2836
        %v7347 = vpop.f32.mrf.mxu0
        %v7348 = vadd.f32 %v7305, %v7347
        %v7349 = vpop.f32.mrf.mxu0
        %v7350 = vadd.f32 %v7307, %v7349
        %v7351 = vpop.f32.mrf.mxu0
        %v7352 = vadd.f32 %v7309, %v7351
        %v7353 = vpop.f32.mrf.mxu0
        %v7354 = vadd.f32 %v7311, %v7353
        %7355 = vdwg.mxu0
        %7356 = vmatprep.subr.bf16.mxu0 0
        %7357 = vmatpush1.bf16.msra.mxu0 %v5181
        %7358 = vmatprep.subr.bf16.mxu0 0
        %7359 = vmatpush1.bf16.msra.mxu0 %v5176
        %7360 = vmatprep.subr.bf16.mxu0 0
        %7361 = vmatpush1.bf16.msra.mxu0 %v5171
        %7362 = vmatprep.subr.bf16.mxu0 0
        %7363 = vmatpush1.bf16.msra.mxu0 %v5166
        %7364 = vmatprep.subr.bf16.mxu0 0
        %7365 = vmatpush1.bf16.msra.mxu0 %v5161
        %7366 = vmatprep.subr.bf16.mxu0 0
        %7367 = vmatpush1.bf16.msra.mxu0 %v5156
        %7368 = vmatprep.subr.bf16.mxu0 0
        %7369 = vmatpush1.bf16.msra.mxu0 %v5151
        %7370 = vmatprep.subr.bf16.mxu0 0
        %7371 = vmatpush1.bf16.msra.mxu0 %v5146
        %7372 = vmatprep.subr.bf16.mxu0 0
        %7373 = vmatpush2.bf16.msra.mxu0 %v5221
        %7374 = vmatprep.subr.bf16.mxu0 0
        %7375 = vmatpush2.bf16.msra.mxu0 %v5216
        %7376 = vmatprep.subr.bf16.mxu0 0
        %7377 = vmatpush2.bf16.msra.mxu0 %v5211
        %7378 = vmatprep.subr.bf16.mxu0 0
        %7379 = vmatpush2.bf16.msra.mxu0 %v5206
        %7380 = vmatprep.subr.bf16.mxu0 0
        %7381 = vmatpush2.bf16.msra.mxu0 %v5201
        %7382 = vmatprep.subr.bf16.mxu0 0
        %7383 = vmatpush2.bf16.msra.mxu0 %v5196
        %7384 = vmatprep.subr.bf16.mxu0 0
        %7385 = vmatpush2.bf16.msra.mxu0 %v5191
        %7386 = vmatprep.subr.bf16.mxu0 0
        %7387 = vmatpush2.bf16.msra.mxu0 %v5186
        %7388 = vmatprep.mubr.bf16.mxu0 %v2821
        %7389 = vmatmul.mubr.bf16.gmra.mxu0 %v2820
        %v7390 = vpop.f32.mrf.mxu0
        %v7391 = vadd.f32 0.0, %v7390
        %v7392 = vpop.f32.mrf.mxu0
        %v7393 = vpop.f32.mrf.mxu0
        %v7394 = vadd.f32 0.0, %v7393
        %v7395 = vpop.f32.mrf.mxu0
        %7396 = vdwg.mxu0
        %7397 = vmatprep.subr.bf16.mxu0 0
        %7398 = vmatpush1.bf16.msra.mxu0 %v5261
        %7399 = vmatprep.subr.bf16.mxu0 0
        %7400 = vmatpush1.bf16.msra.mxu0 %v5256
        %7401 = vmatprep.subr.bf16.mxu0 0
        %7402 = vmatpush1.bf16.msra.mxu0 %v5251
        %7403 = vmatprep.subr.bf16.mxu0 0
        %7404 = vmatpush1.bf16.msra.mxu0 %v5246
        %7405 = vmatprep.subr.bf16.mxu0 0
        %7406 = vmatpush1.bf16.msra.mxu0 %v5241
        %7407 = vmatprep.subr.bf16.mxu0 0
        %7408 = vmatpush1.bf16.msra.mxu0 %v5236
        %7409 = vmatprep.subr.bf16.mxu0 0
        %7410 = vmatpush1.bf16.msra.mxu0 %v5231
        %7411 = vmatprep.subr.bf16.mxu0 0
        %7412 = vmatpush1.bf16.msra.mxu0 %v5226
        %7413 = vmatprep.subr.bf16.mxu0 0
        %7414 = vmatpush2.bf16.msra.mxu0 %v5301
        %7415 = vmatprep.subr.bf16.mxu0 0
        %7416 = vmatpush2.bf16.msra.mxu0 %v5296
        %7417 = vmatprep.subr.bf16.mxu0 0
        %7418 = vmatpush2.bf16.msra.mxu0 %v5291
        %7419 = vmatprep.subr.bf16.mxu0 0
        %7420 = vmatpush2.bf16.msra.mxu0 %v5286
        %7421 = vmatprep.subr.bf16.mxu0 0
        %7422 = vmatpush2.bf16.msra.mxu0 %v5281
        %7423 = vmatprep.subr.bf16.mxu0 0
        %7424 = vmatpush2.bf16.msra.mxu0 %v5276
        %7425 = vmatprep.subr.bf16.mxu0 0
        %7426 = vmatpush2.bf16.msra.mxu0 %v5271
        %7427 = vmatprep.subr.bf16.mxu0 0
        %7428 = vmatpush2.bf16.msra.mxu0 %v5266
        %7429 = vmatprep.mubr.bf16.mxu0 %v2823
        %7430 = vmatmul.mubr.bf16.gmra.mxu0 %v2822
        %v7431 = vpop.f32.mrf.mxu0
        %v7432 = vadd.f32 %v7391, %v7431
        %v7433 = vpop.f32.mrf.mxu0
        %v7434 = vpop.f32.mrf.mxu0
        %v7435 = vadd.f32 %v7394, %v7434
        %v7436 = vpop.f32.mrf.mxu0
        %7437 = vdwg.mxu0
        %7438 = vmatprep.subr.bf16.mxu0 0
        %7439 = vmatpush1.bf16.msra.mxu0 %v5341
        %7440 = vmatprep.subr.bf16.mxu0 0
        %7441 = vmatpush1.bf16.msra.mxu0 %v5336
        %7442 = vmatprep.subr.bf16.mxu0 0
        %7443 = vmatpush1.bf16.msra.mxu0 %v5331
        %7444 = vmatprep.subr.bf16.mxu0 0
        %7445 = vmatpush1.bf16.msra.mxu0 %v5326
        %7446 = vmatprep.subr.bf16.mxu0 0
        %7447 = vmatpush1.bf16.msra.mxu0 %v5321
        %7448 = vmatprep.subr.bf16.mxu0 0
        %7449 = vmatpush1.bf16.msra.mxu0 %v5316
        %7450 = vmatprep.subr.bf16.mxu0 0
        %7451 = vmatpush1.bf16.msra.mxu0 %v5311
        %7452 = vmatprep.subr.bf16.mxu0 0
        %7453 = vmatpush1.bf16.msra.mxu0 %v5306
        %7454 = vmatprep.subr.bf16.mxu0 0
        %7455 = vmatpush2.bf16.msra.mxu0 %v5381
        %7456 = vmatprep.subr.bf16.mxu0 0
        %7457 = vmatpush2.bf16.msra.mxu0 %v5376
        %7458 = vmatprep.subr.bf16.mxu0 0
        %7459 = vmatpush2.bf16.msra.mxu0 %v5371
        %7460 = vmatprep.subr.bf16.mxu0 0
        %7461 = vmatpush2.bf16.msra.mxu0 %v5366
        %7462 = vmatprep.subr.bf16.mxu0 0
        %7463 = vmatpush2.bf16.msra.mxu0 %v5361
        %7464 = vmatprep.subr.bf16.mxu0 0
        %7465 = vmatpush2.bf16.msra.mxu0 %v5356
        %7466 = vmatprep.subr.bf16.mxu0 0
        %7467 = vmatpush2.bf16.msra.mxu0 %v5351
        %7468 = vmatprep.subr.bf16.mxu0 0
        %7469 = vmatpush2.bf16.msra.mxu0 %v5346
        %7470 = vmatprep.mubr.bf16.mxu0 %v2825
        %7471 = vmatmul.mubr.bf16.gmra.mxu0 %v2824
        %v7472 = vpop.f32.mrf.mxu0
        %v7473 = vadd.f32 %v7432, %v7472
        %v7474 = vpop.f32.mrf.mxu0
        %v7475 = vpop.f32.mrf.mxu0
        %v7476 = vadd.f32 %v7435, %v7475
        %v7477 = vpop.f32.mrf.mxu0
        %7478 = vdwg.mxu0
        %7479 = vmatprep.subr.bf16.mxu0 0
        %7480 = vmatpush1.bf16.msra.mxu0 %v5421
        %7481 = vmatprep.subr.bf16.mxu0 0
        %7482 = vmatpush1.bf16.msra.mxu0 %v5416
        %7483 = vmatprep.subr.bf16.mxu0 0
        %7484 = vmatpush1.bf16.msra.mxu0 %v5411
        %7485 = vmatprep.subr.bf16.mxu0 0
        %7486 = vmatpush1.bf16.msra.mxu0 %v5406
        %7487 = vmatprep.subr.bf16.mxu0 0
        %7488 = vmatpush1.bf16.msra.mxu0 %v5401
        %7489 = vmatprep.subr.bf16.mxu0 0
        %7490 = vmatpush1.bf16.msra.mxu0 %v5396
        %7491 = vmatprep.subr.bf16.mxu0 0
        %7492 = vmatpush1.bf16.msra.mxu0 %v5391
        %7493 = vmatprep.subr.bf16.mxu0 0
        %7494 = vmatpush1.bf16.msra.mxu0 %v5386
        %7495 = vmatprep.subr.bf16.mxu0 0
        %7496 = vmatpush2.bf16.msra.mxu0 %v5461
        %7497 = vmatprep.subr.bf16.mxu0 0
        %7498 = vmatpush2.bf16.msra.mxu0 %v5456
        %7499 = vmatprep.subr.bf16.mxu0 0
        %7500 = vmatpush2.bf16.msra.mxu0 %v5451
        %7501 = vmatprep.subr.bf16.mxu0 0
        %7502 = vmatpush2.bf16.msra.mxu0 %v5446
        %7503 = vmatprep.subr.bf16.mxu0 0
        %7504 = vmatpush2.bf16.msra.mxu0 %v5441
        %7505 = vmatprep.subr.bf16.mxu0 0
        %7506 = vmatpush2.bf16.msra.mxu0 %v5436
        %7507 = vmatprep.subr.bf16.mxu0 0
        %7508 = vmatpush2.bf16.msra.mxu0 %v5431
        %7509 = vmatprep.subr.bf16.mxu0 0
        %7510 = vmatpush2.bf16.msra.mxu0 %v5426
        %7511 = vmatprep.mubr.bf16.mxu0 %v2827
        %7512 = vmatmul.mubr.bf16.gmra.mxu0 %v2826
        %v7513 = vpop.f32.mrf.mxu0
        %v7514 = vadd.f32 %v7473, %v7513
        %v7515 = vpop.f32.mrf.mxu0
        %v7516 = vpop.f32.mrf.mxu0
        %v7517 = vadd.f32 %v7476, %v7516
        %v7518 = vpop.f32.mrf.mxu0
        %7519 = vdwg.mxu0
        %7520 = vmatprep.subr.bf16.mxu0 0
        %7521 = vmatpush1.bf16.msra.mxu0 %v5501
        %7522 = vmatprep.subr.bf16.mxu0 0
        %7523 = vmatpush1.bf16.msra.mxu0 %v5496
        %7524 = vmatprep.subr.bf16.mxu0 0
        %7525 = vmatpush1.bf16.msra.mxu0 %v5491
        %7526 = vmatprep.subr.bf16.mxu0 0
        %7527 = vmatpush1.bf16.msra.mxu0 %v5486
        %7528 = vmatprep.subr.bf16.mxu0 0
        %7529 = vmatpush1.bf16.msra.mxu0 %v5481
        %7530 = vmatprep.subr.bf16.mxu0 0
        %7531 = vmatpush1.bf16.msra.mxu0 %v5476
        %7532 = vmatprep.subr.bf16.mxu0 0
        %7533 = vmatpush1.bf16.msra.mxu0 %v5471
        %7534 = vmatprep.subr.bf16.mxu0 0
        %7535 = vmatpush1.bf16.msra.mxu0 %v5466
        %7536 = vmatprep.subr.bf16.mxu0 0
        %7537 = vmatpush2.bf16.msra.mxu0 %v5541
        %7538 = vmatprep.subr.bf16.mxu0 0
        %7539 = vmatpush2.bf16.msra.mxu0 %v5536
        %7540 = vmatprep.subr.bf16.mxu0 0
        %7541 = vmatpush2.bf16.msra.mxu0 %v5531
        %7542 = vmatprep.subr.bf16.mxu0 0
        %7543 = vmatpush2.bf16.msra.mxu0 %v5526
        %7544 = vmatprep.subr.bf16.mxu0 0
        %7545 = vmatpush2.bf16.msra.mxu0 %v5521
        %7546 = vmatprep.subr.bf16.mxu0 0
        %7547 = vmatpush2.bf16.msra.mxu0 %v5516
        %7548 = vmatprep.subr.bf16.mxu0 0
        %7549 = vmatpush2.bf16.msra.mxu0 %v5511
        %7550 = vmatprep.subr.bf16.mxu0 0
        %7551 = vmatpush2.bf16.msra.mxu0 %v5506
        %7552 = vmatprep.mubr.bf16.mxu0 %v2829
        %7553 = vmatmul.mubr.bf16.gmra.mxu0 %v2828
        %v7554 = vpop.f32.mrf.mxu0
        %v7555 = vadd.f32 %v7514, %v7554
        %v7556 = vpop.f32.mrf.mxu0
        %v7557 = vpop.f32.mrf.mxu0
        %v7558 = vadd.f32 %v7517, %v7557
        %v7559 = vpop.f32.mrf.mxu0
        %7560 = vdwg.mxu0
        %7561 = vmatprep.subr.bf16.mxu0 0
        %7562 = vmatpush1.bf16.msra.mxu0 %v5581
        %7563 = vmatprep.subr.bf16.mxu0 0
        %7564 = vmatpush1.bf16.msra.mxu0 %v5576
        %7565 = vmatprep.subr.bf16.mxu0 0
        %7566 = vmatpush1.bf16.msra.mxu0 %v5571
        %7567 = vmatprep.subr.bf16.mxu0 0
        %7568 = vmatpush1.bf16.msra.mxu0 %v5566
        %7569 = vmatprep.subr.bf16.mxu0 0
        %7570 = vmatpush1.bf16.msra.mxu0 %v5561
        %7571 = vmatprep.subr.bf16.mxu0 0
        %7572 = vmatpush1.bf16.msra.mxu0 %v5556
        %7573 = vmatprep.subr.bf16.mxu0 0
        %7574 = vmatpush1.bf16.msra.mxu0 %v5551
        %7575 = vmatprep.subr.bf16.mxu0 0
        %7576 = vmatpush1.bf16.msra.mxu0 %v5546
        %7577 = vmatprep.subr.bf16.mxu0 0
        %7578 = vmatpush2.bf16.msra.mxu0 %v5621
        %7579 = vmatprep.subr.bf16.mxu0 0
        %7580 = vmatpush2.bf16.msra.mxu0 %v5616
        %7581 = vmatprep.subr.bf16.mxu0 0
        %7582 = vmatpush2.bf16.msra.mxu0 %v5611
        %7583 = vmatprep.subr.bf16.mxu0 0
        %7584 = vmatpush2.bf16.msra.mxu0 %v5606
        %7585 = vmatprep.subr.bf16.mxu0 0
        %7586 = vmatpush2.bf16.msra.mxu0 %v5601
        %7587 = vmatprep.subr.bf16.mxu0 0
        %7588 = vmatpush2.bf16.msra.mxu0 %v5596
        %7589 = vmatprep.subr.bf16.mxu0 0
        %7590 = vmatpush2.bf16.msra.mxu0 %v5591
        %7591 = vmatprep.subr.bf16.mxu0 0
        %7592 = vmatpush2.bf16.msra.mxu0 %v5586
        %7593 = vmatprep.mubr.bf16.mxu0 %v2831
        %7594 = vmatmul.mubr.bf16.gmra.mxu0 %v2830
        %v7595 = vpop.f32.mrf.mxu0
        %v7596 = vadd.f32 %v7555, %v7595
        %v7597 = vpop.f32.mrf.mxu0
        %v7598 = vpop.f32.mrf.mxu0
        %v7599 = vadd.f32 %v7558, %v7598
        %v7600 = vpop.f32.mrf.mxu0
        %7601 = vdwg.mxu0
        %7602 = vmatprep.subr.bf16.mxu0 0
        %7603 = vmatpush1.bf16.msra.mxu0 %v5661
        %7604 = vmatprep.subr.bf16.mxu0 0
        %7605 = vmatpush1.bf16.msra.mxu0 %v5656
        %7606 = vmatprep.subr.bf16.mxu0 0
        %7607 = vmatpush1.bf16.msra.mxu0 %v5651
        %7608 = vmatprep.subr.bf16.mxu0 0
        %7609 = vmatpush1.bf16.msra.mxu0 %v5646
        %7610 = vmatprep.subr.bf16.mxu0 0
        %7611 = vmatpush1.bf16.msra.mxu0 %v5641
        %7612 = vmatprep.subr.bf16.mxu0 0
        %7613 = vmatpush1.bf16.msra.mxu0 %v5636
        %7614 = vmatprep.subr.bf16.mxu0 0
        %7615 = vmatpush1.bf16.msra.mxu0 %v5631
        %7616 = vmatprep.subr.bf16.mxu0 0
        %7617 = vmatpush1.bf16.msra.mxu0 %v5626
        %7618 = vmatprep.subr.bf16.mxu0 0
        %7619 = vmatpush2.bf16.msra.mxu0 %v5701
        %7620 = vmatprep.subr.bf16.mxu0 0
        %7621 = vmatpush2.bf16.msra.mxu0 %v5696
        %7622 = vmatprep.subr.bf16.mxu0 0
        %7623 = vmatpush2.bf16.msra.mxu0 %v5691
        %7624 = vmatprep.subr.bf16.mxu0 0
        %7625 = vmatpush2.bf16.msra.mxu0 %v5686
        %7626 = vmatprep.subr.bf16.mxu0 0
        %7627 = vmatpush2.bf16.msra.mxu0 %v5681
        %7628 = vmatprep.subr.bf16.mxu0 0
        %7629 = vmatpush2.bf16.msra.mxu0 %v5676
        %7630 = vmatprep.subr.bf16.mxu0 0
        %7631 = vmatpush2.bf16.msra.mxu0 %v5671
        %7632 = vmatprep.subr.bf16.mxu0 0
        %7633 = vmatpush2.bf16.msra.mxu0 %v5666
        %7634 = vmatprep.mubr.bf16.mxu0 %v2833
        %7635 = vmatmul.mubr.bf16.gmra.mxu0 %v2832
        %v7636 = vpop.f32.mrf.mxu0
        %v7637 = vadd.f32 %v7596, %v7636
        %v7638 = vpop.f32.mrf.mxu0
        %v7639 = vpop.f32.mrf.mxu0
        %v7640 = vadd.f32 %v7599, %v7639
        %v7641 = vpop.f32.mrf.mxu0
        %7642 = vdwg.mxu0
        %7643 = vmatprep.subr.bf16.mxu0 0
        %7644 = vmatpush1.bf16.msra.mxu0 %v5741
        %7645 = vmatprep.subr.bf16.mxu0 0
        %7646 = vmatpush1.bf16.msra.mxu0 %v5736
        %7647 = vmatprep.subr.bf16.mxu0 0
        %7648 = vmatpush1.bf16.msra.mxu0 %v5731
        %7649 = vmatprep.subr.bf16.mxu0 0
        %7650 = vmatpush1.bf16.msra.mxu0 %v5726
        %7651 = vmatprep.subr.bf16.mxu0 0
        %7652 = vmatpush1.bf16.msra.mxu0 %v5721
        %7653 = vmatprep.subr.bf16.mxu0 0
        %7654 = vmatpush1.bf16.msra.mxu0 %v5716
        %7655 = vmatprep.subr.bf16.mxu0 0
        %7656 = vmatpush1.bf16.msra.mxu0 %v5711
        %7657 = vmatprep.subr.bf16.mxu0 0
        %7658 = vmatpush1.bf16.msra.mxu0 %v5706
        %7659 = vmatprep.subr.bf16.mxu0 0
        %7660 = vmatpush2.bf16.msra.mxu0 %v5781
        %7661 = vmatprep.subr.bf16.mxu0 0
        %7662 = vmatpush2.bf16.msra.mxu0 %v5776
        %7663 = vmatprep.subr.bf16.mxu0 0
        %7664 = vmatpush2.bf16.msra.mxu0 %v5771
        %7665 = vmatprep.subr.bf16.mxu0 0
        %7666 = vmatpush2.bf16.msra.mxu0 %v5766
        %7667 = vmatprep.subr.bf16.mxu0 0
        %7668 = vmatpush2.bf16.msra.mxu0 %v5761
        %7669 = vmatprep.subr.bf16.mxu0 0
        %7670 = vmatpush2.bf16.msra.mxu0 %v5756
        %7671 = vmatprep.subr.bf16.mxu0 0
        %7672 = vmatpush2.bf16.msra.mxu0 %v5751
        %7673 = vmatprep.subr.bf16.mxu0 0
        %7674 = vmatpush2.bf16.msra.mxu0 %v5746
        %7675 = vmatprep.mubr.bf16.mxu0 %v2835
        %7676 = vmatmul.mubr.bf16.gmra.mxu0 %v2834
        %v7677 = vpop.f32.mrf.mxu0
        %v7678 = vadd.f32 %v7637, %v7677
        %v7679 = vpop.f32.mrf.mxu0
        %v7680 = vpop.f32.mrf.mxu0
        %v7681 = vadd.f32 %v7640, %v7680
        %v7682 = vpop.f32.mrf.mxu0
        %7683 = vdwg.mxu0
        %7684 = vmatprep.subr.bf16.mxu0 0
        %7685 = vmatpush1.bf16.msra.mxu0 %v5821
        %7686 = vmatprep.subr.bf16.mxu0 0
        %7687 = vmatpush1.bf16.msra.mxu0 %v5816
        %7688 = vmatprep.subr.bf16.mxu0 0
        %7689 = vmatpush1.bf16.msra.mxu0 %v5811
        %7690 = vmatprep.subr.bf16.mxu0 0
        %7691 = vmatpush1.bf16.msra.mxu0 %v5806
        %7692 = vmatprep.subr.bf16.mxu0 0
        %7693 = vmatpush1.bf16.msra.mxu0 %v5801
        %7694 = vmatprep.subr.bf16.mxu0 0
        %7695 = vmatpush1.bf16.msra.mxu0 %v5796
        %7696 = vmatprep.subr.bf16.mxu0 0
        %7697 = vmatpush1.bf16.msra.mxu0 %v5791
        %7698 = vmatprep.subr.bf16.mxu0 0
        %7699 = vmatpush1.bf16.msra.mxu0 %v5786
        %7700 = vmatprep.subr.bf16.mxu0 0
        %7701 = vmatpush2.bf16.msra.mxu0 %v5861
        %7702 = vmatprep.subr.bf16.mxu0 0
        %7703 = vmatpush2.bf16.msra.mxu0 %v5856
        %7704 = vmatprep.subr.bf16.mxu0 0
        %7705 = vmatpush2.bf16.msra.mxu0 %v5851
        %7706 = vmatprep.subr.bf16.mxu0 0
        %7707 = vmatpush2.bf16.msra.mxu0 %v5846
        %7708 = vmatprep.subr.bf16.mxu0 0
        %7709 = vmatpush2.bf16.msra.mxu0 %v5841
        %7710 = vmatprep.subr.bf16.mxu0 0
        %7711 = vmatpush2.bf16.msra.mxu0 %v5836
        %7712 = vmatprep.subr.bf16.mxu0 0
        %7713 = vmatpush2.bf16.msra.mxu0 %v5831
        %7714 = vmatprep.subr.bf16.mxu0 0
        %7715 = vmatpush2.bf16.msra.mxu0 %v5826
        %7716 = vmatprep.mubr.bf16.mxu0 %v2837
        %7717 = vmatmul.mubr.bf16.gmra.mxu0 %v2836
        %v7718 = vpop.f32.mrf.mxu0
        %v7719 = vadd.f32 %v7678, %v7718
        %v7720 = vpop.f32.mrf.mxu0
        %v7721 = vpop.f32.mrf.mxu0
        %v7722 = vadd.f32 %v7681, %v7721
        %v7723 = vpop.f32.mrf.mxu0
        %7724 = vdwg.mxu0
        %v7725 = vld [vmem:[%s9] sm:$0xf]
        %v7726 = vld [vmem:[%s9 + $0x4] sm:$0xf]
        %v7727 = vld [vmem:[%s9 + $0x8] sm:$0xf]
        %v7728 = vld [vmem:[%s9 + $0xc] sm:$0xf]
        %v7729 = vpack.c.bf16 %v6965, %v6961
        %v7730 = vpack.c.bf16 %v6967, %v6963
        %v7731 = vpack.c.bf16 %v7352, %v7348
        %v7732 = vpack.c.bf16 %v7354, %v7350
        %v7733 = vpack.c.bf16 %v7722, %v7719
        %v7734 = vld [vmem:[%s11] sm:$0xff]
        %v7735 = vld [vmem:[%s11 + $0x8] sm:$0xff]
        %v7736 = vld [vmem:[%s11 + $0x10] sm:$0xff]
        %v7737 = vld [vmem:[%s11 + $0x18] sm:$0xff]
        %7739 = vset.pattern.permute.xlu0 0
        %7740 = vperm.xlu0 %7739, %v7734
        %v7741 = vpop.permute.xlu0 %7740
        %7744 = vset.pattern.permute.xlu0 0
        %7745 = vperm.xlu0 %7744, %v7735
        %v7746 = vpop.permute.xlu0 %7745
        %7749 = vset.pattern.permute.xlu0 0
        %7750 = vperm.xlu0 %7749, %v7736
        %v7751 = vpop.permute.xlu0 %7750
        %7754 = vset.pattern.permute.xlu0 0
        %7755 = vperm.xlu0 %7754, %v7737
        %v7756 = vpop.permute.xlu0 %7755
        %v7762 = vunpack.c.l.b16 %v7725
        %v7763 = vunpack.c.l.b16 %v7726
        %v7764 = vunpack.c.l.b16 %v7727
        %v7765 = vunpack.c.l.b16 %v7728
        %v7766 = vpack.c.b16 %v7763, %v7762
        %v7767 = vpack.c.b16 %v7765, %v7764
        %vm7768 = vcmask 130048
        %v7770 = vsel %vm7768, %v7766, 0
        %v7773 = vsel %vm7768, %v7767, 0
        %7775 = vmatprep.subr.bf16.mxu0 0
        %7776 = vmatpush1.bf16.msra.mxu0 0
        %7777 = vmatprep.subr.bf16.mxu0 0
        %7778 = vmatpush1.bf16.msra.mxu0 0
        %7779 = vmatprep.subr.bf16.mxu0 0
        %7780 = vmatpush1.bf16.msra.mxu0 0
        %7781 = vmatprep.subr.bf16.mxu0 0
        %7782 = vmatpush1.bf16.msra.mxu0 0
        %7783 = vmatprep.subr.bf16.mxu0 0
        %7784 = vmatpush1.bf16.msra.mxu0 0
        %7785 = vmatprep.subr.bf16.mxu0 0
        %7786 = vmatpush1.bf16.msra.mxu0 0
        %7787 = vmatprep.subr.bf16.mxu0 0
        %7788 = vmatpush1.bf16.msra.mxu0 0
        %7789 = vmatprep.subr.bf16.mxu0 %v7730
        %7790 = vmatpush1.bf16.msra.mxu0 %v7729
        %7791 = vmatprep.subr.bf16.mxu0 0
        %7792 = vmatpush2.bf16.msra.mxu0 0
        %7793 = vmatprep.subr.bf16.mxu0 0
        %7794 = vmatpush2.bf16.msra.mxu0 0
        %7795 = vmatprep.subr.bf16.mxu0 0
        %7796 = vmatpush2.bf16.msra.mxu0 0
        %7797 = vmatprep.subr.bf16.mxu0 0
        %7798 = vmatpush2.bf16.msra.mxu0 0
        %7799 = vmatprep.subr.bf16.mxu0 0
        %7800 = vmatpush2.bf16.msra.mxu0 0
        %7801 = vmatprep.subr.bf16.mxu0 0
        %7802 = vmatpush2.bf16.msra.mxu0 0
        %7803 = vmatprep.subr.bf16.mxu0 0
        %7804 = vmatpush2.bf16.msra.mxu0 0
        %7805 = vmatprep.subr.bf16.mxu0 0
        %7806 = vmatpush2.bf16.msra.mxu0 0
        %7807 = vmatprep.mubr.bf16.mxu0 0
        %7808 = vmatmul.mubr.bf16.gmra.mxu0 %v7770
        %v7809 = vpop.f32.mrf.mxu0
        %v7810 = vadd.f32 %v7741, %v7809
        %v7811 = vpop.f32.mrf.mxu0
        %v7812 = vadd.f32 %v7741, %v7811
        %v7813 = vpop.f32.mrf.mxu0
        %v7814 = vadd.f32 %v7746, %v7813
        %v7815 = vpop.f32.mrf.mxu0
        %v7816 = vadd.f32 %v7746, %v7815
        %7817 = vmatprep.mubr.bf16.mxu0 0
        %7818 = vmatmul.mubr.bf16.gmra.mxu0 %v7773
        %v7819 = vpop.f32.mrf.mxu0
        %v7820 = vadd.f32 %v7751, %v7819
        %v7821 = vpop.f32.mrf.mxu0
        %v7822 = vadd.f32 %v7751, %v7821
        %v7823 = vpop.f32.mrf.mxu0
        %v7824 = vadd.f32 %v7756, %v7823
        %v7825 = vpop.f32.mrf.mxu0
        %v7826 = vadd.f32 %v7756, %v7825
        %7827 = vdwg.mxu0
        %7828 = vmatprep.subr.bf16.mxu0 0
        %7829 = vmatpush1.bf16.msra.mxu0 0
        %7830 = vmatprep.subr.bf16.mxu0 0
        %7831 = vmatpush1.bf16.msra.mxu0 0
        %7832 = vmatprep.subr.bf16.mxu0 0
        %7833 = vmatpush1.bf16.msra.mxu0 0
        %7834 = vmatprep.subr.bf16.mxu0 0
        %7835 = vmatpush1.bf16.msra.mxu0 0
        %7836 = vmatprep.subr.bf16.mxu0 0
        %7837 = vmatpush1.bf16.msra.mxu0 0
        %7838 = vmatprep.subr.bf16.mxu0 0
        %7839 = vmatpush1.bf16.msra.mxu0 0
        %7840 = vmatprep.subr.bf16.mxu0 0
        %7841 = vmatpush1.bf16.msra.mxu0 0
        %7842 = vmatprep.subr.bf16.mxu0 %v7732
        %7843 = vmatpush1.bf16.msra.mxu0 %v7731
        %7844 = vmatprep.subr.bf16.mxu0 0
        %7845 = vmatpush2.bf16.msra.mxu0 0
        %7846 = vmatprep.subr.bf16.mxu0 0
        %7847 = vmatpush2.bf16.msra.mxu0 0
        %7848 = vmatprep.subr.bf16.mxu0 0
        %7849 = vmatpush2.bf16.msra.mxu0 0
        %7850 = vmatprep.subr.bf16.mxu0 0
        %7851 = vmatpush2.bf16.msra.mxu0 0
        %7852 = vmatprep.subr.bf16.mxu0 0
        %7853 = vmatpush2.bf16.msra.mxu0 0
        %7854 = vmatprep.subr.bf16.mxu0 0
        %7855 = vmatpush2.bf16.msra.mxu0 0
        %7856 = vmatprep.subr.bf16.mxu0 0
        %7857 = vmatpush2.bf16.msra.mxu0 0
        %7858 = vmatprep.subr.bf16.mxu0 0
        %7859 = vmatpush2.bf16.msra.mxu0 0
        %7860 = vmatprep.mubr.bf16.mxu0 0
        %7861 = vmatmul.mubr.bf16.gmra.mxu0 %v7770
        %v7862 = vpop.f32.mrf.mxu0
        %v7863 = vadd.f32 %v7741, %v7862
        %v7864 = vpop.f32.mrf.mxu0
        %v7865 = vadd.f32 %v7741, %v7864
        %v7866 = vpop.f32.mrf.mxu0
        %v7867 = vadd.f32 %v7746, %v7866
        %v7868 = vpop.f32.mrf.mxu0
        %v7869 = vadd.f32 %v7746, %v7868
        %7870 = vmatprep.mubr.bf16.mxu0 0
        %7871 = vmatmul.mubr.bf16.gmra.mxu0 %v7773
        %v7872 = vpop.f32.mrf.mxu0
        %v7873 = vadd.f32 %v7751, %v7872
        %v7874 = vpop.f32.mrf.mxu0
        %v7875 = vadd.f32 %v7751, %v7874
        %v7876 = vpop.f32.mrf.mxu0
        %v7877 = vadd.f32 %v7756, %v7876
        %v7878 = vpop.f32.mrf.mxu0
        %v7879 = vadd.f32 %v7756, %v7878
        %7880 = vdwg.mxu0
        %7881 = vmatprep.subr.bf16.mxu0 0
        %7882 = vmatpush1.bf16.msra.mxu0 0
        %7883 = vmatprep.subr.bf16.mxu0 0
        %7884 = vmatpush1.bf16.msra.mxu0 0
        %7885 = vmatprep.subr.bf16.mxu0 0
        %7886 = vmatpush1.bf16.msra.mxu0 0
        %7887 = vmatprep.subr.bf16.mxu0 0
        %7888 = vmatpush1.bf16.msra.mxu0 0
        %7889 = vmatprep.subr.bf16.mxu0 0
        %7890 = vmatpush1.bf16.msra.mxu0 0
        %7891 = vmatprep.subr.bf16.mxu0 0
        %7892 = vmatpush1.bf16.msra.mxu0 0
        %7893 = vmatprep.subr.bf16.mxu0 0
        %7894 = vmatpush1.bf16.msra.mxu0 0
        %7895 = vmatprep.subr.bf16.mxu0 0
        %7896 = vmatpush1.bf16.msra.mxu0 %v7733
        %7897 = vmatprep.subr.bf16.mxu0 0
        %7898 = vmatpush2.bf16.msra.mxu0 0
        %7899 = vmatprep.subr.bf16.mxu0 0
        %7900 = vmatpush2.bf16.msra.mxu0 0
        %7901 = vmatprep.subr.bf16.mxu0 0
        %7902 = vmatpush2.bf16.msra.mxu0 0
        %7903 = vmatprep.subr.bf16.mxu0 0
        %7904 = vmatpush2.bf16.msra.mxu0 0
        %7905 = vmatprep.subr.bf16.mxu0 0
        %7906 = vmatpush2.bf16.msra.mxu0 0
        %7907 = vmatprep.subr.bf16.mxu0 0
        %7908 = vmatpush2.bf16.msra.mxu0 0
        %7909 = vmatprep.subr.bf16.mxu0 0
        %7910 = vmatpush2.bf16.msra.mxu0 0
        %7911 = vmatprep.subr.bf16.mxu0 0
        %7912 = vmatpush2.bf16.msra.mxu0 0
        %7913 = vmatprep.mubr.bf16.mxu0 0
        %7914 = vmatmul.mubr.bf16.gmra.mxu0 %v7770
        %v7915 = vpop.f32.mrf.mxu0
        %v7916 = vadd.f32 %v7741, %v7915
        %v7917 = vpop.f32.mrf.mxu0
        %v7918 = vpop.f32.mrf.mxu0
        %v7919 = vadd.f32 %v7746, %v7918
        %v7920 = vpop.f32.mrf.mxu0
        %7921 = vmatprep.mubr.bf16.mxu0 0
        %7922 = vmatmul.mubr.bf16.gmra.mxu0 %v7773
        %v7923 = vpop.f32.mrf.mxu0
        %v7924 = vadd.f32 %v7751, %v7923
        %v7925 = vpop.f32.mrf.mxu0
        %v7926 = vpop.f32.mrf.mxu0
        %v7927 = vadd.f32 %v7756, %v7926
        %v7928 = vpop.f32.mrf.mxu0
        %7929 = vdwg.mxu0
        %v7930 = vmax.f32 %v7810, 0.0
        %v7931 = vmax.f32 %v7812, 0.0
        %v7932 = vmax.f32 %v7863, 0.0
        %v7933 = vmax.f32 %v7865, 0.0
        %v7934 = vmax.f32 %v7916, 0.0
        %v7935 = vmax.f32 %v7814, 0.0
        %v7936 = vmax.f32 %v7816, 0.0
        %v7937 = vmax.f32 %v7867, 0.0
        %v7938 = vmax.f32 %v7869, 0.0
        %v7939 = vmax.f32 %v7919, 0.0
        %v7940 = vmax.f32 %v7820, 0.0
        %v7941 = vmax.f32 %v7822, 0.0
        %v7942 = vmax.f32 %v7873, 0.0
        %v7943 = vmax.f32 %v7875, 0.0
        %v7944 = vmax.f32 %v7924, 0.0
        %v7945 = vmax.f32 %v7824, 0.0
        %v7946 = vmax.f32 %v7826, 0.0
        %v7947 = vmax.f32 %v7877, 0.0
        %v7948 = vmax.f32 %v7879, 0.0
        %v7949 = vmax.f32 %v7927, 0.0
        %v7950 = vld [vmem:[#allocation4] sm:$0xff]
        %v7951 = vld [vmem:[#allocation4 + $0x8] sm:$0xff]
        %v7952 = vld [vmem:[#allocation4 + $0x10] sm:$0xff]
        %v7953 = vld [vmem:[#allocation4 + $0x18] sm:$0xff]
        %v7954 = vld [vmem:[#allocation4 + $0x20] sm:$0xff]
        %v7955 = vld [vmem:[#allocation4 + $0x28] sm:$0xff]
        %v7956 = vld [vmem:[#allocation4 + $0x30] sm:$0xff]
        %v7957 = vld [vmem:[#allocation4 + $0x38] sm:$0xff]
        %v7958 = vld [vmem:[#allocation4 + $0x40] sm:$0xff]
        %v7959 = vld [vmem:[#allocation4 + $0x48] sm:$0xff]
        %v7960 = vld [vmem:[#allocation4 + $0x50] sm:$0xff]
        %v7961 = vld [vmem:[#allocation4 + $0x58] sm:$0xff]
        %v7962 = vld [vmem:[#allocation4 + $0x60] sm:$0xff]
        %v7963 = vld [vmem:[#allocation4 + $0x68] sm:$0xff]
        %v7964 = vld [vmem:[#allocation4 + $0x70] sm:$0xff]
        %v7965 = vld [vmem:[#allocation4 + $0x78] sm:$0xff]
        %v7966 = vld [vmem:[#allocation4 + $0x80] sm:$0xff]
        %v7967 = vld [vmem:[#allocation4 + $0x88] sm:$0xff]
        %v7968 = vld [vmem:[#allocation4 + $0x90] sm:$0xff]
        %v7969 = vld [vmem:[#allocation4 + $0x98] sm:$0xff]
        %v7970 = vld [vmem:[#allocation4 + $0xa0] sm:$0xff]
        %v7971 = vld [vmem:[#allocation4 + $0xa8] sm:$0xff]
        %v7972 = vld [vmem:[#allocation4 + $0xb0] sm:$0xff]
        %v7973 = vld [vmem:[#allocation4 + $0xb8] sm:$0xff]
        %v7974 = vld [vmem:[#allocation4 + $0xc0] sm:$0xff]
        %v7975 = vld [vmem:[#allocation4 + $0xc8] sm:$0xff]
        %v7976 = vld [vmem:[#allocation4 + $0xd0] sm:$0xff]
        %v7977 = vld [vmem:[#allocation4 + $0xd8] sm:$0xff]
        %v7978 = vld [vmem:[#allocation4 + $0xe0] sm:$0xff]
        %v7979 = vld [vmem:[#allocation4 + $0xe8] sm:$0xff]
        %v7980 = vld [vmem:[#allocation4 + $0xf0] sm:$0xff]
        %v7981 = vld [vmem:[#allocation4 + $0xf8] sm:$0xff]
        %v7982 = vld [vmem:[#allocation4 + $0x100] sm:$0xff]
        %v7983 = vld [vmem:[#allocation4 + $0x108] sm:$0xff]
        %v7984 = vld [vmem:[#allocation4 + $0x110] sm:$0xff]
        %v7985 = vld [vmem:[#allocation4 + $0x118] sm:$0xff]
        %v7986 = vld [vmem:[#allocation4 + $0x120] sm:$0xff]
        %v7987 = vld [vmem:[#allocation4 + $0x128] sm:$0xff]
        %v7988 = vld [vmem:[#allocation4 + $0x130] sm:$0xff]
        %v7989 = vld [vmem:[#allocation4 + $0x138] sm:$0xff]
        %v7990 = vld [vmem:[#allocation4 + $0x140] sm:$0xff]
        %v7991 = vld [vmem:[#allocation4 + $0x148] sm:$0xff]
        %v7992 = vld [vmem:[#allocation4 + $0x150] sm:$0xff]
        %v7993 = vld [vmem:[#allocation4 + $0x158] sm:$0xff]
        %v7994 = vld [vmem:[#allocation4 + $0x160] sm:$0xff]
        %v7995 = vld [vmem:[#allocation4 + $0x168] sm:$0xff]
        %v7996 = vld [vmem:[#allocation4 + $0x170] sm:$0xff]
        %v7997 = vld [vmem:[#allocation4 + $0x178] sm:$0xff]
        %v7998 = vld [vmem:[#allocation4 + $0x180] sm:$0xff]
        %v7999 = vld [vmem:[#allocation4 + $0x188] sm:$0xff]
        %v8000 = vld [vmem:[#allocation4 + $0x190] sm:$0xff]
        %v8001 = vld [vmem:[#allocation4 + $0x198] sm:$0xff]
        %v8002 = vld [vmem:[#allocation4 + $0x1a0] sm:$0xff]
        %v8003 = vld [vmem:[#allocation4 + $0x1a8] sm:$0xff]
        %v8004 = vld [vmem:[#allocation4 + $0x1b0] sm:$0xff]
        %v8005 = vld [vmem:[#allocation4 + $0x1b8] sm:$0xff]
        %v8006 = vld [vmem:[#allocation4 + $0x1c0] sm:$0xff]
        %v8007 = vld [vmem:[#allocation4 + $0x1c8] sm:$0xff]
        %v8008 = vld [vmem:[#allocation4 + $0x1d0] sm:$0xff]
        %v8009 = vld [vmem:[#allocation4 + $0x1d8] sm:$0xff]
        %v8010 = vld [vmem:[#allocation4 + $0x1e0] sm:$0xff]
        %v8011 = vld [vmem:[#allocation4 + $0x1e8] sm:$0xff]
        %v8012 = vld [vmem:[#allocation4 + $0x1f0] sm:$0xff]
        %v8013 = vld [vmem:[#allocation4 + $0x1f8] sm:$0xff]
        %v8014 = vld [vmem:[#allocation4 + $0x200] sm:$0xff]
        %v8015 = vld [vmem:[#allocation4 + $0x208] sm:$0xff]
        %v8016 = vld [vmem:[#allocation4 + $0x210] sm:$0xff]
        %v8017 = vld [vmem:[#allocation4 + $0x218] sm:$0xff]
        %v8018 = vld [vmem:[#allocation4 + $0x220] sm:$0xff]
        %v8019 = vld [vmem:[#allocation4 + $0x228] sm:$0xff]
        %v8020 = vld [vmem:[#allocation4 + $0x230] sm:$0xff]
        %v8021 = vld [vmem:[#allocation4 + $0x238] sm:$0xff]
        %v8022 = vpack.c.bf16 %v7935, %v7930
        %v8023 = vpack.c.bf16 %v7936, %v7931
        %v8024 = vpack.c.bf16 %v7937, %v7932
        %v8025 = vpack.c.bf16 %v7938, %v7933
        %v8026 = vpack.c.bf16 %v7939, %v7934
        %v8027 = vpack.c.bf16 %v7945, %v7940
        %v8028 = vpack.c.bf16 %v7946, %v7941
        %v8029 = vpack.c.bf16 %v7947, %v7942
        %v8030 = vpack.c.bf16 %v7948, %v7943
        %v8031 = vpack.c.bf16 %v7949, %v7944
        %v8104 = vunpack.c.l.b16 %v7950
        %v8105 = vunpack.c.h.b16 %v7950
        %v8106 = vunpack.c.l.b16 %v7951
        %v8107 = vunpack.c.h.b16 %v7951
        %v8108 = vunpack.c.l.b16 %v7952
        %v8109 = vunpack.c.h.b16 %v7952
        %v8110 = vunpack.c.l.b16 %v7953
        %v8111 = vunpack.c.h.b16 %v7953
        %v8112 = vunpack.c.l.b16 %v7954
        %v8113 = vunpack.c.h.b16 %v7954
        %v8114 = vunpack.c.l.b16 %v7955
        %v8115 = vunpack.c.h.b16 %v7955
        %v8116 = vunpack.c.l.b16 %v7956
        %v8117 = vunpack.c.h.b16 %v7956
        %v8118 = vunpack.c.l.b16 %v7957
        %v8119 = vunpack.c.h.b16 %v7957
        %v8120 = vunpack.c.l.b16 %v7958
        %v8121 = vunpack.c.h.b16 %v7958
        %v8122 = vunpack.c.l.b16 %v7959
        %v8123 = vunpack.c.h.b16 %v7959
        %v8124 = vunpack.c.l.b16 %v7960
        %v8125 = vunpack.c.h.b16 %v7960
        %v8126 = vunpack.c.l.b16 %v7961
        %v8127 = vunpack.c.h.b16 %v7961
        %v8128 = vunpack.c.l.b16 %v7962
        %v8129 = vunpack.c.h.b16 %v7962
        %v8130 = vunpack.c.l.b16 %v7963
        %v8131 = vunpack.c.h.b16 %v7963
        %v8132 = vunpack.c.l.b16 %v7964
        %v8133 = vunpack.c.h.b16 %v7964
        %v8134 = vunpack.c.l.b16 %v7965
        %v8135 = vunpack.c.h.b16 %v7965
        %v8136 = vunpack.c.l.b16 %v7966
        %v8137 = vunpack.c.h.b16 %v7966
        %v8138 = vunpack.c.l.b16 %v7967
        %v8139 = vunpack.c.h.b16 %v7967
        %v8140 = vunpack.c.l.b16 %v7968
        %v8141 = vunpack.c.h.b16 %v7968
        %v8142 = vunpack.c.l.b16 %v7969
        %v8143 = vunpack.c.h.b16 %v7969
        %v8144 = vunpack.c.l.b16 %v7970
        %v8145 = vunpack.c.h.b16 %v7970
        %v8146 = vunpack.c.l.b16 %v7971
        %v8147 = vunpack.c.h.b16 %v7971
        %v8148 = vunpack.c.l.b16 %v7972
        %v8149 = vunpack.c.h.b16 %v7972
        %v8150 = vunpack.c.l.b16 %v7973
        %v8151 = vunpack.c.h.b16 %v7973
        %v8152 = vunpack.c.l.b16 %v7974
        %v8153 = vunpack.c.h.b16 %v7974
        %v8154 = vunpack.c.l.b16 %v7975
        %v8155 = vunpack.c.h.b16 %v7975
        %v8156 = vunpack.c.l.b16 %v7976
        %v8157 = vunpack.c.h.b16 %v7976
        %v8158 = vunpack.c.l.b16 %v7977
        %v8159 = vunpack.c.h.b16 %v7977
        %v8160 = vunpack.c.l.b16 %v7978
        %v8161 = vunpack.c.h.b16 %v7978
        %v8162 = vunpack.c.l.b16 %v7979
        %v8163 = vunpack.c.h.b16 %v7979
        %v8164 = vunpack.c.l.b16 %v7980
        %v8165 = vunpack.c.h.b16 %v7980
        %v8166 = vunpack.c.l.b16 %v7981
        %v8167 = vunpack.c.h.b16 %v7981
        %v8168 = vunpack.c.l.b16 %v7982
        %v8169 = vunpack.c.h.b16 %v7982
        %v8170 = vunpack.c.l.b16 %v7983
        %v8171 = vunpack.c.h.b16 %v7983
        %v8172 = vunpack.c.l.b16 %v7984
        %v8173 = vunpack.c.h.b16 %v7984
        %v8174 = vunpack.c.l.b16 %v7985
        %v8175 = vunpack.c.h.b16 %v7985
        %v8176 = vunpack.c.l.b16 %v7986
        %v8177 = vunpack.c.h.b16 %v7986
        %v8178 = vunpack.c.l.b16 %v7987
        %v8179 = vunpack.c.h.b16 %v7987
        %v8180 = vunpack.c.l.b16 %v7988
        %v8181 = vunpack.c.h.b16 %v7988
        %v8182 = vunpack.c.l.b16 %v7989
        %v8183 = vunpack.c.h.b16 %v7989
        %v8184 = vunpack.c.l.b16 %v7990
        %v8185 = vunpack.c.h.b16 %v7990
        %v8186 = vunpack.c.l.b16 %v7991
        %v8187 = vunpack.c.h.b16 %v7991
        %v8188 = vunpack.c.l.b16 %v7992
        %v8189 = vunpack.c.h.b16 %v7992
        %v8190 = vunpack.c.l.b16 %v7993
        %v8191 = vunpack.c.h.b16 %v7993
        %v8192 = vunpack.c.l.b16 %v7994
        %v8193 = vunpack.c.h.b16 %v7994
        %v8194 = vunpack.c.l.b16 %v7995
        %v8195 = vunpack.c.h.b16 %v7995
        %v8196 = vunpack.c.l.b16 %v7996
        %v8197 = vunpack.c.h.b16 %v7996
        %v8198 = vunpack.c.l.b16 %v7997
        %v8199 = vunpack.c.h.b16 %v7997
        %v8200 = vunpack.c.l.b16 %v7998
        %v8201 = vunpack.c.h.b16 %v7998
        %v8202 = vunpack.c.l.b16 %v7999
        %v8203 = vunpack.c.h.b16 %v7999
        %v8204 = vunpack.c.l.b16 %v8000
        %v8205 = vunpack.c.h.b16 %v8000
        %v8206 = vunpack.c.l.b16 %v8001
        %v8207 = vunpack.c.h.b16 %v8001
        %v8208 = vunpack.c.l.b16 %v8002
        %v8209 = vunpack.c.h.b16 %v8002
        %v8210 = vunpack.c.l.b16 %v8003
        %v8211 = vunpack.c.h.b16 %v8003
        %v8212 = vunpack.c.l.b16 %v8004
        %v8213 = vunpack.c.h.b16 %v8004
        %v8214 = vunpack.c.l.b16 %v8005
        %v8215 = vunpack.c.h.b16 %v8005
        %v8216 = vunpack.c.l.b16 %v8006
        %v8217 = vunpack.c.h.b16 %v8006
        %v8218 = vunpack.c.l.b16 %v8007
        %v8219 = vunpack.c.h.b16 %v8007
        %v8220 = vunpack.c.l.b16 %v8008
        %v8221 = vunpack.c.h.b16 %v8008
        %v8222 = vunpack.c.l.b16 %v8009
        %v8223 = vunpack.c.h.b16 %v8009
        %v8224 = vunpack.c.l.b16 %v8010
        %v8225 = vunpack.c.h.b16 %v8010
        %v8226 = vunpack.c.l.b16 %v8011
        %v8227 = vunpack.c.h.b16 %v8011
        %v8228 = vunpack.c.l.b16 %v8012
        %v8229 = vunpack.c.h.b16 %v8012
        %v8230 = vunpack.c.l.b16 %v8013
        %v8231 = vunpack.c.h.b16 %v8013
        %v8232 = vunpack.c.l.b16 %v8014
        %v8233 = vunpack.c.h.b16 %v8014
        %v8234 = vunpack.c.l.b16 %v8015
        %v8235 = vunpack.c.h.b16 %v8015
        %v8236 = vunpack.c.l.b16 %v8016
        %v8237 = vunpack.c.h.b16 %v8016
        %v8238 = vunpack.c.l.b16 %v8017
        %v8239 = vunpack.c.h.b16 %v8017
        %v8240 = vunpack.c.l.b16 %v8018
        %v8241 = vunpack.c.h.b16 %v8018
        %v8242 = vunpack.c.l.b16 %v8019
        %v8243 = vunpack.c.h.b16 %v8019
        %v8244 = vunpack.c.l.b16 %v8020
        %v8245 = vunpack.c.h.b16 %v8020
        %v8246 = vunpack.c.l.b16 %v8021
        %v8247 = vunpack.c.h.b16 %v8021
        %v8248 = vpack.c.b16 %v8106, %v8104
        %v8249 = vpack.c.b16 %v8107, %v8105
        %v8250 = vpack.c.b16 %v8110, %v8108
        %v8251 = vpack.c.b16 %v8111, %v8109
        %v8252 = vpack.c.b16 %v8114, %v8112
        %v8253 = vpack.c.b16 %v8115, %v8113
        %v8254 = vpack.c.b16 %v8118, %v8116
        %v8255 = vpack.c.b16 %v8119, %v8117
        %v8256 = vpack.c.b16 %v8122, %v8120
        %v8257 = vpack.c.b16 %v8123, %v8121
        %v8258 = vpack.c.b16 %v8126, %v8124
        %v8259 = vpack.c.b16 %v8127, %v8125
        %v8260 = vpack.c.b16 %v8130, %v8128
        %v8261 = vpack.c.b16 %v8131, %v8129
        %v8262 = vpack.c.b16 %v8134, %v8132
        %v8263 = vpack.c.b16 %v8135, %v8133
        %v8264 = vpack.c.b16 %v8138, %v8136
        %v8265 = vpack.c.b16 %v8139, %v8137
        %v8266 = vpack.c.b16 %v8142, %v8140
        %v8267 = vpack.c.b16 %v8143, %v8141
        %v8268 = vpack.c.b16 %v8146, %v8144
        %v8269 = vpack.c.b16 %v8147, %v8145
        %v8270 = vpack.c.b16 %v8150, %v8148
        %v8271 = vpack.c.b16 %v8151, %v8149
        %v8272 = vpack.c.b16 %v8154, %v8152
        %v8273 = vpack.c.b16 %v8155, %v8153
        %v8274 = vpack.c.b16 %v8158, %v8156
        %v8275 = vpack.c.b16 %v8159, %v8157
        %v8276 = vpack.c.b16 %v8162, %v8160
        %v8277 = vpack.c.b16 %v8163, %v8161
        %v8278 = vpack.c.b16 %v8166, %v8164
        %v8279 = vpack.c.b16 %v8167, %v8165
        %v8280 = vpack.c.b16 %v8170, %v8168
        %v8281 = vpack.c.b16 %v8171, %v8169
        %v8282 = vpack.c.b16 %v8174, %v8172
        %v8283 = vpack.c.b16 %v8175, %v8173
        %v8284 = vpack.c.b16 %v8178, %v8176
        %v8285 = vpack.c.b16 %v8179, %v8177
        %v8286 = vpack.c.b16 %v8182, %v8180
        %v8287 = vpack.c.b16 %v8183, %v8181
        %v8288 = vpack.c.b16 %v8186, %v8184
        %v8289 = vpack.c.b16 %v8187, %v8185
        %v8290 = vpack.c.b16 %v8190, %v8188
        %v8291 = vpack.c.b16 %v8191, %v8189
        %v8292 = vpack.c.b16 %v8194, %v8192
        %v8293 = vpack.c.b16 %v8195, %v8193
        %v8294 = vpack.c.b16 %v8198, %v8196
        %v8295 = vpack.c.b16 %v8199, %v8197
        %v8296 = vpack.c.b16 %v8202, %v8200
        %v8297 = vpack.c.b16 %v8203, %v8201
        %v8298 = vpack.c.b16 %v8206, %v8204
        %v8299 = vpack.c.b16 %v8207, %v8205
        %v8300 = vpack.c.b16 %v8210, %v8208
        %v8301 = vpack.c.b16 %v8211, %v8209
        %v8302 = vpack.c.b16 %v8214, %v8212
        %v8303 = vpack.c.b16 %v8215, %v8213
        %v8304 = vpack.c.b16 %v8218, %v8216
        %v8305 = vpack.c.b16 %v8219, %v8217
        %v8306 = vpack.c.b16 %v8222, %v8220
        %v8307 = vpack.c.b16 %v8223, %v8221
        %v8308 = vpack.c.b16 %v8226, %v8224
        %v8309 = vpack.c.b16 %v8227, %v8225
        %v8310 = vpack.c.b16 %v8230, %v8228
        %v8311 = vpack.c.b16 %v8231, %v8229
        %v8312 = vpack.c.b16 %v8234, %v8232
        %v8313 = vpack.c.b16 %v8235, %v8233
        %v8314 = vpack.c.b16 %v8238, %v8236
        %v8315 = vpack.c.b16 %v8239, %v8237
        %v8316 = vpack.c.b16 %v8242, %v8240
        %v8317 = vpack.c.b16 %v8243, %v8241
        %v8318 = vpack.c.b16 %v8246, %v8244
        %v8319 = vpack.c.b16 %v8247, %v8245
        %vm8392 = vcmask 523264
        %v8394 = vsel %vm8392, %v8026, 0
        %v8397 = vsel %vm8392, %v8031, 0
        %8399 = vmatprep.subr.bf16.mxu0 %v8263
        %8400 = vmatpush1.bf16.msra.mxu0 %v8262
        %8401 = vmatprep.subr.bf16.mxu0 %v8261
        %8402 = vmatpush1.bf16.msra.mxu0 %v8260
        %8403 = vmatprep.subr.bf16.mxu0 %v8259
        %8404 = vmatpush1.bf16.msra.mxu0 %v8258
        %8405 = vmatprep.subr.bf16.mxu0 %v8257
        %8406 = vmatpush1.bf16.msra.mxu0 %v8256
        %8407 = vmatprep.subr.bf16.mxu0 %v8255
        %8408 = vmatpush1.bf16.msra.mxu0 %v8254
        %8409 = vmatprep.subr.bf16.mxu0 %v8253
        %8410 = vmatpush1.bf16.msra.mxu0 %v8252
        %8411 = vmatprep.subr.bf16.mxu0 %v8251
        %8412 = vmatpush1.bf16.msra.mxu0 %v8250
        %8413 = vmatprep.subr.bf16.mxu0 %v8249
        %8414 = vmatpush1.bf16.msra.mxu0 %v8248
        %8415 = vmatprep.subr.bf16.mxu0 %v8279
        %8416 = vmatpush2.bf16.msra.mxu0 %v8278
        %8417 = vmatprep.subr.bf16.mxu0 %v8277
        %8418 = vmatpush2.bf16.msra.mxu0 %v8276
        %8419 = vmatprep.subr.bf16.mxu0 %v8275
        %8420 = vmatpush2.bf16.msra.mxu0 %v8274
        %8421 = vmatprep.subr.bf16.mxu0 %v8273
        %8422 = vmatpush2.bf16.msra.mxu0 %v8272
        %8423 = vmatprep.subr.bf16.mxu0 %v8271
        %8424 = vmatpush2.bf16.msra.mxu0 %v8270
        %8425 = vmatprep.subr.bf16.mxu0 %v8269
        %8426 = vmatpush2.bf16.msra.mxu0 %v8268
        %8427 = vmatprep.subr.bf16.mxu0 %v8267
        %8428 = vmatpush2.bf16.msra.mxu0 %v8266
        %8429 = vmatprep.subr.bf16.mxu0 %v8265
        %8430 = vmatpush2.bf16.msra.mxu0 %v8264
        %8431 = vmatprep.mubr.bf16.mxu0 %v8023
        %8432 = vmatmul.mubr.bf16.gmra.mxu0 %v8022
        %v8433 = vpop.f32.mrf.mxu0
        %v8434 = vadd.f32 0.0, %v8433
        %v8435 = vpop.f32.mrf.mxu0
        %v8436 = vadd.f32 0.0, %v8435
        %v8437 = vpop.f32.mrf.mxu0
        %v8438 = vadd.f32 0.0, %v8437
        %v8439 = vpop.f32.mrf.mxu0
        %v8440 = vadd.f32 0.0, %v8439
        %8441 = vmatprep.mubr.bf16.mxu0 %v8028
        %8442 = vmatmul.mubr.bf16.gmra.mxu0 %v8027
        %v8443 = vpop.f32.mrf.mxu0
        %v8444 = vadd.f32 0.0, %v8443
        %v8445 = vpop.f32.mrf.mxu0
        %v8446 = vadd.f32 0.0, %v8445
        %v8447 = vpop.f32.mrf.mxu0
        %v8448 = vadd.f32 0.0, %v8447
        %v8449 = vpop.f32.mrf.mxu0
        %v8450 = vadd.f32 0.0, %v8449
        %8451 = vdwg.mxu0
        %8452 = vmatprep.subr.bf16.mxu0 %v8295
        %8453 = vmatpush1.bf16.msra.mxu0 %v8294
        %8454 = vmatprep.subr.bf16.mxu0 %v8293
        %8455 = vmatpush1.bf16.msra.mxu0 %v8292
        %8456 = vmatprep.subr.bf16.mxu0 %v8291
        %8457 = vmatpush1.bf16.msra.mxu0 %v8290
        %8458 = vmatprep.subr.bf16.mxu0 %v8289
        %8459 = vmatpush1.bf16.msra.mxu0 %v8288
        %8460 = vmatprep.subr.bf16.mxu0 %v8287
        %8461 = vmatpush1.bf16.msra.mxu0 %v8286
        %8462 = vmatprep.subr.bf16.mxu0 %v8285
        %8463 = vmatpush1.bf16.msra.mxu0 %v8284
        %8464 = vmatprep.subr.bf16.mxu0 %v8283
        %8465 = vmatpush1.bf16.msra.mxu0 %v8282
        %8466 = vmatprep.subr.bf16.mxu0 %v8281
        %8467 = vmatpush1.bf16.msra.mxu0 %v8280
        %8468 = vmatprep.subr.bf16.mxu0 %v8311
        %8469 = vmatpush2.bf16.msra.mxu0 %v8310
        %8470 = vmatprep.subr.bf16.mxu0 %v8309
        %8471 = vmatpush2.bf16.msra.mxu0 %v8308
        %8472 = vmatprep.subr.bf16.mxu0 %v8307
        %8473 = vmatpush2.bf16.msra.mxu0 %v8306
        %8474 = vmatprep.subr.bf16.mxu0 %v8305
        %8475 = vmatpush2.bf16.msra.mxu0 %v8304
        %8476 = vmatprep.subr.bf16.mxu0 %v8303
        %8477 = vmatpush2.bf16.msra.mxu0 %v8302
        %8478 = vmatprep.subr.bf16.mxu0 %v8301
        %8479 = vmatpush2.bf16.msra.mxu0 %v8300
        %8480 = vmatprep.subr.bf16.mxu0 %v8299
        %8481 = vmatpush2.bf16.msra.mxu0 %v8298
        %8482 = vmatprep.subr.bf16.mxu0 %v8297
        %8483 = vmatpush2.bf16.msra.mxu0 %v8296
        %8484 = vmatprep.mubr.bf16.mxu0 %v8025
        %8485 = vmatmul.mubr.bf16.gmra.mxu0 %v8024
        %v8486 = vpop.f32.mrf.mxu0
        %v8487 = vadd.f32 %v8434, %v8486
        %v8488 = vpop.f32.mrf.mxu0
        %v8489 = vadd.f32 %v8436, %v8488
        %v8490 = vpop.f32.mrf.mxu0
        %v8491 = vadd.f32 %v8438, %v8490
        %v8492 = vpop.f32.mrf.mxu0
        %v8493 = vadd.f32 %v8440, %v8492
        %8494 = vmatprep.mubr.bf16.mxu0 %v8030
        %8495 = vmatmul.mubr.bf16.gmra.mxu0 %v8029
        %v8496 = vpop.f32.mrf.mxu0
        %v8497 = vadd.f32 %v8444, %v8496
        %v8498 = vpop.f32.mrf.mxu0
        %v8499 = vadd.f32 %v8446, %v8498
        %v8500 = vpop.f32.mrf.mxu0
        %v8501 = vadd.f32 %v8448, %v8500
        %v8502 = vpop.f32.mrf.mxu0
        %v8503 = vadd.f32 %v8450, %v8502
        %8504 = vdwg.mxu0
        %8505 = vmatprep.subr.bf16.mxu0 0
        %8506 = vmatpush1.bf16.msra.mxu0 0
        %8507 = vmatprep.subr.bf16.mxu0 0
        %8508 = vmatpush1.bf16.msra.mxu0 0
        %8509 = vmatprep.subr.bf16.mxu0 0
        %8510 = vmatpush1.bf16.msra.mxu0 0
        %8511 = vmatprep.subr.bf16.mxu0 0
        %8512 = vmatpush1.bf16.msra.mxu0 0
        %8513 = vmatprep.subr.bf16.mxu0 %v8319
        %8514 = vmatpush1.bf16.msra.mxu0 %v8318
        %8515 = vmatprep.subr.bf16.mxu0 %v8317
        %8516 = vmatpush1.bf16.msra.mxu0 %v8316
        %8517 = vmatprep.subr.bf16.mxu0 %v8315
        %8518 = vmatpush1.bf16.msra.mxu0 %v8314
        %8519 = vmatprep.subr.bf16.mxu0 %v8313
        %8520 = vmatpush1.bf16.msra.mxu0 %v8312
        %8521 = vmatprep.subr.bf16.mxu0 0
        %8522 = vmatpush2.bf16.msra.mxu0 0
        %8523 = vmatprep.subr.bf16.mxu0 0
        %8524 = vmatpush2.bf16.msra.mxu0 0
        %8525 = vmatprep.subr.bf16.mxu0 0
        %8526 = vmatpush2.bf16.msra.mxu0 0
        %8527 = vmatprep.subr.bf16.mxu0 0
        %8528 = vmatpush2.bf16.msra.mxu0 0
        %8529 = vmatprep.subr.bf16.mxu0 0
        %8530 = vmatpush2.bf16.msra.mxu0 0
        %8531 = vmatprep.subr.bf16.mxu0 0
        %8532 = vmatpush2.bf16.msra.mxu0 0
        %8533 = vmatprep.subr.bf16.mxu0 0
        %8534 = vmatpush2.bf16.msra.mxu0 0
        %8535 = vmatprep.subr.bf16.mxu0 0
        %8536 = vmatpush2.bf16.msra.mxu0 0
        %8537 = vmatprep.mubr.bf16.mxu0 0
        %8538 = vmatmul.mubr.bf16.gmra.mxu0 %v8394
        %v8539 = vpop.f32.mrf.mxu0
        %v8540 = vadd.f32 %v8487, %v8539
        %v8541 = vpop.f32.mrf.mxu0
        %v8542 = vadd.f32 %v8489, %v8541
        %v8543 = vpop.f32.mrf.mxu0
        %v8544 = vadd.f32 %v8491, %v8543
        %v8545 = vpop.f32.mrf.mxu0
        %v8546 = vadd.f32 %v8493, %v8545
        %8547 = vmatprep.mubr.bf16.mxu0 0
        %8548 = vmatmul.mubr.bf16.gmra.mxu0 %v8397
        %v8549 = vpop.f32.mrf.mxu0
        %v8550 = vadd.f32 %v8497, %v8549
        %v8551 = vpop.f32.mrf.mxu0
        %v8552 = vadd.f32 %v8499, %v8551
        %v8553 = vpop.f32.mrf.mxu0
        %v8554 = vadd.f32 %v8501, %v8553
        %v8555 = vpop.f32.mrf.mxu0
        %v8556 = vadd.f32 %v8503, %v8555
        %8557 = vdwg.mxu0
        %v8558 = vld [vmem:[%s15] sm:$0xf]
        %v8559 = vld [vmem:[%s15 + $0x4] sm:$0xf]
        %v8560 = vld [vmem:[%s15 + $0x8] sm:$0xf]
        %v8561 = vld [vmem:[%s15 + $0xc] sm:$0xf]
        %v8562 = vpack.c.bf16 %v8544, %v8540
        %v8563 = vpack.c.bf16 %v8546, %v8542
        %v8564 = vpack.c.bf16 %v8554, %v8550
        %v8565 = vpack.c.bf16 %v8556, %v8552
        %v8566 = vld [vmem:[%s17] sm:$0xff]
        %v8567 = vld [vmem:[%s17 + $0x8] sm:$0xff]
        %v8568 = vld [vmem:[%s17 + $0x10] sm:$0xff]
        %v8569 = vld [vmem:[%s17 + $0x18] sm:$0xff]
        %8571 = vset.pattern.permute.xlu0 0
        %8572 = vperm.xlu0 %8571, %v8566
        %v8573 = vpop.permute.xlu0 %8572
        %8576 = vset.pattern.permute.xlu0 0
        %8577 = vperm.xlu0 %8576, %v8567
        %v8578 = vpop.permute.xlu0 %8577
        %8581 = vset.pattern.permute.xlu0 0
        %8582 = vperm.xlu0 %8581, %v8568
        %v8583 = vpop.permute.xlu0 %8582
        %8586 = vset.pattern.permute.xlu0 0
        %8587 = vperm.xlu0 %8586, %v8569
        %v8588 = vpop.permute.xlu0 %8587
        %v8594 = vunpack.c.l.b16 %v8558
        %v8595 = vunpack.c.l.b16 %v8559
        %v8596 = vunpack.c.l.b16 %v8560
        %v8597 = vunpack.c.l.b16 %v8561
        %v8598 = vpack.c.b16 %v8595, %v8594
        %v8599 = vpack.c.b16 %v8597, %v8596
        %vm8600 = vcmask 261120
        %v8602 = vsel %vm8600, %v8598, 0
        %v8605 = vsel %vm8600, %v8599, 0
        %8607 = vmatprep.subr.bf16.mxu0 0
        %8608 = vmatpush1.bf16.msra.mxu0 0
        %8609 = vmatprep.subr.bf16.mxu0 0
        %8610 = vmatpush1.bf16.msra.mxu0 0
        %8611 = vmatprep.subr.bf16.mxu0 0
        %8612 = vmatpush1.bf16.msra.mxu0 0
        %8613 = vmatprep.subr.bf16.mxu0 0
        %8614 = vmatpush1.bf16.msra.mxu0 0
        %8615 = vmatprep.subr.bf16.mxu0 0
        %8616 = vmatpush1.bf16.msra.mxu0 0
        %8617 = vmatprep.subr.bf16.mxu0 0
        %8618 = vmatpush1.bf16.msra.mxu0 0
        %8619 = vmatprep.subr.bf16.mxu0 %v8565
        %8620 = vmatpush1.bf16.msra.mxu0 %v8564
        %8621 = vmatprep.subr.bf16.mxu0 %v8563
        %8622 = vmatpush1.bf16.msra.mxu0 %v8562
        %8623 = vmatprep.subr.bf16.mxu0 0
        %8624 = vmatpush2.bf16.msra.mxu0 0
        %8625 = vmatprep.subr.bf16.mxu0 0
        %8626 = vmatpush2.bf16.msra.mxu0 0
        %8627 = vmatprep.subr.bf16.mxu0 0
        %8628 = vmatpush2.bf16.msra.mxu0 0
        %8629 = vmatprep.subr.bf16.mxu0 0
        %8630 = vmatpush2.bf16.msra.mxu0 0
        %8631 = vmatprep.subr.bf16.mxu0 0
        %8632 = vmatpush2.bf16.msra.mxu0 0
        %8633 = vmatprep.subr.bf16.mxu0 0
        %8634 = vmatpush2.bf16.msra.mxu0 0
        %8635 = vmatprep.subr.bf16.mxu0 0
        %8636 = vmatpush2.bf16.msra.mxu0 0
        %8637 = vmatprep.subr.bf16.mxu0 0
        %8638 = vmatpush2.bf16.msra.mxu0 0
        %8639 = vmatprep.mubr.bf16.mxu0 0
        %8640 = vmatmul.mubr.bf16.gmra.mxu0 %v8602
        %v8641 = vpop.f32.mrf.mxu0
        %v8642 = vadd.f32 %v8573, %v8641
        %v8643 = vpop.f32.mrf.mxu0
        %v8644 = vadd.f32 %v8573, %v8643
        %v8645 = vpop.f32.mrf.mxu0
        %v8646 = vadd.f32 %v8578, %v8645
        %v8647 = vpop.f32.mrf.mxu0
        %v8648 = vadd.f32 %v8578, %v8647
        %8649 = vmatprep.mubr.bf16.mxu0 0
        %8650 = vmatmul.mubr.bf16.gmra.mxu0 %v8605
        %v8651 = vpop.f32.mrf.mxu0
        %v8652 = vadd.f32 %v8583, %v8651
        %v8653 = vpop.f32.mrf.mxu0
        %v8654 = vadd.f32 %v8583, %v8653
        %v8655 = vpop.f32.mrf.mxu0
        %v8656 = vadd.f32 %v8588, %v8655
        %v8657 = vpop.f32.mrf.mxu0
        %v8658 = vadd.f32 %v8588, %v8657
        %8659 = vdwg.mxu0
        %v8660 = vmax.f32 %v8642, 0.0
        %v8661 = vmax.f32 %v8644, 0.0
        %v8662 = vmax.f32 %v8646, 0.0
        %v8663 = vmax.f32 %v8648, 0.0
        %v8664 = vmax.f32 %v8652, 0.0
        %v8665 = vmax.f32 %v8654, 0.0
        %v8666 = vmax.f32 %v8656, 0.0
        %v8667 = vmax.f32 %v8658, 0.0
        %v8668 = vld [vmem:[#allocation6] sm:$0xf]
        %v8669 = vld [vmem:[#allocation6 + $0x4] sm:$0xf]
        %v8670 = vld [vmem:[#allocation6 + $0x8] sm:$0xf]
        %v8671 = vld [vmem:[#allocation6 + $0xc] sm:$0xf]
        %v8672 = vld [vmem:[#allocation6 + $0x10] sm:$0xf]
        %v8673 = vld [vmem:[#allocation6 + $0x14] sm:$0xf]
        %v8674 = vld [vmem:[#allocation6 + $0x18] sm:$0xf]
        %v8675 = vld [vmem:[#allocation6 + $0x1c] sm:$0xf]
        %v8676 = vld [vmem:[#allocation6 + $0x20] sm:$0xf]
        %v8677 = vld [vmem:[#allocation6 + $0x24] sm:$0xf]
        %v8678 = vld [vmem:[#allocation6 + $0x28] sm:$0xf]
        %v8679 = vld [vmem:[#allocation6 + $0x2c] sm:$0xf]
        %v8680 = vld [vmem:[#allocation6 + $0x30] sm:$0xf]
        %v8681 = vld [vmem:[#allocation6 + $0x34] sm:$0xf]
        %v8682 = vld [vmem:[#allocation6 + $0x38] sm:$0xf]
        %v8683 = vld [vmem:[#allocation6 + $0x3c] sm:$0xf]
        %v8684 = vld [vmem:[#allocation6 + $0x40] sm:$0xf]
        %v8685 = vld [vmem:[#allocation6 + $0x44] sm:$0xf]
        %v8686 = vpack.c.bf16 %v8662, %v8660
        %v8687 = vpack.c.bf16 %v8663, %v8661
        %v8688 = vpack.c.bf16 %v8666, %v8664
        %v8689 = vpack.c.bf16 %v8667, %v8665
        %v8708 = vunpack.c.l.b16 %v8668
        %v8709 = vunpack.c.l.b16 %v8669
        %v8710 = vunpack.c.l.b16 %v8670
        %v8711 = vunpack.c.l.b16 %v8671
        %v8712 = vunpack.c.l.b16 %v8672
        %v8713 = vunpack.c.l.b16 %v8673
        %v8714 = vunpack.c.l.b16 %v8674
        %v8715 = vunpack.c.l.b16 %v8675
        %v8716 = vunpack.c.l.b16 %v8676
        %v8717 = vunpack.c.l.b16 %v8677
        %v8718 = vunpack.c.l.b16 %v8678
        %v8719 = vunpack.c.l.b16 %v8679
        %v8720 = vunpack.c.l.b16 %v8680
        %v8721 = vunpack.c.l.b16 %v8681
        %v8722 = vunpack.c.l.b16 %v8682
        %v8723 = vunpack.c.l.b16 %v8683
        %v8724 = vunpack.c.l.b16 %v8684
        %v8725 = vunpack.c.l.b16 %v8685
        %v8726 = vpack.c.b16 %v8709, %v8708
        %v8727 = vpack.c.b16 %v8711, %v8710
        %v8728 = vpack.c.b16 %v8713, %v8712
        %v8729 = vpack.c.b16 %v8715, %v8714
        %v8730 = vpack.c.b16 %v8717, %v8716
        %v8731 = vpack.c.b16 %v8719, %v8718
        %v8732 = vpack.c.b16 %v8721, %v8720
        %v8733 = vpack.c.b16 %v8723, %v8722
        %v8734 = vpack.c.b16 %v8725, %v8724
        %v8745 = vsel %vm7768, %v8687, 0
        %v8748 = vsel %vm7768, %v8689, 0
        %8750 = vmatprep.subr.bf16.mxu0 0
        %8751 = vmatpush1.bf16.msra.mxu0 %v8733
        %8752 = vmatprep.subr.bf16.mxu0 0
        %8753 = vmatpush1.bf16.msra.mxu0 %v8732
        %8754 = vmatprep.subr.bf16.mxu0 0
        %8755 = vmatpush1.bf16.msra.mxu0 %v8731
        %8756 = vmatprep.subr.bf16.mxu0 0
        %8757 = vmatpush1.bf16.msra.mxu0 %v8730
        %8758 = vmatprep.subr.bf16.mxu0 0
        %8759 = vmatpush1.bf16.msra.mxu0 %v8729
        %8760 = vmatprep.subr.bf16.mxu0 0
        %8761 = vmatpush1.bf16.msra.mxu0 %v8728
        %8762 = vmatprep.subr.bf16.mxu0 0
        %8763 = vmatpush1.bf16.msra.mxu0 %v8727
        %8764 = vmatprep.subr.bf16.mxu0 0
        %8765 = vmatpush1.bf16.msra.mxu0 %v8726
        %8766 = vmatprep.subr.bf16.mxu0 0
        %8767 = vmatpush2.bf16.msra.mxu0 0
        %8768 = vmatprep.subr.bf16.mxu0 0
        %8769 = vmatpush2.bf16.msra.mxu0 0
        %8770 = vmatprep.subr.bf16.mxu0 0
        %8771 = vmatpush2.bf16.msra.mxu0 0
        %8772 = vmatprep.subr.bf16.mxu0 0
        %8773 = vmatpush2.bf16.msra.mxu0 0
        %8774 = vmatprep.subr.bf16.mxu0 0
        %8775 = vmatpush2.bf16.msra.mxu0 0
        %8776 = vmatprep.subr.bf16.mxu0 0
        %8777 = vmatpush2.bf16.msra.mxu0 0
        %8778 = vmatprep.subr.bf16.mxu0 0
        %8779 = vmatpush2.bf16.msra.mxu0 0
        %8780 = vmatprep.subr.bf16.mxu0 0
        %8781 = vmatpush2.bf16.msra.mxu0 %v8734
        %8782 = vmatprep.mubr.bf16.mxu0 %v8745
        %8783 = vmatmul.mubr.bf16.gmra.mxu0 %v8686
        %v8784 = vpop.f32.mrf.mxu0
        %v8785 = vadd.f32 0.0, %v8784
        %v8786 = vpop.f32.mrf.mxu0
        %v8787 = vpop.f32.mrf.mxu0
        %v8788 = vadd.f32 0.0, %v8787
        %v8789 = vpop.f32.mrf.mxu0
        %8790 = vmatprep.mubr.bf16.mxu0 %v8748
        %8791 = vmatmul.mubr.bf16.gmra.mxu0 %v8688
        %v8792 = vpop.f32.mrf.mxu0
        %v8793 = vadd.f32 0.0, %v8792
        %v8794 = vpop.f32.mrf.mxu0
        %v8795 = vpop.f32.mrf.mxu0
        %v8796 = vadd.f32 0.0, %v8795
        %v8797 = vpop.f32.mrf.mxu0
        %8798 = vdwg.mxu0
        %vm8799 = vcmask 293888
        %v8800 = vsel %vm8799, %v8785, 0.0
        %8801 = vadd.xlane.f32.xlu0 %v8800
        %v8802 = vpop.xlane.xlu0 %8801
        %v8803 = vsel %vm8799, %v8788, 0.0
        %8804 = vadd.xlane.f32.xlu0 %v8803
        %v8805 = vpop.xlane.xlu0 %8804
        %v8806 = vsel %vm8799, %v8793, 0.0
        %8807 = vadd.xlane.f32.xlu0 %v8806
        %v8808 = vpop.xlane.xlu0 %8807
        %v8809 = vsel %vm8799, %v8796, 0.0
        %8810 = vadd.xlane.f32.xlu0 %v8809
        %v8811 = vpop.xlane.xlu0 %8810
        %v8812 = vrcp.pop 36.0
        %v8813 = vmul.f32 %v8802, %v8812
        %v8814 = vmul.f32 %v8805, %v8812
        %v8815 = vmul.f32 %v8808, %v8812
        %v8816 = vmul.f32 %v8811, %v8812
        %v8817 = vld [vmem:[%s21] sm:$0xf]
        %v8818 = vpack.c.bf16 %v8814, %v8813
        %v8819 = vpack.c.bf16 %v8816, %v8815
        %v8820 = vld [vmem:[%s23] sm:$0xff]
        %8822 = vset.pattern.permute.xlu0 0
        %8823 = vperm.xlu0 %8822, %v8820
        %v8824 = vpop.permute.xlu0 %8823
        %v8827 = vsel %vm8600, %v8817, 0
        %8829 = vmatprep.subr.bf16.mxu0 0
        %8830 = vmatpush1.bf16.msra.mxu0 0
        %8831 = vmatprep.subr.bf16.mxu0 0
        %8832 = vmatpush1.bf16.msra.mxu0 0
        %8833 = vmatprep.subr.bf16.mxu0 0
        %8834 = vmatpush1.bf16.msra.mxu0 0
        %8835 = vmatprep.subr.bf16.mxu0 0
        %8836 = vmatpush1.bf16.msra.mxu0 0
        %8837 = vmatprep.subr.bf16.mxu0 0
        %8838 = vmatpush1.bf16.msra.mxu0 0
        %8839 = vmatprep.subr.bf16.mxu0 0
        %8840 = vmatpush1.bf16.msra.mxu0 0
        %8841 = vmatprep.subr.bf16.mxu0 0
        %8842 = vmatpush1.bf16.msra.mxu0 %v8819
        %8843 = vmatprep.subr.bf16.mxu0 0
        %8844 = vmatpush1.bf16.msra.mxu0 %v8818
        %8845 = vmatprep.subr.bf16.mxu0 0
        %8846 = vmatpush2.bf16.msra.mxu0 0
        %8847 = vmatprep.subr.bf16.mxu0 0
        %8848 = vmatpush2.bf16.msra.mxu0 0
        %8849 = vmatprep.subr.bf16.mxu0 0
        %8850 = vmatpush2.bf16.msra.mxu0 0
        %8851 = vmatprep.subr.bf16.mxu0 0
        %8852 = vmatpush2.bf16.msra.mxu0 0
        %8853 = vmatprep.subr.bf16.mxu0 0
        %8854 = vmatpush2.bf16.msra.mxu0 0
        %8855 = vmatprep.subr.bf16.mxu0 0
        %8856 = vmatpush2.bf16.msra.mxu0 0
        %8857 = vmatprep.subr.bf16.mxu0 0
        %8858 = vmatpush2.bf16.msra.mxu0 0
        %8859 = vmatprep.subr.bf16.mxu0 0
        %8860 = vmatpush2.bf16.msra.mxu0 0
        %8861 = vmatprep.mubr.bf16.mxu0 0
        %8862 = vmatmul.mubr.bf16.gmra.mxu0 %v8827
        %v8863 = vpop.f32.mrf.mxu0
        %v8864 = vadd.f32 %v8824, %v8863
        %v8865 = vpop.f32.mrf.mxu0
        %v8866 = vpop.f32.mrf.mxu0
        %v8867 = vpop.f32.mrf.mxu0
        %8868 = vdwg.mxu0
        %v8869 = vmax.f32 %v8864, 0.0
        %v8870 = vld [vmem:[%s49] sm:$0xf]
        %v8871 = vld [vmem:[%s49 + $0x4] sm:$0xf]
        %v8872 = vpack.c.bf16 %v8788, %v8785
        %v8873 = vpack.c.bf16 %v8796, %v8793
        %v8874 = vld [vmem:[%s51] sm:$0xf]
        %v8875 = vld [vmem:[%s51 + $0x4] sm:$0xf]
        %v8876 = vpack.c.bf16 %v8869, %v8869
        %v8879 = vunpack.c.l.b16 %v8874
        %v8880 = vunpack.c.l.b16 %v8875
        %v8881 = vpack.c.b16 %v8880, %v8879
        %vm8882 = vcmask 64512
        %v8884 = vsel %vm8882, %v8881, 0
        %vm8886 = vcmask 1043456
        %v8888 = vsel %vm8886, %v8876, 0
        %8890 = vmatprep.subr.bf16.mxu0 0
        %8891 = vmatpush1.bf16.msra.mxu0 0
        %8892 = vmatprep.subr.bf16.mxu0 0
        %8893 = vmatpush1.bf16.msra.mxu0 0
        %8894 = vmatprep.subr.bf16.mxu0 0
        %8895 = vmatpush1.bf16.msra.mxu0 0
        %8896 = vmatprep.subr.bf16.mxu0 0
        %8897 = vmatpush1.bf16.msra.mxu0 0
        %8898 = vmatprep.subr.bf16.mxu0 0
        %8899 = vmatpush1.bf16.msra.mxu0 0
        %8900 = vmatprep.subr.bf16.mxu0 0
        %8901 = vmatpush1.bf16.msra.mxu0 0
        %8902 = vmatprep.subr.bf16.mxu0 0
        %8903 = vmatpush1.bf16.msra.mxu0 0
        %8904 = vmatprep.subr.bf16.mxu0 0
        %8905 = vmatpush1.bf16.msra.mxu0 %v8888
        %8906 = vmatprep.subr.bf16.mxu0 0
        %8907 = vmatpush2.bf16.msra.mxu0 0
        %8908 = vmatprep.subr.bf16.mxu0 0
        %8909 = vmatpush2.bf16.msra.mxu0 0
        %8910 = vmatprep.subr.bf16.mxu0 0
        %8911 = vmatpush2.bf16.msra.mxu0 0
        %8912 = vmatprep.subr.bf16.mxu0 0
        %8913 = vmatpush2.bf16.msra.mxu0 0
        %8914 = vmatprep.subr.bf16.mxu0 0
        %8915 = vmatpush2.bf16.msra.mxu0 0
        %8916 = vmatprep.subr.bf16.mxu0 0
        %8917 = vmatpush2.bf16.msra.mxu0 0
        %8918 = vmatprep.subr.bf16.mxu0 0
        %8919 = vmatpush2.bf16.msra.mxu0 0
        %8920 = vmatprep.subr.bf16.mxu0 0
        %8921 = vmatpush2.bf16.msra.mxu0 0
        %8922 = vmatprep.mubr.bf16.mxu0 0
        %8923 = vmatmul.mubr.bf16.gmra.mxu0 %v8884
        %v8924 = vpop.f32.mrf.mxu0
        %v8925 = vadd.f32 0.0, %v8924
        %v8926 = vpop.f32.mrf.mxu0
        %v8927 = vpop.f32.mrf.mxu0
        %v8928 = vadd.f32 0.0, %v8927
        %v8929 = vpop.f32.mrf.mxu0
        %8930 = vdwg.mxu0
        %v8933 = vunpack.c.l.b16 %v8870
        %v8934 = vunpack.c.l.b16 %v8871
        %v8935 = vpack.c.b16 %v8934, %v8933
        %v8937 = vsel %vm8600, %v8935, 0
        %8939 = vmatprep.subr.bf16.mxu0 0
        %8940 = vmatpush1.bf16.msra.mxu0 0
        %8941 = vmatprep.subr.bf16.mxu0 0
        %8942 = vmatpush1.bf16.msra.mxu0 0
        %8943 = vmatprep.subr.bf16.mxu0 0
        %8944 = vmatpush1.bf16.msra.mxu0 0
        %8945 = vmatprep.subr.bf16.mxu0 0
        %8946 = vmatpush1.bf16.msra.mxu0 0
        %8947 = vmatprep.subr.bf16.mxu0 0
        %8948 = vmatpush1.bf16.msra.mxu0 0
        %8949 = vmatprep.subr.bf16.mxu0 0
        %8950 = vmatpush1.bf16.msra.mxu0 0
        %8951 = vmatprep.subr.bf16.mxu0 0
        %8952 = vmatpush1.bf16.msra.mxu0 %v8873
        %8953 = vmatprep.subr.bf16.mxu0 0
        %8954 = vmatpush1.bf16.msra.mxu0 %v8872
        %8955 = vmatprep.subr.bf16.mxu0 0
        %8956 = vmatpush2.bf16.msra.mxu0 0
        %8957 = vmatprep.subr.bf16.mxu0 0
        %8958 = vmatpush2.bf16.msra.mxu0 0
        %8959 = vmatprep.subr.bf16.mxu0 0
        %8960 = vmatpush2.bf16.msra.mxu0 0
        %8961 = vmatprep.subr.bf16.mxu0 0
        %8962 = vmatpush2.bf16.msra.mxu0 0
        %8963 = vmatprep.subr.bf16.mxu0 0
        %8964 = vmatpush2.bf16.msra.mxu0 0
        %8965 = vmatprep.subr.bf16.mxu0 0
        %8966 = vmatpush2.bf16.msra.mxu0 0
        %8967 = vmatprep.subr.bf16.mxu0 0
        %8968 = vmatpush2.bf16.msra.mxu0 0
        %8969 = vmatprep.subr.bf16.mxu0 0
        %8970 = vmatpush2.bf16.msra.mxu0 0
        %8971 = vmatprep.mubr.bf16.mxu0 0
        %8972 = vmatmul.mubr.bf16.gmra.mxu0 %v8937
        %v8973 = vpop.f32.mrf.mxu0
        %v8974 = vadd.f32 %v8925, %v8973
        %v8975 = vpop.f32.mrf.mxu0
        %v8976 = vpop.f32.mrf.mxu0
        %v8977 = vadd.f32 %v8928, %v8976
        %v8978 = vpop.f32.mrf.mxu0
        %8979 = vdwg.mxu0
        %v8980 = vld [vmem:[#allocation7] sm:$0xf]
        %v8981 = vld [vmem:[#allocation7 + $0x4] sm:$0xf]
        %v8982 = vld [vmem:[#allocation7 + $0x8] sm:$0xf]
        %v8983 = vld [vmem:[#allocation7 + $0xc] sm:$0xf]
        %v8984 = vld [vmem:[#allocation7 + $0x10] sm:$0x3]
        %v8990 = vunpack.c.l.b16 %v8980
        %v8991 = vunpack.c.l.b16 %v8981
        %v8992 = vunpack.c.l.b16 %v8982
        %v8993 = vunpack.c.l.b16 %v8983
        %v8994 = vunpack.c.l.b16 %v8984
        %v8995 = vpack.c.b16 %v8991, %v8990
        %v8996 = vpack.c.b16 %v8993, %v8992
        %v8997 = vpack.c.b16 %v8994, %v8994
        %v9001 = vsel %vm8799, %v8872, 0
        %v9004 = vsel %vm8799, %v8873, 0
        %vm9006 = vcmask 1041408
        %v9008 = vsel %vm9006, %v8997, 0
        %9010 = vmatprep.subr.bf16.mxu0 0
        %9011 = vmatpush1.bf16.msra.mxu0 0
        %9012 = vmatprep.subr.bf16.mxu0 0
        %9013 = vmatpush1.bf16.msra.mxu0 0
        %9014 = vmatprep.subr.bf16.mxu0 0
        %9015 = vmatpush1.bf16.msra.mxu0 0
        %9016 = vmatprep.subr.bf16.mxu0 0
        %9017 = vmatpush1.bf16.msra.mxu0 0
        %9018 = vmatprep.subr.bf16.mxu0 0
        %9019 = vmatpush1.bf16.msra.mxu0 0
        %9020 = vmatprep.subr.bf16.mxu0 0
        %9021 = vmatpush1.bf16.msra.mxu0 %v9008
        %9022 = vmatprep.subr.bf16.mxu0 0
        %9023 = vmatpush1.bf16.msra.mxu0 %v8996
        %9024 = vmatprep.subr.bf16.mxu0 0
        %9025 = vmatpush1.bf16.msra.mxu0 %v8995
        %9026 = vmatprep.subr.bf16.mxu0 0
        %9027 = vmatpush2.bf16.msra.mxu0 0
        %9028 = vmatprep.subr.bf16.mxu0 0
        %9029 = vmatpush2.bf16.msra.mxu0 0
        %9030 = vmatprep.subr.bf16.mxu0 0
        %9031 = vmatpush2.bf16.msra.mxu0 0
        %9032 = vmatprep.subr.bf16.mxu0 0
        %9033 = vmatpush2.bf16.msra.mxu0 0
        %9034 = vmatprep.subr.bf16.mxu0 0
        %9035 = vmatpush2.bf16.msra.mxu0 0
        %9036 = vmatprep.subr.bf16.mxu0 0
        %9037 = vmatpush2.bf16.msra.mxu0 0
        %9038 = vmatprep.subr.bf16.mxu0 0
        %9039 = vmatpush2.bf16.msra.mxu0 0
        %9040 = vmatprep.subr.bf16.mxu0 0
        %9041 = vmatpush2.bf16.msra.mxu0 0
        %9042 = vmatprep.mubr.bf16.mxu0 0
        %9043 = vmatmul.mubr.bf16.gmra.mxu0 %v9001
        %v9044 = vpop.f32.mrf.mxu0
        %v9045 = vadd.f32 0.0, %v9044
        %v9046 = vpop.f32.mrf.mxu0
        %v9047 = vpop.f32.mrf.mxu0
        %v9048 = vadd.f32 0.0, %v9047
        %v9049 = vpop.f32.mrf.mxu0
        %9050 = vmatprep.mubr.bf16.mxu0 0
        %9051 = vmatmul.mubr.bf16.gmra.mxu0 %v9004
        %v9052 = vpop.f32.mrf.mxu0
        %v9053 = vadd.f32 0.0, %v9052
        %v9054 = vpop.f32.mrf.mxu0
        %v9055 = vpop.f32.mrf.mxu0
        %v9056 = vadd.f32 0.0, %v9055
        %v9057 = vpop.f32.mrf.mxu0
        %9058 = vdwg.mxu0
        %v9059 = vld [vmem:[%s25] sm:$0xf]
        %v9060 = vpack.c.bf16 %v9048, %v9045
        %v9061 = vpack.c.bf16 %v9056, %v9053
        %v9062 = vld [vmem:[%s27] sm:$0xff]
        %9064 = vset.pattern.permute.xlu0 0
        %9065 = vperm.xlu0 %9064, %v9062
        %v9066 = vpop.permute.xlu0 %9065
        %v9069 = vsel %vm8600, %v9059, 0
        %9071 = vmatprep.subr.bf16.mxu0 0
        %9072 = vmatpush1.bf16.msra.mxu0 0
        %9073 = vmatprep.subr.bf16.mxu0 0
        %9074 = vmatpush1.bf16.msra.mxu0 0
        %9075 = vmatprep.subr.bf16.mxu0 0
        %9076 = vmatpush1.bf16.msra.mxu0 0
        %9077 = vmatprep.subr.bf16.mxu0 0
        %9078 = vmatpush1.bf16.msra.mxu0 0
        %9079 = vmatprep.subr.bf16.mxu0 0
        %9080 = vmatpush1.bf16.msra.mxu0 0
        %9081 = vmatprep.subr.bf16.mxu0 0
        %9082 = vmatpush1.bf16.msra.mxu0 0
        %9083 = vmatprep.subr.bf16.mxu0 0
        %9084 = vmatpush1.bf16.msra.mxu0 %v9061
        %9085 = vmatprep.subr.bf16.mxu0 0
        %9086 = vmatpush1.bf16.msra.mxu0 %v9060
        %9087 = vmatprep.subr.bf16.mxu0 0
        %9088 = vmatpush2.bf16.msra.mxu0 0
        %9089 = vmatprep.subr.bf16.mxu0 0
        %9090 = vmatpush2.bf16.msra.mxu0 0
        %9091 = vmatprep.subr.bf16.mxu0 0
        %9092 = vmatpush2.bf16.msra.mxu0 0
        %9093 = vmatprep.subr.bf16.mxu0 0
        %9094 = vmatpush2.bf16.msra.mxu0 0
        %9095 = vmatprep.subr.bf16.mxu0 0
        %9096 = vmatpush2.bf16.msra.mxu0 0
        %9097 = vmatprep.subr.bf16.mxu0 0
        %9098 = vmatpush2.bf16.msra.mxu0 0
        %9099 = vmatprep.subr.bf16.mxu0 0
        %9100 = vmatpush2.bf16.msra.mxu0 0
        %9101 = vmatprep.subr.bf16.mxu0 0
        %9102 = vmatpush2.bf16.msra.mxu0 0
        %9103 = vmatprep.mubr.bf16.mxu0 0
        %9104 = vmatmul.mubr.bf16.gmra.mxu0 %v9069
        %v9105 = vpop.f32.mrf.mxu0
        %v9106 = vadd.f32 %v9066, %v9105
        %v9107 = vpop.f32.mrf.mxu0
        %v9108 = vpop.f32.mrf.mxu0
        %v9109 = vpop.f32.mrf.mxu0
        %9110 = vdwg.mxu0
        %v9111 = vmax.f32 %v9106, 0.0
        %v9112 = vld [vmem:[#allocation9] sm:$0x3]
        %v9113 = vpack.c.bf16 %v9111, %v9111
        %vm9114 = vcmask 31744
        %v9116 = vsel %vm9114, %v9113, 0
        %v9119 = vsel %vm9006, %v9112, 0
        %9121 = vmatprep.subr.bf16.mxu0 0
        %9122 = vmatpush1.bf16.msra.mxu0 0
        %9123 = vmatprep.subr.bf16.mxu0 0
        %9124 = vmatpush1.bf16.msra.mxu0 0
        %9125 = vmatprep.subr.bf16.mxu0 0
        %9126 = vmatpush1.bf16.msra.mxu0 0
        %9127 = vmatprep.subr.bf16.mxu0 0
        %9128 = vmatpush1.bf16.msra.mxu0 0
        %9129 = vmatprep.subr.bf16.mxu0 0
        %9130 = vmatpush1.bf16.msra.mxu0 0
        %9131 = vmatprep.subr.bf16.mxu0 0
        %9132 = vmatpush1.bf16.msra.mxu0 0
        %9133 = vmatprep.subr.bf16.mxu0 0
        %9134 = vmatpush1.bf16.msra.mxu0 0
        %9135 = vmatprep.subr.bf16.mxu0 0
        %9136 = vmatpush1.bf16.msra.mxu0 %v9119
        %9137 = vmatprep.subr.bf16.mxu0 0
        %9138 = vmatpush2.bf16.msra.mxu0 0
        %9139 = vmatprep.subr.bf16.mxu0 0
        %9140 = vmatpush2.bf16.msra.mxu0 0
        %9141 = vmatprep.subr.bf16.mxu0 0
        %9142 = vmatpush2.bf16.msra.mxu0 0
        %9143 = vmatprep.subr.bf16.mxu0 0
        %9144 = vmatpush2.bf16.msra.mxu0 0
        %9145 = vmatprep.subr.bf16.mxu0 0
        %9146 = vmatpush2.bf16.msra.mxu0 0
        %9147 = vmatprep.subr.bf16.mxu0 0
        %9148 = vmatpush2.bf16.msra.mxu0 0
        %9149 = vmatprep.subr.bf16.mxu0 0
        %9150 = vmatpush2.bf16.msra.mxu0 0
        %9151 = vmatprep.subr.bf16.mxu0 0
        %9152 = vmatpush2.bf16.msra.mxu0 0
        %9153 = vmatprep.mubr.bf16.mxu0 0
        %9154 = vmatmul.mubr.bf16.gmra.mxu0 %v9116
        %v9155 = vpop.f32.mrf.mxu0
        %v9156 = vadd.f32 0.0, %v9155
        %v9157 = vpop.f32.mrf.mxu0
        %v9158 = vpop.f32.mrf.mxu0
        %v9159 = vpop.f32.mrf.mxu0
        %9160 = vdwg.mxu0
        %v9161 = vld [vmem:[%s53] sm:$0xf]
        %v9162 = vld [vmem:[%s53 + $0x4] sm:$0xf]
        %v9163 = vpack.c.bf16 %v9156, %v9156
        %v9166 = vunpack.c.l.b16 %v9161
        %v9167 = vunpack.c.l.b16 %v9162
        %v9168 = vpack.c.b16 %v9167, %v9166
        %v9170 = vsel %vm8882, %v9168, 0
        %v9173 = vsel %vm8886, %v9163, 0
        %9175 = vmatprep.subr.bf16.mxu0 0
        %9176 = vmatpush1.bf16.msra.mxu0 0
        %9177 = vmatprep.subr.bf16.mxu0 0
        %9178 = vmatpush1.bf16.msra.mxu0 0
        %9179 = vmatprep.subr.bf16.mxu0 0
        %9180 = vmatpush1.bf16.msra.mxu0 0
        %9181 = vmatprep.subr.bf16.mxu0 0
        %9182 = vmatpush1.bf16.msra.mxu0 0
        %9183 = vmatprep.subr.bf16.mxu0 0
        %9184 = vmatpush1.bf16.msra.mxu0 0
        %9185 = vmatprep.subr.bf16.mxu0 0
        %9186 = vmatpush1.bf16.msra.mxu0 0
        %9187 = vmatprep.subr.bf16.mxu0 0
        %9188 = vmatpush1.bf16.msra.mxu0 0
        %9189 = vmatprep.subr.bf16.mxu0 0
        %9190 = vmatpush1.bf16.msra.mxu0 %v9173
        %9191 = vmatprep.subr.bf16.mxu0 0
        %9192 = vmatpush2.bf16.msra.mxu0 0
        %9193 = vmatprep.subr.bf16.mxu0 0
        %9194 = vmatpush2.bf16.msra.mxu0 0
        %9195 = vmatprep.subr.bf16.mxu0 0
        %9196 = vmatpush2.bf16.msra.mxu0 0
        %9197 = vmatprep.subr.bf16.mxu0 0
        %9198 = vmatpush2.bf16.msra.mxu0 0
        %9199 = vmatprep.subr.bf16.mxu0 0
        %9200 = vmatpush2.bf16.msra.mxu0 0
        %9201 = vmatprep.subr.bf16.mxu0 0
        %9202 = vmatpush2.bf16.msra.mxu0 0
        %9203 = vmatprep.subr.bf16.mxu0 0
        %9204 = vmatpush2.bf16.msra.mxu0 0
        %9205 = vmatprep.subr.bf16.mxu0 0
        %9206 = vmatpush2.bf16.msra.mxu0 0
        %9207 = vmatprep.mubr.bf16.mxu0 0
        %9208 = vmatmul.mubr.bf16.gmra.mxu0 %v9170
        %v9209 = vpop.f32.mrf.mxu0
        %v9210 = vadd.f32 0.0, %v9209
        %v9211 = vpop.f32.mrf.mxu0
        %v9212 = vpop.f32.mrf.mxu0
        %v9213 = vadd.f32 0.0, %v9212
        %v9214 = vpop.f32.mrf.mxu0
        %9215 = vdwg.mxu0
        %v9216 = vadd.f32 %v8974, %v9210
        %v9217 = vadd.f32 %v8977, %v9213
        %v9218 = vld [vmem:[#allocation10] sm:$0xf]
        %v9219 = vld [vmem:[#allocation10 + $0x4] sm:$0xf]
        %v9220 = vld [vmem:[#allocation10 + $0x8] sm:$0xf]
        %v9221 = vld [vmem:[#allocation10 + $0xc] sm:$0xf]
        %v9222 = vld [vmem:[#allocation10 + $0x10] sm:$0x3]
        %v9228 = vunpack.c.l.b16 %v9218
        %v9229 = vunpack.c.l.b16 %v9219
        %v9230 = vunpack.c.l.b16 %v9220
        %v9231 = vunpack.c.l.b16 %v9221
        %v9232 = vunpack.c.l.b16 %v9222
        %v9233 = vpack.c.b16 %v9229, %v9228
        %v9234 = vpack.c.b16 %v9231, %v9230
        %v9235 = vpack.c.b16 %v9232, %v9232
        %v9239 = vsel %vm9006, %v9235, 0
        %9241 = vmatprep.subr.bf16.mxu0 0
        %9242 = vmatpush1.bf16.msra.mxu0 0
        %9243 = vmatprep.subr.bf16.mxu0 0
        %9244 = vmatpush1.bf16.msra.mxu0 0
        %9245 = vmatprep.subr.bf16.mxu0 0
        %9246 = vmatpush1.bf16.msra.mxu0 0
        %9247 = vmatprep.subr.bf16.mxu0 0
        %9248 = vmatpush1.bf16.msra.mxu0 0
        %9249 = vmatprep.subr.bf16.mxu0 0
        %9250 = vmatpush1.bf16.msra.mxu0 0
        %9251 = vmatprep.subr.bf16.mxu0 0
        %9252 = vmatpush1.bf16.msra.mxu0 %v9239
        %9253 = vmatprep.subr.bf16.mxu0 0
        %9254 = vmatpush1.bf16.msra.mxu0 %v9234
        %9255 = vmatprep.subr.bf16.mxu0 0
        %9256 = vmatpush1.bf16.msra.mxu0 %v9233
        %9257 = vmatprep.subr.bf16.mxu0 0
        %9258 = vmatpush2.bf16.msra.mxu0 0
        %9259 = vmatprep.subr.bf16.mxu0 0
        %9260 = vmatpush2.bf16.msra.mxu0 0
        %9261 = vmatprep.subr.bf16.mxu0 0
        %9262 = vmatpush2.bf16.msra.mxu0 0
        %9263 = vmatprep.subr.bf16.mxu0 0
        %9264 = vmatpush2.bf16.msra.mxu0 0
        %9265 = vmatprep.subr.bf16.mxu0 0
        %9266 = vmatpush2.bf16.msra.mxu0 0
        %9267 = vmatprep.subr.bf16.mxu0 0
        %9268 = vmatpush2.bf16.msra.mxu0 0
        %9269 = vmatprep.subr.bf16.mxu0 0
        %9270 = vmatpush2.bf16.msra.mxu0 0
        %9271 = vmatprep.subr.bf16.mxu0 0
        %9272 = vmatpush2.bf16.msra.mxu0 0
        %9273 = vmatprep.mubr.bf16.mxu0 0
        %9274 = vmatmul.mubr.bf16.gmra.mxu0 %v9001
        %v9275 = vpop.f32.mrf.mxu0
        %v9276 = vadd.f32 0.0, %v9275
        %v9277 = vpop.f32.mrf.mxu0
        %v9278 = vpop.f32.mrf.mxu0
        %v9279 = vadd.f32 0.0, %v9278
        %v9280 = vpop.f32.mrf.mxu0
        %9281 = vmatprep.mubr.bf16.mxu0 0
        %9282 = vmatmul.mubr.bf16.gmra.mxu0 %v9004
        %v9283 = vpop.f32.mrf.mxu0
        %v9284 = vadd.f32 0.0, %v9283
        %v9285 = vpop.f32.mrf.mxu0
        %v9286 = vpop.f32.mrf.mxu0
        %v9287 = vadd.f32 0.0, %v9286
        %v9288 = vpop.f32.mrf.mxu0
        %9289 = vdwg.mxu0
        %v9290 = vld [vmem:[%s33] sm:$0xf]
        %v9291 = vpack.c.bf16 %v9279, %v9276
        %v9292 = vpack.c.bf16 %v9287, %v9284
        %v9293 = vld [vmem:[%s35] sm:$0xff]
        %9295 = vset.pattern.permute.xlu0 0
        %9296 = vperm.xlu0 %9295, %v9293
        %v9297 = vpop.permute.xlu0 %9296
        %v9300 = vsel %vm8600, %v9290, 0
        %9302 = vmatprep.subr.bf16.mxu0 0
        %9303 = vmatpush1.bf16.msra.mxu0 0
        %9304 = vmatprep.subr.bf16.mxu0 0
        %9305 = vmatpush1.bf16.msra.mxu0 0
        %9306 = vmatprep.subr.bf16.mxu0 0
        %9307 = vmatpush1.bf16.msra.mxu0 0
        %9308 = vmatprep.subr.bf16.mxu0 0
        %9309 = vmatpush1.bf16.msra.mxu0 0
        %9310 = vmatprep.subr.bf16.mxu0 0
        %9311 = vmatpush1.bf16.msra.mxu0 0
        %9312 = vmatprep.subr.bf16.mxu0 0
        %9313 = vmatpush1.bf16.msra.mxu0 0
        %9314 = vmatprep.subr.bf16.mxu0 0
        %9315 = vmatpush1.bf16.msra.mxu0 %v9292
        %9316 = vmatprep.subr.bf16.mxu0 0
        %9317 = vmatpush1.bf16.msra.mxu0 %v9291
        %9318 = vmatprep.subr.bf16.mxu0 0
        %9319 = vmatpush2.bf16.msra.mxu0 0
        %9320 = vmatprep.subr.bf16.mxu0 0
        %9321 = vmatpush2.bf16.msra.mxu0 0
        %9322 = vmatprep.subr.bf16.mxu0 0
        %9323 = vmatpush2.bf16.msra.mxu0 0
        %9324 = vmatprep.subr.bf16.mxu0 0
        %9325 = vmatpush2.bf16.msra.mxu0 0
        %9326 = vmatprep.subr.bf16.mxu0 0
        %9327 = vmatpush2.bf16.msra.mxu0 0
        %9328 = vmatprep.subr.bf16.mxu0 0
        %9329 = vmatpush2.bf16.msra.mxu0 0
        %9330 = vmatprep.subr.bf16.mxu0 0
        %9331 = vmatpush2.bf16.msra.mxu0 0
        %9332 = vmatprep.subr.bf16.mxu0 0
        %9333 = vmatpush2.bf16.msra.mxu0 0
        %9334 = vmatprep.mubr.bf16.mxu0 0
        %9335 = vmatmul.mubr.bf16.gmra.mxu0 %v9300
        %v9336 = vpop.f32.mrf.mxu0
        %v9337 = vadd.f32 %v9297, %v9336
        %v9338 = vpop.f32.mrf.mxu0
        %v9339 = vpop.f32.mrf.mxu0
        %v9340 = vpop.f32.mrf.mxu0
        %9341 = vdwg.mxu0
        %v9342 = vmax.f32 %v9337, 0.0
        %v9343 = vld [vmem:[#allocation12] sm:$0xf]
        %v9344 = vld [vmem:[#allocation12 + $0x4] sm:$0x1]
        %v9345 = vpack.c.bf16 %v9342, %v9342
        %v9348 = vunpack.c.l.b16 %v9343
        %v9349 = vunpack.c.l.b16 %v9344
        %v9350 = vpack.c.b16 %v9349, %v9348
        %vm9351 = vcmask 72704
        %v9353 = vsel %vm9351, %v9345, 0
        %vm9355 = vcmask 1044480
        %v9356 = vsel %vm8886, 4294967295, 65535
        %v9357 = vsel %vm9355, %v9356, 0
        %v9359 = vand.u32 %v9350, %v9357
        %9361 = vmatprep.subr.bf16.mxu0 0
        %9362 = vmatpush1.bf16.msra.mxu0 0
        %9363 = vmatprep.subr.bf16.mxu0 0
        %9364 = vmatpush1.bf16.msra.mxu0 0
        %9365 = vmatprep.subr.bf16.mxu0 0
        %9366 = vmatpush1.bf16.msra.mxu0 0
        %9367 = vmatprep.subr.bf16.mxu0 0
        %9368 = vmatpush1.bf16.msra.mxu0 0
        %9369 = vmatprep.subr.bf16.mxu0 0
        %9370 = vmatpush1.bf16.msra.mxu0 0
        %9371 = vmatprep.subr.bf16.mxu0 0
        %9372 = vmatpush1.bf16.msra.mxu0 0
        %9373 = vmatprep.subr.bf16.mxu0 0
        %9374 = vmatpush1.bf16.msra.mxu0 0
        %9375 = vmatprep.subr.bf16.mxu0 0
        %9376 = vmatpush1.bf16.msra.mxu0 %v9359
        %9377 = vmatprep.subr.bf16.mxu0 0
        %9378 = vmatpush2.bf16.msra.mxu0 0
        %9379 = vmatprep.subr.bf16.mxu0 0
        %9380 = vmatpush2.bf16.msra.mxu0 0
        %9381 = vmatprep.subr.bf16.mxu0 0
        %9382 = vmatpush2.bf16.msra.mxu0 0
        %9383 = vmatprep.subr.bf16.mxu0 0
        %9384 = vmatpush2.bf16.msra.mxu0 0
        %9385 = vmatprep.subr.bf16.mxu0 0
        %9386 = vmatpush2.bf16.msra.mxu0 0
        %9387 = vmatprep.subr.bf16.mxu0 0
        %9388 = vmatpush2.bf16.msra.mxu0 0
        %9389 = vmatprep.subr.bf16.mxu0 0
        %9390 = vmatpush2.bf16.msra.mxu0 0
        %9391 = vmatprep.subr.bf16.mxu0 0
        %9392 = vmatpush2.bf16.msra.mxu0 0
        %9393 = vmatprep.mubr.bf16.mxu0 0
        %9394 = vmatmul.mubr.bf16.gmra.mxu0 %v9353
        %v9395 = vpop.f32.mrf.mxu0
        %v9396 = vadd.f32 0.0, %v9395
        %v9397 = vpop.f32.mrf.mxu0
        %v9398 = vpop.f32.mrf.mxu0
        %v9399 = vpop.f32.mrf.mxu0
        %9400 = vdwg.mxu0
        %v9401 = vld [vmem:[%s55] sm:$0xf]
        %v9402 = vld [vmem:[%s55 + $0x4] sm:$0xf]
        %v9403 = vpack.c.bf16 %v9396, %v9396
        %v9406 = vunpack.c.l.b16 %v9401
        %v9407 = vunpack.c.l.b16 %v9402
        %v9408 = vpack.c.b16 %v9407, %v9406
        %v9410 = vsel %vm8882, %v9408, 0
        %v9413 = vsel %vm8886, %v9403, 0
        %9415 = vmatprep.subr.bf16.mxu0 0
        %9416 = vmatpush1.bf16.msra.mxu0 0
        %9417 = vmatprep.subr.bf16.mxu0 0
        %9418 = vmatpush1.bf16.msra.mxu0 0
        %9419 = vmatprep.subr.bf16.mxu0 0
        %9420 = vmatpush1.bf16.msra.mxu0 0
        %9421 = vmatprep.subr.bf16.mxu0 0
        %9422 = vmatpush1.bf16.msra.mxu0 0
        %9423 = vmatprep.subr.bf16.mxu0 0
        %9424 = vmatpush1.bf16.msra.mxu0 0
        %9425 = vmatprep.subr.bf16.mxu0 0
        %9426 = vmatpush1.bf16.msra.mxu0 0
        %9427 = vmatprep.subr.bf16.mxu0 0
        %9428 = vmatpush1.bf16.msra.mxu0 0
        %9429 = vmatprep.subr.bf16.mxu0 0
        %9430 = vmatpush1.bf16.msra.mxu0 %v9413
        %9431 = vmatprep.subr.bf16.mxu0 0
        %9432 = vmatpush2.bf16.msra.mxu0 0
        %9433 = vmatprep.subr.bf16.mxu0 0
        %9434 = vmatpush2.bf16.msra.mxu0 0
        %9435 = vmatprep.subr.bf16.mxu0 0
        %9436 = vmatpush2.bf16.msra.mxu0 0
        %9437 = vmatprep.subr.bf16.mxu0 0
        %9438 = vmatpush2.bf16.msra.mxu0 0
        %9439 = vmatprep.subr.bf16.mxu0 0
        %9440 = vmatpush2.bf16.msra.mxu0 0
        %9441 = vmatprep.subr.bf16.mxu0 0
        %9442 = vmatpush2.bf16.msra.mxu0 0
        %9443 = vmatprep.subr.bf16.mxu0 0
        %9444 = vmatpush2.bf16.msra.mxu0 0
        %9445 = vmatprep.subr.bf16.mxu0 0
        %9446 = vmatpush2.bf16.msra.mxu0 0
        %9447 = vmatprep.mubr.bf16.mxu0 0
        %9448 = vmatmul.mubr.bf16.gmra.mxu0 %v9410
        %v9449 = vpop.f32.mrf.mxu0
        %v9450 = vadd.f32 0.0, %v9449
        %v9451 = vpop.f32.mrf.mxu0
        %v9452 = vpop.f32.mrf.mxu0
        %v9453 = vadd.f32 0.0, %v9452
        %v9454 = vpop.f32.mrf.mxu0
        %9455 = vdwg.mxu0
        %v9456 = vadd.f32 %v9216, %v9450
        %v9457 = vadd.f32 %v9217, %v9453
        %v9458 = vld [vmem:[#allocation13] sm:$0xf]
        %v9459 = vld [vmem:[#allocation13 + $0x4] sm:$0xf]
        %v9460 = vld [vmem:[#allocation13 + $0x8] sm:$0xf]
        %v9461 = vld [vmem:[#allocation13 + $0xc] sm:$0xf]
        %v9462 = vld [vmem:[#allocation13 + $0x10] sm:$0x3]
        %v9468 = vunpack.c.l.b16 %v9458
        %v9469 = vunpack.c.l.b16 %v9459
        %v9470 = vunpack.c.l.b16 %v9460
        %v9471 = vunpack.c.l.b16 %v9461
        %v9472 = vunpack.c.l.b16 %v9462
        %v9473 = vpack.c.b16 %v9469, %v9468
        %v9474 = vpack.c.b16 %v9471, %v9470
        %v9475 = vpack.c.b16 %v9472, %v9472
        %v9479 = vsel %vm9006, %v9475, 0
        %9481 = vmatprep.subr.bf16.mxu0 0
        %9482 = vmatpush1.bf16.msra.mxu0 0
        %9483 = vmatprep.subr.bf16.mxu0 0
        %9484 = vmatpush1.bf16.msra.mxu0 0
        %9485 = vmatprep.subr.bf16.mxu0 0
        %9486 = vmatpush1.bf16.msra.mxu0 0
        %9487 = vmatprep.subr.bf16.mxu0 0
        %9488 = vmatpush1.bf16.msra.mxu0 0
        %9489 = vmatprep.subr.bf16.mxu0 0
        %9490 = vmatpush1.bf16.msra.mxu0 0
        %9491 = vmatprep.subr.bf16.mxu0 0
        %9492 = vmatpush1.bf16.msra.mxu0 %v9479
        %9493 = vmatprep.subr.bf16.mxu0 0
        %9494 = vmatpush1.bf16.msra.mxu0 %v9474
        %9495 = vmatprep.subr.bf16.mxu0 0
        %9496 = vmatpush1.bf16.msra.mxu0 %v9473
        %9497 = vmatprep.subr.bf16.mxu0 0
        %9498 = vmatpush2.bf16.msra.mxu0 0
        %9499 = vmatprep.subr.bf16.mxu0 0
        %9500 = vmatpush2.bf16.msra.mxu0 0
        %9501 = vmatprep.subr.bf16.mxu0 0
        %9502 = vmatpush2.bf16.msra.mxu0 0
        %9503 = vmatprep.subr.bf16.mxu0 0
        %9504 = vmatpush2.bf16.msra.mxu0 0
        %9505 = vmatprep.subr.bf16.mxu0 0
        %9506 = vmatpush2.bf16.msra.mxu0 0
        %9507 = vmatprep.subr.bf16.mxu0 0
        %9508 = vmatpush2.bf16.msra.mxu0 0
        %9509 = vmatprep.subr.bf16.mxu0 0
        %9510 = vmatpush2.bf16.msra.mxu0 0
        %9511 = vmatprep.subr.bf16.mxu0 0
        %9512 = vmatpush2.bf16.msra.mxu0 0
        %9513 = vmatprep.mubr.bf16.mxu0 0
        %9514 = vmatmul.mubr.bf16.gmra.mxu0 %v9001
        %v9515 = vpop.f32.mrf.mxu0
        %v9516 = vadd.f32 0.0, %v9515
        %v9517 = vpop.f32.mrf.mxu0
        %v9518 = vpop.f32.mrf.mxu0
        %v9519 = vadd.f32 0.0, %v9518
        %v9520 = vpop.f32.mrf.mxu0
        %9521 = vmatprep.mubr.bf16.mxu0 0
        %9522 = vmatmul.mubr.bf16.gmra.mxu0 %v9004
        %v9523 = vpop.f32.mrf.mxu0
        %v9524 = vadd.f32 0.0, %v9523
        %v9525 = vpop.f32.mrf.mxu0
        %v9526 = vpop.f32.mrf.mxu0
        %v9527 = vadd.f32 0.0, %v9526
        %v9528 = vpop.f32.mrf.mxu0
        %9529 = vdwg.mxu0
        %v9530 = vld [vmem:[%s41] sm:$0xf]
        %v9531 = vpack.c.bf16 %v9519, %v9516
        %v9532 = vpack.c.bf16 %v9527, %v9524
        %v9533 = vld [vmem:[%s43] sm:$0xff]
        %9535 = vset.pattern.permute.xlu0 0
        %9536 = vperm.xlu0 %9535, %v9533
        %v9537 = vpop.permute.xlu0 %9536
        %v9540 = vsel %vm8600, %v9530, 0
        %9542 = vmatprep.subr.bf16.mxu0 0
        %9543 = vmatpush1.bf16.msra.mxu0 0
        %9544 = vmatprep.subr.bf16.mxu0 0
        %9545 = vmatpush1.bf16.msra.mxu0 0
        %9546 = vmatprep.subr.bf16.mxu0 0
        %9547 = vmatpush1.bf16.msra.mxu0 0
        %9548 = vmatprep.subr.bf16.mxu0 0
        %9549 = vmatpush1.bf16.msra.mxu0 0
        %9550 = vmatprep.subr.bf16.mxu0 0
        %9551 = vmatpush1.bf16.msra.mxu0 0
        %9552 = vmatprep.subr.bf16.mxu0 0
        %9553 = vmatpush1.bf16.msra.mxu0 0
        %9554 = vmatprep.subr.bf16.mxu0 0
        %9555 = vmatpush1.bf16.msra.mxu0 %v9532
        %9556 = vmatprep.subr.bf16.mxu0 0
        %9557 = vmatpush1.bf16.msra.mxu0 %v9531
        %9558 = vmatprep.subr.bf16.mxu0 0
        %9559 = vmatpush2.bf16.msra.mxu0 0
        %9560 = vmatprep.subr.bf16.mxu0 0
        %9561 = vmatpush2.bf16.msra.mxu0 0
        %9562 = vmatprep.subr.bf16.mxu0 0
        %9563 = vmatpush2.bf16.msra.mxu0 0
        %9564 = vmatprep.subr.bf16.mxu0 0
        %9565 = vmatpush2.bf16.msra.mxu0 0
        %9566 = vmatprep.subr.bf16.mxu0 0
        %9567 = vmatpush2.bf16.msra.mxu0 0
        %9568 = vmatprep.subr.bf16.mxu0 0
        %9569 = vmatpush2.bf16.msra.mxu0 0
        %9570 = vmatprep.subr.bf16.mxu0 0
        %9571 = vmatpush2.bf16.msra.mxu0 0
        %9572 = vmatprep.subr.bf16.mxu0 0
        %9573 = vmatpush2.bf16.msra.mxu0 0
        %9574 = vmatprep.mubr.bf16.mxu0 0
        %9575 = vmatmul.mubr.bf16.gmra.mxu0 %v9540
        %v9576 = vpop.f32.mrf.mxu0
        %v9577 = vadd.f32 %v9537, %v9576
        %v9578 = vpop.f32.mrf.mxu0
        %v9579 = vpop.f32.mrf.mxu0
        %v9580 = vpop.f32.mrf.mxu0
        %9581 = vdwg.mxu0
        %v9582 = vmax.f32 %v9577, 0.0
        %v9583 = vld [vmem:[#allocation15] sm:$0xf]
        %v9584 = vld [vmem:[#allocation15 + $0x4] sm:$0xf]
        %v9585 = vld [vmem:[#allocation15 + $0x8] sm:$0xf]
        %v9586 = vld [vmem:[#allocation15 + $0xc] sm:$0xf]
        %v9587 = vld [vmem:[#allocation15 + $0x10] sm:$0x3]
        %v9588 = vpack.c.bf16 %v9582, %v9582
        %v9594 = vunpack.c.l.b16 %v9583
        %v9595 = vunpack.c.l.b16 %v9584
        %v9596 = vunpack.c.l.b16 %v9585
        %v9597 = vunpack.c.l.b16 %v9586
        %v9598 = vunpack.c.l.b16 %v9587
        %v9599 = vpack.c.b16 %v9595, %v9594
        %v9600 = vpack.c.b16 %v9597, %v9596
        %v9601 = vpack.c.b16 %v9598, %v9598
        %v9605 = vsel %vm8799, %v9588, 0
        %v9608 = vsel %vm9006, %v9601, 0
        %9610 = vmatprep.subr.bf16.mxu0 0
        %9611 = vmatpush1.bf16.msra.mxu0 0
        %9612 = vmatprep.subr.bf16.mxu0 0
        %9613 = vmatpush1.bf16.msra.mxu0 0
        %9614 = vmatprep.subr.bf16.mxu0 0
        %9615 = vmatpush1.bf16.msra.mxu0 0
        %9616 = vmatprep.subr.bf16.mxu0 0
        %9617 = vmatpush1.bf16.msra.mxu0 0
        %9618 = vmatprep.subr.bf16.mxu0 0
        %9619 = vmatpush1.bf16.msra.mxu0 0
        %9620 = vmatprep.subr.bf16.mxu0 0
        %9621 = vmatpush1.bf16.msra.mxu0 %v9608
        %9622 = vmatprep.subr.bf16.mxu0 0
        %9623 = vmatpush1.bf16.msra.mxu0 %v9600
        %9624 = vmatprep.subr.bf16.mxu0 0
        %9625 = vmatpush1.bf16.msra.mxu0 %v9599
        %9626 = vmatprep.subr.bf16.mxu0 0
        %9627 = vmatpush2.bf16.msra.mxu0 0
        %9628 = vmatprep.subr.bf16.mxu0 0
        %9629 = vmatpush2.bf16.msra.mxu0 0
        %9630 = vmatprep.subr.bf16.mxu0 0
        %9631 = vmatpush2.bf16.msra.mxu0 0
        %9632 = vmatprep.subr.bf16.mxu0 0
        %9633 = vmatpush2.bf16.msra.mxu0 0
        %9634 = vmatprep.subr.bf16.mxu0 0
        %9635 = vmatpush2.bf16.msra.mxu0 0
        %9636 = vmatprep.subr.bf16.mxu0 0
        %9637 = vmatpush2.bf16.msra.mxu0 0
        %9638 = vmatprep.subr.bf16.mxu0 0
        %9639 = vmatpush2.bf16.msra.mxu0 0
        %9640 = vmatprep.subr.bf16.mxu0 0
        %9641 = vmatpush2.bf16.msra.mxu0 0
        %9642 = vmatprep.mubr.bf16.mxu0 0
        %9643 = vmatmul.mubr.bf16.gmra.mxu0 %v9605
        %v9644 = vpop.f32.mrf.mxu0
        %v9645 = vadd.f32 0.0, %v9644
        %v9646 = vpop.f32.mrf.mxu0
        %v9647 = vpop.f32.mrf.mxu0
        %v9648 = vpop.f32.mrf.mxu0
        %9649 = vdwg.mxu0
        %v9650 = vld [vmem:[%s57] sm:$0xf]
        %v9651 = vld [vmem:[%s57 + $0x4] sm:$0xf]
        %v9652 = vpack.c.bf16 %v9645, %v9645
        %v9655 = vunpack.c.l.b16 %v9650
        %v9656 = vunpack.c.l.b16 %v9651
        %v9657 = vpack.c.b16 %v9656, %v9655
        %v9659 = vsel %vm8882, %v9657, 0
        %v9662 = vsel %vm8886, %v9652, 0
        %9664 = vmatprep.subr.bf16.mxu0 0
        %9665 = vmatpush1.bf16.msra.mxu0 0
        %9666 = vmatprep.subr.bf16.mxu0 0
        %9667 = vmatpush1.bf16.msra.mxu0 0
        %9668 = vmatprep.subr.bf16.mxu0 0
        %9669 = vmatpush1.bf16.msra.mxu0 0
        %9670 = vmatprep.subr.bf16.mxu0 0
        %9671 = vmatpush1.bf16.msra.mxu0 0
        %9672 = vmatprep.subr.bf16.mxu0 0
        %9673 = vmatpush1.bf16.msra.mxu0 0
        %9674 = vmatprep.subr.bf16.mxu0 0
        %9675 = vmatpush1.bf16.msra.mxu0 0
        %9676 = vmatprep.subr.bf16.mxu0 0
        %9677 = vmatpush1.bf16.msra.mxu0 0
        %9678 = vmatprep.subr.bf16.mxu0 0
        %9679 = vmatpush1.bf16.msra.mxu0 %v9662
        %9680 = vmatprep.subr.bf16.mxu0 0
        %9681 = vmatpush2.bf16.msra.mxu0 0
        %9682 = vmatprep.subr.bf16.mxu0 0
        %9683 = vmatpush2.bf16.msra.mxu0 0
        %9684 = vmatprep.subr.bf16.mxu0 0
        %9685 = vmatpush2.bf16.msra.mxu0 0
        %9686 = vmatprep.subr.bf16.mxu0 0
        %9687 = vmatpush2.bf16.msra.mxu0 0
        %9688 = vmatprep.subr.bf16.mxu0 0
        %9689 = vmatpush2.bf16.msra.mxu0 0
        %9690 = vmatprep.subr.bf16.mxu0 0
        %9691 = vmatpush2.bf16.msra.mxu0 0
        %9692 = vmatprep.subr.bf16.mxu0 0
        %9693 = vmatpush2.bf16.msra.mxu0 0
        %9694 = vmatprep.subr.bf16.mxu0 0
        %9695 = vmatpush2.bf16.msra.mxu0 0
        %9696 = vmatprep.mubr.bf16.mxu0 0
        %9697 = vmatmul.mubr.bf16.gmra.mxu0 %v9659
        %v9698 = vpop.f32.mrf.mxu0
        %v9699 = vadd.f32 0.0, %v9698
        %v9700 = vpop.f32.mrf.mxu0
        %v9701 = vpop.f32.mrf.mxu0
        %v9702 = vadd.f32 0.0, %v9701
        %v9703 = vpop.f32.mrf.mxu0
        %9704 = vdwg.mxu0
        %v9705 = vadd.f32 %v9456, %v9699
        %v9706 = vadd.f32 %v9457, %v9702
        %v9707 = vld [vmem:[%s59] sm:$0xff]
        %v9708 = vld [vmem:[%s59 + $0x8] sm:$0xff]
        %9710 = vset.pattern.permute.xlu0 0
        %9711 = vperm.xlu0 %9710, %v9707
        %v9712 = vpop.permute.xlu0 %9711
        %9715 = vset.pattern.permute.xlu0 0
        %9716 = vperm.xlu0 %9715, %v9708
        %v9717 = vpop.permute.xlu0 %9716
        %v9719 = vadd.f32 %v9705, %v9712
        %v9720 = vadd.f32 %v9706, %v9717
        %v9721 = vmax.f32 %v9719, 0.0
        %v9722 = vmax.f32 %v9720, 0.0
        %v9723 = vld [vmem:[%s61] sm:$0x7]
        %v9724 = vpack.c.bf16 %v9722, %v9721
        %v9725 = vld [vmem:[%s63] sm:$0x1f]
        %9727 = vset.pattern.permute.xlu0 0
        %9728 = vperm.xlu0 %9727, %v9725
        %v9729 = vpop.permute.xlu0 %9728
        %v9732 = vsel %vm7768, %v9723, 0
        %9734 = vmatprep.subr.bf16.mxu0 0
        %9735 = vmatpush1.bf16.msra.mxu0 0
        %9736 = vmatprep.subr.bf16.mxu0 0
        %9737 = vmatpush1.bf16.msra.mxu0 0
        %9738 = vmatprep.subr.bf16.mxu0 0
        %9739 = vmatpush1.bf16.msra.mxu0 0
        %9740 = vmatprep.subr.bf16.mxu0 0
        %9741 = vmatpush1.bf16.msra.mxu0 0
        %9742 = vmatprep.subr.bf16.mxu0 0
        %9743 = vmatpush1.bf16.msra.mxu0 0
        %9744 = vmatprep.subr.bf16.mxu0 0
        %9745 = vmatpush1.bf16.msra.mxu0 0
        %9746 = vmatprep.subr.bf16.mxu0 0
        %9747 = vmatpush1.bf16.msra.mxu0 0
        %9748 = vmatprep.subr.bf16.mxu0 0
        %9749 = vmatpush1.bf16.msra.mxu0 %v9724
        %9750 = vmatprep.subr.bf16.mxu0 0
        %9751 = vmatpush2.bf16.msra.mxu0 0
        %9752 = vmatprep.subr.bf16.mxu0 0
        %9753 = vmatpush2.bf16.msra.mxu0 0
        %9754 = vmatprep.subr.bf16.mxu0 0
        %9755 = vmatpush2.bf16.msra.mxu0 0
        %9756 = vmatprep.subr.bf16.mxu0 0
        %9757 = vmatpush2.bf16.msra.mxu0 0
        %9758 = vmatprep.subr.bf16.mxu0 0
        %9759 = vmatpush2.bf16.msra.mxu0 0
        %9760 = vmatprep.subr.bf16.mxu0 0
        %9761 = vmatpush2.bf16.msra.mxu0 0
        %9762 = vmatprep.subr.bf16.mxu0 0
        %9763 = vmatpush2.bf16.msra.mxu0 0
        %9764 = vmatprep.subr.bf16.mxu0 0
        %9765 = vmatpush2.bf16.msra.mxu0 0
        %9766 = vmatprep.mubr.bf16.mxu0 0
        %9767 = vmatmul.mubr.bf16.gmra.mxu0 %v9732
        %v9768 = vpop.f32.mrf.mxu0
        %v9769 = vadd.f32 %v9729, %v9768
        %v9770 = vpop.f32.mrf.mxu0
        %v9771 = vpop.f32.mrf.mxu0
        %v9772 = vpop.f32.mrf.mxu0
        %9773 = vdwg.mxu0
        %v9774 = vld [vmem:[#allocation16] sm:$0xff]
        %v9775 = vld [vmem:[#allocation16 + $0x8] sm:$0xff]
        %v9776 = vld [vmem:[#allocation16 + $0x10] sm:$0xff]
        %v9777 = vld [vmem:[#allocation16 + $0x18] sm:$0xff]
        %v9778 = vld [vmem:[#allocation16 + $0x20] sm:$0xff]
        %v9779 = vld [vmem:[#allocation16 + $0x28] sm:$0xff]
        %v9780 = vld [vmem:[#allocation16 + $0x30] sm:$0xff]
        %v9781 = vld [vmem:[#allocation16 + $0x38] sm:$0xff]
        %v9782 = vld [vmem:[#allocation16 + $0x40] sm:$0xff]
        %v9783 = vld [vmem:[#allocation16 + $0x48] sm:$0xff]
        %v9784 = vld [vmem:[#allocation16 + $0x50] sm:$0xff]
        %v9785 = vld [vmem:[#allocation16 + $0x58] sm:$0xff]
        %v9786 = vld [vmem:[#allocation16 + $0x60] sm:$0xff]
        %v9787 = vld [vmem:[#allocation16 + $0x68] sm:$0xff]
        %v9788 = vld [vmem:[#allocation16 + $0x70] sm:$0xff]
        %v9789 = vld [vmem:[#allocation16 + $0x78] sm:$0xff]
        %v9790 = vld [vmem:[#allocation16 + $0x80] sm:$0xff]
        %v9791 = vld [vmem:[#allocation16 + $0x88] sm:$0xff]
        %v9792 = vld [vmem:[#allocation16 + $0x90] sm:$0xff]
        %v9793 = vld [vmem:[#allocation16 + $0x98] sm:$0xff]
        %v9794 = vld [vmem:[#allocation16 + $0xa0] sm:$0xff]
        %v9795 = vld [vmem:[#allocation16 + $0xa8] sm:$0xff]
        %v9796 = vld [vmem:[#allocation16 + $0xb0] sm:$0xff]
        %v9797 = vld [vmem:[#allocation16 + $0xb8] sm:$0xff]
        %v9798 = vld [vmem:[#allocation16 + $0xc0] sm:$0xff]
        %v9799 = vld [vmem:[#allocation16 + $0xc8] sm:$0xff]
        %v9800 = vld [vmem:[#allocation16 + $0xd0] sm:$0xff]
        %v9801 = vld [vmem:[#allocation16 + $0xd8] sm:$0xff]
        %v9802 = vld [vmem:[#allocation16 + $0xe0] sm:$0xff]
        %v9803 = vld [vmem:[#allocation16 + $0xe8] sm:$0xff]
        %v9804 = vld [vmem:[#allocation16 + $0xf0] sm:$0xff]
        %v9805 = vld [vmem:[#allocation16 + $0xf8] sm:$0xff]
        %v9806 = vld [vmem:[#allocation16 + $0x100] sm:$0xff]
        %v9807 = vld [vmem:[#allocation16 + $0x108] sm:$0xff]
        %v9808 = vld [vmem:[#allocation16 + $0x110] sm:$0xff]
        %v9809 = vld [vmem:[#allocation16 + $0x118] sm:$0xff]
        %v9810 = vld [vmem:[#allocation16 + $0x120] sm:$0x33]
        %v9811 = vld [vmem:[#allocation16 + $0x128] sm:$0x33]
        %v9812 = vld [vmem:[#allocation16 + $0x130] sm:$0x33]
        %v9813 = vld [vmem:[#allocation16 + $0x138] sm:$0x33]
        %v9814 = vld [vmem:[#allocation16 + $0x140] sm:$0x33]
        %v9815 = vld [vmem:[#allocation16 + $0x148] sm:$0x33]
        %v9816 = vld [vmem:[#allocation16 + $0x150] sm:$0x33]
        %v9817 = vld [vmem:[#allocation16 + $0x158] sm:$0x33]
        %v9818 = vld [vmem:[#allocation16 + $0x160] sm:$0x33]
        %v9819 = vpack.c.bf16 %v9769, %v9769
        %v9865 = vunpack.c.l.b16 %v9774
        %v9866 = vunpack.c.h.b16 %v9774
        %v9867 = vunpack.c.l.b16 %v9775
        %v9868 = vunpack.c.h.b16 %v9775
        %v9869 = vunpack.c.l.b16 %v9776
        %v9870 = vunpack.c.h.b16 %v9776
        %v9871 = vunpack.c.l.b16 %v9777
        %v9872 = vunpack.c.h.b16 %v9777
        %v9873 = vunpack.c.l.b16 %v9778
        %v9874 = vunpack.c.h.b16 %v9778
        %v9875 = vunpack.c.l.b16 %v9779
        %v9876 = vunpack.c.h.b16 %v9779
        %v9877 = vunpack.c.l.b16 %v9780
        %v9878 = vunpack.c.h.b16 %v9780
        %v9879 = vunpack.c.l.b16 %v9781
        %v9880 = vunpack.c.h.b16 %v9781
        %v9881 = vunpack.c.l.b16 %v9782
        %v9882 = vunpack.c.h.b16 %v9782
        %v9883 = vunpack.c.l.b16 %v9783
        %v9884 = vunpack.c.h.b16 %v9783
        %v9885 = vunpack.c.l.b16 %v9784
        %v9886 = vunpack.c.h.b16 %v9784
        %v9887 = vunpack.c.l.b16 %v9785
        %v9888 = vunpack.c.h.b16 %v9785
        %v9889 = vunpack.c.l.b16 %v9786
        %v9890 = vunpack.c.h.b16 %v9786
        %v9891 = vunpack.c.l.b16 %v9787
        %v9892 = vunpack.c.h.b16 %v9787
        %v9893 = vunpack.c.l.b16 %v9788
        %v9894 = vunpack.c.h.b16 %v9788
        %v9895 = vunpack.c.l.b16 %v9789
        %v9896 = vunpack.c.h.b16 %v9789
        %v9897 = vunpack.c.l.b16 %v9790
        %v9898 = vunpack.c.h.b16 %v9790
        %v9899 = vunpack.c.l.b16 %v9791
        %v9900 = vunpack.c.h.b16 %v9791
        %v9901 = vunpack.c.l.b16 %v9792
        %v9902 = vunpack.c.h.b16 %v9792
        %v9903 = vunpack.c.l.b16 %v9793
        %v9904 = vunpack.c.h.b16 %v9793
        %v9905 = vunpack.c.l.b16 %v9794
        %v9906 = vunpack.c.h.b16 %v9794
        %v9907 = vunpack.c.l.b16 %v9795
        %v9908 = vunpack.c.h.b16 %v9795
        %v9909 = vunpack.c.l.b16 %v9796
        %v9910 = vunpack.c.h.b16 %v9796
        %v9911 = vunpack.c.l.b16 %v9797
        %v9912 = vunpack.c.h.b16 %v9797
        %v9913 = vunpack.c.l.b16 %v9798
        %v9914 = vunpack.c.h.b16 %v9798
        %v9915 = vunpack.c.l.b16 %v9799
        %v9916 = vunpack.c.h.b16 %v9799
        %v9917 = vunpack.c.l.b16 %v9800
        %v9918 = vunpack.c.h.b16 %v9800
        %v9919 = vunpack.c.l.b16 %v9801
        %v9920 = vunpack.c.h.b16 %v9801
        %v9921 = vunpack.c.l.b16 %v9802
        %v9922 = vunpack.c.h.b16 %v9802
        %v9923 = vunpack.c.l.b16 %v9803
        %v9924 = vunpack.c.h.b16 %v9803
        %v9925 = vunpack.c.l.b16 %v9804
        %v9926 = vunpack.c.h.b16 %v9804
        %v9927 = vunpack.c.l.b16 %v9805
        %v9928 = vunpack.c.h.b16 %v9805
        %v9929 = vunpack.c.l.b16 %v9806
        %v9930 = vunpack.c.h.b16 %v9806
        %v9931 = vunpack.c.l.b16 %v9807
        %v9932 = vunpack.c.h.b16 %v9807
        %v9933 = vunpack.c.l.b16 %v9808
        %v9934 = vunpack.c.h.b16 %v9808
        %v9935 = vunpack.c.l.b16 %v9809
        %v9936 = vunpack.c.h.b16 %v9809
        %v9937 = vunpack.c.l.b16 %v9810
        %v9938 = vunpack.c.h.b16 %v9810
        %v9939 = vunpack.c.l.b16 %v9811
        %v9940 = vunpack.c.h.b16 %v9811
        %v9941 = vunpack.c.l.b16 %v9812
        %v9942 = vunpack.c.h.b16 %v9812
        %v9943 = vunpack.c.l.b16 %v9813
        %v9944 = vunpack.c.h.b16 %v9813
        %v9945 = vunpack.c.l.b16 %v9814
        %v9946 = vunpack.c.h.b16 %v9814
        %v9947 = vunpack.c.l.b16 %v9815
        %v9948 = vunpack.c.h.b16 %v9815
        %v9949 = vunpack.c.l.b16 %v9816
        %v9950 = vunpack.c.h.b16 %v9816
        %v9951 = vunpack.c.l.b16 %v9817
        %v9952 = vunpack.c.h.b16 %v9817
        %v9953 = vunpack.c.l.b16 %v9818
        %v9954 = vunpack.c.h.b16 %v9818
        %v9955 = vpack.c.b16 %v9883, %v9865
        %v9956 = vpack.c.b16 %v9884, %v9866
        %v9957 = vpack.c.b16 %v9885, %v9867
        %v9958 = vpack.c.b16 %v9886, %v9868
        %v9959 = vpack.c.b16 %v9887, %v9869
        %v9960 = vpack.c.b16 %v9888, %v9870
        %v9961 = vpack.c.b16 %v9889, %v9871
        %v9962 = vpack.c.b16 %v9890, %v9872
        %v9963 = vpack.c.b16 %v9891, %v9873
        %v9964 = vpack.c.b16 %v9892, %v9874
        %v9965 = vpack.c.b16 %v9893, %v9875
        %v9966 = vpack.c.b16 %v9894, %v9876
        %v9967 = vpack.c.b16 %v9895, %v9877
        %v9968 = vpack.c.b16 %v9896, %v9878
        %v9969 = vpack.c.b16 %v9897, %v9879
        %v9970 = vpack.c.b16 %v9898, %v9880
        %v9971 = vpack.c.b16 %v9899, %v9881
        %v9972 = vpack.c.b16 %v9900, %v9882
        %v9973 = vpack.c.b16 %v9919, %v9901
        %v9974 = vpack.c.b16 %v9920, %v9902
        %v9975 = vpack.c.b16 %v9921, %v9903
        %v9976 = vpack.c.b16 %v9922, %v9904
        %v9977 = vpack.c.b16 %v9923, %v9905
        %v9978 = vpack.c.b16 %v9924, %v9906
        %v9979 = vpack.c.b16 %v9925, %v9907
        %v9980 = vpack.c.b16 %v9926, %v9908
        %v9981 = vpack.c.b16 %v9927, %v9909
        %v9982 = vpack.c.b16 %v9928, %v9910
        %v9983 = vpack.c.b16 %v9929, %v9911
        %v9984 = vpack.c.b16 %v9930, %v9912
        %v9985 = vpack.c.b16 %v9931, %v9913
        %v9986 = vpack.c.b16 %v9932, %v9914
        %v9987 = vpack.c.b16 %v9933, %v9915
        %v9988 = vpack.c.b16 %v9934, %v9916
        %v9989 = vpack.c.b16 %v9935, %v9917
        %v9990 = vpack.c.b16 %v9936, %v9918
        %v9991 = vpack.c.b16 %v9937, %v9937
        %v9992 = vpack.c.b16 %v9938, %v9938
        %v9993 = vpack.c.b16 %v9939, %v9939
        %v9994 = vpack.c.b16 %v9940, %v9940
        %v9995 = vpack.c.b16 %v9941, %v9941
        %v9996 = vpack.c.b16 %v9942, %v9942
        %v9997 = vpack.c.b16 %v9943, %v9943
        %v9998 = vpack.c.b16 %v9944, %v9944
        %v9999 = vpack.c.b16 %v9945, %v9945
        %v10000 = vpack.c.b16 %v9946, %v9946
        %v10001 = vpack.c.b16 %v9947, %v9947
        %v10002 = vpack.c.b16 %v9948, %v9948
        %v10003 = vpack.c.b16 %v9949, %v9949
        %v10004 = vpack.c.b16 %v9950, %v9950
        %v10005 = vpack.c.b16 %v9951, %v9951
        %v10006 = vpack.c.b16 %v9952, %v9952
        %v10007 = vpack.c.b16 %v9953, %v9953
        %v10008 = vpack.c.b16 %v9954, %v9954
        %v10046 = vsel %vm8799, %v9819, 0
        %v10049 = vsel %vm9006, %v9991, 0
        %v10052 = vsel %vm9006, %v9992, 0
        %v10055 = vsel %vm9006, %v9993, 0
        %v10058 = vsel %vm9006, %v9994, 0
        %v10061 = vsel %vm9006, %v9995, 0
        %v10064 = vsel %vm9006, %v9996, 0
        %v10067 = vsel %vm9006, %v9997, 0
        %v10070 = vsel %vm9006, %v9998, 0
        %v10073 = vsel %vm9006, %v9999, 0
        %v10076 = vsel %vm9006, %v10000, 0
        %v10079 = vsel %vm9006, %v10001, 0
        %v10082 = vsel %vm9006, %v10002, 0
        %v10085 = vsel %vm9006, %v10003, 0
        %v10088 = vsel %vm9006, %v10004, 0
        %v10091 = vsel %vm9006, %v10005, 0
        %v10094 = vsel %vm9006, %v10006, 0
        %v10097 = vsel %vm9006, %v10007, 0
        %v10100 = vsel %vm9006, %v10008, 0
        %10102 = vmatprep.subr.bf16.mxu0 0
        %10103 = vmatpush1.bf16.msra.mxu0 0
        %10104 = vmatprep.subr.bf16.mxu0 0
        %10105 = vmatpush1.bf16.msra.mxu0 0
        %10106 = vmatprep.subr.bf16.mxu0 0
        %10107 = vmatpush1.bf16.msra.mxu0 0
        %10108 = vmatprep.subr.bf16.mxu0 0
        %10109 = vmatpush1.bf16.msra.mxu0 0
        %10110 = vmatprep.subr.bf16.mxu0 0
        %10111 = vmatpush1.bf16.msra.mxu0 0
        %10112 = vmatprep.subr.bf16.mxu0 %v10052
        %10113 = vmatpush1.bf16.msra.mxu0 %v10049
        %10114 = vmatprep.subr.bf16.mxu0 %v9974
        %10115 = vmatpush1.bf16.msra.mxu0 %v9973
        %10116 = vmatprep.subr.bf16.mxu0 %v9956
        %10117 = vmatpush1.bf16.msra.mxu0 %v9955
        %10118 = vmatprep.subr.bf16.mxu0 0
        %10119 = vmatpush2.bf16.msra.mxu0 0
        %10120 = vmatprep.subr.bf16.mxu0 0
        %10121 = vmatpush2.bf16.msra.mxu0 0
        %10122 = vmatprep.subr.bf16.mxu0 0
        %10123 = vmatpush2.bf16.msra.mxu0 0
        %10124 = vmatprep.subr.bf16.mxu0 0
        %10125 = vmatpush2.bf16.msra.mxu0 0
        %10126 = vmatprep.subr.bf16.mxu0 0
        %10127 = vmatpush2.bf16.msra.mxu0 0
        %10128 = vmatprep.subr.bf16.mxu0 0
        %10129 = vmatpush2.bf16.msra.mxu0 0
        %10130 = vmatprep.subr.bf16.mxu0 0
        %10131 = vmatpush2.bf16.msra.mxu0 0
        %10132 = vmatprep.subr.bf16.mxu0 0
        %10133 = vmatpush2.bf16.msra.mxu0 0
        %10134 = vmatprep.mubr.bf16.mxu0 0
        %10135 = vmatmul.mubr.bf16.gmra.mxu0 %v10046
        %v10136 = vpop.f32.mrf.mxu0
        %v10137 = vadd.f32 0.0, %v10136
        %v10138 = vpop.f32.mrf.mxu0
        %v10139 = vadd.f32 0.0, %v10138
        %v10140 = vpop.f32.mrf.mxu0
        %v10141 = vpop.f32.mrf.mxu0
        %10142 = vdwg.mxu0
        %10143 = vmatprep.subr.bf16.mxu0 0
        %10144 = vmatpush1.bf16.msra.mxu0 0
        %10145 = vmatprep.subr.bf16.mxu0 0
        %10146 = vmatpush1.bf16.msra.mxu0 0
        %10147 = vmatprep.subr.bf16.mxu0 0
        %10148 = vmatpush1.bf16.msra.mxu0 0
        %10149 = vmatprep.subr.bf16.mxu0 0
        %10150 = vmatpush1.bf16.msra.mxu0 0
        %10151 = vmatprep.subr.bf16.mxu0 0
        %10152 = vmatpush1.bf16.msra.mxu0 0
        %10153 = vmatprep.subr.bf16.mxu0 %v10058
        %10154 = vmatpush1.bf16.msra.mxu0 %v10055
        %10155 = vmatprep.subr.bf16.mxu0 %v9976
        %10156 = vmatpush1.bf16.msra.mxu0 %v9975
        %10157 = vmatprep.subr.bf16.mxu0 %v9958
        %10158 = vmatpush1.bf16.msra.mxu0 %v9957
        %10159 = vmatprep.subr.bf16.mxu0 0
        %10160 = vmatpush2.bf16.msra.mxu0 0
        %10161 = vmatprep.subr.bf16.mxu0 0
        %10162 = vmatpush2.bf16.msra.mxu0 0
        %10163 = vmatprep.subr.bf16.mxu0 0
        %10164 = vmatpush2.bf16.msra.mxu0 0
        %10165 = vmatprep.subr.bf16.mxu0 0
        %10166 = vmatpush2.bf16.msra.mxu0 0
        %10167 = vmatprep.subr.bf16.mxu0 0
        %10168 = vmatpush2.bf16.msra.mxu0 0
        %10169 = vmatprep.subr.bf16.mxu0 0
        %10170 = vmatpush2.bf16.msra.mxu0 0
        %10171 = vmatprep.subr.bf16.mxu0 0
        %10172 = vmatpush2.bf16.msra.mxu0 0
        %10173 = vmatprep.subr.bf16.mxu0 0
        %10174 = vmatpush2.bf16.msra.mxu0 0
        %10175 = vmatprep.mubr.bf16.mxu0 0
        %10176 = vmatmul.mubr.bf16.gmra.mxu0 %v10046
        %v10177 = vpop.f32.mrf.mxu0
        %v10178 = vadd.f32 0.0, %v10177
        %v10179 = vpop.f32.mrf.mxu0
        %v10180 = vadd.f32 0.0, %v10179
        %v10181 = vpop.f32.mrf.mxu0
        %v10182 = vpop.f32.mrf.mxu0
        %10183 = vdwg.mxu0
        %10184 = vmatprep.subr.bf16.mxu0 0
        %10185 = vmatpush1.bf16.msra.mxu0 0
        %10186 = vmatprep.subr.bf16.mxu0 0
        %10187 = vmatpush1.bf16.msra.mxu0 0
        %10188 = vmatprep.subr.bf16.mxu0 0
        %10189 = vmatpush1.bf16.msra.mxu0 0
        %10190 = vmatprep.subr.bf16.mxu0 0
        %10191 = vmatpush1.bf16.msra.mxu0 0
        %10192 = vmatprep.subr.bf16.mxu0 0
        %10193 = vmatpush1.bf16.msra.mxu0 0
        %10194 = vmatprep.subr.bf16.mxu0 %v10064
        %10195 = vmatpush1.bf16.msra.mxu0 %v10061
        %10196 = vmatprep.subr.bf16.mxu0 %v9978
        %10197 = vmatpush1.bf16.msra.mxu0 %v9977
        %10198 = vmatprep.subr.bf16.mxu0 %v9960
        %10199 = vmatpush1.bf16.msra.mxu0 %v9959
        %10200 = vmatprep.subr.bf16.mxu0 0
        %10201 = vmatpush2.bf16.msra.mxu0 0
        %10202 = vmatprep.subr.bf16.mxu0 0
        %10203 = vmatpush2.bf16.msra.mxu0 0
        %10204 = vmatprep.subr.bf16.mxu0 0
        %10205 = vmatpush2.bf16.msra.mxu0 0
        %10206 = vmatprep.subr.bf16.mxu0 0
        %10207 = vmatpush2.bf16.msra.mxu0 0
        %10208 = vmatprep.subr.bf16.mxu0 0
        %10209 = vmatpush2.bf16.msra.mxu0 0
        %10210 = vmatprep.subr.bf16.mxu0 0
        %10211 = vmatpush2.bf16.msra.mxu0 0
        %10212 = vmatprep.subr.bf16.mxu0 0
        %10213 = vmatpush2.bf16.msra.mxu0 0
        %10214 = vmatprep.subr.bf16.mxu0 0
        %10215 = vmatpush2.bf16.msra.mxu0 0
        %10216 = vmatprep.mubr.bf16.mxu0 0
        %10217 = vmatmul.mubr.bf16.gmra.mxu0 %v10046
        %v10218 = vpop.f32.mrf.mxu0
        %v10219 = vadd.f32 0.0, %v10218
        %v10220 = vpop.f32.mrf.mxu0
        %v10221 = vadd.f32 0.0, %v10220
        %v10222 = vpop.f32.mrf.mxu0
        %v10223 = vpop.f32.mrf.mxu0
        %10224 = vdwg.mxu0
        %10225 = vmatprep.subr.bf16.mxu0 0
        %10226 = vmatpush1.bf16.msra.mxu0 0
        %10227 = vmatprep.subr.bf16.mxu0 0
        %10228 = vmatpush1.bf16.msra.mxu0 0
        %10229 = vmatprep.subr.bf16.mxu0 0
        %10230 = vmatpush1.bf16.msra.mxu0 0
        %10231 = vmatprep.subr.bf16.mxu0 0
        %10232 = vmatpush1.bf16.msra.mxu0 0
        %10233 = vmatprep.subr.bf16.mxu0 0
        %10234 = vmatpush1.bf16.msra.mxu0 0
        %10235 = vmatprep.subr.bf16.mxu0 %v10070
        %10236 = vmatpush1.bf16.msra.mxu0 %v10067
        %10237 = vmatprep.subr.bf16.mxu0 %v9980
        %10238 = vmatpush1.bf16.msra.mxu0 %v9979
        %10239 = vmatprep.subr.bf16.mxu0 %v9962
        %10240 = vmatpush1.bf16.msra.mxu0 %v9961
        %10241 = vmatprep.subr.bf16.mxu0 0
        %10242 = vmatpush2.bf16.msra.mxu0 0
        %10243 = vmatprep.subr.bf16.mxu0 0
        %10244 = vmatpush2.bf16.msra.mxu0 0
        %10245 = vmatprep.subr.bf16.mxu0 0
        %10246 = vmatpush2.bf16.msra.mxu0 0
        %10247 = vmatprep.subr.bf16.mxu0 0
        %10248 = vmatpush2.bf16.msra.mxu0 0
        %10249 = vmatprep.subr.bf16.mxu0 0
        %10250 = vmatpush2.bf16.msra.mxu0 0
        %10251 = vmatprep.subr.bf16.mxu0 0
        %10252 = vmatpush2.bf16.msra.mxu0 0
        %10253 = vmatprep.subr.bf16.mxu0 0
        %10254 = vmatpush2.bf16.msra.mxu0 0
        %10255 = vmatprep.subr.bf16.mxu0 0
        %10256 = vmatpush2.bf16.msra.mxu0 0
        %10257 = vmatprep.mubr.bf16.mxu0 0
        %10258 = vmatmul.mubr.bf16.gmra.mxu0 %v10046
        %v10259 = vpop.f32.mrf.mxu0
        %v10260 = vadd.f32 0.0, %v10259
        %v10261 = vpop.f32.mrf.mxu0
        %v10262 = vadd.f32 0.0, %v10261
        %v10263 = vpop.f32.mrf.mxu0
        %v10264 = vpop.f32.mrf.mxu0
        %10265 = vdwg.mxu0
        %10266 = vmatprep.subr.bf16.mxu0 0
        %10267 = vmatpush1.bf16.msra.mxu0 0
        %10268 = vmatprep.subr.bf16.mxu0 0
        %10269 = vmatpush1.bf16.msra.mxu0 0
        %10270 = vmatprep.subr.bf16.mxu0 0
        %10271 = vmatpush1.bf16.msra.mxu0 0
        %10272 = vmatprep.subr.bf16.mxu0 0
        %10273 = vmatpush1.bf16.msra.mxu0 0
        %10274 = vmatprep.subr.bf16.mxu0 0
        %10275 = vmatpush1.bf16.msra.mxu0 0
        %10276 = vmatprep.subr.bf16.mxu0 %v10076
        %10277 = vmatpush1.bf16.msra.mxu0 %v10073
        %10278 = vmatprep.subr.bf16.mxu0 %v9982
        %10279 = vmatpush1.bf16.msra.mxu0 %v9981
        %10280 = vmatprep.subr.bf16.mxu0 %v9964
        %10281 = vmatpush1.bf16.msra.mxu0 %v9963
        %10282 = vmatprep.subr.bf16.mxu0 0
        %10283 = vmatpush2.bf16.msra.mxu0 0
        %10284 = vmatprep.subr.bf16.mxu0 0
        %10285 = vmatpush2.bf16.msra.mxu0 0
        %10286 = vmatprep.subr.bf16.mxu0 0
        %10287 = vmatpush2.bf16.msra.mxu0 0
        %10288 = vmatprep.subr.bf16.mxu0 0
        %10289 = vmatpush2.bf16.msra.mxu0 0
        %10290 = vmatprep.subr.bf16.mxu0 0
        %10291 = vmatpush2.bf16.msra.mxu0 0
        %10292 = vmatprep.subr.bf16.mxu0 0
        %10293 = vmatpush2.bf16.msra.mxu0 0
        %10294 = vmatprep.subr.bf16.mxu0 0
        %10295 = vmatpush2.bf16.msra.mxu0 0
        %10296 = vmatprep.subr.bf16.mxu0 0
        %10297 = vmatpush2.bf16.msra.mxu0 0
        %10298 = vmatprep.mubr.bf16.mxu0 0
        %10299 = vmatmul.mubr.bf16.gmra.mxu0 %v10046
        %v10300 = vpop.f32.mrf.mxu0
        %v10301 = vadd.f32 0.0, %v10300
        %v10302 = vpop.f32.mrf.mxu0
        %v10303 = vadd.f32 0.0, %v10302
        %v10304 = vpop.f32.mrf.mxu0
        %v10305 = vpop.f32.mrf.mxu0
        %10306 = vdwg.mxu0
        %10307 = vmatprep.subr.bf16.mxu0 0
        %10308 = vmatpush1.bf16.msra.mxu0 0
        %10309 = vmatprep.subr.bf16.mxu0 0
        %10310 = vmatpush1.bf16.msra.mxu0 0
        %10311 = vmatprep.subr.bf16.mxu0 0
        %10312 = vmatpush1.bf16.msra.mxu0 0
        %10313 = vmatprep.subr.bf16.mxu0 0
        %10314 = vmatpush1.bf16.msra.mxu0 0
        %10315 = vmatprep.subr.bf16.mxu0 0
        %10316 = vmatpush1.bf16.msra.mxu0 0
        %10317 = vmatprep.subr.bf16.mxu0 %v10082
        %10318 = vmatpush1.bf16.msra.mxu0 %v10079
        %10319 = vmatprep.subr.bf16.mxu0 %v9984
        %10320 = vmatpush1.bf16.msra.mxu0 %v9983
        %10321 = vmatprep.subr.bf16.mxu0 %v9966
        %10322 = vmatpush1.bf16.msra.mxu0 %v9965
        %10323 = vmatprep.subr.bf16.mxu0 0
        %10324 = vmatpush2.bf16.msra.mxu0 0
        %10325 = vmatprep.subr.bf16.mxu0 0
        %10326 = vmatpush2.bf16.msra.mxu0 0
        %10327 = vmatprep.subr.bf16.mxu0 0
        %10328 = vmatpush2.bf16.msra.mxu0 0
        %10329 = vmatprep.subr.bf16.mxu0 0
        %10330 = vmatpush2.bf16.msra.mxu0 0
        %10331 = vmatprep.subr.bf16.mxu0 0
        %10332 = vmatpush2.bf16.msra.mxu0 0
        %10333 = vmatprep.subr.bf16.mxu0 0
        %10334 = vmatpush2.bf16.msra.mxu0 0
        %10335 = vmatprep.subr.bf16.mxu0 0
        %10336 = vmatpush2.bf16.msra.mxu0 0
        %10337 = vmatprep.subr.bf16.mxu0 0
        %10338 = vmatpush2.bf16.msra.mxu0 0
        %10339 = vmatprep.mubr.bf16.mxu0 0
        %10340 = vmatmul.mubr.bf16.gmra.mxu0 %v10046
        %v10341 = vpop.f32.mrf.mxu0
        %v10342 = vadd.f32 0.0, %v10341
        %v10343 = vpop.f32.mrf.mxu0
        %v10344 = vadd.f32 0.0, %v10343
        %v10345 = vpop.f32.mrf.mxu0
        %v10346 = vpop.f32.mrf.mxu0
        %10347 = vdwg.mxu0
        %10348 = vmatprep.subr.bf16.mxu0 0
        %10349 = vmatpush1.bf16.msra.mxu0 0
        %10350 = vmatprep.subr.bf16.mxu0 0
        %10351 = vmatpush1.bf16.msra.mxu0 0
        %10352 = vmatprep.subr.bf16.mxu0 0
        %10353 = vmatpush1.bf16.msra.mxu0 0
        %10354 = vmatprep.subr.bf16.mxu0 0
        %10355 = vmatpush1.bf16.msra.mxu0 0
        %10356 = vmatprep.subr.bf16.mxu0 0
        %10357 = vmatpush1.bf16.msra.mxu0 0
        %10358 = vmatprep.subr.bf16.mxu0 %v10088
        %10359 = vmatpush1.bf16.msra.mxu0 %v10085
        %10360 = vmatprep.subr.bf16.mxu0 %v9986
        %10361 = vmatpush1.bf16.msra.mxu0 %v9985
        %10362 = vmatprep.subr.bf16.mxu0 %v9968
        %10363 = vmatpush1.bf16.msra.mxu0 %v9967
        %10364 = vmatprep.subr.bf16.mxu0 0
        %10365 = vmatpush2.bf16.msra.mxu0 0
        %10366 = vmatprep.subr.bf16.mxu0 0
        %10367 = vmatpush2.bf16.msra.mxu0 0
        %10368 = vmatprep.subr.bf16.mxu0 0
        %10369 = vmatpush2.bf16.msra.mxu0 0
        %10370 = vmatprep.subr.bf16.mxu0 0
        %10371 = vmatpush2.bf16.msra.mxu0 0
        %10372 = vmatprep.subr.bf16.mxu0 0
        %10373 = vmatpush2.bf16.msra.mxu0 0
        %10374 = vmatprep.subr.bf16.mxu0 0
        %10375 = vmatpush2.bf16.msra.mxu0 0
        %10376 = vmatprep.subr.bf16.mxu0 0
        %10377 = vmatpush2.bf16.msra.mxu0 0
        %10378 = vmatprep.subr.bf16.mxu0 0
        %10379 = vmatpush2.bf16.msra.mxu0 0
        %10380 = vmatprep.mubr.bf16.mxu0 0
        %10381 = vmatmul.mubr.bf16.gmra.mxu0 %v10046
        %v10382 = vpop.f32.mrf.mxu0
        %v10383 = vadd.f32 0.0, %v10382
        %v10384 = vpop.f32.mrf.mxu0
        %v10385 = vadd.f32 0.0, %v10384
        %v10386 = vpop.f32.mrf.mxu0
        %v10387 = vpop.f32.mrf.mxu0
        %10388 = vdwg.mxu0
        %10389 = vmatprep.subr.bf16.mxu0 0
        %10390 = vmatpush1.bf16.msra.mxu0 0
        %10391 = vmatprep.subr.bf16.mxu0 0
        %10392 = vmatpush1.bf16.msra.mxu0 0
        %10393 = vmatprep.subr.bf16.mxu0 0
        %10394 = vmatpush1.bf16.msra.mxu0 0
        %10395 = vmatprep.subr.bf16.mxu0 0
        %10396 = vmatpush1.bf16.msra.mxu0 0
        %10397 = vmatprep.subr.bf16.mxu0 0
        %10398 = vmatpush1.bf16.msra.mxu0 0
        %10399 = vmatprep.subr.bf16.mxu0 %v10094
        %10400 = vmatpush1.bf16.msra.mxu0 %v10091
        %10401 = vmatprep.subr.bf16.mxu0 %v9988
        %10402 = vmatpush1.bf16.msra.mxu0 %v9987
        %10403 = vmatprep.subr.bf16.mxu0 %v9970
        %10404 = vmatpush1.bf16.msra.mxu0 %v9969
        %10405 = vmatprep.subr.bf16.mxu0 0
        %10406 = vmatpush2.bf16.msra.mxu0 0
        %10407 = vmatprep.subr.bf16.mxu0 0
        %10408 = vmatpush2.bf16.msra.mxu0 0
        %10409 = vmatprep.subr.bf16.mxu0 0
        %10410 = vmatpush2.bf16.msra.mxu0 0
        %10411 = vmatprep.subr.bf16.mxu0 0
        %10412 = vmatpush2.bf16.msra.mxu0 0
        %10413 = vmatprep.subr.bf16.mxu0 0
        %10414 = vmatpush2.bf16.msra.mxu0 0
        %10415 = vmatprep.subr.bf16.mxu0 0
        %10416 = vmatpush2.bf16.msra.mxu0 0
        %10417 = vmatprep.subr.bf16.mxu0 0
        %10418 = vmatpush2.bf16.msra.mxu0 0
        %10419 = vmatprep.subr.bf16.mxu0 0
        %10420 = vmatpush2.bf16.msra.mxu0 0
        %10421 = vmatprep.mubr.bf16.mxu0 0
        %10422 = vmatmul.mubr.bf16.gmra.mxu0 %v10046
        %v10423 = vpop.f32.mrf.mxu0
        %v10424 = vadd.f32 0.0, %v10423
        %v10425 = vpop.f32.mrf.mxu0
        %v10426 = vadd.f32 0.0, %v10425
        %v10427 = vpop.f32.mrf.mxu0
        %v10428 = vpop.f32.mrf.mxu0
        %10429 = vdwg.mxu0
        %10430 = vmatprep.subr.bf16.mxu0 0
        %10431 = vmatpush1.bf16.msra.mxu0 0
        %10432 = vmatprep.subr.bf16.mxu0 0
        %10433 = vmatpush1.bf16.msra.mxu0 0
        %10434 = vmatprep.subr.bf16.mxu0 0
        %10435 = vmatpush1.bf16.msra.mxu0 0
        %10436 = vmatprep.subr.bf16.mxu0 0
        %10437 = vmatpush1.bf16.msra.mxu0 0
        %10438 = vmatprep.subr.bf16.mxu0 0
        %10439 = vmatpush1.bf16.msra.mxu0 0
        %10440 = vmatprep.subr.bf16.mxu0 %v10100
        %10441 = vmatpush1.bf16.msra.mxu0 %v10097
        %10442 = vmatprep.subr.bf16.mxu0 %v9990
        %10443 = vmatpush1.bf16.msra.mxu0 %v9989
        %10444 = vmatprep.subr.bf16.mxu0 %v9972
        %10445 = vmatpush1.bf16.msra.mxu0 %v9971
        %10446 = vmatprep.subr.bf16.mxu0 0
        %10447 = vmatpush2.bf16.msra.mxu0 0
        %10448 = vmatprep.subr.bf16.mxu0 0
        %10449 = vmatpush2.bf16.msra.mxu0 0
        %10450 = vmatprep.subr.bf16.mxu0 0
        %10451 = vmatpush2.bf16.msra.mxu0 0
        %10452 = vmatprep.subr.bf16.mxu0 0
        %10453 = vmatpush2.bf16.msra.mxu0 0
        %10454 = vmatprep.subr.bf16.mxu0 0
        %10455 = vmatpush2.bf16.msra.mxu0 0
        %10456 = vmatprep.subr.bf16.mxu0 0
        %10457 = vmatpush2.bf16.msra.mxu0 0
        %10458 = vmatprep.subr.bf16.mxu0 0
        %10459 = vmatpush2.bf16.msra.mxu0 0
        %10460 = vmatprep.subr.bf16.mxu0 0
        %10461 = vmatpush2.bf16.msra.mxu0 0
        %10462 = vmatprep.mubr.bf16.mxu0 0
        %10463 = vmatmul.mubr.bf16.gmra.mxu0 %v10046
        %v10464 = vpop.f32.mrf.mxu0
        %v10465 = vadd.f32 0.0, %v10464
        %v10466 = vpop.f32.mrf.mxu0
        %v10467 = vadd.f32 0.0, %v10466
        %v10468 = vpop.f32.mrf.mxu0
        %v10469 = vpop.f32.mrf.mxu0
        %10470 = vdwg.mxu0
        %10471 = vst [vmem:[%s1158] sm:$0x1f] %v10137
        %10472 = vst [vmem:[%s1158 + $0x8] sm:$0x1f] %v10139
        %10473 = vst [vmem:[%s1158 + $0x10] sm:$0x1f] %v10178
        %10474 = vst [vmem:[%s1158 + $0x18] sm:$0x1f] %v10180
        %10475 = vst [vmem:[%s1158 + $0x20] sm:$0x1f] %v10219
        %10476 = vst [vmem:[%s1158 + $0x28] sm:$0x1f] %v10221
        %10477 = vst [vmem:[%s1158 + $0x30] sm:$0x1f] %v10260
        %10478 = vst [vmem:[%s1158 + $0x38] sm:$0x1f] %v10262
        %10479 = vst [vmem:[%s1158 + $0x40] sm:$0x1f] %v10301
        %10480 = vst [vmem:[%s1158 + $0x48] sm:$0x1f] %v10303
        %10481 = vst [vmem:[%s1158 + $0x50] sm:$0x1f] %v10342
        %10482 = vst [vmem:[%s1158 + $0x58] sm:$0x1f] %v10344
        %10483 = vst [vmem:[%s1158 + $0x60] sm:$0x1f] %v10383
        %10484 = vst [vmem:[%s1158 + $0x68] sm:$0x1f] %v10385
        %10485 = vst [vmem:[%s1158 + $0x70] sm:$0x1f] %v10424
        %10486 = vst [vmem:[%s1158 + $0x78] sm:$0x1f] %v10426
        %10487 = vst [vmem:[%s1158 + $0x80] sm:$0x1f] %v10465
        %10488 = vst [vmem:[%s1158 + $0x88] sm:$0x1f] %v10467
        %p10489 = scmp.lt.s32.totalorder %s84, 1
        %s10490 = scalar_select %p10489, %s84, 1
        %s10491 = smul.addr %s10490, 18
        %s10492 = smul.addr %s10491, 8
        %s10493 = scalar_lea.vmem %s67, %s10492
        // Predicated region
        $region193: #{pspnet_forward.1} parent=151 // pred_check
          %p10494 = pneg %p800
        $region194: #{pspnet_forward.1} parent=151 // pred_check_branch
          %10496 = sbr.rel (%p10494) target = $region196
        $region195: #{pspnet_forward.1} parent=151 // pred_region
          _
        $region196: #{pspnet_forward.1} parent=151 // pred_fallthru
          _
      $region152: #{pspnet_forward.1} parent=5 // pred_fallthru
        _
      %p10497 = scmp.le.s32.totalorder 2, %s79
      // Predicated region
      $region197: #{pspnet_forward.1} parent=5 // pred_check
        %p10498 = pneg %p10497
      $region198: #{pspnet_forward.1} parent=5 // pred_check_branch
        %10500 = sbr.rel (%p10498) target = $region200
      $region199: #{pspnet_forward.1} parent=5 // pred_region
        %s10501 = ssub.s32 %s79, 2
        // Predicated region
        $region201: #{pspnet_forward.1} parent=199 // pred_check
          %p10502 = pneg %p806
        $region202: #{pspnet_forward.1} parent=199 // pred_check_branch
          %10504 = sbr.rel (%p10502) target = $region204
        $region203: #{pspnet_forward.1} parent=199 // pred_region
          %p10505 = scmp.lt.s32.totalorder %s85, 1
          %s10506 = scalar_select %p10505, %s85, 1
          %s10507 = smul.addr %s10506, 18
          %s10508 = smul.addr %s10507, 8
          %s10509 = scalar_lea.vmem %s67, %s10508
        $region204: #{pspnet_forward.1} parent=199 // pred_fallthru
          _
      $region200: #{pspnet_forward.1} parent=5 // pred_fallthru
        _
    $region6: #{pspnet_forward.1} parent=1 // loop_footer
      %s83 = sadd.s32 1, %s79
    $region7: #{pspnet_forward.1} parent=1 // loop_footer_branch
      %78 = sbr.rel target = $region3
    $region8: #{pspnet_forward.1} parent=1 // loop_exit
      _
    %10510 = vsyncpa [#allocation3], 1
    %s10511 = scalar_lea.sflag [#allocation3], 1
    %10512 = vsyncpa %s10511, 1
    %10513 = vsyncpa [#allocation5], 1
    %10514 = vsyncpa [#allocation8], 1
    %10515 = vsyncpa [#allocation11], 1
    %10516 = vsyncpa [#allocation14], 1
    %10517 = vsyncpa [#allocation17], 1

</llo_original>
